<compile_context>
chip_gen: v5e
topology: v5e:2x2
jax: 0.10.0
libtpu: 0.0.40
codegen_flags: <defaults>
</compile_context>

<pallas_src>
import functools

import jax
import jax.numpy as jnp
import numpy as np
from jax.experimental import pallas as pl
from jax.experimental.pallas import tpu as pltpu

BN_EPS = 1e-5
LANE = 128
# Conservative scoped-VMEM limit: above the v5e default (16 MiB), well under v7x's 64 MiB/TC.
_VMEM_LIMIT = 32 * 1024 * 1024


def _round_up(x, m):
    return (x + m - 1) // m * m


# ----------------------------- Pallas kernels ------------------------------ #

def _colsum_kernel(x_ref, o_ref):
    # Per-channel sum, accumulated across row tiles (reduction grid axis).
    @pl.when(pl.program_id(0) == 0)
    def _():
        o_ref[...] = jnp.zeros_like(o_ref)
    o_ref[...] += jnp.sum(x_ref[...], axis=0, keepdims=True)


def _colsqdev_kernel(x_ref, mean_ref, o_ref):
    # Per-channel centered sum of squares (second pass of two-pass variance).
    @pl.when(pl.program_id(0) == 0)
    def _():
        o_ref[...] = jnp.zeros_like(o_ref)
    d = x_ref[...] - mean_ref[...]
    o_ref[...] += jnp.sum(d * d, axis=0, keepdims=True)


def _bn_apply_kernel(x_ref, ss_ref, o_ref):
    # y = x * scale + shift  (per-channel affine of batch-normalization), bf16 output.
    o_ref[...] = (x_ref[...] * ss_ref[0:1, :] + ss_ref[1:2, :]).astype(o_ref.dtype)


def _conv3x3_kernel(x_ref, w_ref, cst_ref, o_ref, *, tr, W, single_row_tile):
    # x_ref  : (Hp, Wp, Cin_p)   spatially zero-padded full image, bf16
    # w_ref  : (9, Cin_p, Cout_p) bf16 weights, tap-major (dy*3 + dx)
    # cst_ref: (2, Cout_p) f32    row0 = bias, row1 = PReLU negative slope (possibly fused)
    # o_ref  : (tr, W, Cout_p)    one row-tile of the output
    cout = o_ref.shape[-1]
    cin = x_ref.shape[-1]
    r0 = 0 if single_row_tile else pl.program_id(1) * tr

    acc = jnp.zeros((tr * W, cout), jnp.float32)
    for dy in range(3):
        rows = x_ref[pl.ds(r0 + dy, tr), :, :]          # (tr, Wp, Cin_p)
        for dx in range(3):
            tap = rows[:, dx:dx + W, :].reshape(tr * W, cin)
            acc = acc + jnp.dot(tap, w_ref[dy * 3 + dx],
                                preferred_element_type=jnp.float32)

    y = acc + cst_ref[0:1, :]
    y = jnp.where(y > 0, y, cst_ref[1:2, :] * y)        # PReLU (fused slope for conv2)
    o_ref[...] = y.reshape(tr, W, cout).astype(o_ref.dtype)


# ----------------------------- tile selection ------------------------------ #

def _choose_bn_rows(M, Cp, budget=4 * 1024 * 1024, max_rows=1024):
    rows = max(8, min(max_rows, budget // (Cp * 4)))
    rows = min(rows, _round_up(M, 8))
    rows = max(8, (rows // 8) * 8)
    return rows, _round_up(M, rows)


def _choose_row_tile(H, W, Cp, budget=2 * 1024 * 1024):
    # Keep each (tr, W, Cp) block ~<= budget so double-buffered tiles fit comfortably
    # within the scoped VMEM limit on every generation (incl. v7x's 64 MiB/TC).
    tr = max(1, min(H, budget // (W * Cp * 2)))
    while H % tr:
        tr -= 1
    return tr


# ----------------------------- pallas_call wrappers ------------------------ #

def _batchnorm(x2d, gamma_p, beta_p):
    """Training-mode BatchNorm2d over flattened (rows, C) data. Returns bf16 rows."""
    M, Cp = x2d.shape
    rows, Mp = _choose_bn_rows(M, Cp)
    x2d_p = jnp.pad(x2d, ((0, Mp - M), (0, 0))) if Mp != M else x2d
    T = Mp // rows

    red_params = pltpu.CompilerParams(dimension_semantics=("arbitrary",),
                                      vmem_limit_bytes=_VMEM_LIMIT)

    colsum = pl.pallas_call(
        _colsum_kernel,
        out_shape=jax.ShapeDtypeStruct((1, Cp), jnp.float32),
        grid=(T,),
        in_specs=[pl.BlockSpec((rows, Cp), lambda i: (i, 0))],
        out_specs=pl.BlockSpec((1, Cp), lambda i: (0, 0)),
        compiler_params=red_params,
    )(x2d_p)
    mean = colsum / M

    sqdev = pl.pallas_call(
        _colsqdev_kernel,
        out_shape=jax.ShapeDtypeStruct((1, Cp), jnp.float32),
        grid=(T,),
        in_specs=[pl.BlockSpec((rows, Cp), lambda i: (i, 0)),
                  pl.BlockSpec((1, Cp), lambda i: (0, 0))],
        out_specs=pl.BlockSpec((1, Cp), lambda i: (0, 0)),
        compiler_params=red_params,
    )(x2d_p, mean)
    # Remove the zero-padded rows' contribution ((0 - mean)^2 each) -> exact two-pass var.
    sqdev = sqdev - (Mp - M) * mean * mean
    var = sqdev / M                                    # biased, like torch training BN

    scale = gamma_p.reshape(1, Cp) * jax.lax.rsqrt(var + BN_EPS)
    shift = beta_p.reshape(1, Cp) - mean * scale
    ss = jnp.concatenate([scale, shift], axis=0)       # (2, Cp) f32

    xn = pl.pallas_call(
        _bn_apply_kernel,
        out_shape=jax.ShapeDtypeStruct((Mp, Cp), jnp.bfloat16),
        grid=(T,),
        in_specs=[pl.BlockSpec((rows, Cp), lambda i: (i, 0)),
                  pl.BlockSpec((2, Cp), lambda i: (0, 0))],
        out_specs=pl.BlockSpec((rows, Cp), lambda i: (i, 0)),
        compiler_params=pltpu.CompilerParams(dimension_semantics=("parallel",),
                                             vmem_limit_bytes=_VMEM_LIMIT),
    )(x2d_p, ss)
    return xn[:M]


def _conv3x3_prelu(x_nhwc, wmat, cst, out_dtype):
    """3x3 conv (pad=1) + bias + PReLU as 9 shifted MXU matmuls per output row tile."""
    N, H, W, Cin_p = x_nhwc.shape
    Cout_p = wmat.shape[-1]
    xp = jnp.pad(x_nhwc, ((0, 0), (1, 1), (1, 1), (0, 0))).astype(jnp.bfloat16)
    Hp, Wp = H + 2, W + 2

    tr = _choose_row_tile(H, W, max(Cin_p, Cout_p))
    T = H // tr
    kernel = functools.partial(_conv3x3_kernel, tr=tr, W=W, single_row_tile=(T == 1))

    out_bytes = jnp.dtype(out_dtype).itemsize
    cost = pl.CostEstimate(
        flops=2 * N * H * W * 9 * Cin_p * Cout_p,
        transcendentals=0,
        bytes_accessed=(N * Hp * Wp * Cin_p * 2 + 9 * Cin_p * Cout_p * 2
                        + N * H * W * Cout_p * out_bytes),
    )

    return pl.pallas_call(
        kernel,
        out_shape=jax.ShapeDtypeStruct((N, H, W, Cout_p), out_dtype),
        grid=(N, T),
        in_specs=[
            # Full padded image per batch element; block index depends only on n, so the
            # DMA is not re-issued across the inner row-tile axis.
            # TODO(synk): for very large H the image block should itself be halo-tiled.
            pl.BlockSpec((None, Hp, Wp, Cin_p), lambda n, t: (n, 0, 0, 0)),
            # Constant operands: same block every step (Pallas skips the re-fetch).
            # TODO(synk): pipeline_mode=pl.Buffered(1) would drop their second buffer.
            pl.BlockSpec((9, Cin_p, Cout_p), lambda n, t: (0, 0, 0)),
            pl.BlockSpec((2, Cout_p), lambda n, t: (0, 0)),
        ],
        out_specs=pl.BlockSpec((None, tr, W, Cout_p), lambda n, t: (n, t, 0, 0)),
        compiler_params=pltpu.CompilerParams(
            dimension_semantics=("parallel", "parallel"),
            vmem_limit_bytes=_VMEM_LIMIT),
        cost_estimate=cost,
    )(xp, wmat, cst)


# ----------------------------- parameter prep (JAX glue) ------------------- #

def _pad_vec(v, cp):
    return jnp.pad(v.astype(jnp.float32), (0, cp - v.shape[0]))


def _prep_weight(w, cin_p, cout_p):
    # torch (Cout, Cin, kh, kw) -> (9, Cin_p, Cout_p) bf16, tap-major (dy*3+dx).
    cout, cin = w.shape[0], w.shape[1]
    wm = jnp.transpose(w, (2, 3, 1, 0)).reshape(9, cin, cout)
    wm = jnp.pad(wm, ((0, 0), (0, cin_p - cin), (0, cout_p - cout)))
    return wm.astype(jnp.bfloat16)


def _prep_bias_slope(bias, slope, cout_p):
    b = _pad_vec(bias, cout_p)
    s = _pad_vec(slope, cout_p)
    return jnp.stack([b, s], axis=0)                   # (2, Cout_p) f32


# ----------------------------- forward -------------------------------------- #

def double_conv_forward(x_nchw, params):
    N, Cin, H, W = x_nchw.shape
    Cout = params["w1"].shape[0]
    Cin_p = _round_up(Cin, LANE)
    Cout_p = _round_up(Cout, LANE)

    # NCHW -> NHWC, channels zero-padded to a lane-dense multiple of 128.
    x = jnp.transpose(x_nchw, (0, 2, 3, 1)).astype(jnp.float32)
    x = jnp.pad(x, ((0, 0), (0, 0), (0, 0), (0, Cin_p - Cin)))

    # BatchNorm2d (training-mode batch stats, biased variance, affine).
    xn2d = _batchnorm(x.reshape(N * H * W, Cin_p),
                      _pad_vec(params["gamma"], Cin_p),
                      _pad_vec(params["beta"], Cin_p))
    xn = xn2d.reshape(N, H, W, Cin_p)

    # Conv1 + PReLU(alpha1)
    w1 = _prep_weight(params["w1"], Cin_p, Cout_p)
    cst1 = _prep_bias_slope(params["b1"], params["alpha1"], Cout_p)
    y = _conv3x3_prelu(xn, w1, cst1, jnp.bfloat16)

    # Conv2 + PReLU(alpha2) + PReLU(alpha3): the two PReLUs fuse into one negative slope
    # (slope = a2*a3 if a2 > 0 else a2; sign analysis covers a2 <= 0).
    a2 = params["alpha2"].astype(jnp.float32)
    a3 = params["alpha3"].astype(jnp.float32)
    fused_slope = jnp.where(a2 > 0, a2 * a3, a2)
    w2 = _prep_weight(params["w2"], Cout_p, Cout_p)
    cst2 = _prep_bias_slope(params["b2"], fused_slope, Cout_p)
    z = _conv3x3_prelu(y, w2, cst2, jnp.float32)

    z = z[..., :Cout]
    return jnp.transpose(z, (0, 3, 1, 2))              # back to NCHW


# ----------------------------- reference (pure JAX) ------------------------ #

def _reference(x_nchw, params):
    x = jnp.transpose(x_nchw, (0, 2, 3, 1)).astype(jnp.float32)
    mean = x.mean(axis=(0, 1, 2))
    var = x.var(axis=(0, 1, 2))                        # biased, like torch training BN
    xn = (x - mean) * jax.lax.rsqrt(var + BN_EPS) * params["gamma"] + params["beta"]

    def conv(inp, w, b):
        out = jax.lax.conv_general_dilated(
            inp, jnp.transpose(w, (2, 3, 1, 0)),
            window_strides=(1, 1), padding="SAME",
            dimension_numbers=("NHWC", "HWIO", "NHWC"),
            precision=jax.lax.Precision.HIGHEST)
        return out + b

    def prelu(v, a):
        return jnp.where(v > 0, v, a * v)

    y = prelu(conv(xn, params["w1"], params["b1"]), params["alpha1"])
    z = conv(y, params["w2"], params["b2"])
    z = prelu(prelu(z, params["alpha2"]), params["alpha3"])
    return jnp.transpose(z, (0, 3, 1, 2))


# ----------------------------- main ---------------------------------------- #

def _init_params(key, cin, cout):
    k1, k2, k3, k4 = jax.random.split(key, 4)
    fan1 = cin * 9
    fan2 = cout * 9
    b1lim = 1.0 / np.sqrt(fan1)
    b2lim = 1.0 / np.sqrt(fan2)
    return {
        "gamma": jnp.ones((cin,), jnp.float32),
        "beta": jnp.zeros((cin,), jnp.float32),
        "w1": jax.random.uniform(k1, (cout, cin, 3, 3), jnp.float32, -b1lim, b1lim),
        "b1": jax.random.uniform(k2, (cout,), jnp.float32, -b1lim, b1lim),
        "alpha1": jnp.full((cout,), 0.25, jnp.float32),
        "w2": jax.random.uniform(k3, (cout, cout, 3, 3), jnp.float32, -b2lim, b2lim),
        "b2": jax.random.uniform(k4, (cout,), jnp.float32, -b2lim, b2lim),
        "alpha2": jnp.full((cout,), 0.25, jnp.float32),
        "alpha3": jnp.full((cout,), 0.25, jnp.float32),
    }


if __name__ == "__main__":
    key = jax.random.PRNGKey(0)
    kx, kp = jax.random.split(key)

    N, Cin, Cout, H, W = 2, 4, 8, 16, 16
    x = jax.random.normal(kx, (N, Cin, H, W), jnp.float32)
    params = _init_params(kp, Cin, Cout)

    out = jax.jit(double_conv_forward)(x, params)
    out = jax.block_until_ready(out)

    ref = _reference(x, params)
    assert out.shape == (N, Cout, H, W), out.shape
    np.testing.assert_allclose(np.asarray(out), np.asarray(ref), rtol=2e-2, atol=2e-2)

    print("KERNEL_OK")
</pallas_src>

<mosaic_0001>
module attributes {stable_mosaic.version = 11 : i64} {
  func.func @_colsum_kernel(%arg0: i32, %arg1: memref<512x128xf32, #tpu.memory_space<vmem>>, %arg2: memref<1x128xf32, #tpu.memory_space<vmem>>) attributes {dimension_semantics = [#tpu.dimension_semantics<arbitrary>], iteration_bounds = array<i64: 1>, scalar_prefetch = 0 : i64, scratch_operands = 0 : i64, tpu.core_type = #tpu.core_type<tc>, window_params = [{transform_indices = @transform_0, window_bounds = array<i64: 512, 128>}, {pipeline_mode = #tpu.pipeline_mode<synchronous>, transform_indices = @transform_1, window_bounds = array<i64: 1, 128>}]} {
    %c0_i32 = arith.constant 0 : i32
    %0 = arith.cmpi eq, %arg0, %c0_i32 : i32
    %1 = arith.extui %0 : i1 to i32
    %c0_i32_0 = arith.constant 0 : i32
    %2 = arith.cmpi ne, %1, %c0_i32_0 : i32
    scf.if %2 {
      %cst_6 = arith.constant 0.000000e+00 : f32
      %9 = vector.broadcast %cst_6 : f32 to vector<1x128xf32>
      %c0_7 = arith.constant 0 : index
      %c0_8 = arith.constant 0 : index
      %10 = vector.load %arg2[%c0_7, %c0_8] : memref<1x128xf32, #tpu.memory_space<vmem>>, vector<1x128xf32>
      tpu.vector_store %arg2[%c0_7, %c0_8], %9 {strides = array<i32>} : memref<1x128xf32, #tpu.memory_space<vmem>>, vector<1x128xf32>,
    } else {
    }
    %c0 = arith.constant 0 : index
    %c0_1 = arith.constant 0 : index
    %3 = vector.load %arg2[%c0, %c0_1] : memref<1x128xf32, #tpu.memory_space<vmem>>, vector<1x128xf32>
    %c0_2 = arith.constant 0 : index
    %c0_3 = arith.constant 0 : index
    %4 = vector.load %arg1[%c0_2, %c0_3] : memref<512x128xf32, #tpu.memory_space<vmem>>, vector<512x128xf32>
    %cst = arith.constant dense<0.000000e+00> : vector<128xf32>
    %5 = vector.multi_reduction <add>, %4, %cst [0] : vector<512x128xf32> to vector<128xf32>
    %6 = vector.shape_cast %5 : vector<128xf32> to vector<1x128xf32>
    %7 = arith.addf %3, %6 : vector<1x128xf32>
    %c0_4 = arith.constant 0 : index
    %c0_5 = arith.constant 0 : index
    %8 = vector.load %arg2[%c0_4, %c0_5] : memref<1x128xf32, #tpu.memory_space<vmem>>, vector<1x128xf32>
    tpu.vector_store %arg2[%c0_4, %c0_5], %7 {strides = array<i32>} : memref<1x128xf32, #tpu.memory_space<vmem>>, vector<1x128xf32>,
    return
  }
  func.func @transform_0(%arg0: i32) -> (i32, i32) {
    %c0_i32 = arith.constant 0 : i32
    %c0_i32_0 = arith.constant 0 : i32
    return %arg0, %c0_i32 : i32, i32
  }
  func.func @transform_1(%arg0: i32) -> (i32, i32) {
    %c0_i32 = arith.constant 0 : i32
    %c0_i32_0 = arith.constant 0 : i32
    %c0_i32_1 = arith.constant 0 : i32
    return %c0_i32, %c0_i32_0 : i32, i32
  }
}

module attributes {stable_mosaic.version = 11 : i64} {
  func.func @_colsqdev_kernel(%arg0: i32, %arg1: memref<512x128xf32, #tpu.memory_space<vmem>>, %arg2: memref<1x128xf32, #tpu.memory_space<vmem>>, %arg3: memref<1x128xf32, #tpu.memory_space<vmem>>) attributes {dimension_semantics = [#tpu.dimension_semantics<arbitrary>], iteration_bounds = array<i64: 1>, scalar_prefetch = 0 : i64, scratch_operands = 0 : i64, tpu.core_type = #tpu.core_type<tc>, window_params = [{transform_indices = @transform_0, window_bounds = array<i64: 512, 128>}, {pipeline_mode = #tpu.pipeline_mode<synchronous>, transform_indices = @transform_1, window_bounds = array<i64: 1, 128>}, {pipeline_mode = #tpu.pipeline_mode<synchronous>, transform_indices = @transform_2, window_bounds = array<i64: 1, 128>}]} {
    %c0_i32 = arith.constant 0 : i32
    %0 = arith.cmpi eq, %arg0, %c0_i32 : i32
    %1 = arith.extui %0 : i1 to i32
    %c0_i32_0 = arith.constant 0 : i32
    %2 = arith.cmpi ne, %1, %c0_i32_0 : i32
    scf.if %2 {
      %cst_8 = arith.constant 0.000000e+00 : f32
      %13 = vector.broadcast %cst_8 : f32 to vector<1x128xf32>
      %c0_9 = arith.constant 0 : index
      %c0_10 = arith.constant 0 : index
      %14 = vector.load %arg3[%c0_9, %c0_10] : memref<1x128xf32, #tpu.memory_space<vmem>>, vector<1x128xf32>
      tpu.vector_store %arg3[%c0_9, %c0_10], %13 {strides = array<i32>} : memref<1x128xf32, #tpu.memory_space<vmem>>, vector<1x128xf32>,
    } else {
    }
    %c0 = arith.constant 0 : index
    %c0_1 = arith.constant 0 : index
    %3 = vector.load %arg1[%c0, %c0_1] : memref<512x128xf32, #tpu.memory_space<vmem>>, vector<512x128xf32>
    %c0_2 = arith.constant 0 : index
    %c0_3 = arith.constant 0 : index
    %4 = vector.load %arg2[%c0_2, %c0_3] : memref<1x128xf32, #tpu.memory_space<vmem>>, vector<1x128xf32>
    %5 = vector.broadcast %4 : vector<1x128xf32> to vector<512x128xf32>
    %6 = arith.subf %3, %5 : vector<512x128xf32>
    %c0_4 = arith.constant 0 : index
    %c0_5 = arith.constant 0 : index
    %7 = vector.load %arg3[%c0_4, %c0_5] : memref<1x128xf32, #tpu.memory_space<vmem>>, vector<1x128xf32>
    %8 = arith.mulf %6, %6 : vector<512x128xf32>
    %cst = arith.constant dense<0.000000e+00> : vector<128xf32>
    %9 = vector.multi_reduction <add>, %8, %cst [0] : vector<512x128xf32> to vector<128xf32>
    %10 = vector.shape_cast %9 : vector<128xf32> to vector<1x128xf32>
    %11 = arith.addf %7, %10 : vector<1x128xf32>
    %c0_6 = arith.constant 0 : index
    %c0_7 = arith.constant 0 : index
    %12 = vector.load %arg3[%c0_6, %c0_7] : memref<1x128xf32, #tpu.memory_space<vmem>>, vector<1x128xf32>
    tpu.vector_store %arg3[%c0_6, %c0_7], %11 {strides = array<i32>} : memref<1x128xf32, #tpu.memory_space<vmem>>, vector<1x128xf32>,
    return
  }
  func.func @transform_0(%arg0: i32) -> (i32, i32) {
    %c0_i32 = arith.constant 0 : i32
    %c0_i32_0 = arith.constant 0 : i32
    return %arg0, %c0_i32 : i32, i32
  }
  func.func @transform_1(%arg0: i32) -> (i32, i32) {
    %c0_i32 = arith.constant 0 : i32
    %c0_i32_0 = arith.constant 0 : i32
    %c0_i32_1 = arith.constant 0 : i32
    return %c0_i32, %c0_i32_0 : i32, i32
  }
  func.func @transform_2(%arg0: i32) -> (i32, i32) {
    %c0_i32 = arith.constant 0 : i32
    %c0_i32_0 = arith.constant 0 : i32
    %c0_i32_1 = arith.constant 0 : i32
    return %c0_i32, %c0_i32_0 : i32, i32
  }
}

module attributes {stable_mosaic.version = 11 : i64} {
  func.func @_bn_apply_kernel(%arg0: i32, %arg1: memref<512x128xf32, #tpu.memory_space<vmem>>, %arg2: memref<2x128xf32, #tpu.memory_space<vmem>>, %arg3: memref<512x128xbf16, #tpu.memory_space<vmem>>) attributes {dimension_semantics = [#tpu.dimension_semantics<parallel>], iteration_bounds = array<i64: 1>, scalar_prefetch = 0 : i64, scratch_operands = 0 : i64, tpu.core_type = #tpu.core_type<tc>, window_params = [{transform_indices = @transform_0, window_bounds = array<i64: 512, 128>}, {pipeline_mode = #tpu.pipeline_mode<synchronous>, transform_indices = @transform_1, window_bounds = array<i64: 2, 128>}, {transform_indices = @transform_2, window_bounds = array<i64: 512, 128>}]} {
    %c0 = arith.constant 0 : index
    %c0_0 = arith.constant 0 : index
    %0 = vector.load %arg1[%c0, %c0_0] : memref<512x128xf32, #tpu.memory_space<vmem>>, vector<512x128xf32>
    %c0_1 = arith.constant 0 : index
    %c0_2 = arith.constant 0 : index
    %1 = vector.load %arg2[%c0_1, %c0_2] : memref<2x128xf32, #tpu.memory_space<vmem>>, vector<1x128xf32>
    %2 = vector.broadcast %1 : vector<1x128xf32> to vector<512x128xf32>
    %3 = arith.mulf %0, %2 : vector<512x128xf32>
    %c1 = arith.constant 1 : index
    %c0_3 = arith.constant 0 : index
    %4 = vector.load %arg2[%c1, %c0_3] : memref<2x128xf32, #tpu.memory_space<vmem>>, vector<1x128xf32>
    %5 = vector.broadcast %4 : vector<1x128xf32> to vector<512x128xf32>
    %6 = arith.addf %3, %5 : vector<512x128xf32>
    %7 = arith.truncf %6 : vector<512x128xf32> to vector<512x128xbf16>
    %c0_4 = arith.constant 0 : index
    %c0_5 = arith.constant 0 : index
    %8 = vector.load %arg3[%c0_4, %c0_5] : memref<512x128xbf16, #tpu.memory_space<vmem>>, vector<512x128xbf16>
    tpu.vector_store %arg3[%c0_4, %c0_5], %7 {strides = array<i32>} : memref<512x128xbf16, #tpu.memory_space<vmem>>, vector<512x128xbf16>,
    return
  }
  func.func @transform_0(%arg0: i32) -> (i32, i32) {
    %c0_i32 = arith.constant 0 : i32
    %c0_i32_0 = arith.constant 0 : i32
    return %arg0, %c0_i32 : i32, i32
  }
  func.func @transform_1(%arg0: i32) -> (i32, i32) {
    %c0_i32 = arith.constant 0 : i32
    %c0_i32_0 = arith.constant 0 : i32
    %c0_i32_1 = arith.constant 0 : i32
    return %c0_i32, %c0_i32_0 : i32, i32
  }
  func.func @transform_2(%arg0: i32) -> (i32, i32) {
    %c0_i32 = arith.constant 0 : i32
    %c0_i32_0 = arith.constant 0 : i32
    return %arg0, %c0_i32 : i32, i32
  }
}

module attributes {stable_mosaic.version = 11 : i64} {
  func.func @_conv3x3_kernel(%arg0: i32, %arg1: i32, %arg2: memref<1x18x18x128xbf16, #tpu.memory_space<vmem>>, %arg3: memref<9x128x128xbf16, #tpu.memory_space<vmem>>, %arg4: memref<2x128xf32, #tpu.memory_space<vmem>>, %arg5: memref<1x16x16x128xbf16, #tpu.memory_space<vmem>>) attributes {dimension_semantics = [#tpu.dimension_semantics<parallel>, #tpu.dimension_semantics<parallel>], iteration_bounds = array<i64: 2, 1>, scalar_prefetch = 0 : i64, scratch_operands = 0 : i64, tpu.core_type = #tpu.core_type<tc>, window_params = [{transform_indices = @transform_0, window_bounds = array<i64: 1, 18, 18, 128>}, {pipeline_mode = #tpu.pipeline_mode<synchronous>, transform_indices = @transform_1, window_bounds = array<i64: 9, 128, 128>}, {pipeline_mode = #tpu.pipeline_mode<synchronous>, transform_indices = @transform_2, window_bounds = array<i64: 2, 128>}, {transform_indices = @transform_3, window_bounds = array<i64: 1, 16, 16, 128>}]} {
    %cst = arith.constant 0.000000e+00 : f32
    %0 = vector.broadcast %cst : f32 to vector<256x128xf32>
    %c0 = arith.constant 0 : index
    %c0_0 = arith.constant 0 : index
    %c0_1 = arith.constant 0 : index
    %c0_2 = arith.constant 0 : index
    %1 = vector.load %arg2[%c0, %c0_0, %c0_1, %c0_2] : memref<1x18x18x128xbf16, #tpu.memory_space<vmem>>, vector<1x16x18x128xbf16>
    %2 = vector.shape_cast %1 : vector<1x16x18x128xbf16> to vector<16x18x128xbf16>
    %3 = vector.extract_strided_slice %2 {offsets = [0, 0, 0], sizes = [16, 16, 128], strides = [1, 1, 1]} : vector<16x18x128xbf16> to vector<16x16x128xbf16>
    %4 = vector.shape_cast %3 : vector<16x16x128xbf16> to vector<256x128xbf16>
    %c0_3 = arith.constant 0 : index
    %c0_4 = arith.constant 0 : index
    %c0_5 = arith.constant 0 : index
    %5 = vector.load %arg3[%c0_3, %c0_4, %c0_5] : memref<9x128x128xbf16, #tpu.memory_space<vmem>>, vector<1x128x128xbf16>
    %6 = vector.shape_cast %5 : vector<1x128x128xbf16> to vector<128x128xbf16>
    %cst_6 = arith.constant dense<0.000000e+00> : vector<256x128xf32>
    %7 = tpu.matmul %4, %6, %cst_6 {dimension_numbers = #tpu.dot_dimension_numbers<[1], [0], [0], [1], [0, 0, 1, 1], [], []>} : vector<256x128xbf16>, vector<128x128xbf16>, vector<256x128xf32> -> vector<256x128xf32>
    %8 = arith.addf %0, %7 : vector<256x128xf32>
    %9 = vector.extract_strided_slice %2 {offsets = [0, 1, 0], sizes = [16, 16, 128], strides = [1, 1, 1]} : vector<16x18x128xbf16> to vector<16x16x128xbf16>
    %10 = vector.shape_cast %9 : vector<16x16x128xbf16> to vector<256x128xbf16>
    %c1 = arith.constant 1 : index
    %c0_7 = arith.constant 0 : index
    %c0_8 = arith.constant 0 : index
    %11 = vector.load %arg3[%c1, %c0_7, %c0_8] : memref<9x128x128xbf16, #tpu.memory_space<vmem>>, vector<1x128x128xbf16>
    %12 = vector.shape_cast %11 : vector<1x128x128xbf16> to vector<128x128xbf16>
    %cst_9 = arith.constant dense<0.000000e+00> : vector<256x128xf32>
    %13 = tpu.matmul %10, %12, %cst_9 {dimension_numbers = #tpu.dot_dimension_numbers<[1], [0], [0], [1], [0, 0, 1, 1], [], []>} : vector<256x128xbf16>, vector<128x128xbf16>, vector<256x128xf32> -> vector<256x128xf32>
    %14 = arith.addf %8, %13 : vector<256x128xf32>
    %15 = vector.extract_strided_slice %2 {offsets = [0, 2, 0], sizes = [16, 16, 128], strides = [1, 1, 1]} : vector<16x18x128xbf16> to vector<16x16x128xbf16>
    %16 = vector.shape_cast %15 : vector<16x16x128xbf16> to vector<256x128xbf16>
    %c2 = arith.constant 2 : index
    %c0_10 = arith.constant 0 : index
    %c0_11 = arith.constant 0 : index
    %17 = vector.load %arg3[%c2, %c0_10, %c0_11] : memref<9x128x128xbf16, #tpu.memory_space<vmem>>, vector<1x128x128xbf16>
    %18 = vector.shape_cast %17 : vector<1x128x128xbf16> to vector<128x128xbf16>
    %cst_12 = arith.constant dense<0.000000e+00> : vector<256x128xf32>
    %19 = tpu.matmul %16, %18, %cst_12 {dimension_numbers = #tpu.dot_dimension_numbers<[1], [0], [0], [1], [0, 0, 1, 1], [], []>} : vector<256x128xbf16>, vector<128x128xbf16>, vector<256x128xf32> -> vector<256x128xf32>
    %20 = arith.addf %14, %19 : vector<256x128xf32>
    %c0_13 = arith.constant 0 : index
    %c1_14 = arith.constant 1 : index
    %c0_15 = arith.constant 0 : index
    %c0_16 = arith.constant 0 : index
    %21 = vector.load %arg2[%c0_13, %c1_14, %c0_15, %c0_16] : memref<1x18x18x128xbf16, #tpu.memory_space<vmem>>, vector<1x16x18x128xbf16>
    %22 = vector.shape_cast %21 : vector<1x16x18x128xbf16> to vector<16x18x128xbf16>
    %23 = vector.extract_strided_slice %22 {offsets = [0, 0, 0], sizes = [16, 16, 128], strides = [1, 1, 1]} : vector<16x18x128xbf16> to vector<16x16x128xbf16>
    %24 = vector.shape_cast %23 : vector<16x16x128xbf16> to vector<256x128xbf16>
    %c3 = arith.constant 3 : index
    %c0_17 = arith.constant 0 : index
    %c0_18 = arith.constant 0 : index
    %25 = vector.load %arg3[%c3, %c0_17, %c0_18] : memref<9x128x128xbf16, #tpu.memory_space<vmem>>, vector<1x128x128xbf16>
    %26 = vector.shape_cast %25 : vector<1x128x128xbf16> to vector<128x128xbf16>
    %cst_19 = arith.constant dense<0.000000e+00> : vector<256x128xf32>
    %27 = tpu.matmul %24, %26, %cst_19 {dimension_numbers = #tpu.dot_dimension_numbers<[1], [0], [0], [1], [0, 0, 1, 1], [], []>} : vector<256x128xbf16>, vector<128x128xbf16>, vector<256x128xf32> -> vector<256x128xf32>
    %28 = arith.addf %20, %27 : vector<256x128xf32>
    %29 = vector.extract_strided_slice %22 {offsets = [0, 1, 0], sizes = [16, 16, 128], strides = [1, 1, 1]} : vector<16x18x128xbf16> to vector<16x16x128xbf16>
    %30 = vector.shape_cast %29 : vector<16x16x128xbf16> to vector<256x128xbf16>
    %c4 = arith.constant 4 : index
    %c0_20 = arith.constant 0 : index
    %c0_21 = arith.constant 0 : index
    %31 = vector.load %arg3[%c4, %c0_20, %c0_21] : memref<9x128x128xbf16, #tpu.memory_space<vmem>>, vector<1x128x128xbf16>
    %32 = vector.shape_cast %31 : vector<1x128x128xbf16> to vector<128x128xbf16>
    %cst_22 = arith.constant dense<0.000000e+00> : vector<256x128xf32>
    %33 = tpu.matmul %30, %32, %cst_22 {dimension_numbers = #tpu.dot_dimension_numbers<[1], [0], [0], [1], [0, 0, 1, 1], [], []>} : vector<256x128xbf16>, vector<128x128xbf16>, vector<256x128xf32> -> vector<256x128xf32>
    %34 = arith.addf %28, %33 : vector<256x128xf32>
    %35 = vector.extract_strided_slice %22 {offsets = [0, 2, 0], sizes = [16, 16, 128], strides = [1, 1, 1]} : vector<16x18x128xbf16> to vector<16x16x128xbf16>
    %36 = vector.shape_cast %35 : vector<16x16x128xbf16> to vector<256x128xbf16>
    %c5 = arith.constant 5 : index
    %c0_23 = arith.constant 0 : index
    %c0_24 = arith.constant 0 : index
    %37 = vector.load %arg3[%c5, %c0_23, %c0_24] : memref<9x128x128xbf16, #tpu.memory_space<vmem>>, vector<1x128x128xbf16>
    %38 = vector.shape_cast %37 : vector<1x128x128xbf16> to vector<128x128xbf16>
    %cst_25 = arith.constant dense<0.000000e+00> : vector<256x128xf32>
    %39 = tpu.matmul %36, %38, %cst_25 {dimension_numbers = #tpu.dot_dimension_numbers<[1], [0], [0], [1], [0, 0, 1, 1], [], []>} : vector<256x128xbf16>, vector<128x128xbf16>, vector<256x128xf32> -> vector<256x128xf32>
    %40 = arith.addf %34, %39 : vector<256x128xf32>
    %c0_26 = arith.constant 0 : index
    %c2_27 = arith.constant 2 : index
    %c0_28 = arith.constant 0 : index
    %c0_29 = arith.constant 0 : index
    %41 = vector.load %arg2[%c0_26, %c2_27, %c0_28, %c0_29] : memref<1x18x18x128xbf16, #tpu.memory_space<vmem>>, vector<1x16x18x128xbf16>
    %42 = vector.shape_cast %41 : vector<1x16x18x128xbf16> to vector<16x18x128xbf16>
    %43 = vector.extract_strided_slice %42 {offsets = [0, 0, 0], sizes = [16, 16, 128], strides = [1, 1, 1]} : vector<16x18x128xbf16> to vector<16x16x128xbf16>
    %44 = vector.shape_cast %43 : vector<16x16x128xbf16> to vector<256x128xbf16>
    %c6 = arith.constant 6 : index
    %c0_30 = arith.constant 0 : index
    %c0_31 = arith.constant 0 : index
    %45 = vector.load %arg3[%c6, %c0_30, %c0_31] : memref<9x128x128xbf16, #tpu.memory_space<vmem>>, vector<1x128x128xbf16>
    %46 = vector.shape_cast %45 : vector<1x128x128xbf16> to vector<128x128xbf16>
    %cst_32 = arith.constant dense<0.000000e+00> : vector<256x128xf32>
    %47 = tpu.matmul %44, %46, %cst_32 {dimension_numbers = #tpu.dot_dimension_numbers<[1], [0], [0], [1], [0, 0, 1, 1], [], []>} : vector<256x128xbf16>, vector<128x128xbf16>, vector<256x128xf32> -> vector<256x128xf32>
    %48 = arith.addf %40, %47 : vector<256x128xf32>
    %49 = vector.extract_strided_slice %42 {offsets = [0, 1, 0], sizes = [16, 16, 128], strides = [1, 1, 1]} : vector<16x18x128xbf16> to vector<16x16x128xbf16>
    %50 = vector.shape_cast %49 : vector<16x16x128xbf16> to vector<256x128xbf16>
    %c7 = arith.constant 7 : index
    %c0_33 = arith.constant 0 : index
    %c0_34 = arith.constant 0 : index
    %51 = vector.load %arg3[%c7, %c0_33, %c0_34] : memref<9x128x128xbf16, #tpu.memory_space<vmem>>, vector<1x128x128xbf16>
    %52 = vector.shape_cast %51 : vector<1x128x128xbf16> to vector<128x128xbf16>
    %cst_35 = arith.constant dense<0.000000e+00> : vector<256x128xf32>
    %53 = tpu.matmul %50, %52, %cst_35 {dimension_numbers = #tpu.dot_dimension_numbers<[1], [0], [0], [1], [0, 0, 1, 1], [], []>} : vector<256x128xbf16>, vector<128x128xbf16>, vector<256x128xf32> -> vector<256x128xf32>
    %54 = arith.addf %48, %53 : vector<256x128xf32>
    %55 = vector.extract_strided_slice %42 {offsets = [0, 2, 0], sizes = [16, 16, 128], strides = [1, 1, 1]} : vector<16x18x128xbf16> to vector<16x16x128xbf16>
    %56 = vector.shape_cast %55 : vector<16x16x128xbf16> to vector<256x128xbf16>
    %c8 = arith.constant 8 : index
    %c0_36 = arith.constant 0 : index
    %c0_37 = arith.constant 0 : index
    %57 = vector.load %arg3[%c8, %c0_36, %c0_37] : memref<9x128x128xbf16, #tpu.memory_space<vmem>>, vector<1x128x128xbf16>
    %58 = vector.shape_cast %57 : vector<1x128x128xbf16> to vector<128x128xbf16>
    %cst_38 = arith.constant dense<0.000000e+00> : vector<256x128xf32>
    %59 = tpu.matmul %56, %58, %cst_38 {dimension_numbers = #tpu.dot_dimension_numbers<[1], [0], [0], [1], [0, 0, 1, 1], [], []>} : vector<256x128xbf16>, vector<128x128xbf16>, vector<256x128xf32> -> vector<256x128xf32>
    %60 = arith.addf %54, %59 : vector<256x128xf32>
    %c0_39 = arith.constant 0 : index
    %c0_40 = arith.constant 0 : index
    %61 = vector.load %arg4[%c0_39, %c0_40] : memref<2x128xf32, #tpu.memory_space<vmem>>, vector<1x128xf32>
    %62 = vector.broadcast %61 : vector<1x128xf32> to vector<256x128xf32>
    %63 = arith.addf %60, %62 : vector<256x128xf32>
    %cst_41 = arith.constant 0.000000e+00 : f32
    %64 = vector.broadcast %cst_41 : f32 to vector<256x128xf32>
    %65 = arith.cmpf ogt, %63, %64 : vector<256x128xf32>
    %c1_42 = arith.constant 1 : index
    %c0_43 = arith.constant 0 : index
    %66 = vector.load %arg4[%c1_42, %c0_43] : memref<2x128xf32, #tpu.memory_space<vmem>>, vector<1x128xf32>
    %67 = vector.broadcast %66 : vector<1x128xf32> to vector<256x128xf32>
    %68 = arith.mulf %67, %63 : vector<256x128xf32>
    %69 = arith.select %65, %63, %68 : vector<256x128xi1>, vector<256x128xf32>
    %70 = vector.shape_cast %69 : vector<256x128xf32> to vector<16x16x128xf32>
    %71 = arith.truncf %70 : vector<16x16x128xf32> to vector<16x16x128xbf16>
    %c0_44 = arith.constant 0 : index
    %c0_45 = arith.constant 0 : index
    %c0_46 = arith.constant 0 : index
    %c0_47 = arith.constant 0 : index
    %72 = vector.load %arg5[%c0_44, %c0_45, %c0_46, %c0_47] : memref<1x16x16x128xbf16, #tpu.memory_space<vmem>>, vector<1x16x16x128xbf16>
    %73 = vector.shape_cast %72 : vector<1x16x16x128xbf16> to vector<16x16x128xbf16>
    %74 = vector.shape_cast %71 : vector<16x16x128xbf16> to vector<1x16x16x128xbf16>
    tpu.vector_store %arg5[%c0_44, %c0_45, %c0_46, %c0_47], %74 {strides = array<i32>} : memref<1x16x16x128xbf16, #tpu.memory_space<vmem>>, vector<1x16x16x128xbf16>,
    return
  }
  func.func @transform_0(%arg0: i32, %arg1: i32) -> (i32, i32, i32, i32) {
    %c0_i32 = arith.constant 0 : i32
    %c0_i32_0 = arith.constant 0 : i32
    %c0_i32_1 = arith.constant 0 : i32
    %c0_i32_2 = arith.constant 0 : i32
    return %arg0, %c0_i32, %c0_i32_0, %c0_i32_1 : i32, i32, i32, i32
  }
  func.func @transform_1(%arg0: i32, %arg1: i32) -> (i32, i32, i32) {
    %c0_i32 = arith.constant 0 : i32
    %c0_i32_0 = arith.constant 0 : i32
    %c0_i32_1 = arith.constant 0 : i32
    %c0_i32_2 = arith.constant 0 : i32
    return %c0_i32, %c0_i32_0, %c0_i32_1 : i32, i32, i32
  }
  func.func @transform_2(%arg0: i32, %arg1: i32) -> (i32, i32) {
    %c0_i32 = arith.constant 0 : i32
    %c0_i32_0 = arith.constant 0 : i32
    %c0_i32_1 = arith.constant 0 : i32
    return %c0_i32, %c0_i32_0 : i32, i32
  }
  func.func @transform_3(%arg0: i32, %arg1: i32) -> (i32, i32, i32, i32) {
    %c0_i32 = arith.constant 0 : i32
    %c0_i32_0 = arith.constant 0 : i32
    %c0_i32_1 = arith.constant 0 : i32
    return %arg0, %arg1, %c0_i32, %c0_i32_0 : i32, i32, i32, i32
  }
}

module attributes {stable_mosaic.version = 11 : i64} {
  func.func @_conv3x3_kernel(%arg0: i32, %arg1: i32, %arg2: memref<1x18x18x128xbf16, #tpu.memory_space<vmem>>, %arg3: memref<9x128x128xbf16, #tpu.memory_space<vmem>>, %arg4: memref<2x128xf32, #tpu.memory_space<vmem>>, %arg5: memref<1x16x16x128xf32, #tpu.memory_space<vmem>>) attributes {dimension_semantics = [#tpu.dimension_semantics<parallel>, #tpu.dimension_semantics<parallel>], iteration_bounds = array<i64: 2, 1>, scalar_prefetch = 0 : i64, scratch_operands = 0 : i64, tpu.core_type = #tpu.core_type<tc>, window_params = [{transform_indices = @transform_0, window_bounds = array<i64: 1, 18, 18, 128>}, {pipeline_mode = #tpu.pipeline_mode<synchronous>, transform_indices = @transform_1, window_bounds = array<i64: 9, 128, 128>}, {pipeline_mode = #tpu.pipeline_mode<synchronous>, transform_indices = @transform_2, window_bounds = array<i64: 2, 128>}, {transform_indices = @transform_3, window_bounds = array<i64: 1, 16, 16, 128>}]} {
    %cst = arith.constant 0.000000e+00 : f32
    %0 = vector.broadcast %cst : f32 to vector<256x128xf32>
    %c0 = arith.constant 0 : index
    %c0_0 = arith.constant 0 : index
    %c0_1 = arith.constant 0 : index
    %c0_2 = arith.constant 0 : index
    %1 = vector.load %arg2[%c0, %c0_0, %c0_1, %c0_2] : memref<1x18x18x128xbf16, #tpu.memory_space<vmem>>, vector<1x16x18x128xbf16>
    %2 = vector.shape_cast %1 : vector<1x16x18x128xbf16> to vector<16x18x128xbf16>
    %3 = vector.extract_strided_slice %2 {offsets = [0, 0, 0], sizes = [16, 16, 128], strides = [1, 1, 1]} : vector<16x18x128xbf16> to vector<16x16x128xbf16>
    %4 = vector.shape_cast %3 : vector<16x16x128xbf16> to vector<256x128xbf16>
    %c0_3 = arith.constant 0 : index
    %c0_4 = arith.constant 0 : index
    %c0_5 = arith.constant 0 : index
    %5 = vector.load %arg3[%c0_3, %c0_4, %c0_5] : memref<9x128x128xbf16, #tpu.memory_space<vmem>>, vector<1x128x128xbf16>
    %6 = vector.shape_cast %5 : vector<1x128x128xbf16> to vector<128x128xbf16>
    %cst_6 = arith.constant dense<0.000000e+00> : vector<256x128xf32>
    %7 = tpu.matmul %4, %6, %cst_6 {dimension_numbers = #tpu.dot_dimension_numbers<[1], [0], [0], [1], [0, 0, 1, 1], [], []>} : vector<256x128xbf16>, vector<128x128xbf16>, vector<256x128xf32> -> vector<256x128xf32>
    %8 = arith.addf %0, %7 : vector<256x128xf32>
    %9 = vector.extract_strided_slice %2 {offsets = [0, 1, 0], sizes = [16, 16, 128], strides = [1, 1, 1]} : vector<16x18x128xbf16> to vector<16x16x128xbf16>
    %10 = vector.shape_cast %9 : vector<16x16x128xbf16> to vector<256x128xbf16>
    %c1 = arith.constant 1 : index
    %c0_7 = arith.constant 0 : index
    %c0_8 = arith.constant 0 : index
    %11 = vector.load %arg3[%c1, %c0_7, %c0_8] : memref<9x128x128xbf16, #tpu.memory_space<vmem>>, vector<1x128x128xbf16>
    %12 = vector.shape_cast %11 : vector<1x128x128xbf16> to vector<128x128xbf16>
    %cst_9 = arith.constant dense<0.000000e+00> : vector<256x128xf32>
    %13 = tpu.matmul %10, %12, %cst_9 {dimension_numbers = #tpu.dot_dimension_numbers<[1], [0], [0], [1], [0, 0, 1, 1], [], []>} : vector<256x128xbf16>, vector<128x128xbf16>, vector<256x128xf32> -> vector<256x128xf32>
    %14 = arith.addf %8, %13 : vector<256x128xf32>
    %15 = vector.extract_strided_slice %2 {offsets = [0, 2, 0], sizes = [16, 16, 128], strides = [1, 1, 1]} : vector<16x18x128xbf16> to vector<16x16x128xbf16>
    %16 = vector.shape_cast %15 : vector<16x16x128xbf16> to vector<256x128xbf16>
    %c2 = arith.constant 2 : index
    %c0_10 = arith.constant 0 : index
    %c0_11 = arith.constant 0 : index
    %17 = vector.load %arg3[%c2, %c0_10, %c0_11] : memref<9x128x128xbf16, #tpu.memory_space<vmem>>, vector<1x128x128xbf16>
    %18 = vector.shape_cast %17 : vector<1x128x128xbf16> to vector<128x128xbf16>
    %cst_12 = arith.constant dense<0.000000e+00> : vector<256x128xf32>
    %19 = tpu.matmul %16, %18, %cst_12 {dimension_numbers = #tpu.dot_dimension_numbers<[1], [0], [0], [1], [0, 0, 1, 1], [], []>} : vector<256x128xbf16>, vector<128x128xbf16>, vector<256x128xf32> -> vector<256x128xf32>
    %20 = arith.addf %14, %19 : vector<256x128xf32>
    %c0_13 = arith.constant 0 : index
    %c1_14 = arith.constant 1 : index
    %c0_15 = arith.constant 0 : index
    %c0_16 = arith.constant 0 : index
    %21 = vector.load %arg2[%c0_13, %c1_14, %c0_15, %c0_16] : memref<1x18x18x128xbf16, #tpu.memory_space<vmem>>, vector<1x16x18x128xbf16>
    %22 = vector.shape_cast %21 : vector<1x16x18x128xbf16> to vector<16x18x128xbf16>
    %23 = vector.extract_strided_slice %22 {offsets = [0, 0, 0], sizes = [16, 16, 128], strides = [1, 1, 1]} : vector<16x18x128xbf16> to vector<16x16x128xbf16>
    %24 = vector.shape_cast %23 : vector<16x16x128xbf16> to vector<256x128xbf16>
    %c3 = arith.constant 3 : index
    %c0_17 = arith.constant 0 : index
    %c0_18 = arith.constant 0 : index
    %25 = vector.load %arg3[%c3, %c0_17, %c0_18] : memref<9x128x128xbf16, #tpu.memory_space<vmem>>, vector<1x128x128xbf16>
    %26 = vector.shape_cast %25 : vector<1x128x128xbf16> to vector<128x128xbf16>
    %cst_19 = arith.constant dense<0.000000e+00> : vector<256x128xf32>
    %27 = tpu.matmul %24, %26, %cst_19 {dimension_numbers = #tpu.dot_dimension_numbers<[1], [0], [0], [1], [0, 0, 1, 1], [], []>} : vector<256x128xbf16>, vector<128x128xbf16>, vector<256x128xf32> -> vector<256x128xf32>
    %28 = arith.addf %20, %27 : vector<256x128xf32>
    %29 = vector.extract_strided_slice %22 {offsets = [0, 1, 0], sizes = [16, 16, 128], strides = [1, 1, 1]} : vector<16x18x128xbf16> to vector<16x16x128xbf16>
    %30 = vector.shape_cast %29 : vector<16x16x128xbf16> to vector<256x128xbf16>
    %c4 = arith.constant 4 : index
    %c0_20 = arith.constant 0 : index
    %c0_21 = arith.constant 0 : index
    %31 = vector.load %arg3[%c4, %c0_20, %c0_21] : memref<9x128x128xbf16, #tpu.memory_space<vmem>>, vector<1x128x128xbf16>
    %32 = vector.shape_cast %31 : vector<1x128x128xbf16> to vector<128x128xbf16>
    %cst_22 = arith.constant dense<0.000000e+00> : vector<256x128xf32>
    %33 = tpu.matmul %30, %32, %cst_22 {dimension_numbers = #tpu.dot_dimension_numbers<[1], [0], [0], [1], [0, 0, 1, 1], [], []>} : vector<256x128xbf16>, vector<128x128xbf16>, vector<256x128xf32> -> vector<256x128xf32>
    %34 = arith.addf %28, %33 : vector<256x128xf32>
    %35 = vector.extract_strided_slice %22 {offsets = [0, 2, 0], sizes = [16, 16, 128], strides = [1, 1, 1]} : vector<16x18x128xbf16> to vector<16x16x128xbf16>
    %36 = vector.shape_cast %35 : vector<16x16x128xbf16> to vector<256x128xbf16>
    %c5 = arith.constant 5 : index
    %c0_23 = arith.constant 0 : index
    %c0_24 = arith.constant 0 : index
    %37 = vector.load %arg3[%c5, %c0_23, %c0_24] : memref<9x128x128xbf16, #tpu.memory_space<vmem>>, vector<1x128x128xbf16>
    %38 = vector.shape_cast %37 : vector<1x128x128xbf16> to vector<128x128xbf16>
    %cst_25 = arith.constant dense<0.000000e+00> : vector<256x128xf32>
    %39 = tpu.matmul %36, %38, %cst_25 {dimension_numbers = #tpu.dot_dimension_numbers<[1], [0], [0], [1], [0, 0, 1, 1], [], []>} : vector<256x128xbf16>, vector<128x128xbf16>, vector<256x128xf32> -> vector<256x128xf32>
    %40 = arith.addf %34, %39 : vector<256x128xf32>
    %c0_26 = arith.constant 0 : index
    %c2_27 = arith.constant 2 : index
    %c0_28 = arith.constant 0 : index
    %c0_29 = arith.constant 0 : index
    %41 = vector.load %arg2[%c0_26, %c2_27, %c0_28, %c0_29] : memref<1x18x18x128xbf16, #tpu.memory_space<vmem>>, vector<1x16x18x128xbf16>
    %42 = vector.shape_cast %41 : vector<1x16x18x128xbf16> to vector<16x18x128xbf16>
    %43 = vector.extract_strided_slice %42 {offsets = [0, 0, 0], sizes = [16, 16, 128], strides = [1, 1, 1]} : vector<16x18x128xbf16> to vector<16x16x128xbf16>
    %44 = vector.shape_cast %43 : vector<16x16x128xbf16> to vector<256x128xbf16>
    %c6 = arith.constant 6 : index
    %c0_30 = arith.constant 0 : index
    %c0_31 = arith.constant 0 : index
    %45 = vector.load %arg3[%c6, %c0_30, %c0_31] : memref<9x128x128xbf16, #tpu.memory_space<vmem>>, vector<1x128x128xbf16>
    %46 = vector.shape_cast %45 : vector<1x128x128xbf16> to vector<128x128xbf16>
    %cst_32 = arith.constant dense<0.000000e+00> : vector<256x128xf32>
    %47 = tpu.matmul %44, %46, %cst_32 {dimension_numbers = #tpu.dot_dimension_numbers<[1], [0], [0], [1], [0, 0, 1, 1], [], []>} : vector<256x128xbf16>, vector<128x128xbf16>, vector<256x128xf32> -> vector<256x128xf32>
    %48 = arith.addf %40, %47 : vector<256x128xf32>
    %49 = vector.extract_strided_slice %42 {offsets = [0, 1, 0], sizes = [16, 16, 128], strides = [1, 1, 1]} : vector<16x18x128xbf16> to vector<16x16x128xbf16>
    %50 = vector.shape_cast %49 : vector<16x16x128xbf16> to vector<256x128xbf16>
    %c7 = arith.constant 7 : index
    %c0_33 = arith.constant 0 : index
    %c0_34 = arith.constant 0 : index
    %51 = vector.load %arg3[%c7, %c0_33, %c0_34] : memref<9x128x128xbf16, #tpu.memory_space<vmem>>, vector<1x128x128xbf16>
    %52 = vector.shape_cast %51 : vector<1x128x128xbf16> to vector<128x128xbf16>
    %cst_35 = arith.constant dense<0.000000e+00> : vector<256x128xf32>
    %53 = tpu.matmul %50, %52, %cst_35 {dimension_numbers = #tpu.dot_dimension_numbers<[1], [0], [0], [1], [0, 0, 1, 1], [], []>} : vector<256x128xbf16>, vector<128x128xbf16>, vector<256x128xf32> -> vector<256x128xf32>
    %54 = arith.addf %48, %53 : vector<256x128xf32>
    %55 = vector.extract_strided_slice %42 {offsets = [0, 2, 0], sizes = [16, 16, 128], strides = [1, 1, 1]} : vector<16x18x128xbf16> to vector<16x16x128xbf16>
    %56 = vector.shape_cast %55 : vector<16x16x128xbf16> to vector<256x128xbf16>
    %c8 = arith.constant 8 : index
    %c0_36 = arith.constant 0 : index
    %c0_37 = arith.constant 0 : index
    %57 = vector.load %arg3[%c8, %c0_36, %c0_37] : memref<9x128x128xbf16, #tpu.memory_space<vmem>>, vector<1x128x128xbf16>
    %58 = vector.shape_cast %57 : vector<1x128x128xbf16> to vector<128x128xbf16>
    %cst_38 = arith.constant dense<0.000000e+00> : vector<256x128xf32>
    %59 = tpu.matmul %56, %58, %cst_38 {dimension_numbers = #tpu.dot_dimension_numbers<[1], [0], [0], [1], [0, 0, 1, 1], [], []>} : vector<256x128xbf16>, vector<128x128xbf16>, vector<256x128xf32> -> vector<256x128xf32>
    %60 = arith.addf %54, %59 : vector<256x128xf32>
    %c0_39 = arith.constant 0 : index
    %c0_40 = arith.constant 0 : index
    %61 = vector.load %arg4[%c0_39, %c0_40] : memref<2x128xf32, #tpu.memory_space<vmem>>, vector<1x128xf32>
    %62 = vector.broadcast %61 : vector<1x128xf32> to vector<256x128xf32>
    %63 = arith.addf %60, %62 : vector<256x128xf32>
    %cst_41 = arith.constant 0.000000e+00 : f32
    %64 = vector.broadcast %cst_41 : f32 to vector<256x128xf32>
    %65 = arith.cmpf ogt, %63, %64 : vector<256x128xf32>
    %c1_42 = arith.constant 1 : index
    %c0_43 = arith.constant 0 : index
    %66 = vector.load %arg4[%c1_42, %c0_43] : memref<2x128xf32, #tpu.memory_space<vmem>>, vector<1x128xf32>
    %67 = vector.broadcast %66 : vector<1x128xf32> to vector<256x128xf32>
    %68 = arith.mulf %67, %63 : vector<256x128xf32>
    %69 = arith.select %65, %63, %68 : vector<256x128xi1>, vector<256x128xf32>
    %70 = vector.shape_cast %69 : vector<256x128xf32> to vector<16x16x128xf32>
    %c0_44 = arith.constant 0 : index
    %c0_45 = arith.constant 0 : index
    %c0_46 = arith.constant 0 : index
    %c0_47 = arith.constant 0 : index
    %71 = vector.load %arg5[%c0_44, %c0_45, %c0_46, %c0_47] : memref<1x16x16x128xf32, #tpu.memory_space<vmem>>, vector<1x16x16x128xf32>
    %72 = vector.shape_cast %71 : vector<1x16x16x128xf32> to vector<16x16x128xf32>
    %73 = vector.shape_cast %70 : vector<16x16x128xf32> to vector<1x16x16x128xf32>
    tpu.vector_store %arg5[%c0_44, %c0_45, %c0_46, %c0_47], %73 {strides = array<i32>} : memref<1x16x16x128xf32, #tpu.memory_space<vmem>>, vector<1x16x16x128xf32>,
    return
  }
  func.func @transform_0(%arg0: i32, %arg1: i32) -> (i32, i32, i32, i32) {
    %c0_i32 = arith.constant 0 : i32
    %c0_i32_0 = arith.constant 0 : i32
    %c0_i32_1 = arith.constant 0 : i32
    %c0_i32_2 = arith.constant 0 : i32
    return %arg0, %c0_i32, %c0_i32_0, %c0_i32_1 : i32, i32, i32, i32
  }
  func.func @transform_1(%arg0: i32, %arg1: i32) -> (i32, i32, i32) {
    %c0_i32 = arith.constant 0 : i32
    %c0_i32_0 = arith.constant 0 : i32
    %c0_i32_1 = arith.constant 0 : i32
    %c0_i32_2 = arith.constant 0 : i32
    return %c0_i32, %c0_i32_0, %c0_i32_1 : i32, i32, i32
  }
  func.func @transform_2(%arg0: i32, %arg1: i32) -> (i32, i32) {
    %c0_i32 = arith.constant 0 : i32
    %c0_i32_0 = arith.constant 0 : i32
    %c0_i32_1 = arith.constant 0 : i32
    return %c0_i32, %c0_i32_0 : i32, i32
  }
  func.func @transform_3(%arg0: i32, %arg1: i32) -> (i32, i32, i32, i32) {
    %c0_i32 = arith.constant 0 : i32
    %c0_i32_0 = arith.constant 0 : i32
    %c0_i32_1 = arith.constant 0 : i32
    return %arg0, %arg1, %c0_i32, %c0_i32_0 : i32, i32, i32, i32
  }
}

</mosaic_0001>

<llo_original>
// kernel: double_conv_forward.5
$region0: #{double_conv_forward.5}
  #allocation0 [shape = 'u32[]', space=smem, size = 0x4, offset = 0x4, fixed_abs, tag = 'smem constant byte address 0x4 - core index']
  #allocation1 [shape = 'u32[72,128]{1,0:T(1,128)}', space=vmem, size = 0x9000, scoped, tag = 'internal scratch']
  %s0 = inlined_call_operand.vmem [shape: f32[512,128], index: 0, kind: input, shape index: {}]
  %s1 = inlined_call_operand.vmem [shape: f32[1,128], index: 1, kind: output, shape index: {}]
  %s2 = sld [smem:[#allocation0]]
  $region18: #{double_conv_forward.5} parent=0
    _
  %s4 = ssub.s32 1, %s2
  %s5 = scalar_select 0, %s4, %s2
  // Predicated region
  $region2: #{double_conv_forward.5} parent=0 // pred_check
    _
  $region3: #{double_conv_forward.5} parent=0 // pred_check_branch
    %7 = sbr.rel (0) target = $region5
  $region4: #{double_conv_forward.5} parent=0 // pred_region
    _
  $region5: #{double_conv_forward.5} parent=0 // pred_fallthru
    _
  %p8 = scmp.eq.s32.totalorder 0, 0
  // Predicated region
  $region6: #{double_conv_forward.5} parent=0 // pred_check
    %p9 = pneg %p8
  $region7: #{double_conv_forward.5} parent=0 // pred_check_branch
    %11 = sbr.rel (%p9) target = $region9
  $region8: #{double_conv_forward.5} parent=0 // pred_region
    %12 = vst [vmem:[%s1] sm:$0x1] 0.0
  $region9: #{double_conv_forward.5} parent=0 // pred_fallthru
    _
  %v13 = vld [vmem:[%s1] sm:$0x1]
  %v14 = vld [vmem:[%s0] sm:$0xff]
  %v15 = vld [vmem:[%s0 + $0x8] sm:$0xff]
  %v16 = vld [vmem:[%s0 + $0x10] sm:$0xff]
  %v17 = vld [vmem:[%s0 + $0x18] sm:$0xff]
  %v18 = vld [vmem:[%s0 + $0x20] sm:$0xff]
  %v19 = vld [vmem:[%s0 + $0x28] sm:$0xff]
  %v20 = vld [vmem:[%s0 + $0x30] sm:$0xff]
  %v21 = vld [vmem:[%s0 + $0x38] sm:$0xff]
  %v22 = vld [vmem:[%s0 + $0x40] sm:$0xff]
  %v23 = vld [vmem:[%s0 + $0x48] sm:$0xff]
  %v24 = vld [vmem:[%s0 + $0x50] sm:$0xff]
  %v25 = vld [vmem:[%s0 + $0x58] sm:$0xff]
  %v26 = vld [vmem:[%s0 + $0x60] sm:$0xff]
  %v27 = vld [vmem:[%s0 + $0x68] sm:$0xff]
  %v28 = vld [vmem:[%s0 + $0x70] sm:$0xff]
  %v29 = vld [vmem:[%s0 + $0x78] sm:$0xff]
  %v30 = vld [vmem:[%s0 + $0x80] sm:$0xff]
  %v31 = vld [vmem:[%s0 + $0x88] sm:$0xff]
  %v32 = vld [vmem:[%s0 + $0x90] sm:$0xff]
  %v33 = vld [vmem:[%s0 + $0x98] sm:$0xff]
  %v34 = vld [vmem:[%s0 + $0xa0] sm:$0xff]
  %v35 = vld [vmem:[%s0 + $0xa8] sm:$0xff]
  %v36 = vld [vmem:[%s0 + $0xb0] sm:$0xff]
  %v37 = vld [vmem:[%s0 + $0xb8] sm:$0xff]
  %v38 = vld [vmem:[%s0 + $0xc0] sm:$0xff]
  %v39 = vld [vmem:[%s0 + $0xc8] sm:$0xff]
  %v40 = vld [vmem:[%s0 + $0xd0] sm:$0xff]
  %v41 = vld [vmem:[%s0 + $0xd8] sm:$0xff]
  %v42 = vld [vmem:[%s0 + $0xe0] sm:$0xff]
  %v43 = vld [vmem:[%s0 + $0xe8] sm:$0xff]
  %v44 = vld [vmem:[%s0 + $0xf0] sm:$0xff]
  %v45 = vld [vmem:[%s0 + $0xf8] sm:$0xff]
  %v46 = vld [vmem:[%s0 + $0x100] sm:$0xff]
  %v47 = vld [vmem:[%s0 + $0x108] sm:$0xff]
  %v48 = vld [vmem:[%s0 + $0x110] sm:$0xff]
  %v49 = vld [vmem:[%s0 + $0x118] sm:$0xff]
  %v50 = vld [vmem:[%s0 + $0x120] sm:$0xff]
  %v51 = vld [vmem:[%s0 + $0x128] sm:$0xff]
  %v52 = vld [vmem:[%s0 + $0x130] sm:$0xff]
  %v53 = vld [vmem:[%s0 + $0x138] sm:$0xff]
  %v54 = vld [vmem:[%s0 + $0x140] sm:$0xff]
  %v55 = vld [vmem:[%s0 + $0x148] sm:$0xff]
  %v56 = vld [vmem:[%s0 + $0x150] sm:$0xff]
  %v57 = vld [vmem:[%s0 + $0x158] sm:$0xff]
  %v58 = vld [vmem:[%s0 + $0x160] sm:$0xff]
  %v59 = vld [vmem:[%s0 + $0x168] sm:$0xff]
  %v60 = vld [vmem:[%s0 + $0x170] sm:$0xff]
  %v61 = vld [vmem:[%s0 + $0x178] sm:$0xff]
  %v62 = vld [vmem:[%s0 + $0x180] sm:$0xff]
  %v63 = vld [vmem:[%s0 + $0x188] sm:$0xff]
  %v64 = vld [vmem:[%s0 + $0x190] sm:$0xff]
  %v65 = vld [vmem:[%s0 + $0x198] sm:$0xff]
  %v66 = vld [vmem:[%s0 + $0x1a0] sm:$0xff]
  %v67 = vld [vmem:[%s0 + $0x1a8] sm:$0xff]
  %v68 = vld [vmem:[%s0 + $0x1b0] sm:$0xff]
  %v69 = vld [vmem:[%s0 + $0x1b8] sm:$0xff]
  %v70 = vld [vmem:[%s0 + $0x1c0] sm:$0xff]
  %v71 = vld [vmem:[%s0 + $0x1c8] sm:$0xff]
  %v72 = vld [vmem:[%s0 + $0x1d0] sm:$0xff]
  %v73 = vld [vmem:[%s0 + $0x1d8] sm:$0xff]
  %v74 = vld [vmem:[%s0 + $0x1e0] sm:$0xff]
  %v75 = vld [vmem:[%s0 + $0x1e8] sm:$0xff]
  %v76 = vld [vmem:[%s0 + $0x1f0] sm:$0xff]
  %v77 = vld [vmem:[%s0 + $0x1f8] sm:$0xff]
  %v78 = vadd.f32 %v14, %v15
  %v79 = vadd.f32 %v78, %v16
  %v80 = vadd.f32 %v79, %v17
  %v81 = vadd.f32 %v80, %v18
  %v82 = vadd.f32 %v81, %v19
  %v83 = vadd.f32 %v82, %v20
  %v84 = vadd.f32 %v83, %v21
  %v85 = vadd.f32 %v84, %v22
  %v86 = vadd.f32 %v85, %v23
  %v87 = vadd.f32 %v86, %v24
  %v88 = vadd.f32 %v87, %v25
  %v89 = vadd.f32 %v88, %v26
  %v90 = vadd.f32 %v89, %v27
  %v91 = vadd.f32 %v90, %v28
  %v92 = vadd.f32 %v91, %v29
  %v93 = vadd.f32 %v92, %v30
  %v94 = vadd.f32 %v93, %v31
  %v95 = vadd.f32 %v94, %v32
  %v96 = vadd.f32 %v95, %v33
  %v97 = vadd.f32 %v96, %v34
  %v98 = vadd.f32 %v97, %v35
  %v99 = vadd.f32 %v98, %v36
  %v100 = vadd.f32 %v99, %v37
  %v101 = vadd.f32 %v100, %v38
  %v102 = vadd.f32 %v101, %v39
  %v103 = vadd.f32 %v102, %v40
  %v104 = vadd.f32 %v103, %v41
  %v105 = vadd.f32 %v104, %v42
  %v106 = vadd.f32 %v105, %v43
  %v107 = vadd.f32 %v106, %v44
  %v108 = vadd.f32 %v107, %v45
  %v109 = vadd.f32 %v108, %v46
  %v110 = vadd.f32 %v109, %v47
  %v111 = vadd.f32 %v110, %v48
  %v112 = vadd.f32 %v111, %v49
  %v113 = vadd.f32 %v112, %v50
  %v114 = vadd.f32 %v113, %v51
  %v115 = vadd.f32 %v114, %v52
  %v116 = vadd.f32 %v115, %v53
  %v117 = vadd.f32 %v116, %v54
  %v118 = vadd.f32 %v117, %v55
  %v119 = vadd.f32 %v118, %v56
  %v120 = vadd.f32 %v119, %v57
  %v121 = vadd.f32 %v120, %v58
  %v122 = vadd.f32 %v121, %v59
  %v123 = vadd.f32 %v122, %v60
  %v124 = vadd.f32 %v123, %v61
  %v125 = vadd.f32 %v124, %v62
  %v126 = vadd.f32 %v125, %v63
  %v127 = vadd.f32 %v126, %v64
  %v128 = vadd.f32 %v127, %v65
  %v129 = vadd.f32 %v128, %v66
  %v130 = vadd.f32 %v129, %v67
  %v131 = vadd.f32 %v130, %v68
  %v132 = vadd.f32 %v131, %v69
  %v133 = vadd.f32 %v132, %v70
  %v134 = vadd.f32 %v133, %v71
  %v135 = vadd.f32 %v134, %v72
  %v136 = vadd.f32 %v135, %v73
  %v137 = vadd.f32 %v136, %v74
  %v138 = vadd.f32 %v137, %v75
  %v139 = vadd.f32 %v138, %v76
  %v140 = vadd.f32 %v139, %v77
  %v141 = vrot.slane %v140, 4
  %v142 = vadd.f32 %v140, %v141
  %v143 = vrot.slane %v142, 2
  %v144 = vadd.f32 %v142, %v143
  %v145 = vrot.slane %v144, 1
  %v146 = vadd.f32 %v144, %v145
  %v147 = vadd.f32 %v13, %v146
  %148 = vst [vmem:[%s1] sm:$0x1] %v147
  // Predicated region
  $region10: #{double_conv_forward.5} parent=0 // pred_check
    _
  $region11: #{double_conv_forward.5} parent=0 // pred_check_branch
    %150 = sbr.rel (0) target = $region13
  $region12: #{double_conv_forward.5} parent=0 // pred_region
    _
  $region13: #{double_conv_forward.5} parent=0 // pred_fallthru
    _
  // Predicated region
  $region14: #{double_conv_forward.5} parent=0 // pred_check
    _
  $region15: #{double_conv_forward.5} parent=0 // pred_check_branch
    %152 = sbr.rel (0) target = $region17
  $region16: #{double_conv_forward.5} parent=0 // pred_region
    _
  $region17: #{double_conv_forward.5} parent=0 // pred_fallthru
    _

// kernel: double_conv_forward.6
$region0: #{double_conv_forward.6}
  #allocation0 [shape = 'u32[]', space=smem, size = 0x4, offset = 0x4, fixed_abs, tag = 'smem constant byte address 0x4 - core index']
  #allocation1 [shape = 'u32[72,128]{1,0:T(1,128)}', space=vmem, size = 0x9000, scoped, tag = 'internal scratch']
  %s0 = inlined_call_operand.vmem [shape: f32[512,128], index: 0, kind: input, shape index: {}]
  %s1 = inlined_call_operand.vmem [shape: f32[1,128], index: 1, kind: input, shape index: {}]
  %s2 = inlined_call_operand.vmem [shape: f32[1,128], index: 2, kind: output, shape index: {}]
  %s3 = sld [smem:[#allocation0]]
  $region22: #{double_conv_forward.6} parent=0
    _
  %s5 = ssub.s32 1, %s3
  %s6 = scalar_select 0, %s5, %s3
  // Predicated region
  $region2: #{double_conv_forward.6} parent=0 // pred_check
    _
  $region3: #{double_conv_forward.6} parent=0 // pred_check_branch
    %8 = sbr.rel (0) target = $region5
  $region4: #{double_conv_forward.6} parent=0 // pred_region
    _
  $region5: #{double_conv_forward.6} parent=0 // pred_fallthru
    _
  // Predicated region
  $region6: #{double_conv_forward.6} parent=0 // pred_check
    _
  $region7: #{double_conv_forward.6} parent=0 // pred_check_branch
    %10 = sbr.rel (0) target = $region9
  $region8: #{double_conv_forward.6} parent=0 // pred_region
    _
  $region9: #{double_conv_forward.6} parent=0 // pred_fallthru
    _
  %p11 = scmp.eq.s32.totalorder 0, 0
  // Predicated region
  $region10: #{double_conv_forward.6} parent=0 // pred_check
    %p12 = pneg %p11
  $region11: #{double_conv_forward.6} parent=0 // pred_check_branch
    %14 = sbr.rel (%p12) target = $region13
  $region12: #{double_conv_forward.6} parent=0 // pred_region
    %15 = vst [vmem:[%s2] sm:$0x1] 0.0
  $region13: #{double_conv_forward.6} parent=0 // pred_fallthru
    _
  %v16 = vld [vmem:[%s0] sm:$0xff]
  %v17 = vld [vmem:[%s0 + $0x8] sm:$0xff]
  %v18 = vld [vmem:[%s0 + $0x10] sm:$0xff]
  %v19 = vld [vmem:[%s0 + $0x18] sm:$0xff]
  %v20 = vld [vmem:[%s0 + $0x20] sm:$0xff]
  %v21 = vld [vmem:[%s0 + $0x28] sm:$0xff]
  %v22 = vld [vmem:[%s0 + $0x30] sm:$0xff]
  %v23 = vld [vmem:[%s0 + $0x38] sm:$0xff]
  %v24 = vld [vmem:[%s0 + $0x40] sm:$0xff]
  %v25 = vld [vmem:[%s0 + $0x48] sm:$0xff]
  %v26 = vld [vmem:[%s0 + $0x50] sm:$0xff]
  %v27 = vld [vmem:[%s0 + $0x58] sm:$0xff]
  %v28 = vld [vmem:[%s0 + $0x60] sm:$0xff]
  %v29 = vld [vmem:[%s0 + $0x68] sm:$0xff]
  %v30 = vld [vmem:[%s0 + $0x70] sm:$0xff]
  %v31 = vld [vmem:[%s0 + $0x78] sm:$0xff]
  %v32 = vld [vmem:[%s0 + $0x80] sm:$0xff]
  %v33 = vld [vmem:[%s0 + $0x88] sm:$0xff]
  %v34 = vld [vmem:[%s0 + $0x90] sm:$0xff]
  %v35 = vld [vmem:[%s0 + $0x98] sm:$0xff]
  %v36 = vld [vmem:[%s0 + $0xa0] sm:$0xff]
  %v37 = vld [vmem:[%s0 + $0xa8] sm:$0xff]
  %v38 = vld [vmem:[%s0 + $0xb0] sm:$0xff]
  %v39 = vld [vmem:[%s0 + $0xb8] sm:$0xff]
  %v40 = vld [vmem:[%s0 + $0xc0] sm:$0xff]
  %v41 = vld [vmem:[%s0 + $0xc8] sm:$0xff]
  %v42 = vld [vmem:[%s0 + $0xd0] sm:$0xff]
  %v43 = vld [vmem:[%s0 + $0xd8] sm:$0xff]
  %v44 = vld [vmem:[%s0 + $0xe0] sm:$0xff]
  %v45 = vld [vmem:[%s0 + $0xe8] sm:$0xff]
  %v46 = vld [vmem:[%s0 + $0xf0] sm:$0xff]
  %v47 = vld [vmem:[%s0 + $0xf8] sm:$0xff]
  %v48 = vld [vmem:[%s0 + $0x100] sm:$0xff]
  %v49 = vld [vmem:[%s0 + $0x108] sm:$0xff]
  %v50 = vld [vmem:[%s0 + $0x110] sm:$0xff]
  %v51 = vld [vmem:[%s0 + $0x118] sm:$0xff]
  %v52 = vld [vmem:[%s0 + $0x120] sm:$0xff]
  %v53 = vld [vmem:[%s0 + $0x128] sm:$0xff]
  %v54 = vld [vmem:[%s0 + $0x130] sm:$0xff]
  %v55 = vld [vmem:[%s0 + $0x138] sm:$0xff]
  %v56 = vld [vmem:[%s0 + $0x140] sm:$0xff]
  %v57 = vld [vmem:[%s0 + $0x148] sm:$0xff]
  %v58 = vld [vmem:[%s0 + $0x150] sm:$0xff]
  %v59 = vld [vmem:[%s0 + $0x158] sm:$0xff]
  %v60 = vld [vmem:[%s0 + $0x160] sm:$0xff]
  %v61 = vld [vmem:[%s0 + $0x168] sm:$0xff]
  %v62 = vld [vmem:[%s0 + $0x170] sm:$0xff]
  %v63 = vld [vmem:[%s0 + $0x178] sm:$0xff]
  %v64 = vld [vmem:[%s0 + $0x180] sm:$0xff]
  %v65 = vld [vmem:[%s0 + $0x188] sm:$0xff]
  %v66 = vld [vmem:[%s0 + $0x190] sm:$0xff]
  %v67 = vld [vmem:[%s0 + $0x198] sm:$0xff]
  %v68 = vld [vmem:[%s0 + $0x1a0] sm:$0xff]
  %v69 = vld [vmem:[%s0 + $0x1a8] sm:$0xff]
  %v70 = vld [vmem:[%s0 + $0x1b0] sm:$0xff]
  %v71 = vld [vmem:[%s0 + $0x1b8] sm:$0xff]
  %v72 = vld [vmem:[%s0 + $0x1c0] sm:$0xff]
  %v73 = vld [vmem:[%s0 + $0x1c8] sm:$0xff]
  %v74 = vld [vmem:[%s0 + $0x1d0] sm:$0xff]
  %v75 = vld [vmem:[%s0 + $0x1d8] sm:$0xff]
  %v76 = vld [vmem:[%s0 + $0x1e0] sm:$0xff]
  %v77 = vld [vmem:[%s0 + $0x1e8] sm:$0xff]
  %v78 = vld [vmem:[%s0 + $0x1f0] sm:$0xff]
  %v79 = vld [vmem:[%s0 + $0x1f8] sm:$0xff]
  %v80 = vld [vmem:[%s1] sm:$0x1]
  %v82 = vperm.slane %v80, 0
  %v84 = vsub.f32 %v16, %v82
  %v85 = vsub.f32 %v17, %v82
  %v86 = vsub.f32 %v18, %v82
  %v87 = vsub.f32 %v19, %v82
  %v88 = vsub.f32 %v20, %v82
  %v89 = vsub.f32 %v21, %v82
  %v90 = vsub.f32 %v22, %v82
  %v91 = vsub.f32 %v23, %v82
  %v92 = vsub.f32 %v24, %v82
  %v93 = vsub.f32 %v25, %v82
  %v94 = vsub.f32 %v26, %v82
  %v95 = vsub.f32 %v27, %v82
  %v96 = vsub.f32 %v28, %v82
  %v97 = vsub.f32 %v29, %v82
  %v98 = vsub.f32 %v30, %v82
  %v99 = vsub.f32 %v31, %v82
  %v100 = vsub.f32 %v32, %v82
  %v101 = vsub.f32 %v33, %v82
  %v102 = vsub.f32 %v34, %v82
  %v103 = vsub.f32 %v35, %v82
  %v104 = vsub.f32 %v36, %v82
  %v105 = vsub.f32 %v37, %v82
  %v106 = vsub.f32 %v38, %v82
  %v107 = vsub.f32 %v39, %v82
  %v108 = vsub.f32 %v40, %v82
  %v109 = vsub.f32 %v41, %v82
  %v110 = vsub.f32 %v42, %v82
  %v111 = vsub.f32 %v43, %v82
  %v112 = vsub.f32 %v44, %v82
  %v113 = vsub.f32 %v45, %v82
  %v114 = vsub.f32 %v46, %v82
  %v115 = vsub.f32 %v47, %v82
  %v116 = vsub.f32 %v48, %v82
  %v117 = vsub.f32 %v49, %v82
  %v118 = vsub.f32 %v50, %v82
  %v119 = vsub.f32 %v51, %v82
  %v120 = vsub.f32 %v52, %v82
  %v121 = vsub.f32 %v53, %v82
  %v122 = vsub.f32 %v54, %v82
  %v123 = vsub.f32 %v55, %v82
  %v124 = vsub.f32 %v56, %v82
  %v125 = vsub.f32 %v57, %v82
  %v126 = vsub.f32 %v58, %v82
  %v127 = vsub.f32 %v59, %v82
  %v128 = vsub.f32 %v60, %v82
  %v129 = vsub.f32 %v61, %v82
  %v130 = vsub.f32 %v62, %v82
  %v131 = vsub.f32 %v63, %v82
  %v132 = vsub.f32 %v64, %v82
  %v133 = vsub.f32 %v65, %v82
  %v134 = vsub.f32 %v66, %v82
  %v135 = vsub.f32 %v67, %v82
  %v136 = vsub.f32 %v68, %v82
  %v137 = vsub.f32 %v69, %v82
  %v138 = vsub.f32 %v70, %v82
  %v139 = vsub.f32 %v71, %v82
  %v140 = vsub.f32 %v72, %v82
  %v141 = vsub.f32 %v73, %v82
  %v142 = vsub.f32 %v74, %v82
  %v143 = vsub.f32 %v75, %v82
  %v144 = vsub.f32 %v76, %v82
  %v145 = vsub.f32 %v77, %v82
  %v146 = vsub.f32 %v78, %v82
  %v147 = vsub.f32 %v79, %v82
  %v148 = vld [vmem:[%s2] sm:$0x1]
  %v149 = vmul.f32 %v84, %v84
  %v150 = vmul.f32 %v85, %v85
  %v151 = vmul.f32 %v86, %v86
  %v152 = vmul.f32 %v87, %v87
  %v153 = vmul.f32 %v88, %v88
  %v154 = vmul.f32 %v89, %v89
  %v155 = vmul.f32 %v90, %v90
  %v156 = vmul.f32 %v91, %v91
  %v157 = vmul.f32 %v92, %v92
  %v158 = vmul.f32 %v93, %v93
  %v159 = vmul.f32 %v94, %v94
  %v160 = vmul.f32 %v95, %v95
  %v161 = vmul.f32 %v96, %v96
  %v162 = vmul.f32 %v97, %v97
  %v163 = vmul.f32 %v98, %v98
  %v164 = vmul.f32 %v99, %v99
  %v165 = vmul.f32 %v100, %v100
  %v166 = vmul.f32 %v101, %v101
  %v167 = vmul.f32 %v102, %v102
  %v168 = vmul.f32 %v103, %v103
  %v169 = vmul.f32 %v104, %v104
  %v170 = vmul.f32 %v105, %v105
  %v171 = vmul.f32 %v106, %v106
  %v172 = vmul.f32 %v107, %v107
  %v173 = vmul.f32 %v108, %v108
  %v174 = vmul.f32 %v109, %v109
  %v175 = vmul.f32 %v110, %v110
  %v176 = vmul.f32 %v111, %v111
  %v177 = vmul.f32 %v112, %v112
  %v178 = vmul.f32 %v113, %v113
  %v179 = vmul.f32 %v114, %v114
  %v180 = vmul.f32 %v115, %v115
  %v181 = vmul.f32 %v116, %v116
  %v182 = vmul.f32 %v117, %v117
  %v183 = vmul.f32 %v118, %v118
  %v184 = vmul.f32 %v119, %v119
  %v185 = vmul.f32 %v120, %v120
  %v186 = vmul.f32 %v121, %v121
  %v187 = vmul.f32 %v122, %v122
  %v188 = vmul.f32 %v123, %v123
  %v189 = vmul.f32 %v124, %v124
  %v190 = vmul.f32 %v125, %v125
  %v191 = vmul.f32 %v126, %v126
  %v192 = vmul.f32 %v127, %v127
  %v193 = vmul.f32 %v128, %v128
  %v194 = vmul.f32 %v129, %v129
  %v195 = vmul.f32 %v130, %v130
  %v196 = vmul.f32 %v131, %v131
  %v197 = vmul.f32 %v132, %v132
  %v198 = vmul.f32 %v133, %v133
  %v199 = vmul.f32 %v134, %v134
  %v200 = vmul.f32 %v135, %v135
  %v201 = vmul.f32 %v136, %v136
  %v202 = vmul.f32 %v137, %v137
  %v203 = vmul.f32 %v138, %v138
  %v204 = vmul.f32 %v139, %v139
  %v205 = vmul.f32 %v140, %v140
  %v206 = vmul.f32 %v141, %v141
  %v207 = vmul.f32 %v142, %v142
  %v208 = vmul.f32 %v143, %v143
  %v209 = vmul.f32 %v144, %v144
  %v210 = vmul.f32 %v145, %v145
  %v211 = vmul.f32 %v146, %v146
  %v212 = vmul.f32 %v147, %v147
  %v213 = vadd.f32 %v149, %v150
  %v214 = vadd.f32 %v213, %v151
  %v215 = vadd.f32 %v214, %v152
  %v216 = vadd.f32 %v215, %v153
  %v217 = vadd.f32 %v216, %v154
  %v218 = vadd.f32 %v217, %v155
  %v219 = vadd.f32 %v218, %v156
  %v220 = vadd.f32 %v219, %v157
  %v221 = vadd.f32 %v220, %v158
  %v222 = vadd.f32 %v221, %v159
  %v223 = vadd.f32 %v222, %v160
  %v224 = vadd.f32 %v223, %v161
  %v225 = vadd.f32 %v224, %v162
  %v226 = vadd.f32 %v225, %v163
  %v227 = vadd.f32 %v226, %v164
  %v228 = vadd.f32 %v227, %v165
  %v229 = vadd.f32 %v228, %v166
  %v230 = vadd.f32 %v229, %v167
  %v231 = vadd.f32 %v230, %v168
  %v232 = vadd.f32 %v231, %v169
  %v233 = vadd.f32 %v232, %v170
  %v234 = vadd.f32 %v233, %v171
  %v235 = vadd.f32 %v234, %v172
  %v236 = vadd.f32 %v235, %v173
  %v237 = vadd.f32 %v236, %v174
  %v238 = vadd.f32 %v237, %v175
  %v239 = vadd.f32 %v238, %v176
  %v240 = vadd.f32 %v239, %v177
  %v241 = vadd.f32 %v240, %v178
  %v242 = vadd.f32 %v241, %v179
  %v243 = vadd.f32 %v242, %v180
  %v244 = vadd.f32 %v243, %v181
  %v245 = vadd.f32 %v244, %v182
  %v246 = vadd.f32 %v245, %v183
  %v247 = vadd.f32 %v246, %v184
  %v248 = vadd.f32 %v247, %v185
  %v249 = vadd.f32 %v248, %v186
  %v250 = vadd.f32 %v249, %v187
  %v251 = vadd.f32 %v250, %v188
  %v252 = vadd.f32 %v251, %v189
  %v253 = vadd.f32 %v252, %v190
  %v254 = vadd.f32 %v253, %v191
  %v255 = vadd.f32 %v254, %v192
  %v256 = vadd.f32 %v255, %v193
  %v257 = vadd.f32 %v256, %v194
  %v258 = vadd.f32 %v257, %v195
  %v259 = vadd.f32 %v258, %v196
  %v260 = vadd.f32 %v259, %v197
  %v261 = vadd.f32 %v260, %v198
  %v262 = vadd.f32 %v261, %v199
  %v263 = vadd.f32 %v262, %v200
  %v264 = vadd.f32 %v263, %v201
  %v265 = vadd.f32 %v264, %v202
  %v266 = vadd.f32 %v265, %v203
  %v267 = vadd.f32 %v266, %v204
  %v268 = vadd.f32 %v267, %v205
  %v269 = vadd.f32 %v268, %v206
  %v270 = vadd.f32 %v269, %v207
  %v271 = vadd.f32 %v270, %v208
  %v272 = vadd.f32 %v271, %v209
  %v273 = vadd.f32 %v272, %v210
  %v274 = vadd.f32 %v273, %v211
  %v275 = vadd.f32 %v274, %v212
  %v276 = vrot.slane %v275, 4
  %v277 = vadd.f32 %v275, %v276
  %v278 = vrot.slane %v277, 2
  %v279 = vadd.f32 %v277, %v278
  %v280 = vrot.slane %v279, 1
  %v281 = vadd.f32 %v279, %v280
  %v282 = vadd.f32 %v148, %v281
  %283 = vst [vmem:[%s2] sm:$0x1] %v282
  // Predicated region
  $region14: #{double_conv_forward.6} parent=0 // pred_check
    _
  $region15: #{double_conv_forward.6} parent=0 // pred_check_branch
    %285 = sbr.rel (0) target = $region17
  $region16: #{double_conv_forward.6} parent=0 // pred_region
    _
  $region17: #{double_conv_forward.6} parent=0 // pred_fallthru
    _
  // Predicated region
  $region18: #{double_conv_forward.6} parent=0 // pred_check
    _
  $region19: #{double_conv_forward.6} parent=0 // pred_check_branch
    %287 = sbr.rel (0) target = $region21
  $region20: #{double_conv_forward.6} parent=0 // pred_region
    _
  $region21: #{double_conv_forward.6} parent=0 // pred_fallthru
    _

// kernel: double_conv_forward.7
$region0: #{double_conv_forward.7}
  #allocation0 [shape = 'u32[]', space=smem, size = 0x4, offset = 0x4, fixed_abs, tag = 'smem constant byte address 0x4 - core index']
  #allocation1 [shape = 'u32[72,128]{1,0:T(1,128)}', space=vmem, size = 0x9000, scoped, tag = 'internal scratch']
  %s0 = inlined_call_operand.vmem [shape: f32[512,128], index: 0, kind: input, shape index: {}]
  %s1 = inlined_call_operand.vmem [shape: f32[2,128], index: 1, kind: input, shape index: {}]
  %s2 = inlined_call_operand.vmem [shape: bf16[512,128], index: 2, kind: output, shape index: {}]
  %s3 = sld [smem:[#allocation0]]
  $region18: #{double_conv_forward.7} parent=0
    _
  %s5 = ssub.s32 1, %s3
  %s6 = scalar_select 0, %s5, %s3
  // Predicated region
  $region2: #{double_conv_forward.7} parent=0 // pred_check
    _
  $region3: #{double_conv_forward.7} parent=0 // pred_check_branch
    %8 = sbr.rel (0) target = $region5
  $region4: #{double_conv_forward.7} parent=0 // pred_region
    _
  $region5: #{double_conv_forward.7} parent=0 // pred_fallthru
    _
  // Predicated region
  $region6: #{double_conv_forward.7} parent=0 // pred_check
    _
  $region7: #{double_conv_forward.7} parent=0 // pred_check_branch
    %10 = sbr.rel (0) target = $region9
  $region8: #{double_conv_forward.7} parent=0 // pred_region
    _
  $region9: #{double_conv_forward.7} parent=0 // pred_fallthru
    _
  %v11 = vld [vmem:[%s0] sm:$0xff]
  %v12 = vld [vmem:[%s0 + $0x8] sm:$0xff]
  %v13 = vld [vmem:[%s0 + $0x10] sm:$0xff]
  %v14 = vld [vmem:[%s0 + $0x18] sm:$0xff]
  %v15 = vld [vmem:[%s0 + $0x20] sm:$0xff]
  %v16 = vld [vmem:[%s0 + $0x28] sm:$0xff]
  %v17 = vld [vmem:[%s0 + $0x30] sm:$0xff]
  %v18 = vld [vmem:[%s0 + $0x38] sm:$0xff]
  %v19 = vld [vmem:[%s0 + $0x40] sm:$0xff]
  %v20 = vld [vmem:[%s0 + $0x48] sm:$0xff]
  %v21 = vld [vmem:[%s0 + $0x50] sm:$0xff]
  %v22 = vld [vmem:[%s0 + $0x58] sm:$0xff]
  %v23 = vld [vmem:[%s0 + $0x60] sm:$0xff]
  %v24 = vld [vmem:[%s0 + $0x68] sm:$0xff]
  %v25 = vld [vmem:[%s0 + $0x70] sm:$0xff]
  %v26 = vld [vmem:[%s0 + $0x78] sm:$0xff]
  %v27 = vld [vmem:[%s0 + $0x80] sm:$0xff]
  %v28 = vld [vmem:[%s0 + $0x88] sm:$0xff]
  %v29 = vld [vmem:[%s0 + $0x90] sm:$0xff]
  %v30 = vld [vmem:[%s0 + $0x98] sm:$0xff]
  %v31 = vld [vmem:[%s0 + $0xa0] sm:$0xff]
  %v32 = vld [vmem:[%s0 + $0xa8] sm:$0xff]
  %v33 = vld [vmem:[%s0 + $0xb0] sm:$0xff]
  %v34 = vld [vmem:[%s0 + $0xb8] sm:$0xff]
  %v35 = vld [vmem:[%s0 + $0xc0] sm:$0xff]
  %v36 = vld [vmem:[%s0 + $0xc8] sm:$0xff]
  %v37 = vld [vmem:[%s0 + $0xd0] sm:$0xff]
  %v38 = vld [vmem:[%s0 + $0xd8] sm:$0xff]
  %v39 = vld [vmem:[%s0 + $0xe0] sm:$0xff]
  %v40 = vld [vmem:[%s0 + $0xe8] sm:$0xff]
  %v41 = vld [vmem:[%s0 + $0xf0] sm:$0xff]
  %v42 = vld [vmem:[%s0 + $0xf8] sm:$0xff]
  %v43 = vld [vmem:[%s0 + $0x100] sm:$0xff]
  %v44 = vld [vmem:[%s0 + $0x108] sm:$0xff]
  %v45 = vld [vmem:[%s0 + $0x110] sm:$0xff]
  %v46 = vld [vmem:[%s0 + $0x118] sm:$0xff]
  %v47 = vld [vmem:[%s0 + $0x120] sm:$0xff]
  %v48 = vld [vmem:[%s0 + $0x128] sm:$0xff]
  %v49 = vld [vmem:[%s0 + $0x130] sm:$0xff]
  %v50 = vld [vmem:[%s0 + $0x138] sm:$0xff]
  %v51 = vld [vmem:[%s0 + $0x140] sm:$0xff]
  %v52 = vld [vmem:[%s0 + $0x148] sm:$0xff]
  %v53 = vld [vmem:[%s0 + $0x150] sm:$0xff]
  %v54 = vld [vmem:[%s0 + $0x158] sm:$0xff]
  %v55 = vld [vmem:[%s0 + $0x160] sm:$0xff]
  %v56 = vld [vmem:[%s0 + $0x168] sm:$0xff]
  %v57 = vld [vmem:[%s0 + $0x170] sm:$0xff]
  %v58 = vld [vmem:[%s0 + $0x178] sm:$0xff]
  %v59 = vld [vmem:[%s0 + $0x180] sm:$0xff]
  %v60 = vld [vmem:[%s0 + $0x188] sm:$0xff]
  %v61 = vld [vmem:[%s0 + $0x190] sm:$0xff]
  %v62 = vld [vmem:[%s0 + $0x198] sm:$0xff]
  %v63 = vld [vmem:[%s0 + $0x1a0] sm:$0xff]
  %v64 = vld [vmem:[%s0 + $0x1a8] sm:$0xff]
  %v65 = vld [vmem:[%s0 + $0x1b0] sm:$0xff]
  %v66 = vld [vmem:[%s0 + $0x1b8] sm:$0xff]
  %v67 = vld [vmem:[%s0 + $0x1c0] sm:$0xff]
  %v68 = vld [vmem:[%s0 + $0x1c8] sm:$0xff]
  %v69 = vld [vmem:[%s0 + $0x1d0] sm:$0xff]
  %v70 = vld [vmem:[%s0 + $0x1d8] sm:$0xff]
  %v71 = vld [vmem:[%s0 + $0x1e0] sm:$0xff]
  %v72 = vld [vmem:[%s0 + $0x1e8] sm:$0xff]
  %v73 = vld [vmem:[%s0 + $0x1f0] sm:$0xff]
  %v74 = vld [vmem:[%s0 + $0x1f8] sm:$0xff]
  %v75 = vld [vmem:[%s1] sm:$0x1]
  %v76 = vperm.slane %v75, 0
  %v77 = vmul.f32 %v11, %v76
  %v78 = vmul.f32 %v12, %v76
  %v79 = vmul.f32 %v13, %v76
  %v80 = vmul.f32 %v14, %v76
  %v81 = vmul.f32 %v15, %v76
  %v82 = vmul.f32 %v16, %v76
  %v83 = vmul.f32 %v17, %v76
  %v84 = vmul.f32 %v18, %v76
  %v85 = vmul.f32 %v19, %v76
  %v86 = vmul.f32 %v20, %v76
  %v87 = vmul.f32 %v21, %v76
  %v88 = vmul.f32 %v22, %v76
  %v89 = vmul.f32 %v23, %v76
  %v90 = vmul.f32 %v24, %v76
  %v91 = vmul.f32 %v25, %v76
  %v92 = vmul.f32 %v26, %v76
  %v93 = vmul.f32 %v27, %v76
  %v94 = vmul.f32 %v28, %v76
  %v95 = vmul.f32 %v29, %v76
  %v96 = vmul.f32 %v30, %v76
  %v97 = vmul.f32 %v31, %v76
  %v98 = vmul.f32 %v32, %v76
  %v99 = vmul.f32 %v33, %v76
  %v100 = vmul.f32 %v34, %v76
  %v101 = vmul.f32 %v35, %v76
  %v102 = vmul.f32 %v36, %v76
  %v103 = vmul.f32 %v37, %v76
  %v104 = vmul.f32 %v38, %v76
  %v105 = vmul.f32 %v39, %v76
  %v106 = vmul.f32 %v40, %v76
  %v107 = vmul.f32 %v41, %v76
  %v108 = vmul.f32 %v42, %v76
  %v109 = vmul.f32 %v43, %v76
  %v110 = vmul.f32 %v44, %v76
  %v111 = vmul.f32 %v45, %v76
  %v112 = vmul.f32 %v46, %v76
  %v113 = vmul.f32 %v47, %v76
  %v114 = vmul.f32 %v48, %v76
  %v115 = vmul.f32 %v49, %v76
  %v116 = vmul.f32 %v50, %v76
  %v117 = vmul.f32 %v51, %v76
  %v118 = vmul.f32 %v52, %v76
  %v119 = vmul.f32 %v53, %v76
  %v120 = vmul.f32 %v54, %v76
  %v121 = vmul.f32 %v55, %v76
  %v122 = vmul.f32 %v56, %v76
  %v123 = vmul.f32 %v57, %v76
  %v124 = vmul.f32 %v58, %v76
  %v125 = vmul.f32 %v59, %v76
  %v126 = vmul.f32 %v60, %v76
  %v127 = vmul.f32 %v61, %v76
  %v128 = vmul.f32 %v62, %v76
  %v129 = vmul.f32 %v63, %v76
  %v130 = vmul.f32 %v64, %v76
  %v131 = vmul.f32 %v65, %v76
  %v132 = vmul.f32 %v66, %v76
  %v133 = vmul.f32 %v67, %v76
  %v134 = vmul.f32 %v68, %v76
  %v135 = vmul.f32 %v69, %v76
  %v136 = vmul.f32 %v70, %v76
  %v137 = vmul.f32 %v71, %v76
  %v138 = vmul.f32 %v72, %v76
  %v139 = vmul.f32 %v73, %v76
  %v140 = vmul.f32 %v74, %v76
  %v141 = vld [vmem:[%s1 + $0x1] sm:$0x1]
  %v142 = vperm.slane %v141, 0
  %v143 = vadd.f32 %v77, %v142
  %v144 = vadd.f32 %v78, %v142
  %v145 = vadd.f32 %v79, %v142
  %v146 = vadd.f32 %v80, %v142
  %v147 = vadd.f32 %v81, %v142
  %v148 = vadd.f32 %v82, %v142
  %v149 = vadd.f32 %v83, %v142
  %v150 = vadd.f32 %v84, %v142
  %v151 = vadd.f32 %v85, %v142
  %v152 = vadd.f32 %v86, %v142
  %v153 = vadd.f32 %v87, %v142
  %v154 = vadd.f32 %v88, %v142
  %v155 = vadd.f32 %v89, %v142
  %v156 = vadd.f32 %v90, %v142
  %v157 = vadd.f32 %v91, %v142
  %v158 = vadd.f32 %v92, %v142
  %v159 = vadd.f32 %v93, %v142
  %v160 = vadd.f32 %v94, %v142
  %v161 = vadd.f32 %v95, %v142
  %v162 = vadd.f32 %v96, %v142
  %v163 = vadd.f32 %v97, %v142
  %v164 = vadd.f32 %v98, %v142
  %v165 = vadd.f32 %v99, %v142
  %v166 = vadd.f32 %v100, %v142
  %v167 = vadd.f32 %v101, %v142
  %v168 = vadd.f32 %v102, %v142
  %v169 = vadd.f32 %v103, %v142
  %v170 = vadd.f32 %v104, %v142
  %v171 = vadd.f32 %v105, %v142
  %v172 = vadd.f32 %v106, %v142
  %v173 = vadd.f32 %v107, %v142
  %v174 = vadd.f32 %v108, %v142
  %v175 = vadd.f32 %v109, %v142
  %v176 = vadd.f32 %v110, %v142
  %v177 = vadd.f32 %v111, %v142
  %v178 = vadd.f32 %v112, %v142
  %v179 = vadd.f32 %v113, %v142
  %v180 = vadd.f32 %v114, %v142
  %v181 = vadd.f32 %v115, %v142
  %v182 = vadd.f32 %v116, %v142
  %v183 = vadd.f32 %v117, %v142
  %v184 = vadd.f32 %v118, %v142
  %v185 = vadd.f32 %v119, %v142
  %v186 = vadd.f32 %v120, %v142
  %v187 = vadd.f32 %v121, %v142
  %v188 = vadd.f32 %v122, %v142
  %v189 = vadd.f32 %v123, %v142
  %v190 = vadd.f32 %v124, %v142
  %v191 = vadd.f32 %v125, %v142
  %v192 = vadd.f32 %v126, %v142
  %v193 = vadd.f32 %v127, %v142
  %v194 = vadd.f32 %v128, %v142
  %v195 = vadd.f32 %v129, %v142
  %v196 = vadd.f32 %v130, %v142
  %v197 = vadd.f32 %v131, %v142
  %v198 = vadd.f32 %v132, %v142
  %v199 = vadd.f32 %v133, %v142
  %v200 = vadd.f32 %v134, %v142
  %v201 = vadd.f32 %v135, %v142
  %v202 = vadd.f32 %v136, %v142
  %v203 = vadd.f32 %v137, %v142
  %v204 = vadd.f32 %v138, %v142
  %v205 = vadd.f32 %v139, %v142
  %v206 = vadd.f32 %v140, %v142
  %v207 = vpack.c.bf16 %v143, %v143
  %v208 = vpack.c.bf16 %v144, %v144
  %v209 = vpack.c.bf16 %v145, %v145
  %v210 = vpack.c.bf16 %v146, %v146
  %v211 = vpack.c.bf16 %v147, %v147
  %v212 = vpack.c.bf16 %v148, %v148
  %v213 = vpack.c.bf16 %v149, %v149
  %v214 = vpack.c.bf16 %v150, %v150
  %v215 = vpack.c.bf16 %v151, %v151
  %v216 = vpack.c.bf16 %v152, %v152
  %v217 = vpack.c.bf16 %v153, %v153
  %v218 = vpack.c.bf16 %v154, %v154
  %v219 = vpack.c.bf16 %v155, %v155
  %v220 = vpack.c.bf16 %v156, %v156
  %v221 = vpack.c.bf16 %v157, %v157
  %v222 = vpack.c.bf16 %v158, %v158
  %v223 = vpack.c.bf16 %v159, %v159
  %v224 = vpack.c.bf16 %v160, %v160
  %v225 = vpack.c.bf16 %v161, %v161
  %v226 = vpack.c.bf16 %v162, %v162
  %v227 = vpack.c.bf16 %v163, %v163
  %v228 = vpack.c.bf16 %v164, %v164
  %v229 = vpack.c.bf16 %v165, %v165
  %v230 = vpack.c.bf16 %v166, %v166
  %v231 = vpack.c.bf16 %v167, %v167
  %v232 = vpack.c.bf16 %v168, %v168
  %v233 = vpack.c.bf16 %v169, %v169
  %v234 = vpack.c.bf16 %v170, %v170
  %v235 = vpack.c.bf16 %v171, %v171
  %v236 = vpack.c.bf16 %v172, %v172
  %v237 = vpack.c.bf16 %v173, %v173
  %v238 = vpack.c.bf16 %v174, %v174
  %v239 = vpack.c.bf16 %v175, %v175
  %v240 = vpack.c.bf16 %v176, %v176
  %v241 = vpack.c.bf16 %v177, %v177
  %v242 = vpack.c.bf16 %v178, %v178
  %v243 = vpack.c.bf16 %v179, %v179
  %v244 = vpack.c.bf16 %v180, %v180
  %v245 = vpack.c.bf16 %v181, %v181
  %v246 = vpack.c.bf16 %v182, %v182
  %v247 = vpack.c.bf16 %v183, %v183
  %v248 = vpack.c.bf16 %v184, %v184
  %v249 = vpack.c.bf16 %v185, %v185
  %v250 = vpack.c.bf16 %v186, %v186
  %v251 = vpack.c.bf16 %v187, %v187
  %v252 = vpack.c.bf16 %v188, %v188
  %v253 = vpack.c.bf16 %v189, %v189
  %v254 = vpack.c.bf16 %v190, %v190
  %v255 = vpack.c.bf16 %v191, %v191
  %v256 = vpack.c.bf16 %v192, %v192
  %v257 = vpack.c.bf16 %v193, %v193
  %v258 = vpack.c.bf16 %v194, %v194
  %v259 = vpack.c.bf16 %v195, %v195
  %v260 = vpack.c.bf16 %v196, %v196
  %v261 = vpack.c.bf16 %v197, %v197
  %v262 = vpack.c.bf16 %v198, %v198
  %v263 = vpack.c.bf16 %v199, %v199
  %v264 = vpack.c.bf16 %v200, %v200
  %v265 = vpack.c.bf16 %v201, %v201
  %v266 = vpack.c.bf16 %v202, %v202
  %v267 = vpack.c.bf16 %v203, %v203
  %v268 = vpack.c.bf16 %v204, %v204
  %v269 = vpack.c.bf16 %v205, %v205
  %v270 = vpack.c.bf16 %v206, %v206
  %271 = vst [vmem:[%s2] sm:$0xf] %v207
  %272 = vst [vmem:[%s2 + $0x4] sm:$0xf] %v208
  %273 = vst [vmem:[%s2 + $0x8] sm:$0xf] %v209
  %274 = vst [vmem:[%s2 + $0xc] sm:$0xf] %v210
  %275 = vst [vmem:[%s2 + $0x10] sm:$0xf] %v211
  %276 = vst [vmem:[%s2 + $0x14] sm:$0xf] %v212
  %277 = vst [vmem:[%s2 + $0x18] sm:$0xf] %v213
  %278 = vst [vmem:[%s2 + $0x1c] sm:$0xf] %v214
  %279 = vst [vmem:[%s2 + $0x20] sm:$0xf] %v215
  %280 = vst [vmem:[%s2 + $0x24] sm:$0xf] %v216
  %281 = vst [vmem:[%s2 + $0x28] sm:$0xf] %v217
  %282 = vst [vmem:[%s2 + $0x2c] sm:$0xf] %v218
  %283 = vst [vmem:[%s2 + $0x30] sm:$0xf] %v219
  %284 = vst [vmem:[%s2 + $0x34] sm:$0xf] %v220
  %285 = vst [vmem:[%s2 + $0x38] sm:$0xf] %v221
  %286 = vst [vmem:[%s2 + $0x3c] sm:$0xf] %v222
  %287 = vst [vmem:[%s2 + $0x40] sm:$0xf] %v223
  %288 = vst [vmem:[%s2 + $0x44] sm:$0xf] %v224
  %289 = vst [vmem:[%s2 + $0x48] sm:$0xf] %v225
  %290 = vst [vmem:[%s2 + $0x4c] sm:$0xf] %v226
  %291 = vst [vmem:[%s2 + $0x50] sm:$0xf] %v227
  %292 = vst [vmem:[%s2 + $0x54] sm:$0xf] %v228
  %293 = vst [vmem:[%s2 + $0x58] sm:$0xf] %v229
  %294 = vst [vmem:[%s2 + $0x5c] sm:$0xf] %v230
  %295 = vst [vmem:[%s2 + $0x60] sm:$0xf] %v231
  %296 = vst [vmem:[%s2 + $0x64] sm:$0xf] %v232
  %297 = vst [vmem:[%s2 + $0x68] sm:$0xf] %v233
  %298 = vst [vmem:[%s2 + $0x6c] sm:$0xf] %v234
  %299 = vst [vmem:[%s2 + $0x70] sm:$0xf] %v235
  %300 = vst [vmem:[%s2 + $0x74] sm:$0xf] %v236
  %301 = vst [vmem:[%s2 + $0x78] sm:$0xf] %v237
  %302 = vst [vmem:[%s2 + $0x7c] sm:$0xf] %v238
  %303 = vst [vmem:[%s2 + $0x80] sm:$0xf] %v239
  %304 = vst [vmem:[%s2 + $0x84] sm:$0xf] %v240
  %305 = vst [vmem:[%s2 + $0x88] sm:$0xf] %v241
  %306 = vst [vmem:[%s2 + $0x8c] sm:$0xf] %v242
  %307 = vst [vmem:[%s2 + $0x90] sm:$0xf] %v243
  %308 = vst [vmem:[%s2 + $0x94] sm:$0xf] %v244
  %309 = vst [vmem:[%s2 + $0x98] sm:$0xf] %v245
  %310 = vst [vmem:[%s2 + $0x9c] sm:$0xf] %v246
  %311 = vst [vmem:[%s2 + $0xa0] sm:$0xf] %v247
  %312 = vst [vmem:[%s2 + $0xa4] sm:$0xf] %v248
  %313 = vst [vmem:[%s2 + $0xa8] sm:$0xf] %v249
  %314 = vst [vmem:[%s2 + $0xac] sm:$0xf] %v250
  %315 = vst [vmem:[%s2 + $0xb0] sm:$0xf] %v251
  %316 = vst [vmem:[%s2 + $0xb4] sm:$0xf] %v252
  %317 = vst [vmem:[%s2 + $0xb8] sm:$0xf] %v253
  %318 = vst [vmem:[%s2 + $0xbc] sm:$0xf] %v254
  %319 = vst [vmem:[%s2 + $0xc0] sm:$0xf] %v255
  %320 = vst [vmem:[%s2 + $0xc4] sm:$0xf] %v256
  %321 = vst [vmem:[%s2 + $0xc8] sm:$0xf] %v257
  %322 = vst [vmem:[%s2 + $0xcc] sm:$0xf] %v258
  %323 = vst [vmem:[%s2 + $0xd0] sm:$0xf] %v259
  %324 = vst [vmem:[%s2 + $0xd4] sm:$0xf] %v260
  %325 = vst [vmem:[%s2 + $0xd8] sm:$0xf] %v261
  %326 = vst [vmem:[%s2 + $0xdc] sm:$0xf] %v262
  %327 = vst [vmem:[%s2 + $0xe0] sm:$0xf] %v263
  %328 = vst [vmem:[%s2 + $0xe4] sm:$0xf] %v264
  %329 = vst [vmem:[%s2 + $0xe8] sm:$0xf] %v265
  %330 = vst [vmem:[%s2 + $0xec] sm:$0xf] %v266
  %331 = vst [vmem:[%s2 + $0xf0] sm:$0xf] %v267
  %332 = vst [vmem:[%s2 + $0xf4] sm:$0xf] %v268
  %333 = vst [vmem:[%s2 + $0xf8] sm:$0xf] %v269
  %334 = vst [vmem:[%s2 + $0xfc] sm:$0xf] %v270
  // Predicated region
  $region10: #{double_conv_forward.7} parent=0 // pred_check
    _
  $region11: #{double_conv_forward.7} parent=0 // pred_check_branch
    %336 = sbr.rel (0) target = $region13
  $region12: #{double_conv_forward.7} parent=0 // pred_region
    _
  $region13: #{double_conv_forward.7} parent=0 // pred_fallthru
    _
  // Predicated region
  $region14: #{double_conv_forward.7} parent=0 // pred_check
    _
  $region15: #{double_conv_forward.7} parent=0 // pred_check_branch
    %338 = sbr.rel (0) target = $region17
  $region16: #{double_conv_forward.7} parent=0 // pred_region
    _
  $region17: #{double_conv_forward.7} parent=0 // pred_fallthru
    _

// kernel: double_conv_forward.8
$region0: #{double_conv_forward.8}
  #allocation0 [shape = 'u32[]', space=smem, size = 0x4, offset = 0x4, fixed_abs, tag = 'smem constant byte address 0x4 - core index']
  #allocation1 [shape = 'u32[72,128]{1,0:T(1,128)}', space=vmem, size = 0x9000, scoped, tag = 'internal scratch']
  %s0 = inlined_call_operand.vmem [shape: bf16[2,18,18,128], index: 0, kind: input, shape index: {}]
  %s1 = inlined_call_operand.vmem [shape: bf16[9,128,128], index: 1, kind: input, shape index: {}]
  %s2 = inlined_call_operand.vmem [shape: f32[2,128], index: 2, kind: input, shape index: {}]
  %s3 = inlined_call_operand.vmem [shape: bf16[2,16,16,128], index: 3, kind: output, shape index: {}]
  %s4 = sld [smem:[#allocation0]]
  $region45: #{double_conv_forward.8} parent=0
    _
  %s6 = ssub.s32 1, %s4
  %s7 = scalar_select 0, %s6, %s4
  loop: start=0, step=1, limit=4
  $region2: #{double_conv_forward.8} parent=0 // loop_pre_header
    _
  $region3: #{double_conv_forward.8} parent=0 // loop_header
    %s9 = sphi 0, %s13
    %p10 = scmp.ge.s32.totalorder %s9, 4
    %s16 = sphi 0, %s28
    %s17 = sphi 0, %s24
    %s18 = sphi 0, %s16
    %s19 = sphi 0, %s17
    %s20 = sphi 0, %s18
    %s21 = sphi 0, %s19
    %s31 = sphi 0, %s33
    %s34 = sphi 0, %s31
    %s35 = sphi 0, %s34
    %s51 = sphi 0, %s35
    %s55 = sphi 0, %s55
    %s57 = sphi 0, %s55
    %s58 = sphi 0, %s57
    %s72 = sphi 0, %s58
    %s76 = sphi 0, %s76
    %s78 = sphi 0, %s76
    %s79 = sphi 0, %s78
    %s93 = sphi 0, %s79
    %s101 = sphi 0, %s103
    %s104 = sphi 0, %s101
    %s105 = sphi 0, %s104
    %s121 = sphi 0, %s105
  $region4: #{double_conv_forward.8} parent=0 // loop_header_branch
    %12 = sbr.rel (%p10) target = $region8
  $region5: #{double_conv_forward.8} parent=0 // loop_body
    %s14 = ssub.s32 %s9, 1
    %s15 = ssub.s32 %s9, 2
    %s22 = sadd.s32 1, %s17
    %p23 = scmp.ge.s32.totalorder %s22, 1
    %s24 = scalar_select %p23, 0, %s22
    %s25 = sadd.s32 1, %s16
    %s26 = scalar_select %p23, %s25, %s16
    %p27 = scmp.ge.s32.totalorder %s26, 2
    %s28 = scalar_select %p27, 0, %s26
    %s29 = ssub.s32 %s16, %s28
    %p30 = scmp.eq.s32.totalorder %s29, 0
    %s32 = sadd.s32 %s31, 1
    %s33 = scalar_select %p30, %s31, %s32
    %p36 = pneg %p30
    %p37 = scmp.eq.s32.totalorder %s9, 1
    %p38 = por %p36, %p37
    %p39 = scmp.ne.s32.totalorder %s31, %s34
    %p40 = scmp.eq.s32.totalorder %s9, 0
    %p41 = por %p39, %p40
    %p42 = scmp.ne.s32.totalorder %s31, %s34
    %p43 = scmp.eq.s32.totalorder %s14, 1
    %p44 = por %p42, %p43
    %p45 = scmp.ne.s32.totalorder %s34, %s35
    %p46 = scmp.eq.s32.totalorder %s14, 0
    %p47 = por %p45, %p46
    %p48 = scmp.ne.s32.totalorder %s34, %s35
    %p49 = scmp.eq.s32.totalorder %s15, 1
    %p50 = por %p48, %p49
    %p52 = scmp.ne.s32.totalorder %s35, %s51
    %p53 = scmp.eq.s32.totalorder %s15, 0
    %p54 = por %p52, %p53
    %s56 = sadd.s32 %s55, 1
    %p59 = scmp.eq.s32.totalorder %s9, 1
    %p60 = scmp.ne.s32.totalorder %s55, %s57
    %p61 = scmp.eq.s32.totalorder %s9, 0
    %p62 = por %p60, %p61
    %p63 = scmp.ne.s32.totalorder %s55, %s57
    %p64 = scmp.eq.s32.totalorder %s14, 1
    %p65 = por %p63, %p64
    %p66 = scmp.ne.s32.totalorder %s57, %s58
    %p67 = scmp.eq.s32.totalorder %s14, 0
    %p68 = por %p66, %p67
    %p69 = scmp.ne.s32.totalorder %s57, %s58
    %p70 = scmp.eq.s32.totalorder %s15, 1
    %p71 = por %p69, %p70
    %p73 = scmp.ne.s32.totalorder %s58, %s72
    %p74 = scmp.eq.s32.totalorder %s15, 0
    %p75 = por %p73, %p74
    %s77 = sadd.s32 %s76, 1
    %p80 = scmp.eq.s32.totalorder %s9, 1
    %p81 = scmp.ne.s32.totalorder %s76, %s78
    %p82 = scmp.eq.s32.totalorder %s9, 0
    %p83 = por %p81, %p82
    %p84 = scmp.ne.s32.totalorder %s76, %s78
    %p85 = scmp.eq.s32.totalorder %s14, 1
    %p86 = por %p84, %p85
    %p87 = scmp.ne.s32.totalorder %s78, %s79
    %p88 = scmp.eq.s32.totalorder %s14, 0
    %p89 = por %p87, %p88
    %p90 = scmp.ne.s32.totalorder %s78, %s79
    %p91 = scmp.eq.s32.totalorder %s15, 1
    %p92 = por %p90, %p91
    %p94 = scmp.ne.s32.totalorder %s79, %s93
    %p95 = scmp.eq.s32.totalorder %s15, 0
    %p96 = por %p94, %p95
    %s97 = ssub.s32 %s16, %s28
    %s98 = ssub.s32 %s17, %s24
    %s99 = sor.u32 %s97, %s98
    %p100 = scmp.eq.s32.totalorder %s99, 0
    %s102 = sadd.s32 %s101, 1
    %s103 = scalar_select %p100, %s101, %s102
    %p106 = pneg %p100
    %p107 = scmp.eq.s32.totalorder %s9, 1
    %p108 = por %p106, %p107
    %p109 = scmp.ne.s32.totalorder %s101, %s104
    %p110 = scmp.eq.s32.totalorder %s9, 0
    %p111 = por %p109, %p110
    %p112 = scmp.ne.s32.totalorder %s101, %s104
    %p113 = scmp.eq.s32.totalorder %s14, 1
    %p114 = por %p112, %p113
    %p115 = scmp.ne.s32.totalorder %s104, %s105
    %p116 = scmp.eq.s32.totalorder %s14, 0
    %p117 = por %p115, %p116
    %p118 = scmp.ne.s32.totalorder %s104, %s105
    %p119 = scmp.eq.s32.totalorder %s15, 1
    %p120 = por %p118, %p119
    %p122 = scmp.ne.s32.totalorder %s105, %s121
    %p123 = scmp.eq.s32.totalorder %s15, 0
    %p124 = por %p122, %p123
    %p125 = scmp.le.s32.totalorder 1, %s9
    %p126 = scmp.lt.s32.totalorder %s9, 3
    %p127 = pnand %p125, %p126
    %p128 = pneg %p127
    // Predicated region
    $region9: #{double_conv_forward.8} parent=5 // pred_check
      _
    $region10: #{double_conv_forward.8} parent=5 // pred_check_branch
      %130 = sbr.rel (%p127) target = $region12
    $region11: #{double_conv_forward.8} parent=5 // pred_region
      %s131 = ssub.s32 %s9, 1
      // Predicated region
      $region13: #{double_conv_forward.8} parent=11 // pred_check
        %p132 = pneg %p68
      $region14: #{double_conv_forward.8} parent=11 // pred_check_branch
        %134 = sbr.rel (%p132) target = $region16
      $region15: #{double_conv_forward.8} parent=11 // pred_region
        _
      $region16: #{double_conv_forward.8} parent=11 // pred_fallthru
        _
      // Predicated region
      $region17: #{double_conv_forward.8} parent=11 // pred_check
        %p135 = pneg %p89
      $region18: #{double_conv_forward.8} parent=11 // pred_check_branch
        %137 = sbr.rel (%p135) target = $region20
      $region19: #{double_conv_forward.8} parent=11 // pred_region
        _
      $region20: #{double_conv_forward.8} parent=11 // pred_fallthru
        _
    $region12: #{double_conv_forward.8} parent=5 // pred_fallthru
      _
    %p138 = scmp.lt.s32.totalorder %s9, 2
    // Predicated region
    $region21: #{double_conv_forward.8} parent=5 // pred_check
      %p139 = pneg %p138
    $region22: #{double_conv_forward.8} parent=5 // pred_check_branch
      %141 = sbr.rel (%p139) target = $region24
    $region23: #{double_conv_forward.8} parent=5 // pred_region
      // Predicated region
      $region25: #{double_conv_forward.8} parent=23 // pred_check
        %p142 = pneg %p41
      $region26: #{double_conv_forward.8} parent=23 // pred_check_branch
        %144 = sbr.rel (%p142) target = $region28
      $region27: #{double_conv_forward.8} parent=23 // pred_region
        %p145 = scmp.lt.s32.totalorder %s16, 1
        %s146 = scalar_select %p145, %s16, 1
        %s147 = smul.addr %s146, 54
        %s148 = smul.addr %s147, 4
        %s149 = scalar_lea.vmem %s0, %s148
      $region28: #{double_conv_forward.8} parent=23 // pred_fallthru
        _
    $region24: #{double_conv_forward.8} parent=5 // pred_fallthru
      _
    %p150 = scmp.le.s32.totalorder 1, %s9
    %p151 = scmp.lt.s32.totalorder %s9, 3
    %p152 = pnand %p150, %p151
    %p153 = pneg %p152
    // Predicated region
    $region29: #{double_conv_forward.8} parent=5 // pred_check
      _
    $region30: #{double_conv_forward.8} parent=5 // pred_check_branch
      %155 = sbr.rel (%p152) target = $region32
    $region31: #{double_conv_forward.8} parent=5 // pred_region
      %s156 = ssub.s32 %s9, 1
      %p157 = scmp.lt.s32.totalorder %s18, 1
      %s158 = scalar_select %p157, %s18, 1
      %s159 = smul.addr %s158, 54
      %s160 = smul.addr %s159, 4
      %s161 = scalar_lea.vmem %s0, %s160
      %p162 = pneg %p47
      %p163 = pneg %p44
      %p164 = pneg %p68
      %p165 = pneg %p65
      %p166 = pneg %p89
      %p167 = pneg %p86
      %p168 = pneg %p117
      %p169 = pneg %p114
      %s170 = smul.u32 16, %s19
      %p171 = scmp.lt.s32.totalorder %s18, 1
      %s172 = scalar_select %p171, %s18, 1
      %p173 = scmp.lt.s32.totalorder %s170, 15
      %s174 = scalar_select %p173, %s170, 15
      %s175 = smul.addr %s174, 2
      %s176 = smul.addr %s172, 32
      %s177 = sadd.s32 %s175, %s176
      %s178 = smul.addr %s177, 4
      %s179 = scalar_lea.vmem %s3, %s178
      %p180 = scmp.lt.s32.totalorder %s18, 1
      %s181 = scalar_select %p180, %s18, 1
      %s182 = smul.addr %s181, 54
      %s183 = smul.addr %s182, 4
      %s184 = scalar_lea.vmem %s0, %s183
      %s185 = smul.u32 16, %s19
      %p186 = scmp.lt.s32.totalorder %s18, 1
      %s187 = scalar_select %p186, %s18, 1
      %p188 = scmp.lt.s32.totalorder %s185, 15
      %s189 = scalar_select %p188, %s185, 15
      %s190 = smul.addr %s189, 2
      %s191 = smul.addr %s187, 32
      %s192 = sadd.s32 %s190, %s191
      %s193 = smul.addr %s192, 4
      %s194 = scalar_lea.vmem %s3, %s193
      %s195 = smul.u32 16, %s19
      %v196 = vld [vmem:[%s184] sm:$0xf]
      %v197 = vld [vmem:[%s184 + $0x4] sm:$0xf]
      %v198 = vld [vmem:[%s184 + $0x8] sm:$0x1]
      %v199 = vld [vmem:[%s184 + $0xc] sm:$0xf]
      %v200 = vld [vmem:[%s184 + $0x10] sm:$0xf]
      %v201 = vld [vmem:[%s184 + $0x14] sm:$0x1]
      %v202 = vld [vmem:[%s184 + $0x18] sm:$0xf]
      %v203 = vld [vmem:[%s184 + $0x1c] sm:$0xf]
      %v204 = vld [vmem:[%s184 + $0x20] sm:$0x1]
      %v205 = vld [vmem:[%s184 + $0x24] sm:$0xf]
      %v206 = vld [vmem:[%s184 + $0x28] sm:$0xf]
      %v207 = vld [vmem:[%s184 + $0x2c] sm:$0x1]
      %v208 = vld [vmem:[%s184 + $0x30] sm:$0xf]
      %v209 = vld [vmem:[%s184 + $0x34] sm:$0xf]
      %v210 = vld [vmem:[%s184 + $0x38] sm:$0x1]
      %v211 = vld [vmem:[%s184 + $0x3c] sm:$0xf]
      %v212 = vld [vmem:[%s184 + $0x40] sm:$0xf]
      %v213 = vld [vmem:[%s184 + $0x44] sm:$0x1]
      %v214 = vld [vmem:[%s184 + $0x48] sm:$0xf]
      %v215 = vld [vmem:[%s184 + $0x4c] sm:$0xf]
      %v216 = vld [vmem:[%s184 + $0x50] sm:$0x1]
      %v217 = vld [vmem:[%s184 + $0x54] sm:$0xf]
      %v218 = vld [vmem:[%s184 + $0x58] sm:$0xf]
      %v219 = vld [vmem:[%s184 + $0x5c] sm:$0x1]
      %v220 = vld [vmem:[%s184 + $0x60] sm:$0xf]
      %v221 = vld [vmem:[%s184 + $0x64] sm:$0xf]
      %v222 = vld [vmem:[%s184 + $0x68] sm:$0x1]
      %v223 = vld [vmem:[%s184 + $0x6c] sm:$0xf]
      %v224 = vld [vmem:[%s184 + $0x70] sm:$0xf]
      %v225 = vld [vmem:[%s184 + $0x74] sm:$0x1]
      %v226 = vld [vmem:[%s184 + $0x78] sm:$0xf]
      %v227 = vld [vmem:[%s184 + $0x7c] sm:$0xf]
      %v228 = vld [vmem:[%s184 + $0x80] sm:$0x1]
      %v229 = vld [vmem:[%s184 + $0x84] sm:$0xf]
      %v230 = vld [vmem:[%s184 + $0x88] sm:$0xf]
      %v231 = vld [vmem:[%s184 + $0x8c] sm:$0x1]
      %v232 = vld [vmem:[%s184 + $0x90] sm:$0xf]
      %v233 = vld [vmem:[%s184 + $0x94] sm:$0xf]
      %v234 = vld [vmem:[%s184 + $0x98] sm:$0x1]
      %v235 = vld [vmem:[%s184 + $0x9c] sm:$0xf]
      %v236 = vld [vmem:[%s184 + $0xa0] sm:$0xf]
      %v237 = vld [vmem:[%s184 + $0xa4] sm:$0x1]
      %v238 = vld [vmem:[%s184 + $0xa8] sm:$0xf]
      %v239 = vld [vmem:[%s184 + $0xac] sm:$0xf]
      %v240 = vld [vmem:[%s184 + $0xb0] sm:$0x1]
      %v241 = vld [vmem:[%s184 + $0xb4] sm:$0xf]
      %v242 = vld [vmem:[%s184 + $0xb8] sm:$0xf]
      %v243 = vld [vmem:[%s184 + $0xbc] sm:$0x1]
      %v244 = vld [vmem:[%s1] sm:$0xf]
      %v245 = vld [vmem:[%s1 + $0x4] sm:$0xf]
      %v246 = vld [vmem:[%s1 + $0x8] sm:$0xf]
      %v247 = vld [vmem:[%s1 + $0xc] sm:$0xf]
      %v248 = vld [vmem:[%s1 + $0x10] sm:$0xf]
      %v249 = vld [vmem:[%s1 + $0x14] sm:$0xf]
      %v250 = vld [vmem:[%s1 + $0x18] sm:$0xf]
      %v251 = vld [vmem:[%s1 + $0x1c] sm:$0xf]
      %v252 = vld [vmem:[%s1 + $0x20] sm:$0xf]
      %v253 = vld [vmem:[%s1 + $0x24] sm:$0xf]
      %v254 = vld [vmem:[%s1 + $0x28] sm:$0xf]
      %v255 = vld [vmem:[%s1 + $0x2c] sm:$0xf]
      %v256 = vld [vmem:[%s1 + $0x30] sm:$0xf]
      %v257 = vld [vmem:[%s1 + $0x34] sm:$0xf]
      %v258 = vld [vmem:[%s1 + $0x38] sm:$0xf]
      %v259 = vld [vmem:[%s1 + $0x3c] sm:$0xf]
      %vm260 = vsmask.f32 3328
      %vm261 = vsmask.f32 7440
      %vm262 = vmor %vm260, %vm261
      %v264 = vshrl.u32 %v196, 16
      %v266 = vrot.slane %v264, 4
      %v267 = vshll.u32 %v196, 16
      %v269 = vrot.slane %v267, 5
      %v270 = vor.u32 %v266, %v269
      %v271 = vrot.slane %v270, 4
      %v273 = vshll.u32 %v197, 16
      %v275 = vrot.slane %v273, 5
      %v276 = vsel %vm262, %v271, %v275
      %v277 = vshrl.u32 %v197, 16
      %v279 = vrot.slane %v277, 4
      %v280 = vor.u32 %v279, %v275
      %v281 = vrot.slane %v280, 4
      %v283 = vshll.u32 %v198, 16
      %v285 = vrot.slane %v283, 5
      %v286 = vsel %vm262, %v281, %v285
      %v288 = vshrl.u32 %v199, 16
      %v290 = vrot.slane %v288, 4
      %v291 = vshll.u32 %v199, 16
      %v293 = vrot.slane %v291, 5
      %v294 = vor.u32 %v290, %v293
      %v295 = vrot.slane %v294, 4
      %v297 = vshll.u32 %v200, 16
      %v299 = vrot.slane %v297, 5
      %v300 = vsel %vm262, %v295, %v299
      %v301 = vshrl.u32 %v200, 16
      %v303 = vrot.slane %v301, 4
      %v304 = vor.u32 %v303, %v299
      %v305 = vrot.slane %v304, 4
      %v307 = vshll.u32 %v201, 16
      %v309 = vrot.slane %v307, 5
      %v310 = vsel %vm262, %v305, %v309
      %v312 = vshrl.u32 %v202, 16
      %v314 = vrot.slane %v312, 4
      %v315 = vshll.u32 %v202, 16
      %v317 = vrot.slane %v315, 5
      %v318 = vor.u32 %v314, %v317
      %v319 = vrot.slane %v318, 4
      %v321 = vshll.u32 %v203, 16
      %v323 = vrot.slane %v321, 5
      %v324 = vsel %vm262, %v319, %v323
      %v325 = vshrl.u32 %v203, 16
      %v327 = vrot.slane %v325, 4
      %v328 = vor.u32 %v327, %v323
      %v329 = vrot.slane %v328, 4
      %v331 = vshll.u32 %v204, 16
      %v333 = vrot.slane %v331, 5
      %v334 = vsel %vm262, %v329, %v333
      %v336 = vshrl.u32 %v205, 16
      %v338 = vrot.slane %v336, 4
      %v339 = vshll.u32 %v205, 16
      %v341 = vrot.slane %v339, 5
      %v342 = vor.u32 %v338, %v341
      %v343 = vrot.slane %v342, 4
      %v345 = vshll.u32 %v206, 16
      %v347 = vrot.slane %v345, 5
      %v348 = vsel %vm262, %v343, %v347
      %v349 = vshrl.u32 %v206, 16
      %v351 = vrot.slane %v349, 4
      %v352 = vor.u32 %v351, %v347
      %v353 = vrot.slane %v352, 4
      %v355 = vshll.u32 %v207, 16
      %v357 = vrot.slane %v355, 5
      %v358 = vsel %vm262, %v353, %v357
      %v360 = vshrl.u32 %v208, 16
      %v362 = vrot.slane %v360, 4
      %v363 = vshll.u32 %v208, 16
      %v365 = vrot.slane %v363, 5
      %v366 = vor.u32 %v362, %v365
      %v367 = vrot.slane %v366, 4
      %v369 = vshll.u32 %v209, 16
      %v371 = vrot.slane %v369, 5
      %v372 = vsel %vm262, %v367, %v371
      %v373 = vshrl.u32 %v209, 16
      %v375 = vrot.slane %v373, 4
      %v376 = vor.u32 %v375, %v371
      %v377 = vrot.slane %v376, 4
      %v379 = vshll.u32 %v210, 16
      %v381 = vrot.slane %v379, 5
      %v382 = vsel %vm262, %v377, %v381
      %v384 = vshrl.u32 %v211, 16
      %v386 = vrot.slane %v384, 4
      %v387 = vshll.u32 %v211, 16
      %v389 = vrot.slane %v387, 5
      %v390 = vor.u32 %v386, %v389
      %v391 = vrot.slane %v390, 4
      %v393 = vshll.u32 %v212, 16
      %v395 = vrot.slane %v393, 5
      %v396 = vsel %vm262, %v391, %v395
      %v397 = vshrl.u32 %v212, 16
      %v399 = vrot.slane %v397, 4
      %v400 = vor.u32 %v399, %v395
      %v401 = vrot.slane %v400, 4
      %v403 = vshll.u32 %v213, 16
      %v405 = vrot.slane %v403, 5
      %v406 = vsel %vm262, %v401, %v405
      %v408 = vshrl.u32 %v214, 16
      %v410 = vrot.slane %v408, 4
      %v411 = vshll.u32 %v214, 16
      %v413 = vrot.slane %v411, 5
      %v414 = vor.u32 %v410, %v413
      %v415 = vrot.slane %v414, 4
      %v417 = vshll.u32 %v215, 16
      %v419 = vrot.slane %v417, 5
      %v420 = vsel %vm262, %v415, %v419
      %v421 = vshrl.u32 %v215, 16
      %v423 = vrot.slane %v421, 4
      %v424 = vor.u32 %v423, %v419
      %v425 = vrot.slane %v424, 4
      %v427 = vshll.u32 %v216, 16
      %v429 = vrot.slane %v427, 5
      %v430 = vsel %vm262, %v425, %v429
      %v432 = vshrl.u32 %v217, 16
      %v434 = vrot.slane %v432, 4
      %v435 = vshll.u32 %v217, 16
      %v437 = vrot.slane %v435, 5
      %v438 = vor.u32 %v434, %v437
      %v439 = vrot.slane %v438, 4
      %v441 = vshll.u32 %v218, 16
      %v443 = vrot.slane %v441, 5
      %v444 = vsel %vm262, %v439, %v443
      %v445 = vshrl.u32 %v218, 16
      %v447 = vrot.slane %v445, 4
      %v448 = vor.u32 %v447, %v443
      %v449 = vrot.slane %v448, 4
      %v451 = vshll.u32 %v219, 16
      %v453 = vrot.slane %v451, 5
      %v454 = vsel %vm262, %v449, %v453
      %v456 = vshrl.u32 %v220, 16
      %v458 = vrot.slane %v456, 4
      %v459 = vshll.u32 %v220, 16
      %v461 = vrot.slane %v459, 5
      %v462 = vor.u32 %v458, %v461
      %v463 = vrot.slane %v462, 4
      %v465 = vshll.u32 %v221, 16
      %v467 = vrot.slane %v465, 5
      %v468 = vsel %vm262, %v463, %v467
      %v469 = vshrl.u32 %v221, 16
      %v471 = vrot.slane %v469, 4
      %v472 = vor.u32 %v471, %v467
      %v473 = vrot.slane %v472, 4
      %v475 = vshll.u32 %v222, 16
      %v477 = vrot.slane %v475, 5
      %v478 = vsel %vm262, %v473, %v477
      %v480 = vshrl.u32 %v223, 16
      %v482 = vrot.slane %v480, 4
      %v483 = vshll.u32 %v223, 16
      %v485 = vrot.slane %v483, 5
      %v486 = vor.u32 %v482, %v485
      %v487 = vrot.slane %v486, 4
      %v489 = vshll.u32 %v224, 16
      %v491 = vrot.slane %v489, 5
      %v492 = vsel %vm262, %v487, %v491
      %v493 = vshrl.u32 %v224, 16
      %v495 = vrot.slane %v493, 4
      %v496 = vor.u32 %v495, %v491
      %v497 = vrot.slane %v496, 4
      %v499 = vshll.u32 %v225, 16
      %v501 = vrot.slane %v499, 5
      %v502 = vsel %vm262, %v497, %v501
      %v504 = vshrl.u32 %v226, 16
      %v506 = vrot.slane %v504, 4
      %v507 = vshll.u32 %v226, 16
      %v509 = vrot.slane %v507, 5
      %v510 = vor.u32 %v506, %v509
      %v511 = vrot.slane %v510, 4
      %v513 = vshll.u32 %v227, 16
      %v515 = vrot.slane %v513, 5
      %v516 = vsel %vm262, %v511, %v515
      %v517 = vshrl.u32 %v227, 16
      %v519 = vrot.slane %v517, 4
      %v520 = vor.u32 %v519, %v515
      %v521 = vrot.slane %v520, 4
      %v523 = vshll.u32 %v228, 16
      %v525 = vrot.slane %v523, 5
      %v526 = vsel %vm262, %v521, %v525
      %v528 = vshrl.u32 %v229, 16
      %v530 = vrot.slane %v528, 4
      %v531 = vshll.u32 %v229, 16
      %v533 = vrot.slane %v531, 5
      %v534 = vor.u32 %v530, %v533
      %v535 = vrot.slane %v534, 4
      %v537 = vshll.u32 %v230, 16
      %v539 = vrot.slane %v537, 5
      %v540 = vsel %vm262, %v535, %v539
      %v541 = vshrl.u32 %v230, 16
      %v543 = vrot.slane %v541, 4
      %v544 = vor.u32 %v543, %v539
      %v545 = vrot.slane %v544, 4
      %v547 = vshll.u32 %v231, 16
      %v549 = vrot.slane %v547, 5
      %v550 = vsel %vm262, %v545, %v549
      %v552 = vshrl.u32 %v232, 16
      %v554 = vrot.slane %v552, 4
      %v555 = vshll.u32 %v232, 16
      %v557 = vrot.slane %v555, 5
      %v558 = vor.u32 %v554, %v557
      %v559 = vrot.slane %v558, 4
      %v561 = vshll.u32 %v233, 16
      %v563 = vrot.slane %v561, 5
      %v564 = vsel %vm262, %v559, %v563
      %v565 = vshrl.u32 %v233, 16
      %v567 = vrot.slane %v565, 4
      %v568 = vor.u32 %v567, %v563
      %v569 = vrot.slane %v568, 4
      %v571 = vshll.u32 %v234, 16
      %v573 = vrot.slane %v571, 5
      %v574 = vsel %vm262, %v569, %v573
      %v576 = vshrl.u32 %v235, 16
      %v578 = vrot.slane %v576, 4
      %v579 = vshll.u32 %v235, 16
      %v581 = vrot.slane %v579, 5
      %v582 = vor.u32 %v578, %v581
      %v583 = vrot.slane %v582, 4
      %v585 = vshll.u32 %v236, 16
      %v587 = vrot.slane %v585, 5
      %v588 = vsel %vm262, %v583, %v587
      %v589 = vshrl.u32 %v236, 16
      %v591 = vrot.slane %v589, 4
      %v592 = vor.u32 %v591, %v587
      %v593 = vrot.slane %v592, 4
      %v595 = vshll.u32 %v237, 16
      %v597 = vrot.slane %v595, 5
      %v598 = vsel %vm262, %v593, %v597
      %v600 = vshrl.u32 %v238, 16
      %v602 = vrot.slane %v600, 4
      %v603 = vshll.u32 %v238, 16
      %v605 = vrot.slane %v603, 5
      %v606 = vor.u32 %v602, %v605
      %v607 = vrot.slane %v606, 4
      %v609 = vshll.u32 %v239, 16
      %v611 = vrot.slane %v609, 5
      %v612 = vsel %vm262, %v607, %v611
      %v613 = vshrl.u32 %v239, 16
      %v615 = vrot.slane %v613, 4
      %v616 = vor.u32 %v615, %v611
      %v617 = vrot.slane %v616, 4
      %v619 = vshll.u32 %v240, 16
      %v621 = vrot.slane %v619, 5
      %v622 = vsel %vm262, %v617, %v621
      %v624 = vshrl.u32 %v241, 16
      %v626 = vrot.slane %v624, 4
      %v627 = vshll.u32 %v241, 16
      %v629 = vrot.slane %v627, 5
      %v630 = vor.u32 %v626, %v629
      %v631 = vrot.slane %v630, 4
      %v633 = vshll.u32 %v242, 16
      %v635 = vrot.slane %v633, 5
      %v636 = vsel %vm262, %v631, %v635
      %v637 = vshrl.u32 %v242, 16
      %v639 = vrot.slane %v637, 4
      %v640 = vor.u32 %v639, %v635
      %v641 = vrot.slane %v640, 4
      %v643 = vshll.u32 %v243, 16
      %v645 = vrot.slane %v643, 5
      %v646 = vsel %vm262, %v641, %v645
      %s647 = scalar_lea.vmem %s1, 64
      %v648 = vld [vmem:[%s647] sm:$0xf]
      %v649 = vld [vmem:[%s647 + $0x4] sm:$0xf]
      %v650 = vld [vmem:[%s647 + $0x8] sm:$0xf]
      %v651 = vld [vmem:[%s647 + $0xc] sm:$0xf]
      %v652 = vld [vmem:[%s647 + $0x10] sm:$0xf]
      %v653 = vld [vmem:[%s647 + $0x14] sm:$0xf]
      %v654 = vld [vmem:[%s647 + $0x18] sm:$0xf]
      %v655 = vld [vmem:[%s647 + $0x1c] sm:$0xf]
      %v656 = vld [vmem:[%s647 + $0x20] sm:$0xf]
      %v657 = vld [vmem:[%s647 + $0x24] sm:$0xf]
      %v658 = vld [vmem:[%s647 + $0x28] sm:$0xf]
      %v659 = vld [vmem:[%s647 + $0x2c] sm:$0xf]
      %v660 = vld [vmem:[%s647 + $0x30] sm:$0xf]
      %v661 = vld [vmem:[%s647 + $0x34] sm:$0xf]
      %v662 = vld [vmem:[%s647 + $0x38] sm:$0xf]
      %v663 = vld [vmem:[%s647 + $0x3c] sm:$0xf]
      %v664 = vunpack.c.l.b16 %v276
      %v665 = vunpack.c.l.b16 %v286
      %v666 = vunpack.c.l.b16 %v300
      %v667 = vunpack.c.l.b16 %v310
      %v668 = vunpack.c.l.b16 %v324
      %v669 = vunpack.c.l.b16 %v334
      %v670 = vunpack.c.l.b16 %v348
      %v671 = vunpack.c.l.b16 %v358
      %v672 = vunpack.c.l.b16 %v372
      %v673 = vunpack.c.l.b16 %v382
      %v674 = vunpack.c.l.b16 %v396
      %v675 = vunpack.c.l.b16 %v406
      %v676 = vunpack.c.l.b16 %v420
      %v677 = vunpack.c.l.b16 %v430
      %v678 = vunpack.c.l.b16 %v444
      %v679 = vunpack.c.l.b16 %v454
      %v680 = vunpack.c.l.b16 %v468
      %v681 = vunpack.c.l.b16 %v478
      %v682 = vunpack.c.l.b16 %v492
      %v683 = vunpack.c.l.b16 %v502
      %v684 = vunpack.c.l.b16 %v516
      %v685 = vunpack.c.l.b16 %v526
      %v686 = vunpack.c.l.b16 %v540
      %v687 = vunpack.c.l.b16 %v550
      %v688 = vunpack.c.l.b16 %v564
      %v689 = vunpack.c.l.b16 %v574
      %v690 = vunpack.c.l.b16 %v588
      %v691 = vunpack.c.l.b16 %v598
      %v692 = vunpack.c.l.b16 %v612
      %v693 = vunpack.c.l.b16 %v622
      %v694 = vunpack.c.l.b16 %v636
      %v695 = vunpack.c.l.b16 %v646
      %v696 = vpack.c.b16 %v665, %v664
      %v697 = vpack.c.b16 %v667, %v666
      %v698 = vpack.c.b16 %v669, %v668
      %v699 = vpack.c.b16 %v671, %v670
      %v700 = vpack.c.b16 %v673, %v672
      %v701 = vpack.c.b16 %v675, %v674
      %v702 = vpack.c.b16 %v677, %v676
      %v703 = vpack.c.b16 %v679, %v678
      %v704 = vpack.c.b16 %v681, %v680
      %v705 = vpack.c.b16 %v683, %v682
      %v706 = vpack.c.b16 %v685, %v684
      %v707 = vpack.c.b16 %v687, %v686
      %v708 = vpack.c.b16 %v689, %v688
      %v709 = vpack.c.b16 %v691, %v690
      %v710 = vpack.c.b16 %v693, %v692
      %v711 = vpack.c.b16 %v695, %v694
      %v744 = vunpack.c.l.b16 %v648
      %v745 = vunpack.c.l.b16 %v649
      %v746 = vunpack.c.l.b16 %v650
      %v747 = vunpack.c.l.b16 %v651
      %v748 = vunpack.c.l.b16 %v652
      %v749 = vunpack.c.l.b16 %v653
      %v750 = vunpack.c.l.b16 %v654
      %v751 = vunpack.c.l.b16 %v655
      %v752 = vunpack.c.l.b16 %v656
      %v753 = vunpack.c.l.b16 %v657
      %v754 = vunpack.c.l.b16 %v658
      %v755 = vunpack.c.l.b16 %v659
      %v756 = vunpack.c.l.b16 %v660
      %v757 = vunpack.c.l.b16 %v661
      %v758 = vunpack.c.l.b16 %v662
      %v759 = vunpack.c.l.b16 %v663
      %v760 = vpack.c.b16 %v745, %v744
      %v761 = vpack.c.b16 %v747, %v746
      %v762 = vpack.c.b16 %v749, %v748
      %v763 = vpack.c.b16 %v751, %v750
      %v764 = vpack.c.b16 %v753, %v752
      %v765 = vpack.c.b16 %v755, %v754
      %v766 = vpack.c.b16 %v757, %v756
      %v767 = vpack.c.b16 %v759, %v758
      %776 = vmatpush.bf16.msra.mxu0 %v767
      %777 = vmatpush.bf16.msra.mxu0 %v766
      %778 = vmatpush.bf16.msra.mxu0 %v765
      %779 = vmatpush.bf16.msra.mxu0 %v764
      %780 = vmatpush.bf16.msra.mxu0 %v763
      %781 = vmatpush.bf16.msra.mxu0 %v762
      %782 = vmatpush.bf16.msra.mxu0 %v761
      %783 = vmatpush.bf16.msra.mxu0 %v760
      %784 = vmatmul.bf16.gmra.mxu0 %v696
      %v785 = vpop.f32.mrf.mxu0
      %v786 = vadd.f32 0.0, %v785
      %v787 = vpop.f32.mrf.mxu0
      %v788 = vadd.f32 0.0, %v787
      %789 = vmatmul.bf16.gmra.mxu0 %v697
      %v790 = vpop.f32.mrf.mxu0
      %v791 = vadd.f32 0.0, %v790
      %v792 = vpop.f32.mrf.mxu0
      %v793 = vadd.f32 0.0, %v792
      %794 = vmatmul.bf16.gmra.mxu0 %v698
      %v795 = vpop.f32.mrf.mxu0
      %v796 = vadd.f32 0.0, %v795
      %v797 = vpop.f32.mrf.mxu0
      %v798 = vadd.f32 0.0, %v797
      %799 = vmatmul.bf16.gmra.mxu0 %v699
      %v800 = vpop.f32.mrf.mxu0
      %v801 = vadd.f32 0.0, %v800
      %v802 = vpop.f32.mrf.mxu0
      %v803 = vadd.f32 0.0, %v802
      %804 = vmatmul.bf16.gmra.mxu0 %v700
      %v805 = vpop.f32.mrf.mxu0
      %v806 = vadd.f32 0.0, %v805
      %v807 = vpop.f32.mrf.mxu0
      %v808 = vadd.f32 0.0, %v807
      %809 = vmatmul.bf16.gmra.mxu0 %v701
      %v810 = vpop.f32.mrf.mxu0
      %v811 = vadd.f32 0.0, %v810
      %v812 = vpop.f32.mrf.mxu0
      %v813 = vadd.f32 0.0, %v812
      %814 = vmatmul.bf16.gmra.mxu0 %v702
      %v815 = vpop.f32.mrf.mxu0
      %v816 = vadd.f32 0.0, %v815
      %v817 = vpop.f32.mrf.mxu0
      %v818 = vadd.f32 0.0, %v817
      %819 = vmatmul.bf16.gmra.mxu0 %v703
      %v820 = vpop.f32.mrf.mxu0
      %v821 = vadd.f32 0.0, %v820
      %v822 = vpop.f32.mrf.mxu0
      %v823 = vadd.f32 0.0, %v822
      %824 = vmatmul.bf16.gmra.mxu0 %v704
      %v825 = vpop.f32.mrf.mxu0
      %v826 = vadd.f32 0.0, %v825
      %v827 = vpop.f32.mrf.mxu0
      %v828 = vadd.f32 0.0, %v827
      %829 = vmatmul.bf16.gmra.mxu0 %v705
      %v830 = vpop.f32.mrf.mxu0
      %v831 = vadd.f32 0.0, %v830
      %v832 = vpop.f32.mrf.mxu0
      %v833 = vadd.f32 0.0, %v832
      %834 = vmatmul.bf16.gmra.mxu0 %v706
      %v835 = vpop.f32.mrf.mxu0
      %v836 = vadd.f32 0.0, %v835
      %v837 = vpop.f32.mrf.mxu0
      %v838 = vadd.f32 0.0, %v837
      %839 = vmatmul.bf16.gmra.mxu0 %v707
      %v840 = vpop.f32.mrf.mxu0
      %v841 = vadd.f32 0.0, %v840
      %v842 = vpop.f32.mrf.mxu0
      %v843 = vadd.f32 0.0, %v842
      %844 = vmatmul.bf16.gmra.mxu0 %v708
      %v845 = vpop.f32.mrf.mxu0
      %v846 = vadd.f32 0.0, %v845
      %v847 = vpop.f32.mrf.mxu0
      %v848 = vadd.f32 0.0, %v847
      %849 = vmatmul.bf16.gmra.mxu0 %v709
      %v850 = vpop.f32.mrf.mxu0
      %v851 = vadd.f32 0.0, %v850
      %v852 = vpop.f32.mrf.mxu0
      %v853 = vadd.f32 0.0, %v852
      %854 = vmatmul.bf16.gmra.mxu0 %v710
      %v855 = vpop.f32.mrf.mxu0
      %v856 = vadd.f32 0.0, %v855
      %v857 = vpop.f32.mrf.mxu0
      %v858 = vadd.f32 0.0, %v857
      %859 = vmatmul.bf16.gmra.mxu0 %v711
      %v860 = vpop.f32.mrf.mxu0
      %v861 = vadd.f32 0.0, %v860
      %v862 = vpop.f32.mrf.mxu0
      %v863 = vadd.f32 0.0, %v862
      %864 = vdwg.mxu0
      %v897 = vunpack.c.l.b16 %v196
      %v898 = vunpack.c.l.b16 %v197
      %v899 = vunpack.c.l.b16 %v199
      %v900 = vunpack.c.l.b16 %v200
      %v901 = vunpack.c.l.b16 %v202
      %v902 = vunpack.c.l.b16 %v203
      %v903 = vunpack.c.l.b16 %v205
      %v904 = vunpack.c.l.b16 %v206
      %v905 = vunpack.c.l.b16 %v208
      %v906 = vunpack.c.l.b16 %v209
      %v907 = vunpack.c.l.b16 %v211
      %v908 = vunpack.c.l.b16 %v212
      %v909 = vunpack.c.l.b16 %v214
      %v910 = vunpack.c.l.b16 %v215
      %v911 = vunpack.c.l.b16 %v217
      %v912 = vunpack.c.l.b16 %v218
      %v913 = vunpack.c.l.b16 %v220
      %v914 = vunpack.c.l.b16 %v221
      %v915 = vunpack.c.l.b16 %v223
      %v916 = vunpack.c.l.b16 %v224
      %v917 = vunpack.c.l.b16 %v226
      %v918 = vunpack.c.l.b16 %v227
      %v919 = vunpack.c.l.b16 %v229
      %v920 = vunpack.c.l.b16 %v230
      %v921 = vunpack.c.l.b16 %v232
      %v922 = vunpack.c.l.b16 %v233
      %v923 = vunpack.c.l.b16 %v235
      %v924 = vunpack.c.l.b16 %v236
      %v925 = vunpack.c.l.b16 %v238
      %v926 = vunpack.c.l.b16 %v239
      %v927 = vunpack.c.l.b16 %v241
      %v928 = vunpack.c.l.b16 %v242
      %v929 = vpack.c.b16 %v898, %v897
      %v930 = vpack.c.b16 %v900, %v899
      %v931 = vpack.c.b16 %v902, %v901
      %v932 = vpack.c.b16 %v904, %v903
      %v933 = vpack.c.b16 %v906, %v905
      %v934 = vpack.c.b16 %v908, %v907
      %v935 = vpack.c.b16 %v910, %v909
      %v936 = vpack.c.b16 %v912, %v911
      %v937 = vpack.c.b16 %v914, %v913
      %v938 = vpack.c.b16 %v916, %v915
      %v939 = vpack.c.b16 %v918, %v917
      %v940 = vpack.c.b16 %v920, %v919
      %v941 = vpack.c.b16 %v922, %v921
      %v942 = vpack.c.b16 %v924, %v923
      %v943 = vpack.c.b16 %v926, %v925
      %v944 = vpack.c.b16 %v928, %v927
      %v977 = vunpack.c.l.b16 %v244
      %v978 = vunpack.c.l.b16 %v245
      %v979 = vunpack.c.l.b16 %v246
      %v980 = vunpack.c.l.b16 %v247
      %v981 = vunpack.c.l.b16 %v248
      %v982 = vunpack.c.l.b16 %v249
      %v983 = vunpack.c.l.b16 %v250
      %v984 = vunpack.c.l.b16 %v251
      %v985 = vunpack.c.l.b16 %v252
      %v986 = vunpack.c.l.b16 %v253
      %v987 = vunpack.c.l.b16 %v254
      %v988 = vunpack.c.l.b16 %v255
      %v989 = vunpack.c.l.b16 %v256
      %v990 = vunpack.c.l.b16 %v257
      %v991 = vunpack.c.l.b16 %v258
      %v992 = vunpack.c.l.b16 %v259
      %v993 = vpack.c.b16 %v978, %v977
      %v994 = vpack.c.b16 %v980, %v979
      %v995 = vpack.c.b16 %v982, %v981
      %v996 = vpack.c.b16 %v984, %v983
      %v997 = vpack.c.b16 %v986, %v985
      %v998 = vpack.c.b16 %v988, %v987
      %v999 = vpack.c.b16 %v990, %v989
      %v1000 = vpack.c.b16 %v992, %v991
      %1009 = vmatpush.bf16.msra.mxu0 %v1000
      %1010 = vmatpush.bf16.msra.mxu0 %v999
      %1011 = vmatpush.bf16.msra.mxu0 %v998
      %1012 = vmatpush.bf16.msra.mxu0 %v997
      %1013 = vmatpush.bf16.msra.mxu0 %v996
      %1014 = vmatpush.bf16.msra.mxu0 %v995
      %1015 = vmatpush.bf16.msra.mxu0 %v994
      %1016 = vmatpush.bf16.msra.mxu0 %v993
      %1017 = vmatmul.bf16.gmra.mxu0 %v929
      %v1018 = vpop.f32.mrf.mxu0
      %v1019 = vadd.f32 %v786, %v1018
      %v1020 = vpop.f32.mrf.mxu0
      %v1021 = vadd.f32 %v788, %v1020
      %1022 = vmatmul.bf16.gmra.mxu0 %v930
      %v1023 = vpop.f32.mrf.mxu0
      %v1024 = vadd.f32 %v791, %v1023
      %v1025 = vpop.f32.mrf.mxu0
      %v1026 = vadd.f32 %v793, %v1025
      %1027 = vmatmul.bf16.gmra.mxu0 %v931
      %v1028 = vpop.f32.mrf.mxu0
      %v1029 = vadd.f32 %v796, %v1028
      %v1030 = vpop.f32.mrf.mxu0
      %v1031 = vadd.f32 %v798, %v1030
      %1032 = vmatmul.bf16.gmra.mxu0 %v932
      %v1033 = vpop.f32.mrf.mxu0
      %v1034 = vadd.f32 %v801, %v1033
      %v1035 = vpop.f32.mrf.mxu0
      %v1036 = vadd.f32 %v803, %v1035
      %1037 = vmatmul.bf16.gmra.mxu0 %v933
      %v1038 = vpop.f32.mrf.mxu0
      %v1039 = vadd.f32 %v806, %v1038
      %v1040 = vpop.f32.mrf.mxu0
      %v1041 = vadd.f32 %v808, %v1040
      %1042 = vmatmul.bf16.gmra.mxu0 %v934
      %v1043 = vpop.f32.mrf.mxu0
      %v1044 = vadd.f32 %v811, %v1043
      %v1045 = vpop.f32.mrf.mxu0
      %v1046 = vadd.f32 %v813, %v1045
      %1047 = vmatmul.bf16.gmra.mxu0 %v935
      %v1048 = vpop.f32.mrf.mxu0
      %v1049 = vadd.f32 %v816, %v1048
      %v1050 = vpop.f32.mrf.mxu0
      %v1051 = vadd.f32 %v818, %v1050
      %1052 = vmatmul.bf16.gmra.mxu0 %v936
      %v1053 = vpop.f32.mrf.mxu0
      %v1054 = vadd.f32 %v821, %v1053
      %v1055 = vpop.f32.mrf.mxu0
      %v1056 = vadd.f32 %v823, %v1055
      %1057 = vmatmul.bf16.gmra.mxu0 %v937
      %v1058 = vpop.f32.mrf.mxu0
      %v1059 = vadd.f32 %v826, %v1058
      %v1060 = vpop.f32.mrf.mxu0
      %v1061 = vadd.f32 %v828, %v1060
      %1062 = vmatmul.bf16.gmra.mxu0 %v938
      %v1063 = vpop.f32.mrf.mxu0
      %v1064 = vadd.f32 %v831, %v1063
      %v1065 = vpop.f32.mrf.mxu0
      %v1066 = vadd.f32 %v833, %v1065
      %1067 = vmatmul.bf16.gmra.mxu0 %v939
      %v1068 = vpop.f32.mrf.mxu0
      %v1069 = vadd.f32 %v836, %v1068
      %v1070 = vpop.f32.mrf.mxu0
      %v1071 = vadd.f32 %v838, %v1070
      %1072 = vmatmul.bf16.gmra.mxu0 %v940
      %v1073 = vpop.f32.mrf.mxu0
      %v1074 = vadd.f32 %v841, %v1073
      %v1075 = vpop.f32.mrf.mxu0
      %v1076 = vadd.f32 %v843, %v1075
      %1077 = vmatmul.bf16.gmra.mxu0 %v941
      %v1078 = vpop.f32.mrf.mxu0
      %v1079 = vadd.f32 %v846, %v1078
      %v1080 = vpop.f32.mrf.mxu0
      %v1081 = vadd.f32 %v848, %v1080
      %1082 = vmatmul.bf16.gmra.mxu0 %v942
      %v1083 = vpop.f32.mrf.mxu0
      %v1084 = vadd.f32 %v851, %v1083
      %v1085 = vpop.f32.mrf.mxu0
      %v1086 = vadd.f32 %v853, %v1085
      %1087 = vmatmul.bf16.gmra.mxu0 %v943
      %v1088 = vpop.f32.mrf.mxu0
      %v1089 = vadd.f32 %v856, %v1088
      %v1090 = vpop.f32.mrf.mxu0
      %v1091 = vadd.f32 %v858, %v1090
      %1092 = vmatmul.bf16.gmra.mxu0 %v944
      %v1093 = vpop.f32.mrf.mxu0
      %v1094 = vadd.f32 %v861, %v1093
      %v1095 = vpop.f32.mrf.mxu0
      %v1096 = vadd.f32 %v863, %v1095
      %1097 = vdwg.mxu0
      %vm1114 = vcmask 1042432
      %vm1115 = vcmask 1046532
      %vm1116 = vmor %vm1114, %vm1115
      %v1117 = vrot.slane %v196, 5
      %v1118 = vrot.slane %v1117, 4
      %v1119 = vrot.slane %v197, 5
      %v1120 = vsel %vm1116, %v1118, %v1119
      %v1121 = vrot.slane %v1119, 4
      %v1122 = vrot.slane %v198, 5
      %v1123 = vsel %vm1116, %v1121, %v1122
      %v1124 = vrot.slane %v199, 5
      %v1125 = vrot.slane %v1124, 4
      %v1126 = vrot.slane %v200, 5
      %v1127 = vsel %vm1116, %v1125, %v1126
      %v1128 = vrot.slane %v1126, 4
      %v1129 = vrot.slane %v201, 5
      %v1130 = vsel %vm1116, %v1128, %v1129
      %v1131 = vrot.slane %v202, 5
      %v1132 = vrot.slane %v1131, 4
      %v1133 = vrot.slane %v203, 5
      %v1134 = vsel %vm1116, %v1132, %v1133
      %v1135 = vrot.slane %v1133, 4
      %v1136 = vrot.slane %v204, 5
      %v1137 = vsel %vm1116, %v1135, %v1136
      %v1138 = vrot.slane %v205, 5
      %v1139 = vrot.slane %v1138, 4
      %v1140 = vrot.slane %v206, 5
      %v1141 = vsel %vm1116, %v1139, %v1140
      %v1142 = vrot.slane %v1140, 4
      %v1143 = vrot.slane %v207, 5
      %v1144 = vsel %vm1116, %v1142, %v1143
      %v1145 = vrot.slane %v208, 5
      %v1146 = vrot.slane %v1145, 4
      %v1147 = vrot.slane %v209, 5
      %v1148 = vsel %vm1116, %v1146, %v1147
      %v1149 = vrot.slane %v1147, 4
      %v1150 = vrot.slane %v210, 5
      %v1151 = vsel %vm1116, %v1149, %v1150
      %v1152 = vrot.slane %v211, 5
      %v1153 = vrot.slane %v1152, 4
      %v1154 = vrot.slane %v212, 5
      %v1155 = vsel %vm1116, %v1153, %v1154
      %v1156 = vrot.slane %v1154, 4
      %v1157 = vrot.slane %v213, 5
      %v1158 = vsel %vm1116, %v1156, %v1157
      %v1159 = vrot.slane %v214, 5
      %v1160 = vrot.slane %v1159, 4
      %v1161 = vrot.slane %v215, 5
      %v1162 = vsel %vm1116, %v1160, %v1161
      %v1163 = vrot.slane %v1161, 4
      %v1164 = vrot.slane %v216, 5
      %v1165 = vsel %vm1116, %v1163, %v1164
      %v1166 = vrot.slane %v217, 5
      %v1167 = vrot.slane %v1166, 4
      %v1168 = vrot.slane %v218, 5
      %v1169 = vsel %vm1116, %v1167, %v1168
      %v1170 = vrot.slane %v1168, 4
      %v1171 = vrot.slane %v219, 5
      %v1172 = vsel %vm1116, %v1170, %v1171
      %v1173 = vrot.slane %v220, 5
      %v1174 = vrot.slane %v1173, 4
      %v1175 = vrot.slane %v221, 5
      %v1176 = vsel %vm1116, %v1174, %v1175
      %v1177 = vrot.slane %v1175, 4
      %v1178 = vrot.slane %v222, 5
      %v1179 = vsel %vm1116, %v1177, %v1178
      %v1180 = vrot.slane %v223, 5
      %v1181 = vrot.slane %v1180, 4
      %v1182 = vrot.slane %v224, 5
      %v1183 = vsel %vm1116, %v1181, %v1182
      %v1184 = vrot.slane %v1182, 4
      %v1185 = vrot.slane %v225, 5
      %v1186 = vsel %vm1116, %v1184, %v1185
      %v1187 = vrot.slane %v226, 5
      %v1188 = vrot.slane %v1187, 4
      %v1189 = vrot.slane %v227, 5
      %v1190 = vsel %vm1116, %v1188, %v1189
      %v1191 = vrot.slane %v1189, 4
      %v1192 = vrot.slane %v228, 5
      %v1193 = vsel %vm1116, %v1191, %v1192
      %v1194 = vrot.slane %v229, 5
      %v1195 = vrot.slane %v1194, 4
      %v1196 = vrot.slane %v230, 5
      %v1197 = vsel %vm1116, %v1195, %v1196
      %v1198 = vrot.slane %v1196, 4
      %v1199 = vrot.slane %v231, 5
      %v1200 = vsel %vm1116, %v1198, %v1199
      %v1201 = vrot.slane %v232, 5
      %v1202 = vrot.slane %v1201, 4
      %v1203 = vrot.slane %v233, 5
      %v1204 = vsel %vm1116, %v1202, %v1203
      %v1205 = vrot.slane %v1203, 4
      %v1206 = vrot.slane %v234, 5
      %v1207 = vsel %vm1116, %v1205, %v1206
      %v1208 = vrot.slane %v235, 5
      %v1209 = vrot.slane %v1208, 4
      %v1210 = vrot.slane %v236, 5
      %v1211 = vsel %vm1116, %v1209, %v1210
      %v1212 = vrot.slane %v1210, 4
      %v1213 = vrot.slane %v237, 5
      %v1214 = vsel %vm1116, %v1212, %v1213
      %v1215 = vrot.slane %v238, 5
      %v1216 = vrot.slane %v1215, 4
      %v1217 = vrot.slane %v239, 5
      %v1218 = vsel %vm1116, %v1216, %v1217
      %v1219 = vrot.slane %v1217, 4
      %v1220 = vrot.slane %v240, 5
      %v1221 = vsel %vm1116, %v1219, %v1220
      %v1222 = vrot.slane %v241, 5
      %v1223 = vrot.slane %v1222, 4
      %v1224 = vrot.slane %v242, 5
      %v1225 = vsel %vm1116, %v1223, %v1224
      %v1226 = vrot.slane %v1224, 4
      %v1227 = vrot.slane %v243, 5
      %v1228 = vsel %vm1116, %v1226, %v1227
      %s1229 = scalar_lea.vmem %s1, 128
      %v1230 = vld [vmem:[%s1229] sm:$0xf]
      %v1231 = vld [vmem:[%s1229 + $0x4] sm:$0xf]
      %v1232 = vld [vmem:[%s1229 + $0x8] sm:$0xf]
      %v1233 = vld [vmem:[%s1229 + $0xc] sm:$0xf]
      %v1234 = vld [vmem:[%s1229 + $0x10] sm:$0xf]
      %v1235 = vld [vmem:[%s1229 + $0x14] sm:$0xf]
      %v1236 = vld [vmem:[%s1229 + $0x18] sm:$0xf]
      %v1237 = vld [vmem:[%s1229 + $0x1c] sm:$0xf]
      %v1238 = vld [vmem:[%s1229 + $0x20] sm:$0xf]
      %v1239 = vld [vmem:[%s1229 + $0x24] sm:$0xf]
      %v1240 = vld [vmem:[%s1229 + $0x28] sm:$0xf]
      %v1241 = vld [vmem:[%s1229 + $0x2c] sm:$0xf]
      %v1242 = vld [vmem:[%s1229 + $0x30] sm:$0xf]
      %v1243 = vld [vmem:[%s1229 + $0x34] sm:$0xf]
      %v1244 = vld [vmem:[%s1229 + $0x38] sm:$0xf]
      %v1245 = vld [vmem:[%s1229 + $0x3c] sm:$0xf]
      %v1246 = vunpack.c.l.b16 %v1120
      %v1247 = vunpack.c.l.b16 %v1123
      %v1248 = vunpack.c.l.b16 %v1127
      %v1249 = vunpack.c.l.b16 %v1130
      %v1250 = vunpack.c.l.b16 %v1134
      %v1251 = vunpack.c.l.b16 %v1137
      %v1252 = vunpack.c.l.b16 %v1141
      %v1253 = vunpack.c.l.b16 %v1144
      %v1254 = vunpack.c.l.b16 %v1148
      %v1255 = vunpack.c.l.b16 %v1151
      %v1256 = vunpack.c.l.b16 %v1155
      %v1257 = vunpack.c.l.b16 %v1158
      %v1258 = vunpack.c.l.b16 %v1162
      %v1259 = vunpack.c.l.b16 %v1165
      %v1260 = vunpack.c.l.b16 %v1169
      %v1261 = vunpack.c.l.b16 %v1172
      %v1262 = vunpack.c.l.b16 %v1176
      %v1263 = vunpack.c.l.b16 %v1179
      %v1264 = vunpack.c.l.b16 %v1183
      %v1265 = vunpack.c.l.b16 %v1186
      %v1266 = vunpack.c.l.b16 %v1190
      %v1267 = vunpack.c.l.b16 %v1193
      %v1268 = vunpack.c.l.b16 %v1197
      %v1269 = vunpack.c.l.b16 %v1200
      %v1270 = vunpack.c.l.b16 %v1204
      %v1271 = vunpack.c.l.b16 %v1207
      %v1272 = vunpack.c.l.b16 %v1211
      %v1273 = vunpack.c.l.b16 %v1214
      %v1274 = vunpack.c.l.b16 %v1218
      %v1275 = vunpack.c.l.b16 %v1221
      %v1276 = vunpack.c.l.b16 %v1225
      %v1277 = vunpack.c.l.b16 %v1228
      %v1278 = vpack.c.b16 %v1247, %v1246
      %v1279 = vpack.c.b16 %v1249, %v1248
      %v1280 = vpack.c.b16 %v1251, %v1250
      %v1281 = vpack.c.b16 %v1253, %v1252
      %v1282 = vpack.c.b16 %v1255, %v1254
      %v1283 = vpack.c.b16 %v1257, %v1256
      %v1284 = vpack.c.b16 %v1259, %v1258
      %v1285 = vpack.c.b16 %v1261, %v1260
      %v1286 = vpack.c.b16 %v1263, %v1262
      %v1287 = vpack.c.b16 %v1265, %v1264
      %v1288 = vpack.c.b16 %v1267, %v1266
      %v1289 = vpack.c.b16 %v1269, %v1268
      %v1290 = vpack.c.b16 %v1271, %v1270
      %v1291 = vpack.c.b16 %v1273, %v1272
      %v1292 = vpack.c.b16 %v1275, %v1274
      %v1293 = vpack.c.b16 %v1277, %v1276
      %v1326 = vunpack.c.l.b16 %v1230
      %v1327 = vunpack.c.l.b16 %v1231
      %v1328 = vunpack.c.l.b16 %v1232
      %v1329 = vunpack.c.l.b16 %v1233
      %v1330 = vunpack.c.l.b16 %v1234
      %v1331 = vunpack.c.l.b16 %v1235
      %v1332 = vunpack.c.l.b16 %v1236
      %v1333 = vunpack.c.l.b16 %v1237
      %v1334 = vunpack.c.l.b16 %v1238
      %v1335 = vunpack.c.l.b16 %v1239
      %v1336 = vunpack.c.l.b16 %v1240
      %v1337 = vunpack.c.l.b16 %v1241
      %v1338 = vunpack.c.l.b16 %v1242
      %v1339 = vunpack.c.l.b16 %v1243
      %v1340 = vunpack.c.l.b16 %v1244
      %v1341 = vunpack.c.l.b16 %v1245
      %v1342 = vpack.c.b16 %v1327, %v1326
      %v1343 = vpack.c.b16 %v1329, %v1328
      %v1344 = vpack.c.b16 %v1331, %v1330
      %v1345 = vpack.c.b16 %v1333, %v1332
      %v1346 = vpack.c.b16 %v1335, %v1334
      %v1347 = vpack.c.b16 %v1337, %v1336
      %v1348 = vpack.c.b16 %v1339, %v1338
      %v1349 = vpack.c.b16 %v1341, %v1340
      %1358 = vmatpush.bf16.msra.mxu0 %v1349
      %1359 = vmatpush.bf16.msra.mxu0 %v1348
      %1360 = vmatpush.bf16.msra.mxu0 %v1347
      %1361 = vmatpush.bf16.msra.mxu0 %v1346
      %1362 = vmatpush.bf16.msra.mxu0 %v1345
      %1363 = vmatpush.bf16.msra.mxu0 %v1344
      %1364 = vmatpush.bf16.msra.mxu0 %v1343
      %1365 = vmatpush.bf16.msra.mxu0 %v1342
      %1366 = vmatmul.bf16.gmra.mxu0 %v1278
      %v1367 = vpop.f32.mrf.mxu0
      %v1368 = vadd.f32 0.0, %v1367
      %v1369 = vpop.f32.mrf.mxu0
      %v1370 = vadd.f32 0.0, %v1369
      %1371 = vmatmul.bf16.gmra.mxu0 %v1279
      %v1372 = vpop.f32.mrf.mxu0
      %v1373 = vadd.f32 0.0, %v1372
      %v1374 = vpop.f32.mrf.mxu0
      %v1375 = vadd.f32 0.0, %v1374
      %1376 = vmatmul.bf16.gmra.mxu0 %v1280
      %v1377 = vpop.f32.mrf.mxu0
      %v1378 = vadd.f32 0.0, %v1377
      %v1379 = vpop.f32.mrf.mxu0
      %v1380 = vadd.f32 0.0, %v1379
      %1381 = vmatmul.bf16.gmra.mxu0 %v1281
      %v1382 = vpop.f32.mrf.mxu0
      %v1383 = vadd.f32 0.0, %v1382
      %v1384 = vpop.f32.mrf.mxu0
      %v1385 = vadd.f32 0.0, %v1384
      %1386 = vmatmul.bf16.gmra.mxu0 %v1282
      %v1387 = vpop.f32.mrf.mxu0
      %v1388 = vadd.f32 0.0, %v1387
      %v1389 = vpop.f32.mrf.mxu0
      %v1390 = vadd.f32 0.0, %v1389
      %1391 = vmatmul.bf16.gmra.mxu0 %v1283
      %v1392 = vpop.f32.mrf.mxu0
      %v1393 = vadd.f32 0.0, %v1392
      %v1394 = vpop.f32.mrf.mxu0
      %v1395 = vadd.f32 0.0, %v1394
      %1396 = vmatmul.bf16.gmra.mxu0 %v1284
      %v1397 = vpop.f32.mrf.mxu0
      %v1398 = vadd.f32 0.0, %v1397
      %v1399 = vpop.f32.mrf.mxu0
      %v1400 = vadd.f32 0.0, %v1399
      %1401 = vmatmul.bf16.gmra.mxu0 %v1285
      %v1402 = vpop.f32.mrf.mxu0
      %v1403 = vadd.f32 0.0, %v1402
      %v1404 = vpop.f32.mrf.mxu0
      %v1405 = vadd.f32 0.0, %v1404
      %1406 = vmatmul.bf16.gmra.mxu0 %v1286
      %v1407 = vpop.f32.mrf.mxu0
      %v1408 = vadd.f32 0.0, %v1407
      %v1409 = vpop.f32.mrf.mxu0
      %v1410 = vadd.f32 0.0, %v1409
      %1411 = vmatmul.bf16.gmra.mxu0 %v1287
      %v1412 = vpop.f32.mrf.mxu0
      %v1413 = vadd.f32 0.0, %v1412
      %v1414 = vpop.f32.mrf.mxu0
      %v1415 = vadd.f32 0.0, %v1414
      %1416 = vmatmul.bf16.gmra.mxu0 %v1288
      %v1417 = vpop.f32.mrf.mxu0
      %v1418 = vadd.f32 0.0, %v1417
      %v1419 = vpop.f32.mrf.mxu0
      %v1420 = vadd.f32 0.0, %v1419
      %1421 = vmatmul.bf16.gmra.mxu0 %v1289
      %v1422 = vpop.f32.mrf.mxu0
      %v1423 = vadd.f32 0.0, %v1422
      %v1424 = vpop.f32.mrf.mxu0
      %v1425 = vadd.f32 0.0, %v1424
      %1426 = vmatmul.bf16.gmra.mxu0 %v1290
      %v1427 = vpop.f32.mrf.mxu0
      %v1428 = vadd.f32 0.0, %v1427
      %v1429 = vpop.f32.mrf.mxu0
      %v1430 = vadd.f32 0.0, %v1429
      %1431 = vmatmul.bf16.gmra.mxu0 %v1291
      %v1432 = vpop.f32.mrf.mxu0
      %v1433 = vadd.f32 0.0, %v1432
      %v1434 = vpop.f32.mrf.mxu0
      %v1435 = vadd.f32 0.0, %v1434
      %1436 = vmatmul.bf16.gmra.mxu0 %v1292
      %v1437 = vpop.f32.mrf.mxu0
      %v1438 = vadd.f32 0.0, %v1437
      %v1439 = vpop.f32.mrf.mxu0
      %v1440 = vadd.f32 0.0, %v1439
      %1441 = vmatmul.bf16.gmra.mxu0 %v1293
      %v1442 = vpop.f32.mrf.mxu0
      %v1443 = vadd.f32 0.0, %v1442
      %v1444 = vpop.f32.mrf.mxu0
      %v1445 = vadd.f32 0.0, %v1444
      %1446 = vdwg.mxu0
      %v1447 = vadd.f32 %v1019, %v1368
      %v1448 = vadd.f32 %v1021, %v1370
      %v1449 = vadd.f32 %v1024, %v1373
      %v1450 = vadd.f32 %v1026, %v1375
      %v1451 = vadd.f32 %v1029, %v1378
      %v1452 = vadd.f32 %v1031, %v1380
      %v1453 = vadd.f32 %v1034, %v1383
      %v1454 = vadd.f32 %v1036, %v1385
      %v1455 = vadd.f32 %v1039, %v1388
      %v1456 = vadd.f32 %v1041, %v1390
      %v1457 = vadd.f32 %v1044, %v1393
      %v1458 = vadd.f32 %v1046, %v1395
      %v1459 = vadd.f32 %v1049, %v1398
      %v1460 = vadd.f32 %v1051, %v1400
      %v1461 = vadd.f32 %v1054, %v1403
      %v1462 = vadd.f32 %v1056, %v1405
      %v1463 = vadd.f32 %v1059, %v1408
      %v1464 = vadd.f32 %v1061, %v1410
      %v1465 = vadd.f32 %v1064, %v1413
      %v1466 = vadd.f32 %v1066, %v1415
      %v1467 = vadd.f32 %v1069, %v1418
      %v1468 = vadd.f32 %v1071, %v1420
      %v1469 = vadd.f32 %v1074, %v1423
      %v1470 = vadd.f32 %v1076, %v1425
      %v1471 = vadd.f32 %v1079, %v1428
      %v1472 = vadd.f32 %v1081, %v1430
      %v1473 = vadd.f32 %v1084, %v1433
      %v1474 = vadd.f32 %v1086, %v1435
      %v1475 = vadd.f32 %v1089, %v1438
      %v1476 = vadd.f32 %v1091, %v1440
      %v1477 = vadd.f32 %v1094, %v1443
      %v1478 = vadd.f32 %v1096, %v1445
      %s1479 = scalar_lea.vmem %s184, 12
      %v1480 = vld [vmem:[%s1479] sm:$0xf]
      %v1481 = vld [vmem:[%s1479 + $0x4] sm:$0xf]
      %v1482 = vld [vmem:[%s1479 + $0x8] sm:$0x1]
      %v1483 = vld [vmem:[%s1479 + $0xc] sm:$0xf]
      %v1484 = vld [vmem:[%s1479 + $0x10] sm:$0xf]
      %v1485 = vld [vmem:[%s1479 + $0x14] sm:$0x1]
      %v1486 = vld [vmem:[%s1479 + $0x18] sm:$0xf]
      %v1487 = vld [vmem:[%s1479 + $0x1c] sm:$0xf]
      %v1488 = vld [vmem:[%s1479 + $0x20] sm:$0x1]
      %v1489 = vld [vmem:[%s1479 + $0x24] sm:$0xf]
      %v1490 = vld [vmem:[%s1479 + $0x28] sm:$0xf]
      %v1491 = vld [vmem:[%s1479 + $0x2c] sm:$0x1]
      %v1492 = vld [vmem:[%s1479 + $0x30] sm:$0xf]
      %v1493 = vld [vmem:[%s1479 + $0x34] sm:$0xf]
      %v1494 = vld [vmem:[%s1479 + $0x38] sm:$0x1]
      %v1495 = vld [vmem:[%s1479 + $0x3c] sm:$0xf]
      %v1496 = vld [vmem:[%s1479 + $0x40] sm:$0xf]
      %v1497 = vld [vmem:[%s1479 + $0x44] sm:$0x1]
      %v1498 = vld [vmem:[%s1479 + $0x48] sm:$0xf]
      %v1499 = vld [vmem:[%s1479 + $0x4c] sm:$0xf]
      %v1500 = vld [vmem:[%s1479 + $0x50] sm:$0x1]
      %v1501 = vld [vmem:[%s1479 + $0x54] sm:$0xf]
      %v1502 = vld [vmem:[%s1479 + $0x58] sm:$0xf]
      %v1503 = vld [vmem:[%s1479 + $0x5c] sm:$0x1]
      %v1504 = vld [vmem:[%s1479 + $0x60] sm:$0xf]
      %v1505 = vld [vmem:[%s1479 + $0x64] sm:$0xf]
      %v1506 = vld [vmem:[%s1479 + $0x68] sm:$0x1]
      %v1507 = vld [vmem:[%s1479 + $0x6c] sm:$0xf]
      %v1508 = vld [vmem:[%s1479 + $0x70] sm:$0xf]
      %v1509 = vld [vmem:[%s1479 + $0x74] sm:$0x1]
      %v1510 = vld [vmem:[%s1479 + $0x78] sm:$0xf]
      %v1511 = vld [vmem:[%s1479 + $0x7c] sm:$0xf]
      %v1512 = vld [vmem:[%s1479 + $0x80] sm:$0x1]
      %v1513 = vld [vmem:[%s1479 + $0x84] sm:$0xf]
      %v1514 = vld [vmem:[%s1479 + $0x88] sm:$0xf]
      %v1515 = vld [vmem:[%s1479 + $0x8c] sm:$0x1]
      %v1516 = vld [vmem:[%s1479 + $0x90] sm:$0xf]
      %v1517 = vld [vmem:[%s1479 + $0x94] sm:$0xf]
      %v1518 = vld [vmem:[%s1479 + $0x98] sm:$0x1]
      %v1519 = vld [vmem:[%s1479 + $0x9c] sm:$0xf]
      %v1520 = vld [vmem:[%s1479 + $0xa0] sm:$0xf]
      %v1521 = vld [vmem:[%s1479 + $0xa4] sm:$0x1]
      %v1522 = vld [vmem:[%s1479 + $0xa8] sm:$0xf]
      %v1523 = vld [vmem:[%s1479 + $0xac] sm:$0xf]
      %v1524 = vld [vmem:[%s1479 + $0xb0] sm:$0x1]
      %v1525 = vld [vmem:[%s1479 + $0xb4] sm:$0xf]
      %v1526 = vld [vmem:[%s1479 + $0xb8] sm:$0xf]
      %v1527 = vld [vmem:[%s1479 + $0xbc] sm:$0x1]
      %s1528 = scalar_lea.vmem %s1, 192
      %v1529 = vld [vmem:[%s1528] sm:$0xf]
      %v1530 = vld [vmem:[%s1528 + $0x4] sm:$0xf]
      %v1531 = vld [vmem:[%s1528 + $0x8] sm:$0xf]
      %v1532 = vld [vmem:[%s1528 + $0xc] sm:$0xf]
      %v1533 = vld [vmem:[%s1528 + $0x10] sm:$0xf]
      %v1534 = vld [vmem:[%s1528 + $0x14] sm:$0xf]
      %v1535 = vld [vmem:[%s1528 + $0x18] sm:$0xf]
      %v1536 = vld [vmem:[%s1528 + $0x1c] sm:$0xf]
      %v1537 = vld [vmem:[%s1528 + $0x20] sm:$0xf]
      %v1538 = vld [vmem:[%s1528 + $0x24] sm:$0xf]
      %v1539 = vld [vmem:[%s1528 + $0x28] sm:$0xf]
      %v1540 = vld [vmem:[%s1528 + $0x2c] sm:$0xf]
      %v1541 = vld [vmem:[%s1528 + $0x30] sm:$0xf]
      %v1542 = vld [vmem:[%s1528 + $0x34] sm:$0xf]
      %v1543 = vld [vmem:[%s1528 + $0x38] sm:$0xf]
      %v1544 = vld [vmem:[%s1528 + $0x3c] sm:$0xf]
      %v1577 = vunpack.c.l.b16 %v1480
      %v1578 = vunpack.c.l.b16 %v1481
      %v1579 = vunpack.c.l.b16 %v1483
      %v1580 = vunpack.c.l.b16 %v1484
      %v1581 = vunpack.c.l.b16 %v1486
      %v1582 = vunpack.c.l.b16 %v1487
      %v1583 = vunpack.c.l.b16 %v1489
      %v1584 = vunpack.c.l.b16 %v1490
      %v1585 = vunpack.c.l.b16 %v1492
      %v1586 = vunpack.c.l.b16 %v1493
      %v1587 = vunpack.c.l.b16 %v1495
      %v1588 = vunpack.c.l.b16 %v1496
      %v1589 = vunpack.c.l.b16 %v1498
      %v1590 = vunpack.c.l.b16 %v1499
      %v1591 = vunpack.c.l.b16 %v1501
      %v1592 = vunpack.c.l.b16 %v1502
      %v1593 = vunpack.c.l.b16 %v1504
      %v1594 = vunpack.c.l.b16 %v1505
      %v1595 = vunpack.c.l.b16 %v1507
      %v1596 = vunpack.c.l.b16 %v1508
      %v1597 = vunpack.c.l.b16 %v1510
      %v1598 = vunpack.c.l.b16 %v1511
      %v1599 = vunpack.c.l.b16 %v1513
      %v1600 = vunpack.c.l.b16 %v1514
      %v1601 = vunpack.c.l.b16 %v1516
      %v1602 = vunpack.c.l.b16 %v1517
      %v1603 = vunpack.c.l.b16 %v1519
      %v1604 = vunpack.c.l.b16 %v1520
      %v1605 = vunpack.c.l.b16 %v1522
      %v1606 = vunpack.c.l.b16 %v1523
      %v1607 = vunpack.c.l.b16 %v1525
      %v1608 = vunpack.c.l.b16 %v1526
      %v1609 = vpack.c.b16 %v1578, %v1577
      %v1610 = vpack.c.b16 %v1580, %v1579
      %v1611 = vpack.c.b16 %v1582, %v1581
      %v1612 = vpack.c.b16 %v1584, %v1583
      %v1613 = vpack.c.b16 %v1586, %v1585
      %v1614 = vpack.c.b16 %v1588, %v1587
      %v1615 = vpack.c.b16 %v1590, %v1589
      %v1616 = vpack.c.b16 %v1592, %v1591
      %v1617 = vpack.c.b16 %v1594, %v1593
      %v1618 = vpack.c.b16 %v1596, %v1595
      %v1619 = vpack.c.b16 %v1598, %v1597
      %v1620 = vpack.c.b16 %v1600, %v1599
      %v1621 = vpack.c.b16 %v1602, %v1601
      %v1622 = vpack.c.b16 %v1604, %v1603
      %v1623 = vpack.c.b16 %v1606, %v1605
      %v1624 = vpack.c.b16 %v1608, %v1607
      %v1657 = vunpack.c.l.b16 %v1529
      %v1658 = vunpack.c.l.b16 %v1530
      %v1659 = vunpack.c.l.b16 %v1531
      %v1660 = vunpack.c.l.b16 %v1532
      %v1661 = vunpack.c.l.b16 %v1533
      %v1662 = vunpack.c.l.b16 %v1534
      %v1663 = vunpack.c.l.b16 %v1535
      %v1664 = vunpack.c.l.b16 %v1536
      %v1665 = vunpack.c.l.b16 %v1537
      %v1666 = vunpack.c.l.b16 %v1538
      %v1667 = vunpack.c.l.b16 %v1539
      %v1668 = vunpack.c.l.b16 %v1540
      %v1669 = vunpack.c.l.b16 %v1541
      %v1670 = vunpack.c.l.b16 %v1542
      %v1671 = vunpack.c.l.b16 %v1543
      %v1672 = vunpack.c.l.b16 %v1544
      %v1673 = vpack.c.b16 %v1658, %v1657
      %v1674 = vpack.c.b16 %v1660, %v1659
      %v1675 = vpack.c.b16 %v1662, %v1661
      %v1676 = vpack.c.b16 %v1664, %v1663
      %v1677 = vpack.c.b16 %v1666, %v1665
      %v1678 = vpack.c.b16 %v1668, %v1667
      %v1679 = vpack.c.b16 %v1670, %v1669
      %v1680 = vpack.c.b16 %v1672, %v1671
      %1689 = vmatpush.bf16.msra.mxu0 %v1680
      %1690 = vmatpush.bf16.msra.mxu0 %v1679
      %1691 = vmatpush.bf16.msra.mxu0 %v1678
      %1692 = vmatpush.bf16.msra.mxu0 %v1677
      %1693 = vmatpush.bf16.msra.mxu0 %v1676
      %1694 = vmatpush.bf16.msra.mxu0 %v1675
      %1695 = vmatpush.bf16.msra.mxu0 %v1674
      %1696 = vmatpush.bf16.msra.mxu0 %v1673
      %1697 = vmatmul.bf16.gmra.mxu0 %v1609
      %v1698 = vpop.f32.mrf.mxu0
      %v1699 = vadd.f32 0.0, %v1698
      %v1700 = vpop.f32.mrf.mxu0
      %v1701 = vadd.f32 0.0, %v1700
      %1702 = vmatmul.bf16.gmra.mxu0 %v1610
      %v1703 = vpop.f32.mrf.mxu0
      %v1704 = vadd.f32 0.0, %v1703
      %v1705 = vpop.f32.mrf.mxu0
      %v1706 = vadd.f32 0.0, %v1705
      %1707 = vmatmul.bf16.gmra.mxu0 %v1611
      %v1708 = vpop.f32.mrf.mxu0
      %v1709 = vadd.f32 0.0, %v1708
      %v1710 = vpop.f32.mrf.mxu0
      %v1711 = vadd.f32 0.0, %v1710
      %1712 = vmatmul.bf16.gmra.mxu0 %v1612
      %v1713 = vpop.f32.mrf.mxu0
      %v1714 = vadd.f32 0.0, %v1713
      %v1715 = vpop.f32.mrf.mxu0
      %v1716 = vadd.f32 0.0, %v1715
      %1717 = vmatmul.bf16.gmra.mxu0 %v1613
      %v1718 = vpop.f32.mrf.mxu0
      %v1719 = vadd.f32 0.0, %v1718
      %v1720 = vpop.f32.mrf.mxu0
      %v1721 = vadd.f32 0.0, %v1720
      %1722 = vmatmul.bf16.gmra.mxu0 %v1614
      %v1723 = vpop.f32.mrf.mxu0
      %v1724 = vadd.f32 0.0, %v1723
      %v1725 = vpop.f32.mrf.mxu0
      %v1726 = vadd.f32 0.0, %v1725
      %1727 = vmatmul.bf16.gmra.mxu0 %v1615
      %v1728 = vpop.f32.mrf.mxu0
      %v1729 = vadd.f32 0.0, %v1728
      %v1730 = vpop.f32.mrf.mxu0
      %v1731 = vadd.f32 0.0, %v1730
      %1732 = vmatmul.bf16.gmra.mxu0 %v1616
      %v1733 = vpop.f32.mrf.mxu0
      %v1734 = vadd.f32 0.0, %v1733
      %v1735 = vpop.f32.mrf.mxu0
      %v1736 = vadd.f32 0.0, %v1735
      %1737 = vmatmul.bf16.gmra.mxu0 %v1617
      %v1738 = vpop.f32.mrf.mxu0
      %v1739 = vadd.f32 0.0, %v1738
      %v1740 = vpop.f32.mrf.mxu0
      %v1741 = vadd.f32 0.0, %v1740
      %1742 = vmatmul.bf16.gmra.mxu0 %v1618
      %v1743 = vpop.f32.mrf.mxu0
      %v1744 = vadd.f32 0.0, %v1743
      %v1745 = vpop.f32.mrf.mxu0
      %v1746 = vadd.f32 0.0, %v1745
      %1747 = vmatmul.bf16.gmra.mxu0 %v1619
      %v1748 = vpop.f32.mrf.mxu0
      %v1749 = vadd.f32 0.0, %v1748
      %v1750 = vpop.f32.mrf.mxu0
      %v1751 = vadd.f32 0.0, %v1750
      %1752 = vmatmul.bf16.gmra.mxu0 %v1620
      %v1753 = vpop.f32.mrf.mxu0
      %v1754 = vadd.f32 0.0, %v1753
      %v1755 = vpop.f32.mrf.mxu0
      %v1756 = vadd.f32 0.0, %v1755
      %1757 = vmatmul.bf16.gmra.mxu0 %v1621
      %v1758 = vpop.f32.mrf.mxu0
      %v1759 = vadd.f32 0.0, %v1758
      %v1760 = vpop.f32.mrf.mxu0
      %v1761 = vadd.f32 0.0, %v1760
      %1762 = vmatmul.bf16.gmra.mxu0 %v1622
      %v1763 = vpop.f32.mrf.mxu0
      %v1764 = vadd.f32 0.0, %v1763
      %v1765 = vpop.f32.mrf.mxu0
      %v1766 = vadd.f32 0.0, %v1765
      %1767 = vmatmul.bf16.gmra.mxu0 %v1623
      %v1768 = vpop.f32.mrf.mxu0
      %v1769 = vadd.f32 0.0, %v1768
      %v1770 = vpop.f32.mrf.mxu0
      %v1771 = vadd.f32 0.0, %v1770
      %1772 = vmatmul.bf16.gmra.mxu0 %v1624
      %v1773 = vpop.f32.mrf.mxu0
      %v1774 = vadd.f32 0.0, %v1773
      %v1775 = vpop.f32.mrf.mxu0
      %v1776 = vadd.f32 0.0, %v1775
      %1777 = vdwg.mxu0
      %v1778 = vadd.f32 %v1447, %v1699
      %v1779 = vadd.f32 %v1448, %v1701
      %v1780 = vadd.f32 %v1449, %v1704
      %v1781 = vadd.f32 %v1450, %v1706
      %v1782 = vadd.f32 %v1451, %v1709
      %v1783 = vadd.f32 %v1452, %v1711
      %v1784 = vadd.f32 %v1453, %v1714
      %v1785 = vadd.f32 %v1454, %v1716
      %v1786 = vadd.f32 %v1455, %v1719
      %v1787 = vadd.f32 %v1456, %v1721
      %v1788 = vadd.f32 %v1457, %v1724
      %v1789 = vadd.f32 %v1458, %v1726
      %v1790 = vadd.f32 %v1459, %v1729
      %v1791 = vadd.f32 %v1460, %v1731
      %v1792 = vadd.f32 %v1461, %v1734
      %v1793 = vadd.f32 %v1462, %v1736
      %v1794 = vadd.f32 %v1463, %v1739
      %v1795 = vadd.f32 %v1464, %v1741
      %v1796 = vadd.f32 %v1465, %v1744
      %v1797 = vadd.f32 %v1466, %v1746
      %v1798 = vadd.f32 %v1467, %v1749
      %v1799 = vadd.f32 %v1468, %v1751
      %v1800 = vadd.f32 %v1469, %v1754
      %v1801 = vadd.f32 %v1470, %v1756
      %v1802 = vadd.f32 %v1471, %v1759
      %v1803 = vadd.f32 %v1472, %v1761
      %v1804 = vadd.f32 %v1473, %v1764
      %v1805 = vadd.f32 %v1474, %v1766
      %v1806 = vadd.f32 %v1475, %v1769
      %v1807 = vadd.f32 %v1476, %v1771
      %v1808 = vadd.f32 %v1477, %v1774
      %v1809 = vadd.f32 %v1478, %v1776
      %v1811 = vshrl.u32 %v1480, 16
      %v1813 = vrot.slane %v1811, 4
      %v1814 = vshll.u32 %v1480, 16
      %v1816 = vrot.slane %v1814, 5
      %v1817 = vor.u32 %v1813, %v1816
      %v1818 = vrot.slane %v1817, 4
      %v1820 = vshll.u32 %v1481, 16
      %v1822 = vrot.slane %v1820, 5
      %v1823 = vsel %vm262, %v1818, %v1822
      %v1824 = vshrl.u32 %v1481, 16
      %v1826 = vrot.slane %v1824, 4
      %v1827 = vor.u32 %v1826, %v1822
      %v1828 = vrot.slane %v1827, 4
      %v1830 = vshll.u32 %v1482, 16
      %v1832 = vrot.slane %v1830, 5
      %v1833 = vsel %vm262, %v1828, %v1832
      %v1835 = vshrl.u32 %v1483, 16
      %v1837 = vrot.slane %v1835, 4
      %v1838 = vshll.u32 %v1483, 16
      %v1840 = vrot.slane %v1838, 5
      %v1841 = vor.u32 %v1837, %v1840
      %v1842 = vrot.slane %v1841, 4
      %v1844 = vshll.u32 %v1484, 16
      %v1846 = vrot.slane %v1844, 5
      %v1847 = vsel %vm262, %v1842, %v1846
      %v1848 = vshrl.u32 %v1484, 16
      %v1850 = vrot.slane %v1848, 4
      %v1851 = vor.u32 %v1850, %v1846
      %v1852 = vrot.slane %v1851, 4
      %v1854 = vshll.u32 %v1485, 16
      %v1856 = vrot.slane %v1854, 5
      %v1857 = vsel %vm262, %v1852, %v1856
      %v1859 = vshrl.u32 %v1486, 16
      %v1861 = vrot.slane %v1859, 4
      %v1862 = vshll.u32 %v1486, 16
      %v1864 = vrot.slane %v1862, 5
      %v1865 = vor.u32 %v1861, %v1864
      %v1866 = vrot.slane %v1865, 4
      %v1868 = vshll.u32 %v1487, 16
      %v1870 = vrot.slane %v1868, 5
      %v1871 = vsel %vm262, %v1866, %v1870
      %v1872 = vshrl.u32 %v1487, 16
      %v1874 = vrot.slane %v1872, 4
      %v1875 = vor.u32 %v1874, %v1870
      %v1876 = vrot.slane %v1875, 4
      %v1878 = vshll.u32 %v1488, 16
      %v1880 = vrot.slane %v1878, 5
      %v1881 = vsel %vm262, %v1876, %v1880
      %v1883 = vshrl.u32 %v1489, 16
      %v1885 = vrot.slane %v1883, 4
      %v1886 = vshll.u32 %v1489, 16
      %v1888 = vrot.slane %v1886, 5
      %v1889 = vor.u32 %v1885, %v1888
      %v1890 = vrot.slane %v1889, 4
      %v1892 = vshll.u32 %v1490, 16
      %v1894 = vrot.slane %v1892, 5
      %v1895 = vsel %vm262, %v1890, %v1894
      %v1896 = vshrl.u32 %v1490, 16
      %v1898 = vrot.slane %v1896, 4
      %v1899 = vor.u32 %v1898, %v1894
      %v1900 = vrot.slane %v1899, 4
      %v1902 = vshll.u32 %v1491, 16
      %v1904 = vrot.slane %v1902, 5
      %v1905 = vsel %vm262, %v1900, %v1904
      %v1907 = vshrl.u32 %v1492, 16
      %v1909 = vrot.slane %v1907, 4
      %v1910 = vshll.u32 %v1492, 16
      %v1912 = vrot.slane %v1910, 5
      %v1913 = vor.u32 %v1909, %v1912
      %v1914 = vrot.slane %v1913, 4
      %v1916 = vshll.u32 %v1493, 16
      %v1918 = vrot.slane %v1916, 5
      %v1919 = vsel %vm262, %v1914, %v1918
      %v1920 = vshrl.u32 %v1493, 16
      %v1922 = vrot.slane %v1920, 4
      %v1923 = vor.u32 %v1922, %v1918
      %v1924 = vrot.slane %v1923, 4
      %v1926 = vshll.u32 %v1494, 16
      %v1928 = vrot.slane %v1926, 5
      %v1929 = vsel %vm262, %v1924, %v1928
      %v1931 = vshrl.u32 %v1495, 16
      %v1933 = vrot.slane %v1931, 4
      %v1934 = vshll.u32 %v1495, 16
      %v1936 = vrot.slane %v1934, 5
      %v1937 = vor.u32 %v1933, %v1936
      %v1938 = vrot.slane %v1937, 4
      %v1940 = vshll.u32 %v1496, 16
      %v1942 = vrot.slane %v1940, 5
      %v1943 = vsel %vm262, %v1938, %v1942
      %v1944 = vshrl.u32 %v1496, 16
      %v1946 = vrot.slane %v1944, 4
      %v1947 = vor.u32 %v1946, %v1942
      %v1948 = vrot.slane %v1947, 4
      %v1950 = vshll.u32 %v1497, 16
      %v1952 = vrot.slane %v1950, 5
      %v1953 = vsel %vm262, %v1948, %v1952
      %v1955 = vshrl.u32 %v1498, 16
      %v1957 = vrot.slane %v1955, 4
      %v1958 = vshll.u32 %v1498, 16
      %v1960 = vrot.slane %v1958, 5
      %v1961 = vor.u32 %v1957, %v1960
      %v1962 = vrot.slane %v1961, 4
      %v1964 = vshll.u32 %v1499, 16
      %v1966 = vrot.slane %v1964, 5
      %v1967 = vsel %vm262, %v1962, %v1966
      %v1968 = vshrl.u32 %v1499, 16
      %v1970 = vrot.slane %v1968, 4
      %v1971 = vor.u32 %v1970, %v1966
      %v1972 = vrot.slane %v1971, 4
      %v1974 = vshll.u32 %v1500, 16
      %v1976 = vrot.slane %v1974, 5
      %v1977 = vsel %vm262, %v1972, %v1976
      %v1979 = vshrl.u32 %v1501, 16
      %v1981 = vrot.slane %v1979, 4
      %v1982 = vshll.u32 %v1501, 16
      %v1984 = vrot.slane %v1982, 5
      %v1985 = vor.u32 %v1981, %v1984
      %v1986 = vrot.slane %v1985, 4
      %v1988 = vshll.u32 %v1502, 16
      %v1990 = vrot.slane %v1988, 5
      %v1991 = vsel %vm262, %v1986, %v1990
      %v1992 = vshrl.u32 %v1502, 16
      %v1994 = vrot.slane %v1992, 4
      %v1995 = vor.u32 %v1994, %v1990
      %v1996 = vrot.slane %v1995, 4
      %v1998 = vshll.u32 %v1503, 16
      %v2000 = vrot.slane %v1998, 5
      %v2001 = vsel %vm262, %v1996, %v2000
      %v2003 = vshrl.u32 %v1504, 16
      %v2005 = vrot.slane %v2003, 4
      %v2006 = vshll.u32 %v1504, 16
      %v2008 = vrot.slane %v2006, 5
      %v2009 = vor.u32 %v2005, %v2008
      %v2010 = vrot.slane %v2009, 4
      %v2012 = vshll.u32 %v1505, 16
      %v2014 = vrot.slane %v2012, 5
      %v2015 = vsel %vm262, %v2010, %v2014
      %v2016 = vshrl.u32 %v1505, 16
      %v2018 = vrot.slane %v2016, 4
      %v2019 = vor.u32 %v2018, %v2014
      %v2020 = vrot.slane %v2019, 4
      %v2022 = vshll.u32 %v1506, 16
      %v2024 = vrot.slane %v2022, 5
      %v2025 = vsel %vm262, %v2020, %v2024
      %v2027 = vshrl.u32 %v1507, 16
      %v2029 = vrot.slane %v2027, 4
      %v2030 = vshll.u32 %v1507, 16
      %v2032 = vrot.slane %v2030, 5
      %v2033 = vor.u32 %v2029, %v2032
      %v2034 = vrot.slane %v2033, 4
      %v2036 = vshll.u32 %v1508, 16
      %v2038 = vrot.slane %v2036, 5
      %v2039 = vsel %vm262, %v2034, %v2038
      %v2040 = vshrl.u32 %v1508, 16
      %v2042 = vrot.slane %v2040, 4
      %v2043 = vor.u32 %v2042, %v2038
      %v2044 = vrot.slane %v2043, 4
      %v2046 = vshll.u32 %v1509, 16
      %v2048 = vrot.slane %v2046, 5
      %v2049 = vsel %vm262, %v2044, %v2048
      %v2051 = vshrl.u32 %v1510, 16
      %v2053 = vrot.slane %v2051, 4
      %v2054 = vshll.u32 %v1510, 16
      %v2056 = vrot.slane %v2054, 5
      %v2057 = vor.u32 %v2053, %v2056
      %v2058 = vrot.slane %v2057, 4
      %v2060 = vshll.u32 %v1511, 16
      %v2062 = vrot.slane %v2060, 5
      %v2063 = vsel %vm262, %v2058, %v2062
      %v2064 = vshrl.u32 %v1511, 16
      %v2066 = vrot.slane %v2064, 4
      %v2067 = vor.u32 %v2066, %v2062
      %v2068 = vrot.slane %v2067, 4
      %v2070 = vshll.u32 %v1512, 16
      %v2072 = vrot.slane %v2070, 5
      %v2073 = vsel %vm262, %v2068, %v2072
      %v2075 = vshrl.u32 %v1513, 16
      %v2077 = vrot.slane %v2075, 4
      %v2078 = vshll.u32 %v1513, 16
      %v2080 = vrot.slane %v2078, 5
      %v2081 = vor.u32 %v2077, %v2080
      %v2082 = vrot.slane %v2081, 4
      %v2084 = vshll.u32 %v1514, 16
      %v2086 = vrot.slane %v2084, 5
      %v2087 = vsel %vm262, %v2082, %v2086
      %v2088 = vshrl.u32 %v1514, 16
      %v2090 = vrot.slane %v2088, 4
      %v2091 = vor.u32 %v2090, %v2086
      %v2092 = vrot.slane %v2091, 4
      %v2094 = vshll.u32 %v1515, 16
      %v2096 = vrot.slane %v2094, 5
      %v2097 = vsel %vm262, %v2092, %v2096
      %v2099 = vshrl.u32 %v1516, 16
      %v2101 = vrot.slane %v2099, 4
      %v2102 = vshll.u32 %v1516, 16
      %v2104 = vrot.slane %v2102, 5
      %v2105 = vor.u32 %v2101, %v2104
      %v2106 = vrot.slane %v2105, 4
      %v2108 = vshll.u32 %v1517, 16
      %v2110 = vrot.slane %v2108, 5
      %v2111 = vsel %vm262, %v2106, %v2110
      %v2112 = vshrl.u32 %v1517, 16
      %v2114 = vrot.slane %v2112, 4
      %v2115 = vor.u32 %v2114, %v2110
      %v2116 = vrot.slane %v2115, 4
      %v2118 = vshll.u32 %v1518, 16
      %v2120 = vrot.slane %v2118, 5
      %v2121 = vsel %vm262, %v2116, %v2120
      %v2123 = vshrl.u32 %v1519, 16
      %v2125 = vrot.slane %v2123, 4
      %v2126 = vshll.u32 %v1519, 16
      %v2128 = vrot.slane %v2126, 5
      %v2129 = vor.u32 %v2125, %v2128
      %v2130 = vrot.slane %v2129, 4
      %v2132 = vshll.u32 %v1520, 16
      %v2134 = vrot.slane %v2132, 5
      %v2135 = vsel %vm262, %v2130, %v2134
      %v2136 = vshrl.u32 %v1520, 16
      %v2138 = vrot.slane %v2136, 4
      %v2139 = vor.u32 %v2138, %v2134
      %v2140 = vrot.slane %v2139, 4
      %v2142 = vshll.u32 %v1521, 16
      %v2144 = vrot.slane %v2142, 5
      %v2145 = vsel %vm262, %v2140, %v2144
      %v2147 = vshrl.u32 %v1522, 16
      %v2149 = vrot.slane %v2147, 4
      %v2150 = vshll.u32 %v1522, 16
      %v2152 = vrot.slane %v2150, 5
      %v2153 = vor.u32 %v2149, %v2152
      %v2154 = vrot.slane %v2153, 4
      %v2156 = vshll.u32 %v1523, 16
      %v2158 = vrot.slane %v2156, 5
      %v2159 = vsel %vm262, %v2154, %v2158
      %v2160 = vshrl.u32 %v1523, 16
      %v2162 = vrot.slane %v2160, 4
      %v2163 = vor.u32 %v2162, %v2158
      %v2164 = vrot.slane %v2163, 4
      %v2166 = vshll.u32 %v1524, 16
      %v2168 = vrot.slane %v2166, 5
      %v2169 = vsel %vm262, %v2164, %v2168
      %v2171 = vshrl.u32 %v1525, 16
      %v2173 = vrot.slane %v2171, 4
      %v2174 = vshll.u32 %v1525, 16
      %v2176 = vrot.slane %v2174, 5
      %v2177 = vor.u32 %v2173, %v2176
      %v2178 = vrot.slane %v2177, 4
      %v2180 = vshll.u32 %v1526, 16
      %v2182 = vrot.slane %v2180, 5
      %v2183 = vsel %vm262, %v2178, %v2182
      %v2184 = vshrl.u32 %v1526, 16
      %v2186 = vrot.slane %v2184, 4
      %v2187 = vor.u32 %v2186, %v2182
      %v2188 = vrot.slane %v2187, 4
      %v2190 = vshll.u32 %v1527, 16
      %v2192 = vrot.slane %v2190, 5
      %v2193 = vsel %vm262, %v2188, %v2192
      %s2194 = scalar_lea.vmem %s1, 256
      %v2195 = vld [vmem:[%s2194] sm:$0xf]
      %v2196 = vld [vmem:[%s2194 + $0x4] sm:$0xf]
      %v2197 = vld [vmem:[%s2194 + $0x8] sm:$0xf]
      %v2198 = vld [vmem:[%s2194 + $0xc] sm:$0xf]
      %v2199 = vld [vmem:[%s2194 + $0x10] sm:$0xf]
      %v2200 = vld [vmem:[%s2194 + $0x14] sm:$0xf]
      %v2201 = vld [vmem:[%s2194 + $0x18] sm:$0xf]
      %v2202 = vld [vmem:[%s2194 + $0x1c] sm:$0xf]
      %v2203 = vld [vmem:[%s2194 + $0x20] sm:$0xf]
      %v2204 = vld [vmem:[%s2194 + $0x24] sm:$0xf]
      %v2205 = vld [vmem:[%s2194 + $0x28] sm:$0xf]
      %v2206 = vld [vmem:[%s2194 + $0x2c] sm:$0xf]
      %v2207 = vld [vmem:[%s2194 + $0x30] sm:$0xf]
      %v2208 = vld [vmem:[%s2194 + $0x34] sm:$0xf]
      %v2209 = vld [vmem:[%s2194 + $0x38] sm:$0xf]
      %v2210 = vld [vmem:[%s2194 + $0x3c] sm:$0xf]
      %v2211 = vunpack.c.l.b16 %v1823
      %v2212 = vunpack.c.l.b16 %v1833
      %v2213 = vunpack.c.l.b16 %v1847
      %v2214 = vunpack.c.l.b16 %v1857
      %v2215 = vunpack.c.l.b16 %v1871
      %v2216 = vunpack.c.l.b16 %v1881
      %v2217 = vunpack.c.l.b16 %v1895
      %v2218 = vunpack.c.l.b16 %v1905
      %v2219 = vunpack.c.l.b16 %v1919
      %v2220 = vunpack.c.l.b16 %v1929
      %v2221 = vunpack.c.l.b16 %v1943
      %v2222 = vunpack.c.l.b16 %v1953
      %v2223 = vunpack.c.l.b16 %v1967
      %v2224 = vunpack.c.l.b16 %v1977
      %v2225 = vunpack.c.l.b16 %v1991
      %v2226 = vunpack.c.l.b16 %v2001
      %v2227 = vunpack.c.l.b16 %v2015
      %v2228 = vunpack.c.l.b16 %v2025
      %v2229 = vunpack.c.l.b16 %v2039
      %v2230 = vunpack.c.l.b16 %v2049
      %v2231 = vunpack.c.l.b16 %v2063
      %v2232 = vunpack.c.l.b16 %v2073
      %v2233 = vunpack.c.l.b16 %v2087
      %v2234 = vunpack.c.l.b16 %v2097
      %v2235 = vunpack.c.l.b16 %v2111
      %v2236 = vunpack.c.l.b16 %v2121
      %v2237 = vunpack.c.l.b16 %v2135
      %v2238 = vunpack.c.l.b16 %v2145
      %v2239 = vunpack.c.l.b16 %v2159
      %v2240 = vunpack.c.l.b16 %v2169
      %v2241 = vunpack.c.l.b16 %v2183
      %v2242 = vunpack.c.l.b16 %v2193
      %v2243 = vpack.c.b16 %v2212, %v2211
      %v2244 = vpack.c.b16 %v2214, %v2213
      %v2245 = vpack.c.b16 %v2216, %v2215
      %v2246 = vpack.c.b16 %v2218, %v2217
      %v2247 = vpack.c.b16 %v2220, %v2219
      %v2248 = vpack.c.b16 %v2222, %v2221
      %v2249 = vpack.c.b16 %v2224, %v2223
      %v2250 = vpack.c.b16 %v2226, %v2225
      %v2251 = vpack.c.b16 %v2228, %v2227
      %v2252 = vpack.c.b16 %v2230, %v2229
      %v2253 = vpack.c.b16 %v2232, %v2231
      %v2254 = vpack.c.b16 %v2234, %v2233
      %v2255 = vpack.c.b16 %v2236, %v2235
      %v2256 = vpack.c.b16 %v2238, %v2237
      %v2257 = vpack.c.b16 %v2240, %v2239
      %v2258 = vpack.c.b16 %v2242, %v2241
      %v2291 = vunpack.c.l.b16 %v2195
      %v2292 = vunpack.c.l.b16 %v2196
      %v2293 = vunpack.c.l.b16 %v2197
      %v2294 = vunpack.c.l.b16 %v2198
      %v2295 = vunpack.c.l.b16 %v2199
      %v2296 = vunpack.c.l.b16 %v2200
      %v2297 = vunpack.c.l.b16 %v2201
      %v2298 = vunpack.c.l.b16 %v2202
      %v2299 = vunpack.c.l.b16 %v2203
      %v2300 = vunpack.c.l.b16 %v2204
      %v2301 = vunpack.c.l.b16 %v2205
      %v2302 = vunpack.c.l.b16 %v2206
      %v2303 = vunpack.c.l.b16 %v2207
      %v2304 = vunpack.c.l.b16 %v2208
      %v2305 = vunpack.c.l.b16 %v2209
      %v2306 = vunpack.c.l.b16 %v2210
      %v2307 = vpack.c.b16 %v2292, %v2291
      %v2308 = vpack.c.b16 %v2294, %v2293
      %v2309 = vpack.c.b16 %v2296, %v2295
      %v2310 = vpack.c.b16 %v2298, %v2297
      %v2311 = vpack.c.b16 %v2300, %v2299
      %v2312 = vpack.c.b16 %v2302, %v2301
      %v2313 = vpack.c.b16 %v2304, %v2303
      %v2314 = vpack.c.b16 %v2306, %v2305
      %2323 = vmatpush.bf16.msra.mxu0 %v2314
      %2324 = vmatpush.bf16.msra.mxu0 %v2313
      %2325 = vmatpush.bf16.msra.mxu0 %v2312
      %2326 = vmatpush.bf16.msra.mxu0 %v2311
      %2327 = vmatpush.bf16.msra.mxu0 %v2310
      %2328 = vmatpush.bf16.msra.mxu0 %v2309
      %2329 = vmatpush.bf16.msra.mxu0 %v2308
      %2330 = vmatpush.bf16.msra.mxu0 %v2307
      %2331 = vmatmul.bf16.gmra.mxu0 %v2243
      %v2332 = vpop.f32.mrf.mxu0
      %v2333 = vadd.f32 0.0, %v2332
      %v2334 = vpop.f32.mrf.mxu0
      %v2335 = vadd.f32 0.0, %v2334
      %2336 = vmatmul.bf16.gmra.mxu0 %v2244
      %v2337 = vpop.f32.mrf.mxu0
      %v2338 = vadd.f32 0.0, %v2337
      %v2339 = vpop.f32.mrf.mxu0
      %v2340 = vadd.f32 0.0, %v2339
      %2341 = vmatmul.bf16.gmra.mxu0 %v2245
      %v2342 = vpop.f32.mrf.mxu0
      %v2343 = vadd.f32 0.0, %v2342
      %v2344 = vpop.f32.mrf.mxu0
      %v2345 = vadd.f32 0.0, %v2344
      %2346 = vmatmul.bf16.gmra.mxu0 %v2246
      %v2347 = vpop.f32.mrf.mxu0
      %v2348 = vadd.f32 0.0, %v2347
      %v2349 = vpop.f32.mrf.mxu0
      %v2350 = vadd.f32 0.0, %v2349
      %2351 = vmatmul.bf16.gmra.mxu0 %v2247
      %v2352 = vpop.f32.mrf.mxu0
      %v2353 = vadd.f32 0.0, %v2352
      %v2354 = vpop.f32.mrf.mxu0
      %v2355 = vadd.f32 0.0, %v2354
      %2356 = vmatmul.bf16.gmra.mxu0 %v2248
      %v2357 = vpop.f32.mrf.mxu0
      %v2358 = vadd.f32 0.0, %v2357
      %v2359 = vpop.f32.mrf.mxu0
      %v2360 = vadd.f32 0.0, %v2359
      %2361 = vmatmul.bf16.gmra.mxu0 %v2249
      %v2362 = vpop.f32.mrf.mxu0
      %v2363 = vadd.f32 0.0, %v2362
      %v2364 = vpop.f32.mrf.mxu0
      %v2365 = vadd.f32 0.0, %v2364
      %2366 = vmatmul.bf16.gmra.mxu0 %v2250
      %v2367 = vpop.f32.mrf.mxu0
      %v2368 = vadd.f32 0.0, %v2367
      %v2369 = vpop.f32.mrf.mxu0
      %v2370 = vadd.f32 0.0, %v2369
      %2371 = vmatmul.bf16.gmra.mxu0 %v2251
      %v2372 = vpop.f32.mrf.mxu0
      %v2373 = vadd.f32 0.0, %v2372
      %v2374 = vpop.f32.mrf.mxu0
      %v2375 = vadd.f32 0.0, %v2374
      %2376 = vmatmul.bf16.gmra.mxu0 %v2252
      %v2377 = vpop.f32.mrf.mxu0
      %v2378 = vadd.f32 0.0, %v2377
      %v2379 = vpop.f32.mrf.mxu0
      %v2380 = vadd.f32 0.0, %v2379
      %2381 = vmatmul.bf16.gmra.mxu0 %v2253
      %v2382 = vpop.f32.mrf.mxu0
      %v2383 = vadd.f32 0.0, %v2382
      %v2384 = vpop.f32.mrf.mxu0
      %v2385 = vadd.f32 0.0, %v2384
      %2386 = vmatmul.bf16.gmra.mxu0 %v2254
      %v2387 = vpop.f32.mrf.mxu0
      %v2388 = vadd.f32 0.0, %v2387
      %v2389 = vpop.f32.mrf.mxu0
      %v2390 = vadd.f32 0.0, %v2389
      %2391 = vmatmul.bf16.gmra.mxu0 %v2255
      %v2392 = vpop.f32.mrf.mxu0
      %v2393 = vadd.f32 0.0, %v2392
      %v2394 = vpop.f32.mrf.mxu0
      %v2395 = vadd.f32 0.0, %v2394
      %2396 = vmatmul.bf16.gmra.mxu0 %v2256
      %v2397 = vpop.f32.mrf.mxu0
      %v2398 = vadd.f32 0.0, %v2397
      %v2399 = vpop.f32.mrf.mxu0
      %v2400 = vadd.f32 0.0, %v2399
      %2401 = vmatmul.bf16.gmra.mxu0 %v2257
      %v2402 = vpop.f32.mrf.mxu0
      %v2403 = vadd.f32 0.0, %v2402
      %v2404 = vpop.f32.mrf.mxu0
      %v2405 = vadd.f32 0.0, %v2404
      %2406 = vmatmul.bf16.gmra.mxu0 %v2258
      %v2407 = vpop.f32.mrf.mxu0
      %v2408 = vadd.f32 0.0, %v2407
      %v2409 = vpop.f32.mrf.mxu0
      %v2410 = vadd.f32 0.0, %v2409
      %2411 = vdwg.mxu0
      %v2412 = vadd.f32 %v1778, %v2333
      %v2413 = vadd.f32 %v1779, %v2335
      %v2414 = vadd.f32 %v1780, %v2338
      %v2415 = vadd.f32 %v1781, %v2340
      %v2416 = vadd.f32 %v1782, %v2343
      %v2417 = vadd.f32 %v1783, %v2345
      %v2418 = vadd.f32 %v1784, %v2348
      %v2419 = vadd.f32 %v1785, %v2350
      %v2420 = vadd.f32 %v1786, %v2353
      %v2421 = vadd.f32 %v1787, %v2355
      %v2422 = vadd.f32 %v1788, %v2358
      %v2423 = vadd.f32 %v1789, %v2360
      %v2424 = vadd.f32 %v1790, %v2363
      %v2425 = vadd.f32 %v1791, %v2365
      %v2426 = vadd.f32 %v1792, %v2368
      %v2427 = vadd.f32 %v1793, %v2370
      %v2428 = vadd.f32 %v1794, %v2373
      %v2429 = vadd.f32 %v1795, %v2375
      %v2430 = vadd.f32 %v1796, %v2378
      %v2431 = vadd.f32 %v1797, %v2380
      %v2432 = vadd.f32 %v1798, %v2383
      %v2433 = vadd.f32 %v1799, %v2385
      %v2434 = vadd.f32 %v1800, %v2388
      %v2435 = vadd.f32 %v1801, %v2390
      %v2436 = vadd.f32 %v1802, %v2393
      %v2437 = vadd.f32 %v1803, %v2395
      %v2438 = vadd.f32 %v1804, %v2398
      %v2439 = vadd.f32 %v1805, %v2400
      %v2440 = vadd.f32 %v1806, %v2403
      %v2441 = vadd.f32 %v1807, %v2405
      %v2442 = vadd.f32 %v1808, %v2408
      %v2443 = vadd.f32 %v1809, %v2410
      %v2460 = vrot.slane %v1480, 5
      %v2461 = vrot.slane %v2460, 4
      %v2462 = vrot.slane %v1481, 5
      %v2463 = vsel %vm1116, %v2461, %v2462
      %v2464 = vrot.slane %v2462, 4
      %v2465 = vrot.slane %v1482, 5
      %v2466 = vsel %vm1116, %v2464, %v2465
      %v2467 = vrot.slane %v1483, 5
      %v2468 = vrot.slane %v2467, 4
      %v2469 = vrot.slane %v1484, 5
      %v2470 = vsel %vm1116, %v2468, %v2469
      %v2471 = vrot.slane %v2469, 4
      %v2472 = vrot.slane %v1485, 5
      %v2473 = vsel %vm1116, %v2471, %v2472
      %v2474 = vrot.slane %v1486, 5
      %v2475 = vrot.slane %v2474, 4
      %v2476 = vrot.slane %v1487, 5
      %v2477 = vsel %vm1116, %v2475, %v2476
      %v2478 = vrot.slane %v2476, 4
      %v2479 = vrot.slane %v1488, 5
      %v2480 = vsel %vm1116, %v2478, %v2479
      %v2481 = vrot.slane %v1489, 5
      %v2482 = vrot.slane %v2481, 4
      %v2483 = vrot.slane %v1490, 5
      %v2484 = vsel %vm1116, %v2482, %v2483
      %v2485 = vrot.slane %v2483, 4
      %v2486 = vrot.slane %v1491, 5
      %v2487 = vsel %vm1116, %v2485, %v2486
      %v2488 = vrot.slane %v1492, 5
      %v2489 = vrot.slane %v2488, 4
      %v2490 = vrot.slane %v1493, 5
      %v2491 = vsel %vm1116, %v2489, %v2490
      %v2492 = vrot.slane %v2490, 4
      %v2493 = vrot.slane %v1494, 5
      %v2494 = vsel %vm1116, %v2492, %v2493
      %v2495 = vrot.slane %v1495, 5
      %v2496 = vrot.slane %v2495, 4
      %v2497 = vrot.slane %v1496, 5
      %v2498 = vsel %vm1116, %v2496, %v2497
      %v2499 = vrot.slane %v2497, 4
      %v2500 = vrot.slane %v1497, 5
      %v2501 = vsel %vm1116, %v2499, %v2500
      %v2502 = vrot.slane %v1498, 5
      %v2503 = vrot.slane %v2502, 4
      %v2504 = vrot.slane %v1499, 5
      %v2505 = vsel %vm1116, %v2503, %v2504
      %v2506 = vrot.slane %v2504, 4
      %v2507 = vrot.slane %v1500, 5
      %v2508 = vsel %vm1116, %v2506, %v2507
      %v2509 = vrot.slane %v1501, 5
      %v2510 = vrot.slane %v2509, 4
      %v2511 = vrot.slane %v1502, 5
      %v2512 = vsel %vm1116, %v2510, %v2511
      %v2513 = vrot.slane %v2511, 4
      %v2514 = vrot.slane %v1503, 5
      %v2515 = vsel %vm1116, %v2513, %v2514
      %v2516 = vrot.slane %v1504, 5
      %v2517 = vrot.slane %v2516, 4
      %v2518 = vrot.slane %v1505, 5
      %v2519 = vsel %vm1116, %v2517, %v2518
      %v2520 = vrot.slane %v2518, 4
      %v2521 = vrot.slane %v1506, 5
      %v2522 = vsel %vm1116, %v2520, %v2521
      %v2523 = vrot.slane %v1507, 5
      %v2524 = vrot.slane %v2523, 4
      %v2525 = vrot.slane %v1508, 5
      %v2526 = vsel %vm1116, %v2524, %v2525
      %v2527 = vrot.slane %v2525, 4
      %v2528 = vrot.slane %v1509, 5
      %v2529 = vsel %vm1116, %v2527, %v2528
      %v2530 = vrot.slane %v1510, 5
      %v2531 = vrot.slane %v2530, 4
      %v2532 = vrot.slane %v1511, 5
      %v2533 = vsel %vm1116, %v2531, %v2532
      %v2534 = vrot.slane %v2532, 4
      %v2535 = vrot.slane %v1512, 5
      %v2536 = vsel %vm1116, %v2534, %v2535
      %v2537 = vrot.slane %v1513, 5
      %v2538 = vrot.slane %v2537, 4
      %v2539 = vrot.slane %v1514, 5
      %v2540 = vsel %vm1116, %v2538, %v2539
      %v2541 = vrot.slane %v2539, 4
      %v2542 = vrot.slane %v1515, 5
      %v2543 = vsel %vm1116, %v2541, %v2542
      %v2544 = vrot.slane %v1516, 5
      %v2545 = vrot.slane %v2544, 4
      %v2546 = vrot.slane %v1517, 5
      %v2547 = vsel %vm1116, %v2545, %v2546
      %v2548 = vrot.slane %v2546, 4
      %v2549 = vrot.slane %v1518, 5
      %v2550 = vsel %vm1116, %v2548, %v2549
      %v2551 = vrot.slane %v1519, 5
      %v2552 = vrot.slane %v2551, 4
      %v2553 = vrot.slane %v1520, 5
      %v2554 = vsel %vm1116, %v2552, %v2553
      %v2555 = vrot.slane %v2553, 4
      %v2556 = vrot.slane %v1521, 5
      %v2557 = vsel %vm1116, %v2555, %v2556
      %v2558 = vrot.slane %v1522, 5
      %v2559 = vrot.slane %v2558, 4
      %v2560 = vrot.slane %v1523, 5
      %v2561 = vsel %vm1116, %v2559, %v2560
      %v2562 = vrot.slane %v2560, 4
      %v2563 = vrot.slane %v1524, 5
      %v2564 = vsel %vm1116, %v2562, %v2563
      %v2565 = vrot.slane %v1525, 5
      %v2566 = vrot.slane %v2565, 4
      %v2567 = vrot.slane %v1526, 5
      %v2568 = vsel %vm1116, %v2566, %v2567
      %v2569 = vrot.slane %v2567, 4
      %v2570 = vrot.slane %v1527, 5
      %v2571 = vsel %vm1116, %v2569, %v2570
      %s2572 = scalar_lea.vmem %s1, 320
      %v2573 = vld [vmem:[%s2572] sm:$0xf]
      %v2574 = vld [vmem:[%s2572 + $0x4] sm:$0xf]
      %v2575 = vld [vmem:[%s2572 + $0x8] sm:$0xf]
      %v2576 = vld [vmem:[%s2572 + $0xc] sm:$0xf]
      %v2577 = vld [vmem:[%s2572 + $0x10] sm:$0xf]
      %v2578 = vld [vmem:[%s2572 + $0x14] sm:$0xf]
      %v2579 = vld [vmem:[%s2572 + $0x18] sm:$0xf]
      %v2580 = vld [vmem:[%s2572 + $0x1c] sm:$0xf]
      %v2581 = vld [vmem:[%s2572 + $0x20] sm:$0xf]
      %v2582 = vld [vmem:[%s2572 + $0x24] sm:$0xf]
      %v2583 = vld [vmem:[%s2572 + $0x28] sm:$0xf]
      %v2584 = vld [vmem:[%s2572 + $0x2c] sm:$0xf]
      %v2585 = vld [vmem:[%s2572 + $0x30] sm:$0xf]
      %v2586 = vld [vmem:[%s2572 + $0x34] sm:$0xf]
      %v2587 = vld [vmem:[%s2572 + $0x38] sm:$0xf]
      %v2588 = vld [vmem:[%s2572 + $0x3c] sm:$0xf]
      %v2589 = vunpack.c.l.b16 %v2463
      %v2590 = vunpack.c.l.b16 %v2466
      %v2591 = vunpack.c.l.b16 %v2470
      %v2592 = vunpack.c.l.b16 %v2473
      %v2593 = vunpack.c.l.b16 %v2477
      %v2594 = vunpack.c.l.b16 %v2480
      %v2595 = vunpack.c.l.b16 %v2484
      %v2596 = vunpack.c.l.b16 %v2487
      %v2597 = vunpack.c.l.b16 %v2491
      %v2598 = vunpack.c.l.b16 %v2494
      %v2599 = vunpack.c.l.b16 %v2498
      %v2600 = vunpack.c.l.b16 %v2501
      %v2601 = vunpack.c.l.b16 %v2505
      %v2602 = vunpack.c.l.b16 %v2508
      %v2603 = vunpack.c.l.b16 %v2512
      %v2604 = vunpack.c.l.b16 %v2515
      %v2605 = vunpack.c.l.b16 %v2519
      %v2606 = vunpack.c.l.b16 %v2522
      %v2607 = vunpack.c.l.b16 %v2526
      %v2608 = vunpack.c.l.b16 %v2529
      %v2609 = vunpack.c.l.b16 %v2533
      %v2610 = vunpack.c.l.b16 %v2536
      %v2611 = vunpack.c.l.b16 %v2540
      %v2612 = vunpack.c.l.b16 %v2543
      %v2613 = vunpack.c.l.b16 %v2547
      %v2614 = vunpack.c.l.b16 %v2550
      %v2615 = vunpack.c.l.b16 %v2554
      %v2616 = vunpack.c.l.b16 %v2557
      %v2617 = vunpack.c.l.b16 %v2561
      %v2618 = vunpack.c.l.b16 %v2564
      %v2619 = vunpack.c.l.b16 %v2568
      %v2620 = vunpack.c.l.b16 %v2571
      %v2621 = vpack.c.b16 %v2590, %v2589
      %v2622 = vpack.c.b16 %v2592, %v2591
      %v2623 = vpack.c.b16 %v2594, %v2593
      %v2624 = vpack.c.b16 %v2596, %v2595
      %v2625 = vpack.c.b16 %v2598, %v2597
      %v2626 = vpack.c.b16 %v2600, %v2599
      %v2627 = vpack.c.b16 %v2602, %v2601
      %v2628 = vpack.c.b16 %v2604, %v2603
      %v2629 = vpack.c.b16 %v2606, %v2605
      %v2630 = vpack.c.b16 %v2608, %v2607
      %v2631 = vpack.c.b16 %v2610, %v2609
      %v2632 = vpack.c.b16 %v2612, %v2611
      %v2633 = vpack.c.b16 %v2614, %v2613
      %v2634 = vpack.c.b16 %v2616, %v2615
      %v2635 = vpack.c.b16 %v2618, %v2617
      %v2636 = vpack.c.b16 %v2620, %v2619
      %v2669 = vunpack.c.l.b16 %v2573
      %v2670 = vunpack.c.l.b16 %v2574
      %v2671 = vunpack.c.l.b16 %v2575
      %v2672 = vunpack.c.l.b16 %v2576
      %v2673 = vunpack.c.l.b16 %v2577
      %v2674 = vunpack.c.l.b16 %v2578
      %v2675 = vunpack.c.l.b16 %v2579
      %v2676 = vunpack.c.l.b16 %v2580
      %v2677 = vunpack.c.l.b16 %v2581
      %v2678 = vunpack.c.l.b16 %v2582
      %v2679 = vunpack.c.l.b16 %v2583
      %v2680 = vunpack.c.l.b16 %v2584
      %v2681 = vunpack.c.l.b16 %v2585
      %v2682 = vunpack.c.l.b16 %v2586
      %v2683 = vunpack.c.l.b16 %v2587
      %v2684 = vunpack.c.l.b16 %v2588
      %v2685 = vpack.c.b16 %v2670, %v2669
      %v2686 = vpack.c.b16 %v2672, %v2671
      %v2687 = vpack.c.b16 %v2674, %v2673
      %v2688 = vpack.c.b16 %v2676, %v2675
      %v2689 = vpack.c.b16 %v2678, %v2677
      %v2690 = vpack.c.b16 %v2680, %v2679
      %v2691 = vpack.c.b16 %v2682, %v2681
      %v2692 = vpack.c.b16 %v2684, %v2683
      %2701 = vmatpush.bf16.msra.mxu0 %v2692
      %2702 = vmatpush.bf16.msra.mxu0 %v2691
      %2703 = vmatpush.bf16.msra.mxu0 %v2690
      %2704 = vmatpush.bf16.msra.mxu0 %v2689
      %2705 = vmatpush.bf16.msra.mxu0 %v2688
      %2706 = vmatpush.bf16.msra.mxu0 %v2687
      %2707 = vmatpush.bf16.msra.mxu0 %v2686
      %2708 = vmatpush.bf16.msra.mxu0 %v2685
      %2709 = vmatmul.bf16.gmra.mxu0 %v2621
      %v2710 = vpop.f32.mrf.mxu0
      %v2711 = vadd.f32 0.0, %v2710
      %v2712 = vpop.f32.mrf.mxu0
      %v2713 = vadd.f32 0.0, %v2712
      %2714 = vmatmul.bf16.gmra.mxu0 %v2622
      %v2715 = vpop.f32.mrf.mxu0
      %v2716 = vadd.f32 0.0, %v2715
      %v2717 = vpop.f32.mrf.mxu0
      %v2718 = vadd.f32 0.0, %v2717
      %2719 = vmatmul.bf16.gmra.mxu0 %v2623
      %v2720 = vpop.f32.mrf.mxu0
      %v2721 = vadd.f32 0.0, %v2720
      %v2722 = vpop.f32.mrf.mxu0
      %v2723 = vadd.f32 0.0, %v2722
      %2724 = vmatmul.bf16.gmra.mxu0 %v2624
      %v2725 = vpop.f32.mrf.mxu0
      %v2726 = vadd.f32 0.0, %v2725
      %v2727 = vpop.f32.mrf.mxu0
      %v2728 = vadd.f32 0.0, %v2727
      %2729 = vmatmul.bf16.gmra.mxu0 %v2625
      %v2730 = vpop.f32.mrf.mxu0
      %v2731 = vadd.f32 0.0, %v2730
      %v2732 = vpop.f32.mrf.mxu0
      %v2733 = vadd.f32 0.0, %v2732
      %2734 = vmatmul.bf16.gmra.mxu0 %v2626
      %v2735 = vpop.f32.mrf.mxu0
      %v2736 = vadd.f32 0.0, %v2735
      %v2737 = vpop.f32.mrf.mxu0
      %v2738 = vadd.f32 0.0, %v2737
      %2739 = vmatmul.bf16.gmra.mxu0 %v2627
      %v2740 = vpop.f32.mrf.mxu0
      %v2741 = vadd.f32 0.0, %v2740
      %v2742 = vpop.f32.mrf.mxu0
      %v2743 = vadd.f32 0.0, %v2742
      %2744 = vmatmul.bf16.gmra.mxu0 %v2628
      %v2745 = vpop.f32.mrf.mxu0
      %v2746 = vadd.f32 0.0, %v2745
      %v2747 = vpop.f32.mrf.mxu0
      %v2748 = vadd.f32 0.0, %v2747
      %2749 = vmatmul.bf16.gmra.mxu0 %v2629
      %v2750 = vpop.f32.mrf.mxu0
      %v2751 = vadd.f32 0.0, %v2750
      %v2752 = vpop.f32.mrf.mxu0
      %v2753 = vadd.f32 0.0, %v2752
      %2754 = vmatmul.bf16.gmra.mxu0 %v2630
      %v2755 = vpop.f32.mrf.mxu0
      %v2756 = vadd.f32 0.0, %v2755
      %v2757 = vpop.f32.mrf.mxu0
      %v2758 = vadd.f32 0.0, %v2757
      %2759 = vmatmul.bf16.gmra.mxu0 %v2631
      %v2760 = vpop.f32.mrf.mxu0
      %v2761 = vadd.f32 0.0, %v2760
      %v2762 = vpop.f32.mrf.mxu0
      %v2763 = vadd.f32 0.0, %v2762
      %2764 = vmatmul.bf16.gmra.mxu0 %v2632
      %v2765 = vpop.f32.mrf.mxu0
      %v2766 = vadd.f32 0.0, %v2765
      %v2767 = vpop.f32.mrf.mxu0
      %v2768 = vadd.f32 0.0, %v2767
      %2769 = vmatmul.bf16.gmra.mxu0 %v2633
      %v2770 = vpop.f32.mrf.mxu0
      %v2771 = vadd.f32 0.0, %v2770
      %v2772 = vpop.f32.mrf.mxu0
      %v2773 = vadd.f32 0.0, %v2772
      %2774 = vmatmul.bf16.gmra.mxu0 %v2634
      %v2775 = vpop.f32.mrf.mxu0
      %v2776 = vadd.f32 0.0, %v2775
      %v2777 = vpop.f32.mrf.mxu0
      %v2778 = vadd.f32 0.0, %v2777
      %2779 = vmatmul.bf16.gmra.mxu0 %v2635
      %v2780 = vpop.f32.mrf.mxu0
      %v2781 = vadd.f32 0.0, %v2780
      %v2782 = vpop.f32.mrf.mxu0
      %v2783 = vadd.f32 0.0, %v2782
      %2784 = vmatmul.bf16.gmra.mxu0 %v2636
      %v2785 = vpop.f32.mrf.mxu0
      %v2786 = vadd.f32 0.0, %v2785
      %v2787 = vpop.f32.mrf.mxu0
      %v2788 = vadd.f32 0.0, %v2787
      %2789 = vdwg.mxu0
      %v2790 = vadd.f32 %v2412, %v2711
      %v2791 = vadd.f32 %v2413, %v2713
      %v2792 = vadd.f32 %v2414, %v2716
      %v2793 = vadd.f32 %v2415, %v2718
      %v2794 = vadd.f32 %v2416, %v2721
      %v2795 = vadd.f32 %v2417, %v2723
      %v2796 = vadd.f32 %v2418, %v2726
      %v2797 = vadd.f32 %v2419, %v2728
      %v2798 = vadd.f32 %v2420, %v2731
      %v2799 = vadd.f32 %v2421, %v2733
      %v2800 = vadd.f32 %v2422, %v2736
      %v2801 = vadd.f32 %v2423, %v2738
      %v2802 = vadd.f32 %v2424, %v2741
      %v2803 = vadd.f32 %v2425, %v2743
      %v2804 = vadd.f32 %v2426, %v2746
      %v2805 = vadd.f32 %v2427, %v2748
      %v2806 = vadd.f32 %v2428, %v2751
      %v2807 = vadd.f32 %v2429, %v2753
      %v2808 = vadd.f32 %v2430, %v2756
      %v2809 = vadd.f32 %v2431, %v2758
      %v2810 = vadd.f32 %v2432, %v2761
      %v2811 = vadd.f32 %v2433, %v2763
      %v2812 = vadd.f32 %v2434, %v2766
      %v2813 = vadd.f32 %v2435, %v2768
      %v2814 = vadd.f32 %v2436, %v2771
      %v2815 = vadd.f32 %v2437, %v2773
      %v2816 = vadd.f32 %v2438, %v2776
      %v2817 = vadd.f32 %v2439, %v2778
      %v2818 = vadd.f32 %v2440, %v2781
      %v2819 = vadd.f32 %v2441, %v2783
      %v2820 = vadd.f32 %v2442, %v2786
      %v2821 = vadd.f32 %v2443, %v2788
      %s2822 = scalar_lea.vmem %s184, 24
      %v2823 = vld [vmem:[%s2822] sm:$0xf]
      %v2824 = vld [vmem:[%s2822 + $0x4] sm:$0xf]
      %v2825 = vld [vmem:[%s2822 + $0x8] sm:$0x1]
      %v2826 = vld [vmem:[%s2822 + $0xc] sm:$0xf]
      %v2827 = vld [vmem:[%s2822 + $0x10] sm:$0xf]
      %v2828 = vld [vmem:[%s2822 + $0x14] sm:$0x1]
      %v2829 = vld [vmem:[%s2822 + $0x18] sm:$0xf]
      %v2830 = vld [vmem:[%s2822 + $0x1c] sm:$0xf]
      %v2831 = vld [vmem:[%s2822 + $0x20] sm:$0x1]
      %v2832 = vld [vmem:[%s2822 + $0x24] sm:$0xf]
      %v2833 = vld [vmem:[%s2822 + $0x28] sm:$0xf]
      %v2834 = vld [vmem:[%s2822 + $0x2c] sm:$0x1]
      %v2835 = vld [vmem:[%s2822 + $0x30] sm:$0xf]
      %v2836 = vld [vmem:[%s2822 + $0x34] sm:$0xf]
      %v2837 = vld [vmem:[%s2822 + $0x38] sm:$0x1]
      %v2838 = vld [vmem:[%s2822 + $0x3c] sm:$0xf]
      %v2839 = vld [vmem:[%s2822 + $0x40] sm:$0xf]
      %v2840 = vld [vmem:[%s2822 + $0x44] sm:$0x1]
      %v2841 = vld [vmem:[%s2822 + $0x48] sm:$0xf]
      %v2842 = vld [vmem:[%s2822 + $0x4c] sm:$0xf]
      %v2843 = vld [vmem:[%s2822 + $0x50] sm:$0x1]
      %v2844 = vld [vmem:[%s2822 + $0x54] sm:$0xf]
      %v2845 = vld [vmem:[%s2822 + $0x58] sm:$0xf]
      %v2846 = vld [vmem:[%s2822 + $0x5c] sm:$0x1]
      %v2847 = vld [vmem:[%s2822 + $0x60] sm:$0xf]
      %v2848 = vld [vmem:[%s2822 + $0x64] sm:$0xf]
      %v2849 = vld [vmem:[%s2822 + $0x68] sm:$0x1]
      %v2850 = vld [vmem:[%s2822 + $0x6c] sm:$0xf]
      %v2851 = vld [vmem:[%s2822 + $0x70] sm:$0xf]
      %v2852 = vld [vmem:[%s2822 + $0x74] sm:$0x1]
      %v2853 = vld [vmem:[%s2822 + $0x78] sm:$0xf]
      %v2854 = vld [vmem:[%s2822 + $0x7c] sm:$0xf]
      %v2855 = vld [vmem:[%s2822 + $0x80] sm:$0x1]
      %v2856 = vld [vmem:[%s2822 + $0x84] sm:$0xf]
      %v2857 = vld [vmem:[%s2822 + $0x88] sm:$0xf]
      %v2858 = vld [vmem:[%s2822 + $0x8c] sm:$0x1]
      %v2859 = vld [vmem:[%s2822 + $0x90] sm:$0xf]
      %v2860 = vld [vmem:[%s2822 + $0x94] sm:$0xf]
      %v2861 = vld [vmem:[%s2822 + $0x98] sm:$0x1]
      %v2862 = vld [vmem:[%s2822 + $0x9c] sm:$0xf]
      %v2863 = vld [vmem:[%s2822 + $0xa0] sm:$0xf]
      %v2864 = vld [vmem:[%s2822 + $0xa4] sm:$0x1]
      %v2865 = vld [vmem:[%s2822 + $0xa8] sm:$0xf]
      %v2866 = vld [vmem:[%s2822 + $0xac] sm:$0xf]
      %v2867 = vld [vmem:[%s2822 + $0xb0] sm:$0x1]
      %v2868 = vld [vmem:[%s2822 + $0xb4] sm:$0xf]
      %v2869 = vld [vmem:[%s2822 + $0xb8] sm:$0xf]
      %v2870 = vld [vmem:[%s2822 + $0xbc] sm:$0x1]
      %s2871 = scalar_lea.vmem %s1, 384
      %v2872 = vld [vmem:[%s2871] sm:$0xf]
      %v2873 = vld [vmem:[%s2871 + $0x4] sm:$0xf]
      %v2874 = vld [vmem:[%s2871 + $0x8] sm:$0xf]
      %v2875 = vld [vmem:[%s2871 + $0xc] sm:$0xf]
      %v2876 = vld [vmem:[%s2871 + $0x10] sm:$0xf]
      %v2877 = vld [vmem:[%s2871 + $0x14] sm:$0xf]
      %v2878 = vld [vmem:[%s2871 + $0x18] sm:$0xf]
      %v2879 = vld [vmem:[%s2871 + $0x1c] sm:$0xf]
      %v2880 = vld [vmem:[%s2871 + $0x20] sm:$0xf]
      %v2881 = vld [vmem:[%s2871 + $0x24] sm:$0xf]
      %v2882 = vld [vmem:[%s2871 + $0x28] sm:$0xf]
      %v2883 = vld [vmem:[%s2871 + $0x2c] sm:$0xf]
      %v2884 = vld [vmem:[%s2871 + $0x30] sm:$0xf]
      %v2885 = vld [vmem:[%s2871 + $0x34] sm:$0xf]
      %v2886 = vld [vmem:[%s2871 + $0x38] sm:$0xf]
      %v2887 = vld [vmem:[%s2871 + $0x3c] sm:$0xf]
      %v2920 = vunpack.c.l.b16 %v2823
      %v2921 = vunpack.c.l.b16 %v2824
      %v2922 = vunpack.c.l.b16 %v2826
      %v2923 = vunpack.c.l.b16 %v2827
      %v2924 = vunpack.c.l.b16 %v2829
      %v2925 = vunpack.c.l.b16 %v2830
      %v2926 = vunpack.c.l.b16 %v2832
      %v2927 = vunpack.c.l.b16 %v2833
      %v2928 = vunpack.c.l.b16 %v2835
      %v2929 = vunpack.c.l.b16 %v2836
      %v2930 = vunpack.c.l.b16 %v2838
      %v2931 = vunpack.c.l.b16 %v2839
      %v2932 = vunpack.c.l.b16 %v2841
      %v2933 = vunpack.c.l.b16 %v2842
      %v2934 = vunpack.c.l.b16 %v2844
      %v2935 = vunpack.c.l.b16 %v2845
      %v2936 = vunpack.c.l.b16 %v2847
      %v2937 = vunpack.c.l.b16 %v2848
      %v2938 = vunpack.c.l.b16 %v2850
      %v2939 = vunpack.c.l.b16 %v2851
      %v2940 = vunpack.c.l.b16 %v2853
      %v2941 = vunpack.c.l.b16 %v2854
      %v2942 = vunpack.c.l.b16 %v2856
      %v2943 = vunpack.c.l.b16 %v2857
      %v2944 = vunpack.c.l.b16 %v2859
      %v2945 = vunpack.c.l.b16 %v2860
      %v2946 = vunpack.c.l.b16 %v2862
      %v2947 = vunpack.c.l.b16 %v2863
      %v2948 = vunpack.c.l.b16 %v2865
      %v2949 = vunpack.c.l.b16 %v2866
      %v2950 = vunpack.c.l.b16 %v2868
      %v2951 = vunpack.c.l.b16 %v2869
      %v2952 = vpack.c.b16 %v2921, %v2920
      %v2953 = vpack.c.b16 %v2923, %v2922
      %v2954 = vpack.c.b16 %v2925, %v2924
      %v2955 = vpack.c.b16 %v2927, %v2926
      %v2956 = vpack.c.b16 %v2929, %v2928
      %v2957 = vpack.c.b16 %v2931, %v2930
      %v2958 = vpack.c.b16 %v2933, %v2932
      %v2959 = vpack.c.b16 %v2935, %v2934
      %v2960 = vpack.c.b16 %v2937, %v2936
      %v2961 = vpack.c.b16 %v2939, %v2938
      %v2962 = vpack.c.b16 %v2941, %v2940
      %v2963 = vpack.c.b16 %v2943, %v2942
      %v2964 = vpack.c.b16 %v2945, %v2944
      %v2965 = vpack.c.b16 %v2947, %v2946
      %v2966 = vpack.c.b16 %v2949, %v2948
      %v2967 = vpack.c.b16 %v2951, %v2950
      %v3000 = vunpack.c.l.b16 %v2872
      %v3001 = vunpack.c.l.b16 %v2873
      %v3002 = vunpack.c.l.b16 %v2874
      %v3003 = vunpack.c.l.b16 %v2875
      %v3004 = vunpack.c.l.b16 %v2876
      %v3005 = vunpack.c.l.b16 %v2877
      %v3006 = vunpack.c.l.b16 %v2878
      %v3007 = vunpack.c.l.b16 %v2879
      %v3008 = vunpack.c.l.b16 %v2880
      %v3009 = vunpack.c.l.b16 %v2881
      %v3010 = vunpack.c.l.b16 %v2882
      %v3011 = vunpack.c.l.b16 %v2883
      %v3012 = vunpack.c.l.b16 %v2884
      %v3013 = vunpack.c.l.b16 %v2885
      %v3014 = vunpack.c.l.b16 %v2886
      %v3015 = vunpack.c.l.b16 %v2887
      %v3016 = vpack.c.b16 %v3001, %v3000
      %v3017 = vpack.c.b16 %v3003, %v3002
      %v3018 = vpack.c.b16 %v3005, %v3004
      %v3019 = vpack.c.b16 %v3007, %v3006
      %v3020 = vpack.c.b16 %v3009, %v3008
      %v3021 = vpack.c.b16 %v3011, %v3010
      %v3022 = vpack.c.b16 %v3013, %v3012
      %v3023 = vpack.c.b16 %v3015, %v3014
      %3032 = vmatpush.bf16.msra.mxu0 %v3023
      %3033 = vmatpush.bf16.msra.mxu0 %v3022
      %3034 = vmatpush.bf16.msra.mxu0 %v3021
      %3035 = vmatpush.bf16.msra.mxu0 %v3020
      %3036 = vmatpush.bf16.msra.mxu0 %v3019
      %3037 = vmatpush.bf16.msra.mxu0 %v3018
      %3038 = vmatpush.bf16.msra.mxu0 %v3017
      %3039 = vmatpush.bf16.msra.mxu0 %v3016
      %3040 = vmatmul.bf16.gmra.mxu0 %v2952
      %v3041 = vpop.f32.mrf.mxu0
      %v3042 = vadd.f32 0.0, %v3041
      %v3043 = vpop.f32.mrf.mxu0
      %v3044 = vadd.f32 0.0, %v3043
      %3045 = vmatmul.bf16.gmra.mxu0 %v2953
      %v3046 = vpop.f32.mrf.mxu0
      %v3047 = vadd.f32 0.0, %v3046
      %v3048 = vpop.f32.mrf.mxu0
      %v3049 = vadd.f32 0.0, %v3048
      %3050 = vmatmul.bf16.gmra.mxu0 %v2954
      %v3051 = vpop.f32.mrf.mxu0
      %v3052 = vadd.f32 0.0, %v3051
      %v3053 = vpop.f32.mrf.mxu0
      %v3054 = vadd.f32 0.0, %v3053
      %3055 = vmatmul.bf16.gmra.mxu0 %v2955
      %v3056 = vpop.f32.mrf.mxu0
      %v3057 = vadd.f32 0.0, %v3056
      %v3058 = vpop.f32.mrf.mxu0
      %v3059 = vadd.f32 0.0, %v3058
      %3060 = vmatmul.bf16.gmra.mxu0 %v2956
      %v3061 = vpop.f32.mrf.mxu0
      %v3062 = vadd.f32 0.0, %v3061
      %v3063 = vpop.f32.mrf.mxu0
      %v3064 = vadd.f32 0.0, %v3063
      %3065 = vmatmul.bf16.gmra.mxu0 %v2957
      %v3066 = vpop.f32.mrf.mxu0
      %v3067 = vadd.f32 0.0, %v3066
      %v3068 = vpop.f32.mrf.mxu0
      %v3069 = vadd.f32 0.0, %v3068
      %3070 = vmatmul.bf16.gmra.mxu0 %v2958
      %v3071 = vpop.f32.mrf.mxu0
      %v3072 = vadd.f32 0.0, %v3071
      %v3073 = vpop.f32.mrf.mxu0
      %v3074 = vadd.f32 0.0, %v3073
      %3075 = vmatmul.bf16.gmra.mxu0 %v2959
      %v3076 = vpop.f32.mrf.mxu0
      %v3077 = vadd.f32 0.0, %v3076
      %v3078 = vpop.f32.mrf.mxu0
      %v3079 = vadd.f32 0.0, %v3078
      %3080 = vmatmul.bf16.gmra.mxu0 %v2960
      %v3081 = vpop.f32.mrf.mxu0
      %v3082 = vadd.f32 0.0, %v3081
      %v3083 = vpop.f32.mrf.mxu0
      %v3084 = vadd.f32 0.0, %v3083
      %3085 = vmatmul.bf16.gmra.mxu0 %v2961
      %v3086 = vpop.f32.mrf.mxu0
      %v3087 = vadd.f32 0.0, %v3086
      %v3088 = vpop.f32.mrf.mxu0
      %v3089 = vadd.f32 0.0, %v3088
      %3090 = vmatmul.bf16.gmra.mxu0 %v2962
      %v3091 = vpop.f32.mrf.mxu0
      %v3092 = vadd.f32 0.0, %v3091
      %v3093 = vpop.f32.mrf.mxu0
      %v3094 = vadd.f32 0.0, %v3093
      %3095 = vmatmul.bf16.gmra.mxu0 %v2963
      %v3096 = vpop.f32.mrf.mxu0
      %v3097 = vadd.f32 0.0, %v3096
      %v3098 = vpop.f32.mrf.mxu0
      %v3099 = vadd.f32 0.0, %v3098
      %3100 = vmatmul.bf16.gmra.mxu0 %v2964
      %v3101 = vpop.f32.mrf.mxu0
      %v3102 = vadd.f32 0.0, %v3101
      %v3103 = vpop.f32.mrf.mxu0
      %v3104 = vadd.f32 0.0, %v3103
      %3105 = vmatmul.bf16.gmra.mxu0 %v2965
      %v3106 = vpop.f32.mrf.mxu0
      %v3107 = vadd.f32 0.0, %v3106
      %v3108 = vpop.f32.mrf.mxu0
      %v3109 = vadd.f32 0.0, %v3108
      %3110 = vmatmul.bf16.gmra.mxu0 %v2966
      %v3111 = vpop.f32.mrf.mxu0
      %v3112 = vadd.f32 0.0, %v3111
      %v3113 = vpop.f32.mrf.mxu0
      %v3114 = vadd.f32 0.0, %v3113
      %3115 = vmatmul.bf16.gmra.mxu0 %v2967
      %v3116 = vpop.f32.mrf.mxu0
      %v3117 = vadd.f32 0.0, %v3116
      %v3118 = vpop.f32.mrf.mxu0
      %v3119 = vadd.f32 0.0, %v3118
      %3120 = vdwg.mxu0
      %v3121 = vadd.f32 %v2790, %v3042
      %v3122 = vadd.f32 %v2791, %v3044
      %v3123 = vadd.f32 %v2792, %v3047
      %v3124 = vadd.f32 %v2793, %v3049
      %v3125 = vadd.f32 %v2794, %v3052
      %v3126 = vadd.f32 %v2795, %v3054
      %v3127 = vadd.f32 %v2796, %v3057
      %v3128 = vadd.f32 %v2797, %v3059
      %v3129 = vadd.f32 %v2798, %v3062
      %v3130 = vadd.f32 %v2799, %v3064
      %v3131 = vadd.f32 %v2800, %v3067
      %v3132 = vadd.f32 %v2801, %v3069
      %v3133 = vadd.f32 %v2802, %v3072
      %v3134 = vadd.f32 %v2803, %v3074
      %v3135 = vadd.f32 %v2804, %v3077
      %v3136 = vadd.f32 %v2805, %v3079
      %v3137 = vadd.f32 %v2806, %v3082
      %v3138 = vadd.f32 %v2807, %v3084
      %v3139 = vadd.f32 %v2808, %v3087
      %v3140 = vadd.f32 %v2809, %v3089
      %v3141 = vadd.f32 %v2810, %v3092
      %v3142 = vadd.f32 %v2811, %v3094
      %v3143 = vadd.f32 %v2812, %v3097
      %v3144 = vadd.f32 %v2813, %v3099
      %v3145 = vadd.f32 %v2814, %v3102
      %v3146 = vadd.f32 %v2815, %v3104
      %v3147 = vadd.f32 %v2816, %v3107
      %v3148 = vadd.f32 %v2817, %v3109
      %v3149 = vadd.f32 %v2818, %v3112
      %v3150 = vadd.f32 %v2819, %v3114
      %v3151 = vadd.f32 %v2820, %v3117
      %v3152 = vadd.f32 %v2821, %v3119
      %v3154 = vshrl.u32 %v2823, 16
      %v3156 = vrot.slane %v3154, 4
      %v3157 = vshll.u32 %v2823, 16
      %v3159 = vrot.slane %v3157, 5
      %v3160 = vor.u32 %v3156, %v3159
      %v3161 = vrot.slane %v3160, 4
      %v3163 = vshll.u32 %v2824, 16
      %v3165 = vrot.slane %v3163, 5
      %v3166 = vsel %vm262, %v3161, %v3165
      %v3167 = vshrl.u32 %v2824, 16
      %v3169 = vrot.slane %v3167, 4
      %v3170 = vor.u32 %v3169, %v3165
      %v3171 = vrot.slane %v3170, 4
      %v3173 = vshll.u32 %v2825, 16
      %v3175 = vrot.slane %v3173, 5
      %v3176 = vsel %vm262, %v3171, %v3175
      %v3178 = vshrl.u32 %v2826, 16
      %v3180 = vrot.slane %v3178, 4
      %v3181 = vshll.u32 %v2826, 16
      %v3183 = vrot.slane %v3181, 5
      %v3184 = vor.u32 %v3180, %v3183
      %v3185 = vrot.slane %v3184, 4
      %v3187 = vshll.u32 %v2827, 16
      %v3189 = vrot.slane %v3187, 5
      %v3190 = vsel %vm262, %v3185, %v3189
      %v3191 = vshrl.u32 %v2827, 16
      %v3193 = vrot.slane %v3191, 4
      %v3194 = vor.u32 %v3193, %v3189
      %v3195 = vrot.slane %v3194, 4
      %v3197 = vshll.u32 %v2828, 16
      %v3199 = vrot.slane %v3197, 5
      %v3200 = vsel %vm262, %v3195, %v3199
      %v3202 = vshrl.u32 %v2829, 16
      %v3204 = vrot.slane %v3202, 4
      %v3205 = vshll.u32 %v2829, 16
      %v3207 = vrot.slane %v3205, 5
      %v3208 = vor.u32 %v3204, %v3207
      %v3209 = vrot.slane %v3208, 4
      %v3211 = vshll.u32 %v2830, 16
      %v3213 = vrot.slane %v3211, 5
      %v3214 = vsel %vm262, %v3209, %v3213
      %v3215 = vshrl.u32 %v2830, 16
      %v3217 = vrot.slane %v3215, 4
      %v3218 = vor.u32 %v3217, %v3213
      %v3219 = vrot.slane %v3218, 4
      %v3221 = vshll.u32 %v2831, 16
      %v3223 = vrot.slane %v3221, 5
      %v3224 = vsel %vm262, %v3219, %v3223
      %v3226 = vshrl.u32 %v2832, 16
      %v3228 = vrot.slane %v3226, 4
      %v3229 = vshll.u32 %v2832, 16
      %v3231 = vrot.slane %v3229, 5
      %v3232 = vor.u32 %v3228, %v3231
      %v3233 = vrot.slane %v3232, 4
      %v3235 = vshll.u32 %v2833, 16
      %v3237 = vrot.slane %v3235, 5
      %v3238 = vsel %vm262, %v3233, %v3237
      %v3239 = vshrl.u32 %v2833, 16
      %v3241 = vrot.slane %v3239, 4
      %v3242 = vor.u32 %v3241, %v3237
      %v3243 = vrot.slane %v3242, 4
      %v3245 = vshll.u32 %v2834, 16
      %v3247 = vrot.slane %v3245, 5
      %v3248 = vsel %vm262, %v3243, %v3247
      %v3250 = vshrl.u32 %v2835, 16
      %v3252 = vrot.slane %v3250, 4
      %v3253 = vshll.u32 %v2835, 16
      %v3255 = vrot.slane %v3253, 5
      %v3256 = vor.u32 %v3252, %v3255
      %v3257 = vrot.slane %v3256, 4
      %v3259 = vshll.u32 %v2836, 16
      %v3261 = vrot.slane %v3259, 5
      %v3262 = vsel %vm262, %v3257, %v3261
      %v3263 = vshrl.u32 %v2836, 16
      %v3265 = vrot.slane %v3263, 4
      %v3266 = vor.u32 %v3265, %v3261
      %v3267 = vrot.slane %v3266, 4
      %v3269 = vshll.u32 %v2837, 16
      %v3271 = vrot.slane %v3269, 5
      %v3272 = vsel %vm262, %v3267, %v3271
      %v3274 = vshrl.u32 %v2838, 16
      %v3276 = vrot.slane %v3274, 4
      %v3277 = vshll.u32 %v2838, 16
      %v3279 = vrot.slane %v3277, 5
      %v3280 = vor.u32 %v3276, %v3279
      %v3281 = vrot.slane %v3280, 4
      %v3283 = vshll.u32 %v2839, 16
      %v3285 = vrot.slane %v3283, 5
      %v3286 = vsel %vm262, %v3281, %v3285
      %v3287 = vshrl.u32 %v2839, 16
      %v3289 = vrot.slane %v3287, 4
      %v3290 = vor.u32 %v3289, %v3285
      %v3291 = vrot.slane %v3290, 4
      %v3293 = vshll.u32 %v2840, 16
      %v3295 = vrot.slane %v3293, 5
      %v3296 = vsel %vm262, %v3291, %v3295
      %v3298 = vshrl.u32 %v2841, 16
      %v3300 = vrot.slane %v3298, 4
      %v3301 = vshll.u32 %v2841, 16
      %v3303 = vrot.slane %v3301, 5
      %v3304 = vor.u32 %v3300, %v3303
      %v3305 = vrot.slane %v3304, 4
      %v3307 = vshll.u32 %v2842, 16
      %v3309 = vrot.slane %v3307, 5
      %v3310 = vsel %vm262, %v3305, %v3309
      %v3311 = vshrl.u32 %v2842, 16
      %v3313 = vrot.slane %v3311, 4
      %v3314 = vor.u32 %v3313, %v3309
      %v3315 = vrot.slane %v3314, 4
      %v3317 = vshll.u32 %v2843, 16
      %v3319 = vrot.slane %v3317, 5
      %v3320 = vsel %vm262, %v3315, %v3319
      %v3322 = vshrl.u32 %v2844, 16
      %v3324 = vrot.slane %v3322, 4
      %v3325 = vshll.u32 %v2844, 16
      %v3327 = vrot.slane %v3325, 5
      %v3328 = vor.u32 %v3324, %v3327
      %v3329 = vrot.slane %v3328, 4
      %v3331 = vshll.u32 %v2845, 16
      %v3333 = vrot.slane %v3331, 5
      %v3334 = vsel %vm262, %v3329, %v3333
      %v3335 = vshrl.u32 %v2845, 16
      %v3337 = vrot.slane %v3335, 4
      %v3338 = vor.u32 %v3337, %v3333
      %v3339 = vrot.slane %v3338, 4
      %v3341 = vshll.u32 %v2846, 16
      %v3343 = vrot.slane %v3341, 5
      %v3344 = vsel %vm262, %v3339, %v3343
      %v3346 = vshrl.u32 %v2847, 16
      %v3348 = vrot.slane %v3346, 4
      %v3349 = vshll.u32 %v2847, 16
      %v3351 = vrot.slane %v3349, 5
      %v3352 = vor.u32 %v3348, %v3351
      %v3353 = vrot.slane %v3352, 4
      %v3355 = vshll.u32 %v2848, 16
      %v3357 = vrot.slane %v3355, 5
      %v3358 = vsel %vm262, %v3353, %v3357
      %v3359 = vshrl.u32 %v2848, 16
      %v3361 = vrot.slane %v3359, 4
      %v3362 = vor.u32 %v3361, %v3357
      %v3363 = vrot.slane %v3362, 4
      %v3365 = vshll.u32 %v2849, 16
      %v3367 = vrot.slane %v3365, 5
      %v3368 = vsel %vm262, %v3363, %v3367
      %v3370 = vshrl.u32 %v2850, 16
      %v3372 = vrot.slane %v3370, 4
      %v3373 = vshll.u32 %v2850, 16
      %v3375 = vrot.slane %v3373, 5
      %v3376 = vor.u32 %v3372, %v3375
      %v3377 = vrot.slane %v3376, 4
      %v3379 = vshll.u32 %v2851, 16
      %v3381 = vrot.slane %v3379, 5
      %v3382 = vsel %vm262, %v3377, %v3381
      %v3383 = vshrl.u32 %v2851, 16
      %v3385 = vrot.slane %v3383, 4
      %v3386 = vor.u32 %v3385, %v3381
      %v3387 = vrot.slane %v3386, 4
      %v3389 = vshll.u32 %v2852, 16
      %v3391 = vrot.slane %v3389, 5
      %v3392 = vsel %vm262, %v3387, %v3391
      %v3394 = vshrl.u32 %v2853, 16
      %v3396 = vrot.slane %v3394, 4
      %v3397 = vshll.u32 %v2853, 16
      %v3399 = vrot.slane %v3397, 5
      %v3400 = vor.u32 %v3396, %v3399
      %v3401 = vrot.slane %v3400, 4
      %v3403 = vshll.u32 %v2854, 16
      %v3405 = vrot.slane %v3403, 5
      %v3406 = vsel %vm262, %v3401, %v3405
      %v3407 = vshrl.u32 %v2854, 16
      %v3409 = vrot.slane %v3407, 4
      %v3410 = vor.u32 %v3409, %v3405
      %v3411 = vrot.slane %v3410, 4
      %v3413 = vshll.u32 %v2855, 16
      %v3415 = vrot.slane %v3413, 5
      %v3416 = vsel %vm262, %v3411, %v3415
      %v3418 = vshrl.u32 %v2856, 16
      %v3420 = vrot.slane %v3418, 4
      %v3421 = vshll.u32 %v2856, 16
      %v3423 = vrot.slane %v3421, 5
      %v3424 = vor.u32 %v3420, %v3423
      %v3425 = vrot.slane %v3424, 4
      %v3427 = vshll.u32 %v2857, 16
      %v3429 = vrot.slane %v3427, 5
      %v3430 = vsel %vm262, %v3425, %v3429
      %v3431 = vshrl.u32 %v2857, 16
      %v3433 = vrot.slane %v3431, 4
      %v3434 = vor.u32 %v3433, %v3429
      %v3435 = vrot.slane %v3434, 4
      %v3437 = vshll.u32 %v2858, 16
      %v3439 = vrot.slane %v3437, 5
      %v3440 = vsel %vm262, %v3435, %v3439
      %v3442 = vshrl.u32 %v2859, 16
      %v3444 = vrot.slane %v3442, 4
      %v3445 = vshll.u32 %v2859, 16
      %v3447 = vrot.slane %v3445, 5
      %v3448 = vor.u32 %v3444, %v3447
      %v3449 = vrot.slane %v3448, 4
      %v3451 = vshll.u32 %v2860, 16
      %v3453 = vrot.slane %v3451, 5
      %v3454 = vsel %vm262, %v3449, %v3453
      %v3455 = vshrl.u32 %v2860, 16
      %v3457 = vrot.slane %v3455, 4
      %v3458 = vor.u32 %v3457, %v3453
      %v3459 = vrot.slane %v3458, 4
      %v3461 = vshll.u32 %v2861, 16
      %v3463 = vrot.slane %v3461, 5
      %v3464 = vsel %vm262, %v3459, %v3463
      %v3466 = vshrl.u32 %v2862, 16
      %v3468 = vrot.slane %v3466, 4
      %v3469 = vshll.u32 %v2862, 16
      %v3471 = vrot.slane %v3469, 5
      %v3472 = vor.u32 %v3468, %v3471
      %v3473 = vrot.slane %v3472, 4
      %v3475 = vshll.u32 %v2863, 16
      %v3477 = vrot.slane %v3475, 5
      %v3478 = vsel %vm262, %v3473, %v3477
      %v3479 = vshrl.u32 %v2863, 16
      %v3481 = vrot.slane %v3479, 4
      %v3482 = vor.u32 %v3481, %v3477
      %v3483 = vrot.slane %v3482, 4
      %v3485 = vshll.u32 %v2864, 16
      %v3487 = vrot.slane %v3485, 5
      %v3488 = vsel %vm262, %v3483, %v3487
      %v3490 = vshrl.u32 %v2865, 16
      %v3492 = vrot.slane %v3490, 4
      %v3493 = vshll.u32 %v2865, 16
      %v3495 = vrot.slane %v3493, 5
      %v3496 = vor.u32 %v3492, %v3495
      %v3497 = vrot.slane %v3496, 4
      %v3499 = vshll.u32 %v2866, 16
      %v3501 = vrot.slane %v3499, 5
      %v3502 = vsel %vm262, %v3497, %v3501
      %v3503 = vshrl.u32 %v2866, 16
      %v3505 = vrot.slane %v3503, 4
      %v3506 = vor.u32 %v3505, %v3501
      %v3507 = vrot.slane %v3506, 4
      %v3509 = vshll.u32 %v2867, 16
      %v3511 = vrot.slane %v3509, 5
      %v3512 = vsel %vm262, %v3507, %v3511
      %v3514 = vshrl.u32 %v2868, 16
      %v3516 = vrot.slane %v3514, 4
      %v3517 = vshll.u32 %v2868, 16
      %v3519 = vrot.slane %v3517, 5
      %v3520 = vor.u32 %v3516, %v3519
      %v3521 = vrot.slane %v3520, 4
      %v3523 = vshll.u32 %v2869, 16
      %v3525 = vrot.slane %v3523, 5
      %v3526 = vsel %vm262, %v3521, %v3525
      %v3527 = vshrl.u32 %v2869, 16
      %v3529 = vrot.slane %v3527, 4
      %v3530 = vor.u32 %v3529, %v3525
      %v3531 = vrot.slane %v3530, 4
      %v3533 = vshll.u32 %v2870, 16
      %v3535 = vrot.slane %v3533, 5
      %v3536 = vsel %vm262, %v3531, %v3535
      %s3537 = scalar_lea.vmem %s1, 448
      %v3538 = vld [vmem:[%s3537] sm:$0xf]
      %v3539 = vld [vmem:[%s3537 + $0x4] sm:$0xf]
      %v3540 = vld [vmem:[%s3537 + $0x8] sm:$0xf]
      %v3541 = vld [vmem:[%s3537 + $0xc] sm:$0xf]
      %v3542 = vld [vmem:[%s3537 + $0x10] sm:$0xf]
      %v3543 = vld [vmem:[%s3537 + $0x14] sm:$0xf]
      %v3544 = vld [vmem:[%s3537 + $0x18] sm:$0xf]
      %v3545 = vld [vmem:[%s3537 + $0x1c] sm:$0xf]
      %v3546 = vld [vmem:[%s3537 + $0x20] sm:$0xf]
      %v3547 = vld [vmem:[%s3537 + $0x24] sm:$0xf]
      %v3548 = vld [vmem:[%s3537 + $0x28] sm:$0xf]
      %v3549 = vld [vmem:[%s3537 + $0x2c] sm:$0xf]
      %v3550 = vld [vmem:[%s3537 + $0x30] sm:$0xf]
      %v3551 = vld [vmem:[%s3537 + $0x34] sm:$0xf]
      %v3552 = vld [vmem:[%s3537 + $0x38] sm:$0xf]
      %v3553 = vld [vmem:[%s3537 + $0x3c] sm:$0xf]
      %v3554 = vunpack.c.l.b16 %v3166
      %v3555 = vunpack.c.l.b16 %v3176
      %v3556 = vunpack.c.l.b16 %v3190
      %v3557 = vunpack.c.l.b16 %v3200
      %v3558 = vunpack.c.l.b16 %v3214
      %v3559 = vunpack.c.l.b16 %v3224
      %v3560 = vunpack.c.l.b16 %v3238
      %v3561 = vunpack.c.l.b16 %v3248
      %v3562 = vunpack.c.l.b16 %v3262
      %v3563 = vunpack.c.l.b16 %v3272
      %v3564 = vunpack.c.l.b16 %v3286
      %v3565 = vunpack.c.l.b16 %v3296
      %v3566 = vunpack.c.l.b16 %v3310
      %v3567 = vunpack.c.l.b16 %v3320
      %v3568 = vunpack.c.l.b16 %v3334
      %v3569 = vunpack.c.l.b16 %v3344
      %v3570 = vunpack.c.l.b16 %v3358
      %v3571 = vunpack.c.l.b16 %v3368
      %v3572 = vunpack.c.l.b16 %v3382
      %v3573 = vunpack.c.l.b16 %v3392
      %v3574 = vunpack.c.l.b16 %v3406
      %v3575 = vunpack.c.l.b16 %v3416
      %v3576 = vunpack.c.l.b16 %v3430
      %v3577 = vunpack.c.l.b16 %v3440
      %v3578 = vunpack.c.l.b16 %v3454
      %v3579 = vunpack.c.l.b16 %v3464
      %v3580 = vunpack.c.l.b16 %v3478
      %v3581 = vunpack.c.l.b16 %v3488
      %v3582 = vunpack.c.l.b16 %v3502
      %v3583 = vunpack.c.l.b16 %v3512
      %v3584 = vunpack.c.l.b16 %v3526
      %v3585 = vunpack.c.l.b16 %v3536
      %v3586 = vpack.c.b16 %v3555, %v3554
      %v3587 = vpack.c.b16 %v3557, %v3556
      %v3588 = vpack.c.b16 %v3559, %v3558
      %v3589 = vpack.c.b16 %v3561, %v3560
      %v3590 = vpack.c.b16 %v3563, %v3562
      %v3591 = vpack.c.b16 %v3565, %v3564
      %v3592 = vpack.c.b16 %v3567, %v3566
      %v3593 = vpack.c.b16 %v3569, %v3568
      %v3594 = vpack.c.b16 %v3571, %v3570
      %v3595 = vpack.c.b16 %v3573, %v3572
      %v3596 = vpack.c.b16 %v3575, %v3574
      %v3597 = vpack.c.b16 %v3577, %v3576
      %v3598 = vpack.c.b16 %v3579, %v3578
      %v3599 = vpack.c.b16 %v3581, %v3580
      %v3600 = vpack.c.b16 %v3583, %v3582
      %v3601 = vpack.c.b16 %v3585, %v3584
      %v3634 = vunpack.c.l.b16 %v3538
      %v3635 = vunpack.c.l.b16 %v3539
      %v3636 = vunpack.c.l.b16 %v3540
      %v3637 = vunpack.c.l.b16 %v3541
      %v3638 = vunpack.c.l.b16 %v3542
      %v3639 = vunpack.c.l.b16 %v3543
      %v3640 = vunpack.c.l.b16 %v3544
      %v3641 = vunpack.c.l.b16 %v3545
      %v3642 = vunpack.c.l.b16 %v3546
      %v3643 = vunpack.c.l.b16 %v3547
      %v3644 = vunpack.c.l.b16 %v3548
      %v3645 = vunpack.c.l.b16 %v3549
      %v3646 = vunpack.c.l.b16 %v3550
      %v3647 = vunpack.c.l.b16 %v3551
      %v3648 = vunpack.c.l.b16 %v3552
      %v3649 = vunpack.c.l.b16 %v3553
      %v3650 = vpack.c.b16 %v3635, %v3634
      %v3651 = vpack.c.b16 %v3637, %v3636
      %v3652 = vpack.c.b16 %v3639, %v3638
      %v3653 = vpack.c.b16 %v3641, %v3640
      %v3654 = vpack.c.b16 %v3643, %v3642
      %v3655 = vpack.c.b16 %v3645, %v3644
      %v3656 = vpack.c.b16 %v3647, %v3646
      %v3657 = vpack.c.b16 %v3649, %v3648
      %3666 = vmatpush.bf16.msra.mxu0 %v3657
      %3667 = vmatpush.bf16.msra.mxu0 %v3656
      %3668 = vmatpush.bf16.msra.mxu0 %v3655
      %3669 = vmatpush.bf16.msra.mxu0 %v3654
      %3670 = vmatpush.bf16.msra.mxu0 %v3653
      %3671 = vmatpush.bf16.msra.mxu0 %v3652
      %3672 = vmatpush.bf16.msra.mxu0 %v3651
      %3673 = vmatpush.bf16.msra.mxu0 %v3650
      %3674 = vmatmul.bf16.gmra.mxu0 %v3586
      %v3675 = vpop.f32.mrf.mxu0
      %v3676 = vadd.f32 0.0, %v3675
      %v3677 = vpop.f32.mrf.mxu0
      %v3678 = vadd.f32 0.0, %v3677
      %3679 = vmatmul.bf16.gmra.mxu0 %v3587
      %v3680 = vpop.f32.mrf.mxu0
      %v3681 = vadd.f32 0.0, %v3680
      %v3682 = vpop.f32.mrf.mxu0
      %v3683 = vadd.f32 0.0, %v3682
      %3684 = vmatmul.bf16.gmra.mxu0 %v3588
      %v3685 = vpop.f32.mrf.mxu0
      %v3686 = vadd.f32 0.0, %v3685
      %v3687 = vpop.f32.mrf.mxu0
      %v3688 = vadd.f32 0.0, %v3687
      %3689 = vmatmul.bf16.gmra.mxu0 %v3589
      %v3690 = vpop.f32.mrf.mxu0
      %v3691 = vadd.f32 0.0, %v3690
      %v3692 = vpop.f32.mrf.mxu0
      %v3693 = vadd.f32 0.0, %v3692
      %3694 = vmatmul.bf16.gmra.mxu0 %v3590
      %v3695 = vpop.f32.mrf.mxu0
      %v3696 = vadd.f32 0.0, %v3695
      %v3697 = vpop.f32.mrf.mxu0
      %v3698 = vadd.f32 0.0, %v3697
      %3699 = vmatmul.bf16.gmra.mxu0 %v3591
      %v3700 = vpop.f32.mrf.mxu0
      %v3701 = vadd.f32 0.0, %v3700
      %v3702 = vpop.f32.mrf.mxu0
      %v3703 = vadd.f32 0.0, %v3702
      %3704 = vmatmul.bf16.gmra.mxu0 %v3592
      %v3705 = vpop.f32.mrf.mxu0
      %v3706 = vadd.f32 0.0, %v3705
      %v3707 = vpop.f32.mrf.mxu0
      %v3708 = vadd.f32 0.0, %v3707
      %3709 = vmatmul.bf16.gmra.mxu0 %v3593
      %v3710 = vpop.f32.mrf.mxu0
      %v3711 = vadd.f32 0.0, %v3710
      %v3712 = vpop.f32.mrf.mxu0
      %v3713 = vadd.f32 0.0, %v3712
      %3714 = vmatmul.bf16.gmra.mxu0 %v3594
      %v3715 = vpop.f32.mrf.mxu0
      %v3716 = vadd.f32 0.0, %v3715
      %v3717 = vpop.f32.mrf.mxu0
      %v3718 = vadd.f32 0.0, %v3717
      %3719 = vmatmul.bf16.gmra.mxu0 %v3595
      %v3720 = vpop.f32.mrf.mxu0
      %v3721 = vadd.f32 0.0, %v3720
      %v3722 = vpop.f32.mrf.mxu0
      %v3723 = vadd.f32 0.0, %v3722
      %3724 = vmatmul.bf16.gmra.mxu0 %v3596
      %v3725 = vpop.f32.mrf.mxu0
      %v3726 = vadd.f32 0.0, %v3725
      %v3727 = vpop.f32.mrf.mxu0
      %v3728 = vadd.f32 0.0, %v3727
      %3729 = vmatmul.bf16.gmra.mxu0 %v3597
      %v3730 = vpop.f32.mrf.mxu0
      %v3731 = vadd.f32 0.0, %v3730
      %v3732 = vpop.f32.mrf.mxu0
      %v3733 = vadd.f32 0.0, %v3732
      %3734 = vmatmul.bf16.gmra.mxu0 %v3598
      %v3735 = vpop.f32.mrf.mxu0
      %v3736 = vadd.f32 0.0, %v3735
      %v3737 = vpop.f32.mrf.mxu0
      %v3738 = vadd.f32 0.0, %v3737
      %3739 = vmatmul.bf16.gmra.mxu0 %v3599
      %v3740 = vpop.f32.mrf.mxu0
      %v3741 = vadd.f32 0.0, %v3740
      %v3742 = vpop.f32.mrf.mxu0
      %v3743 = vadd.f32 0.0, %v3742
      %3744 = vmatmul.bf16.gmra.mxu0 %v3600
      %v3745 = vpop.f32.mrf.mxu0
      %v3746 = vadd.f32 0.0, %v3745
      %v3747 = vpop.f32.mrf.mxu0
      %v3748 = vadd.f32 0.0, %v3747
      %3749 = vmatmul.bf16.gmra.mxu0 %v3601
      %v3750 = vpop.f32.mrf.mxu0
      %v3751 = vadd.f32 0.0, %v3750
      %v3752 = vpop.f32.mrf.mxu0
      %v3753 = vadd.f32 0.0, %v3752
      %3754 = vdwg.mxu0
      %v3755 = vadd.f32 %v3121, %v3676
      %v3756 = vadd.f32 %v3122, %v3678
      %v3757 = vadd.f32 %v3123, %v3681
      %v3758 = vadd.f32 %v3124, %v3683
      %v3759 = vadd.f32 %v3125, %v3686
      %v3760 = vadd.f32 %v3126, %v3688
      %v3761 = vadd.f32 %v3127, %v3691
      %v3762 = vadd.f32 %v3128, %v3693
      %v3763 = vadd.f32 %v3129, %v3696
      %v3764 = vadd.f32 %v3130, %v3698
      %v3765 = vadd.f32 %v3131, %v3701
      %v3766 = vadd.f32 %v3132, %v3703
      %v3767 = vadd.f32 %v3133, %v3706
      %v3768 = vadd.f32 %v3134, %v3708
      %v3769 = vadd.f32 %v3135, %v3711
      %v3770 = vadd.f32 %v3136, %v3713
      %v3771 = vadd.f32 %v3137, %v3716
      %v3772 = vadd.f32 %v3138, %v3718
      %v3773 = vadd.f32 %v3139, %v3721
      %v3774 = vadd.f32 %v3140, %v3723
      %v3775 = vadd.f32 %v3141, %v3726
      %v3776 = vadd.f32 %v3142, %v3728
      %v3777 = vadd.f32 %v3143, %v3731
      %v3778 = vadd.f32 %v3144, %v3733
      %v3779 = vadd.f32 %v3145, %v3736
      %v3780 = vadd.f32 %v3146, %v3738
      %v3781 = vadd.f32 %v3147, %v3741
      %v3782 = vadd.f32 %v3148, %v3743
      %v3783 = vadd.f32 %v3149, %v3746
      %v3784 = vadd.f32 %v3150, %v3748
      %v3785 = vadd.f32 %v3151, %v3751
      %v3786 = vadd.f32 %v3152, %v3753
      %v3803 = vrot.slane %v2823, 5
      %v3804 = vrot.slane %v3803, 4
      %v3805 = vrot.slane %v2824, 5
      %v3806 = vsel %vm1116, %v3804, %v3805
      %v3807 = vrot.slane %v3805, 4
      %v3808 = vrot.slane %v2825, 5
      %v3809 = vsel %vm1116, %v3807, %v3808
      %v3810 = vrot.slane %v2826, 5
      %v3811 = vrot.slane %v3810, 4
      %v3812 = vrot.slane %v2827, 5
      %v3813 = vsel %vm1116, %v3811, %v3812
      %v3814 = vrot.slane %v3812, 4
      %v3815 = vrot.slane %v2828, 5
      %v3816 = vsel %vm1116, %v3814, %v3815
      %v3817 = vrot.slane %v2829, 5
      %v3818 = vrot.slane %v3817, 4
      %v3819 = vrot.slane %v2830, 5
      %v3820 = vsel %vm1116, %v3818, %v3819
      %v3821 = vrot.slane %v3819, 4
      %v3822 = vrot.slane %v2831, 5
      %v3823 = vsel %vm1116, %v3821, %v3822
      %v3824 = vrot.slane %v2832, 5
      %v3825 = vrot.slane %v3824, 4
      %v3826 = vrot.slane %v2833, 5
      %v3827 = vsel %vm1116, %v3825, %v3826
      %v3828 = vrot.slane %v3826, 4
      %v3829 = vrot.slane %v2834, 5
      %v3830 = vsel %vm1116, %v3828, %v3829
      %v3831 = vrot.slane %v2835, 5
      %v3832 = vrot.slane %v3831, 4
      %v3833 = vrot.slane %v2836, 5
      %v3834 = vsel %vm1116, %v3832, %v3833
      %v3835 = vrot.slane %v3833, 4
      %v3836 = vrot.slane %v2837, 5
      %v3837 = vsel %vm1116, %v3835, %v3836
      %v3838 = vrot.slane %v2838, 5
      %v3839 = vrot.slane %v3838, 4
      %v3840 = vrot.slane %v2839, 5
      %v3841 = vsel %vm1116, %v3839, %v3840
      %v3842 = vrot.slane %v3840, 4
      %v3843 = vrot.slane %v2840, 5
      %v3844 = vsel %vm1116, %v3842, %v3843
      %v3845 = vrot.slane %v2841, 5
      %v3846 = vrot.slane %v3845, 4
      %v3847 = vrot.slane %v2842, 5
      %v3848 = vsel %vm1116, %v3846, %v3847
      %v3849 = vrot.slane %v3847, 4
      %v3850 = vrot.slane %v2843, 5
      %v3851 = vsel %vm1116, %v3849, %v3850
      %v3852 = vrot.slane %v2844, 5
      %v3853 = vrot.slane %v3852, 4
      %v3854 = vrot.slane %v2845, 5
      %v3855 = vsel %vm1116, %v3853, %v3854
      %v3856 = vrot.slane %v3854, 4
      %v3857 = vrot.slane %v2846, 5
      %v3858 = vsel %vm1116, %v3856, %v3857
      %v3859 = vrot.slane %v2847, 5
      %v3860 = vrot.slane %v3859, 4
      %v3861 = vrot.slane %v2848, 5
      %v3862 = vsel %vm1116, %v3860, %v3861
      %v3863 = vrot.slane %v3861, 4
      %v3864 = vrot.slane %v2849, 5
      %v3865 = vsel %vm1116, %v3863, %v3864
      %v3866 = vrot.slane %v2850, 5
      %v3867 = vrot.slane %v3866, 4
      %v3868 = vrot.slane %v2851, 5
      %v3869 = vsel %vm1116, %v3867, %v3868
      %v3870 = vrot.slane %v3868, 4
      %v3871 = vrot.slane %v2852, 5
      %v3872 = vsel %vm1116, %v3870, %v3871
      %v3873 = vrot.slane %v2853, 5
      %v3874 = vrot.slane %v3873, 4
      %v3875 = vrot.slane %v2854, 5
      %v3876 = vsel %vm1116, %v3874, %v3875
      %v3877 = vrot.slane %v3875, 4
      %v3878 = vrot.slane %v2855, 5
      %v3879 = vsel %vm1116, %v3877, %v3878
      %v3880 = vrot.slane %v2856, 5
      %v3881 = vrot.slane %v3880, 4
      %v3882 = vrot.slane %v2857, 5
      %v3883 = vsel %vm1116, %v3881, %v3882
      %v3884 = vrot.slane %v3882, 4
      %v3885 = vrot.slane %v2858, 5
      %v3886 = vsel %vm1116, %v3884, %v3885
      %v3887 = vrot.slane %v2859, 5
      %v3888 = vrot.slane %v3887, 4
      %v3889 = vrot.slane %v2860, 5
      %v3890 = vsel %vm1116, %v3888, %v3889
      %v3891 = vrot.slane %v3889, 4
      %v3892 = vrot.slane %v2861, 5
      %v3893 = vsel %vm1116, %v3891, %v3892
      %v3894 = vrot.slane %v2862, 5
      %v3895 = vrot.slane %v3894, 4
      %v3896 = vrot.slane %v2863, 5
      %v3897 = vsel %vm1116, %v3895, %v3896
      %v3898 = vrot.slane %v3896, 4
      %v3899 = vrot.slane %v2864, 5
      %v3900 = vsel %vm1116, %v3898, %v3899
      %v3901 = vrot.slane %v2865, 5
      %v3902 = vrot.slane %v3901, 4
      %v3903 = vrot.slane %v2866, 5
      %v3904 = vsel %vm1116, %v3902, %v3903
      %v3905 = vrot.slane %v3903, 4
      %v3906 = vrot.slane %v2867, 5
      %v3907 = vsel %vm1116, %v3905, %v3906
      %v3908 = vrot.slane %v2868, 5
      %v3909 = vrot.slane %v3908, 4
      %v3910 = vrot.slane %v2869, 5
      %v3911 = vsel %vm1116, %v3909, %v3910
      %v3912 = vrot.slane %v3910, 4
      %v3913 = vrot.slane %v2870, 5
      %v3914 = vsel %vm1116, %v3912, %v3913
      %s3915 = scalar_lea.vmem %s1, 512
      %v3916 = vld [vmem:[%s3915] sm:$0xf]
      %v3917 = vld [vmem:[%s3915 + $0x4] sm:$0xf]
      %v3918 = vld [vmem:[%s3915 + $0x8] sm:$0xf]
      %v3919 = vld [vmem:[%s3915 + $0xc] sm:$0xf]
      %v3920 = vld [vmem:[%s3915 + $0x10] sm:$0xf]
      %v3921 = vld [vmem:[%s3915 + $0x14] sm:$0xf]
      %v3922 = vld [vmem:[%s3915 + $0x18] sm:$0xf]
      %v3923 = vld [vmem:[%s3915 + $0x1c] sm:$0xf]
      %v3924 = vld [vmem:[%s3915 + $0x20] sm:$0xf]
      %v3925 = vld [vmem:[%s3915 + $0x24] sm:$0xf]
      %v3926 = vld [vmem:[%s3915 + $0x28] sm:$0xf]
      %v3927 = vld [vmem:[%s3915 + $0x2c] sm:$0xf]
      %v3928 = vld [vmem:[%s3915 + $0x30] sm:$0xf]
      %v3929 = vld [vmem:[%s3915 + $0x34] sm:$0xf]
      %v3930 = vld [vmem:[%s3915 + $0x38] sm:$0xf]
      %v3931 = vld [vmem:[%s3915 + $0x3c] sm:$0xf]
      %v3932 = vunpack.c.l.b16 %v3806
      %v3933 = vunpack.c.l.b16 %v3809
      %v3934 = vunpack.c.l.b16 %v3813
      %v3935 = vunpack.c.l.b16 %v3816
      %v3936 = vunpack.c.l.b16 %v3820
      %v3937 = vunpack.c.l.b16 %v3823
      %v3938 = vunpack.c.l.b16 %v3827
      %v3939 = vunpack.c.l.b16 %v3830
      %v3940 = vunpack.c.l.b16 %v3834
      %v3941 = vunpack.c.l.b16 %v3837
      %v3942 = vunpack.c.l.b16 %v3841
      %v3943 = vunpack.c.l.b16 %v3844
      %v3944 = vunpack.c.l.b16 %v3848
      %v3945 = vunpack.c.l.b16 %v3851
      %v3946 = vunpack.c.l.b16 %v3855
      %v3947 = vunpack.c.l.b16 %v3858
      %v3948 = vunpack.c.l.b16 %v3862
      %v3949 = vunpack.c.l.b16 %v3865
      %v3950 = vunpack.c.l.b16 %v3869
      %v3951 = vunpack.c.l.b16 %v3872
      %v3952 = vunpack.c.l.b16 %v3876
      %v3953 = vunpack.c.l.b16 %v3879
      %v3954 = vunpack.c.l.b16 %v3883
      %v3955 = vunpack.c.l.b16 %v3886
      %v3956 = vunpack.c.l.b16 %v3890
      %v3957 = vunpack.c.l.b16 %v3893
      %v3958 = vunpack.c.l.b16 %v3897
      %v3959 = vunpack.c.l.b16 %v3900
      %v3960 = vunpack.c.l.b16 %v3904
      %v3961 = vunpack.c.l.b16 %v3907
      %v3962 = vunpack.c.l.b16 %v3911
      %v3963 = vunpack.c.l.b16 %v3914
      %v3964 = vpack.c.b16 %v3933, %v3932
      %v3965 = vpack.c.b16 %v3935, %v3934
      %v3966 = vpack.c.b16 %v3937, %v3936
      %v3967 = vpack.c.b16 %v3939, %v3938
      %v3968 = vpack.c.b16 %v3941, %v3940
      %v3969 = vpack.c.b16 %v3943, %v3942
      %v3970 = vpack.c.b16 %v3945, %v3944
      %v3971 = vpack.c.b16 %v3947, %v3946
      %v3972 = vpack.c.b16 %v3949, %v3948
      %v3973 = vpack.c.b16 %v3951, %v3950
      %v3974 = vpack.c.b16 %v3953, %v3952
      %v3975 = vpack.c.b16 %v3955, %v3954
      %v3976 = vpack.c.b16 %v3957, %v3956
      %v3977 = vpack.c.b16 %v3959, %v3958
      %v3978 = vpack.c.b16 %v3961, %v3960
      %v3979 = vpack.c.b16 %v3963, %v3962
      %v4012 = vunpack.c.l.b16 %v3916
      %v4013 = vunpack.c.l.b16 %v3917
      %v4014 = vunpack.c.l.b16 %v3918
      %v4015 = vunpack.c.l.b16 %v3919
      %v4016 = vunpack.c.l.b16 %v3920
      %v4017 = vunpack.c.l.b16 %v3921
      %v4018 = vunpack.c.l.b16 %v3922
      %v4019 = vunpack.c.l.b16 %v3923
      %v4020 = vunpack.c.l.b16 %v3924
      %v4021 = vunpack.c.l.b16 %v3925
      %v4022 = vunpack.c.l.b16 %v3926
      %v4023 = vunpack.c.l.b16 %v3927
      %v4024 = vunpack.c.l.b16 %v3928
      %v4025 = vunpack.c.l.b16 %v3929
      %v4026 = vunpack.c.l.b16 %v3930
      %v4027 = vunpack.c.l.b16 %v3931
      %v4028 = vpack.c.b16 %v4013, %v4012
      %v4029 = vpack.c.b16 %v4015, %v4014
      %v4030 = vpack.c.b16 %v4017, %v4016
      %v4031 = vpack.c.b16 %v4019, %v4018
      %v4032 = vpack.c.b16 %v4021, %v4020
      %v4033 = vpack.c.b16 %v4023, %v4022
      %v4034 = vpack.c.b16 %v4025, %v4024
      %v4035 = vpack.c.b16 %v4027, %v4026
      %4044 = vmatpush.bf16.msra.mxu0 %v4035
      %4045 = vmatpush.bf16.msra.mxu0 %v4034
      %4046 = vmatpush.bf16.msra.mxu0 %v4033
      %4047 = vmatpush.bf16.msra.mxu0 %v4032
      %4048 = vmatpush.bf16.msra.mxu0 %v4031
      %4049 = vmatpush.bf16.msra.mxu0 %v4030
      %4050 = vmatpush.bf16.msra.mxu0 %v4029
      %4051 = vmatpush.bf16.msra.mxu0 %v4028
      %4052 = vmatmul.bf16.gmra.mxu0 %v3964
      %v4053 = vpop.f32.mrf.mxu0
      %v4054 = vadd.f32 0.0, %v4053
      %v4055 = vpop.f32.mrf.mxu0
      %v4056 = vadd.f32 0.0, %v4055
      %4057 = vmatmul.bf16.gmra.mxu0 %v3965
      %v4058 = vpop.f32.mrf.mxu0
      %v4059 = vadd.f32 0.0, %v4058
      %v4060 = vpop.f32.mrf.mxu0
      %v4061 = vadd.f32 0.0, %v4060
      %4062 = vmatmul.bf16.gmra.mxu0 %v3966
      %v4063 = vpop.f32.mrf.mxu0
      %v4064 = vadd.f32 0.0, %v4063
      %v4065 = vpop.f32.mrf.mxu0
      %v4066 = vadd.f32 0.0, %v4065
      %4067 = vmatmul.bf16.gmra.mxu0 %v3967
      %v4068 = vpop.f32.mrf.mxu0
      %v4069 = vadd.f32 0.0, %v4068
      %v4070 = vpop.f32.mrf.mxu0
      %v4071 = vadd.f32 0.0, %v4070
      %4072 = vmatmul.bf16.gmra.mxu0 %v3968
      %v4073 = vpop.f32.mrf.mxu0
      %v4074 = vadd.f32 0.0, %v4073
      %v4075 = vpop.f32.mrf.mxu0
      %v4076 = vadd.f32 0.0, %v4075
      %4077 = vmatmul.bf16.gmra.mxu0 %v3969
      %v4078 = vpop.f32.mrf.mxu0
      %v4079 = vadd.f32 0.0, %v4078
      %v4080 = vpop.f32.mrf.mxu0
      %v4081 = vadd.f32 0.0, %v4080
      %4082 = vmatmul.bf16.gmra.mxu0 %v3970
      %v4083 = vpop.f32.mrf.mxu0
      %v4084 = vadd.f32 0.0, %v4083
      %v4085 = vpop.f32.mrf.mxu0
      %v4086 = vadd.f32 0.0, %v4085
      %4087 = vmatmul.bf16.gmra.mxu0 %v3971
      %v4088 = vpop.f32.mrf.mxu0
      %v4089 = vadd.f32 0.0, %v4088
      %v4090 = vpop.f32.mrf.mxu0
      %v4091 = vadd.f32 0.0, %v4090
      %4092 = vmatmul.bf16.gmra.mxu0 %v3972
      %v4093 = vpop.f32.mrf.mxu0
      %v4094 = vadd.f32 0.0, %v4093
      %v4095 = vpop.f32.mrf.mxu0
      %v4096 = vadd.f32 0.0, %v4095
      %4097 = vmatmul.bf16.gmra.mxu0 %v3973
      %v4098 = vpop.f32.mrf.mxu0
      %v4099 = vadd.f32 0.0, %v4098
      %v4100 = vpop.f32.mrf.mxu0
      %v4101 = vadd.f32 0.0, %v4100
      %4102 = vmatmul.bf16.gmra.mxu0 %v3974
      %v4103 = vpop.f32.mrf.mxu0
      %v4104 = vadd.f32 0.0, %v4103
      %v4105 = vpop.f32.mrf.mxu0
      %v4106 = vadd.f32 0.0, %v4105
      %4107 = vmatmul.bf16.gmra.mxu0 %v3975
      %v4108 = vpop.f32.mrf.mxu0
      %v4109 = vadd.f32 0.0, %v4108
      %v4110 = vpop.f32.mrf.mxu0
      %v4111 = vadd.f32 0.0, %v4110
      %4112 = vmatmul.bf16.gmra.mxu0 %v3976
      %v4113 = vpop.f32.mrf.mxu0
      %v4114 = vadd.f32 0.0, %v4113
      %v4115 = vpop.f32.mrf.mxu0
      %v4116 = vadd.f32 0.0, %v4115
      %4117 = vmatmul.bf16.gmra.mxu0 %v3977
      %v4118 = vpop.f32.mrf.mxu0
      %v4119 = vadd.f32 0.0, %v4118
      %v4120 = vpop.f32.mrf.mxu0
      %v4121 = vadd.f32 0.0, %v4120
      %4122 = vmatmul.bf16.gmra.mxu0 %v3978
      %v4123 = vpop.f32.mrf.mxu0
      %v4124 = vadd.f32 0.0, %v4123
      %v4125 = vpop.f32.mrf.mxu0
      %v4126 = vadd.f32 0.0, %v4125
      %4127 = vmatmul.bf16.gmra.mxu0 %v3979
      %v4128 = vpop.f32.mrf.mxu0
      %v4129 = vadd.f32 0.0, %v4128
      %v4130 = vpop.f32.mrf.mxu0
      %v4131 = vadd.f32 0.0, %v4130
      %4132 = vdwg.mxu0
      %v4133 = vadd.f32 %v3755, %v4054
      %v4134 = vadd.f32 %v3756, %v4056
      %v4135 = vadd.f32 %v3757, %v4059
      %v4136 = vadd.f32 %v3758, %v4061
      %v4137 = vadd.f32 %v3759, %v4064
      %v4138 = vadd.f32 %v3760, %v4066
      %v4139 = vadd.f32 %v3761, %v4069
      %v4140 = vadd.f32 %v3762, %v4071
      %v4141 = vadd.f32 %v3763, %v4074
      %v4142 = vadd.f32 %v3764, %v4076
      %v4143 = vadd.f32 %v3765, %v4079
      %v4144 = vadd.f32 %v3766, %v4081
      %v4145 = vadd.f32 %v3767, %v4084
      %v4146 = vadd.f32 %v3768, %v4086
      %v4147 = vadd.f32 %v3769, %v4089
      %v4148 = vadd.f32 %v3770, %v4091
      %v4149 = vadd.f32 %v3771, %v4094
      %v4150 = vadd.f32 %v3772, %v4096
      %v4151 = vadd.f32 %v3773, %v4099
      %v4152 = vadd.f32 %v3774, %v4101
      %v4153 = vadd.f32 %v3775, %v4104
      %v4154 = vadd.f32 %v3776, %v4106
      %v4155 = vadd.f32 %v3777, %v4109
      %v4156 = vadd.f32 %v3778, %v4111
      %v4157 = vadd.f32 %v3779, %v4114
      %v4158 = vadd.f32 %v3780, %v4116
      %v4159 = vadd.f32 %v3781, %v4119
      %v4160 = vadd.f32 %v3782, %v4121
      %v4161 = vadd.f32 %v3783, %v4124
      %v4162 = vadd.f32 %v3784, %v4126
      %v4163 = vadd.f32 %v3785, %v4129
      %v4164 = vadd.f32 %v3786, %v4131
      %v4165 = vld [vmem:[%s2] sm:$0x1]
      %v4166 = vperm.slane %v4165, 0
      %v4167 = vadd.f32 %v4133, %v4166
      %v4168 = vadd.f32 %v4134, %v4166
      %v4169 = vadd.f32 %v4135, %v4166
      %v4170 = vadd.f32 %v4136, %v4166
      %v4171 = vadd.f32 %v4137, %v4166
      %v4172 = vadd.f32 %v4138, %v4166
      %v4173 = vadd.f32 %v4139, %v4166
      %v4174 = vadd.f32 %v4140, %v4166
      %v4175 = vadd.f32 %v4141, %v4166
      %v4176 = vadd.f32 %v4142, %v4166
      %v4177 = vadd.f32 %v4143, %v4166
      %v4178 = vadd.f32 %v4144, %v4166
      %v4179 = vadd.f32 %v4145, %v4166
      %v4180 = vadd.f32 %v4146, %v4166
      %v4181 = vadd.f32 %v4147, %v4166
      %v4182 = vadd.f32 %v4148, %v4166
      %v4183 = vadd.f32 %v4149, %v4166
      %v4184 = vadd.f32 %v4150, %v4166
      %v4185 = vadd.f32 %v4151, %v4166
      %v4186 = vadd.f32 %v4152, %v4166
      %v4187 = vadd.f32 %v4153, %v4166
      %v4188 = vadd.f32 %v4154, %v4166
      %v4189 = vadd.f32 %v4155, %v4166
      %v4190 = vadd.f32 %v4156, %v4166
      %v4191 = vadd.f32 %v4157, %v4166
      %v4192 = vadd.f32 %v4158, %v4166
      %v4193 = vadd.f32 %v4159, %v4166
      %v4194 = vadd.f32 %v4160, %v4166
      %v4195 = vadd.f32 %v4161, %v4166
      %v4196 = vadd.f32 %v4162, %v4166
      %v4197 = vadd.f32 %v4163, %v4166
      %v4198 = vadd.f32 %v4164, %v4166
      %vm4199 = vcmp.gt.f32.partialorder %v4167, 0.0
      %vm4200 = vcmp.gt.f32.partialorder %v4168, 0.0
      %vm4201 = vcmp.gt.f32.partialorder %v4169, 0.0
      %vm4202 = vcmp.gt.f32.partialorder %v4170, 0.0
      %vm4203 = vcmp.gt.f32.partialorder %v4171, 0.0
      %vm4204 = vcmp.gt.f32.partialorder %v4172, 0.0
      %vm4205 = vcmp.gt.f32.partialorder %v4173, 0.0
      %vm4206 = vcmp.gt.f32.partialorder %v4174, 0.0
      %vm4207 = vcmp.gt.f32.partialorder %v4175, 0.0
      %vm4208 = vcmp.gt.f32.partialorder %v4176, 0.0
      %vm4209 = vcmp.gt.f32.partialorder %v4177, 0.0
      %vm4210 = vcmp.gt.f32.partialorder %v4178, 0.0
      %vm4211 = vcmp.gt.f32.partialorder %v4179, 0.0
      %vm4212 = vcmp.gt.f32.partialorder %v4180, 0.0
      %vm4213 = vcmp.gt.f32.partialorder %v4181, 0.0
      %vm4214 = vcmp.gt.f32.partialorder %v4182, 0.0
      %vm4215 = vcmp.gt.f32.partialorder %v4183, 0.0
      %vm4216 = vcmp.gt.f32.partialorder %v4184, 0.0
      %vm4217 = vcmp.gt.f32.partialorder %v4185, 0.0
      %vm4218 = vcmp.gt.f32.partialorder %v4186, 0.0
      %vm4219 = vcmp.gt.f32.partialorder %v4187, 0.0
      %vm4220 = vcmp.gt.f32.partialorder %v4188, 0.0
      %vm4221 = vcmp.gt.f32.partialorder %v4189, 0.0
      %vm4222 = vcmp.gt.f32.partialorder %v4190, 0.0
      %vm4223 = vcmp.gt.f32.partialorder %v4191, 0.0
      %vm4224 = vcmp.gt.f32.partialorder %v4192, 0.0
      %vm4225 = vcmp.gt.f32.partialorder %v4193, 0.0
      %vm4226 = vcmp.gt.f32.partialorder %v4194, 0.0
      %vm4227 = vcmp.gt.f32.partialorder %v4195, 0.0
      %vm4228 = vcmp.gt.f32.partialorder %v4196, 0.0
      %vm4229 = vcmp.gt.f32.partialorder %v4197, 0.0
      %vm4230 = vcmp.gt.f32.partialorder %v4198, 0.0
      %v4231 = vld [vmem:[%s2 + $0x1] sm:$0x1]
      %v4232 = vperm.slane %v4231, 0
      %v4233 = vmul.f32 %v4232, %v4167
      %v4234 = vmul.f32 %v4232, %v4168
      %v4235 = vmul.f32 %v4232, %v4169
      %v4236 = vmul.f32 %v4232, %v4170
      %v4237 = vmul.f32 %v4232, %v4171
      %v4238 = vmul.f32 %v4232, %v4172
      %v4239 = vmul.f32 %v4232, %v4173
      %v4240 = vmul.f32 %v4232, %v4174
      %v4241 = vmul.f32 %v4232, %v4175
      %v4242 = vmul.f32 %v4232, %v4176
      %v4243 = vmul.f32 %v4232, %v4177
      %v4244 = vmul.f32 %v4232, %v4178
      %v4245 = vmul.f32 %v4232, %v4179
      %v4246 = vmul.f32 %v4232, %v4180
      %v4247 = vmul.f32 %v4232, %v4181
      %v4248 = vmul.f32 %v4232, %v4182
      %v4249 = vmul.f32 %v4232, %v4183
      %v4250 = vmul.f32 %v4232, %v4184
      %v4251 = vmul.f32 %v4232, %v4185
      %v4252 = vmul.f32 %v4232, %v4186
      %v4253 = vmul.f32 %v4232, %v4187
      %v4254 = vmul.f32 %v4232, %v4188
      %v4255 = vmul.f32 %v4232, %v4189
      %v4256 = vmul.f32 %v4232, %v4190
      %v4257 = vmul.f32 %v4232, %v4191
      %v4258 = vmul.f32 %v4232, %v4192
      %v4259 = vmul.f32 %v4232, %v4193
      %v4260 = vmul.f32 %v4232, %v4194
      %v4261 = vmul.f32 %v4232, %v4195
      %v4262 = vmul.f32 %v4232, %v4196
      %v4263 = vmul.f32 %v4232, %v4197
      %v4264 = vmul.f32 %v4232, %v4198
      %v4265 = vsel %vm4199, %v4167, %v4233
      %v4266 = vsel %vm4200, %v4168, %v4234
      %v4267 = vsel %vm4201, %v4169, %v4235
      %v4268 = vsel %vm4202, %v4170, %v4236
      %v4269 = vsel %vm4203, %v4171, %v4237
      %v4270 = vsel %vm4204, %v4172, %v4238
      %v4271 = vsel %vm4205, %v4173, %v4239
      %v4272 = vsel %vm4206, %v4174, %v4240
      %v4273 = vsel %vm4207, %v4175, %v4241
      %v4274 = vsel %vm4208, %v4176, %v4242
      %v4275 = vsel %vm4209, %v4177, %v4243
      %v4276 = vsel %vm4210, %v4178, %v4244
      %v4277 = vsel %vm4211, %v4179, %v4245
      %v4278 = vsel %vm4212, %v4180, %v4246
      %v4279 = vsel %vm4213, %v4181, %v4247
      %v4280 = vsel %vm4214, %v4182, %v4248
      %v4281 = vsel %vm4215, %v4183, %v4249
      %v4282 = vsel %vm4216, %v4184, %v4250
      %v4283 = vsel %vm4217, %v4185, %v4251
      %v4284 = vsel %vm4218, %v4186, %v4252
      %v4285 = vsel %vm4219, %v4187, %v4253
      %v4286 = vsel %vm4220, %v4188, %v4254
      %v4287 = vsel %vm4221, %v4189, %v4255
      %v4288 = vsel %vm4222, %v4190, %v4256
      %v4289 = vsel %vm4223, %v4191, %v4257
      %v4290 = vsel %vm4224, %v4192, %v4258
      %v4291 = vsel %vm4225, %v4193, %v4259
      %v4292 = vsel %vm4226, %v4194, %v4260
      %v4293 = vsel %vm4227, %v4195, %v4261
      %v4294 = vsel %vm4228, %v4196, %v4262
      %v4295 = vsel %vm4229, %v4197, %v4263
      %v4296 = vsel %vm4230, %v4198, %v4264
      %v4297 = vpack.c.bf16 %v4265, %v4265
      %v4298 = vpack.c.bf16 %v4266, %v4266
      %v4299 = vpack.c.bf16 %v4267, %v4267
      %v4300 = vpack.c.bf16 %v4268, %v4268
      %v4301 = vpack.c.bf16 %v4269, %v4269
      %v4302 = vpack.c.bf16 %v4270, %v4270
      %v4303 = vpack.c.bf16 %v4271, %v4271
      %v4304 = vpack.c.bf16 %v4272, %v4272
      %v4305 = vpack.c.bf16 %v4273, %v4273
      %v4306 = vpack.c.bf16 %v4274, %v4274
      %v4307 = vpack.c.bf16 %v4275, %v4275
      %v4308 = vpack.c.bf16 %v4276, %v4276
      %v4309 = vpack.c.bf16 %v4277, %v4277
      %v4310 = vpack.c.bf16 %v4278, %v4278
      %v4311 = vpack.c.bf16 %v4279, %v4279
      %v4312 = vpack.c.bf16 %v4280, %v4280
      %v4313 = vpack.c.bf16 %v4281, %v4281
      %v4314 = vpack.c.bf16 %v4282, %v4282
      %v4315 = vpack.c.bf16 %v4283, %v4283
      %v4316 = vpack.c.bf16 %v4284, %v4284
      %v4317 = vpack.c.bf16 %v4285, %v4285
      %v4318 = vpack.c.bf16 %v4286, %v4286
      %v4319 = vpack.c.bf16 %v4287, %v4287
      %v4320 = vpack.c.bf16 %v4288, %v4288
      %v4321 = vpack.c.bf16 %v4289, %v4289
      %v4322 = vpack.c.bf16 %v4290, %v4290
      %v4323 = vpack.c.bf16 %v4291, %v4291
      %v4324 = vpack.c.bf16 %v4292, %v4292
      %v4325 = vpack.c.bf16 %v4293, %v4293
      %v4326 = vpack.c.bf16 %v4294, %v4294
      %v4327 = vpack.c.bf16 %v4295, %v4295
      %v4328 = vpack.c.bf16 %v4296, %v4296
      %4329 = vst [vmem:[%s194] sm:$0xf] %v4297
      %4330 = vst [vmem:[%s194 + $0x4] sm:$0xf] %v4298
      %4331 = vst [vmem:[%s194 + $0x8] sm:$0xf] %v4299
      %4332 = vst [vmem:[%s194 + $0xc] sm:$0xf] %v4300
      %4333 = vst [vmem:[%s194 + $0x10] sm:$0xf] %v4301
      %4334 = vst [vmem:[%s194 + $0x14] sm:$0xf] %v4302
      %4335 = vst [vmem:[%s194 + $0x18] sm:$0xf] %v4303
      %4336 = vst [vmem:[%s194 + $0x1c] sm:$0xf] %v4304
      %4337 = vst [vmem:[%s194 + $0x20] sm:$0xf] %v4305
      %4338 = vst [vmem:[%s194 + $0x24] sm:$0xf] %v4306
      %4339 = vst [vmem:[%s194 + $0x28] sm:$0xf] %v4307
      %4340 = vst [vmem:[%s194 + $0x2c] sm:$0xf] %v4308
      %4341 = vst [vmem:[%s194 + $0x30] sm:$0xf] %v4309
      %4342 = vst [vmem:[%s194 + $0x34] sm:$0xf] %v4310
      %4343 = vst [vmem:[%s194 + $0x38] sm:$0xf] %v4311
      %4344 = vst [vmem:[%s194 + $0x3c] sm:$0xf] %v4312
      %4345 = vst [vmem:[%s194 + $0x40] sm:$0xf] %v4313
      %4346 = vst [vmem:[%s194 + $0x44] sm:$0xf] %v4314
      %4347 = vst [vmem:[%s194 + $0x48] sm:$0xf] %v4315
      %4348 = vst [vmem:[%s194 + $0x4c] sm:$0xf] %v4316
      %4349 = vst [vmem:[%s194 + $0x50] sm:$0xf] %v4317
      %4350 = vst [vmem:[%s194 + $0x54] sm:$0xf] %v4318
      %4351 = vst [vmem:[%s194 + $0x58] sm:$0xf] %v4319
      %4352 = vst [vmem:[%s194 + $0x5c] sm:$0xf] %v4320
      %4353 = vst [vmem:[%s194 + $0x60] sm:$0xf] %v4321
      %4354 = vst [vmem:[%s194 + $0x64] sm:$0xf] %v4322
      %4355 = vst [vmem:[%s194 + $0x68] sm:$0xf] %v4323
      %4356 = vst [vmem:[%s194 + $0x6c] sm:$0xf] %v4324
      %4357 = vst [vmem:[%s194 + $0x70] sm:$0xf] %v4325
      %4358 = vst [vmem:[%s194 + $0x74] sm:$0xf] %v4326
      %4359 = vst [vmem:[%s194 + $0x78] sm:$0xf] %v4327
      %4360 = vst [vmem:[%s194 + $0x7c] sm:$0xf] %v4328
      %s4361 = smul.u32 16, %s19
      %p4362 = scmp.lt.s32.totalorder %s18, 1
      %s4363 = scalar_select %p4362, %s18, 1
      %p4364 = scmp.lt.s32.totalorder %s4361, 15
      %s4365 = scalar_select %p4364, %s4361, 15
      %s4366 = smul.addr %s4365, 2
      %s4367 = smul.addr %s4363, 32
      %s4368 = sadd.s32 %s4366, %s4367
      %s4369 = smul.addr %s4368, 4
      %s4370 = scalar_lea.vmem %s3, %s4369
      // Predicated region
      $region33: #{double_conv_forward.8} parent=31 // pred_check
        %p4371 = pneg %p114
      $region34: #{double_conv_forward.8} parent=31 // pred_check_branch
        %4373 = sbr.rel (%p4371) target = $region36
      $region35: #{double_conv_forward.8} parent=31 // pred_region
        %s4374 = smul.u32 16, %s19
      $region36: #{double_conv_forward.8} parent=31 // pred_fallthru
        _
    $region32: #{double_conv_forward.8} parent=5 // pred_fallthru
      _
    %p4375 = scmp.le.s32.totalorder 2, %s9
    // Predicated region
    $region37: #{double_conv_forward.8} parent=5 // pred_check
      %p4376 = pneg %p4375
    $region38: #{double_conv_forward.8} parent=5 // pred_check_branch
      %4378 = sbr.rel (%p4376) target = $region40
    $region39: #{double_conv_forward.8} parent=5 // pred_region
      %s4379 = ssub.s32 %s9, 2
      // Predicated region
      $region41: #{double_conv_forward.8} parent=39 // pred_check
        %p4380 = pneg %p120
      $region42: #{double_conv_forward.8} parent=39 // pred_check_branch
        %4382 = sbr.rel (%p4380) target = $region44
      $region43: #{double_conv_forward.8} parent=39 // pred_region
        %s4383 = smul.u32 16, %s21
        %p4384 = scmp.lt.s32.totalorder %s20, 1
        %s4385 = scalar_select %p4384, %s20, 1
        %p4386 = scmp.lt.s32.totalorder %s4383, 15
        %s4387 = scalar_select %p4386, %s4383, 15
        %s4388 = smul.addr %s4387, 2
        %s4389 = smul.addr %s4385, 32
        %s4390 = sadd.s32 %s4388, %s4389
        %s4391 = smul.addr %s4390, 4
        %s4392 = scalar_lea.vmem %s3, %s4391
      $region44: #{double_conv_forward.8} parent=39 // pred_fallthru
        _
    $region40: #{double_conv_forward.8} parent=5 // pred_fallthru
      _
  $region6: #{double_conv_forward.8} parent=0 // loop_footer
    %s13 = sadd.s32 1, %s9
  $region7: #{double_conv_forward.8} parent=0 // loop_footer_branch
    %8 = sbr.rel target = $region3
  $region8: #{double_conv_forward.8} parent=0 // loop_exit
    _

// kernel: double_conv_forward.9
$region0: #{double_conv_forward.9}
  #allocation0 [shape = 'u32[]', space=smem, size = 0x4, offset = 0x4, fixed_abs, tag = 'smem constant byte address 0x4 - core index']
  #allocation1 [shape = 'u32[72,128]{1,0:T(1,128)}', space=vmem, size = 0x9000, scoped, tag = 'internal scratch']
  %s0 = inlined_call_operand.vmem [shape: bf16[2,18,18,128], index: 0, kind: input, shape index: {}]
  %s1 = inlined_call_operand.vmem [shape: bf16[9,128,128], index: 1, kind: input, shape index: {}]
  %s2 = inlined_call_operand.vmem [shape: f32[2,128], index: 2, kind: input, shape index: {}]
  %s3 = inlined_call_operand.vmem [shape: f32[2,16,16,128], index: 3, kind: output, shape index: {}]
  %s4 = sld [smem:[#allocation0]]
  $region45: #{double_conv_forward.9} parent=0
    _
  %s6 = ssub.s32 1, %s4
  %s7 = scalar_select 0, %s6, %s4
  loop: start=0, step=1, limit=4
  $region2: #{double_conv_forward.9} parent=0 // loop_pre_header
    _
  $region3: #{double_conv_forward.9} parent=0 // loop_header
    %s9 = sphi 0, %s13
    %p10 = scmp.ge.s32.totalorder %s9, 4
    %s16 = sphi 0, %s28
    %s17 = sphi 0, %s24
    %s18 = sphi 0, %s16
    %s19 = sphi 0, %s17
    %s20 = sphi 0, %s18
    %s21 = sphi 0, %s19
    %s31 = sphi 0, %s33
    %s34 = sphi 0, %s31
    %s35 = sphi 0, %s34
    %s51 = sphi 0, %s35
    %s55 = sphi 0, %s55
    %s57 = sphi 0, %s55
    %s58 = sphi 0, %s57
    %s72 = sphi 0, %s58
    %s76 = sphi 0, %s76
    %s78 = sphi 0, %s76
    %s79 = sphi 0, %s78
    %s93 = sphi 0, %s79
    %s101 = sphi 0, %s103
    %s104 = sphi 0, %s101
    %s105 = sphi 0, %s104
    %s121 = sphi 0, %s105
  $region4: #{double_conv_forward.9} parent=0 // loop_header_branch
    %12 = sbr.rel (%p10) target = $region8
  $region5: #{double_conv_forward.9} parent=0 // loop_body
    %s14 = ssub.s32 %s9, 1
    %s15 = ssub.s32 %s9, 2
    %s22 = sadd.s32 1, %s17
    %p23 = scmp.ge.s32.totalorder %s22, 1
    %s24 = scalar_select %p23, 0, %s22
    %s25 = sadd.s32 1, %s16
    %s26 = scalar_select %p23, %s25, %s16
    %p27 = scmp.ge.s32.totalorder %s26, 2
    %s28 = scalar_select %p27, 0, %s26
    %s29 = ssub.s32 %s16, %s28
    %p30 = scmp.eq.s32.totalorder %s29, 0
    %s32 = sadd.s32 %s31, 1
    %s33 = scalar_select %p30, %s31, %s32
    %p36 = pneg %p30
    %p37 = scmp.eq.s32.totalorder %s9, 1
    %p38 = por %p36, %p37
    %p39 = scmp.ne.s32.totalorder %s31, %s34
    %p40 = scmp.eq.s32.totalorder %s9, 0
    %p41 = por %p39, %p40
    %p42 = scmp.ne.s32.totalorder %s31, %s34
    %p43 = scmp.eq.s32.totalorder %s14, 1
    %p44 = por %p42, %p43
    %p45 = scmp.ne.s32.totalorder %s34, %s35
    %p46 = scmp.eq.s32.totalorder %s14, 0
    %p47 = por %p45, %p46
    %p48 = scmp.ne.s32.totalorder %s34, %s35
    %p49 = scmp.eq.s32.totalorder %s15, 1
    %p50 = por %p48, %p49
    %p52 = scmp.ne.s32.totalorder %s35, %s51
    %p53 = scmp.eq.s32.totalorder %s15, 0
    %p54 = por %p52, %p53
    %s56 = sadd.s32 %s55, 1
    %p59 = scmp.eq.s32.totalorder %s9, 1
    %p60 = scmp.ne.s32.totalorder %s55, %s57
    %p61 = scmp.eq.s32.totalorder %s9, 0
    %p62 = por %p60, %p61
    %p63 = scmp.ne.s32.totalorder %s55, %s57
    %p64 = scmp.eq.s32.totalorder %s14, 1
    %p65 = por %p63, %p64
    %p66 = scmp.ne.s32.totalorder %s57, %s58
    %p67 = scmp.eq.s32.totalorder %s14, 0
    %p68 = por %p66, %p67
    %p69 = scmp.ne.s32.totalorder %s57, %s58
    %p70 = scmp.eq.s32.totalorder %s15, 1
    %p71 = por %p69, %p70
    %p73 = scmp.ne.s32.totalorder %s58, %s72
    %p74 = scmp.eq.s32.totalorder %s15, 0
    %p75 = por %p73, %p74
    %s77 = sadd.s32 %s76, 1
    %p80 = scmp.eq.s32.totalorder %s9, 1
    %p81 = scmp.ne.s32.totalorder %s76, %s78
    %p82 = scmp.eq.s32.totalorder %s9, 0
    %p83 = por %p81, %p82
    %p84 = scmp.ne.s32.totalorder %s76, %s78
    %p85 = scmp.eq.s32.totalorder %s14, 1
    %p86 = por %p84, %p85
    %p87 = scmp.ne.s32.totalorder %s78, %s79
    %p88 = scmp.eq.s32.totalorder %s14, 0
    %p89 = por %p87, %p88
    %p90 = scmp.ne.s32.totalorder %s78, %s79
    %p91 = scmp.eq.s32.totalorder %s15, 1
    %p92 = por %p90, %p91
    %p94 = scmp.ne.s32.totalorder %s79, %s93
    %p95 = scmp.eq.s32.totalorder %s15, 0
    %p96 = por %p94, %p95
    %s97 = ssub.s32 %s16, %s28
    %s98 = ssub.s32 %s17, %s24
    %s99 = sor.u32 %s97, %s98
    %p100 = scmp.eq.s32.totalorder %s99, 0
    %s102 = sadd.s32 %s101, 1
    %s103 = scalar_select %p100, %s101, %s102
    %p106 = pneg %p100
    %p107 = scmp.eq.s32.totalorder %s9, 1
    %p108 = por %p106, %p107
    %p109 = scmp.ne.s32.totalorder %s101, %s104
    %p110 = scmp.eq.s32.totalorder %s9, 0
    %p111 = por %p109, %p110
    %p112 = scmp.ne.s32.totalorder %s101, %s104
    %p113 = scmp.eq.s32.totalorder %s14, 1
    %p114 = por %p112, %p113
    %p115 = scmp.ne.s32.totalorder %s104, %s105
    %p116 = scmp.eq.s32.totalorder %s14, 0
    %p117 = por %p115, %p116
    %p118 = scmp.ne.s32.totalorder %s104, %s105
    %p119 = scmp.eq.s32.totalorder %s15, 1
    %p120 = por %p118, %p119
    %p122 = scmp.ne.s32.totalorder %s105, %s121
    %p123 = scmp.eq.s32.totalorder %s15, 0
    %p124 = por %p122, %p123
    %p125 = scmp.le.s32.totalorder 1, %s9
    %p126 = scmp.lt.s32.totalorder %s9, 3
    %p127 = pnand %p125, %p126
    %p128 = pneg %p127
    // Predicated region
    $region9: #{double_conv_forward.9} parent=5 // pred_check
      _
    $region10: #{double_conv_forward.9} parent=5 // pred_check_branch
      %130 = sbr.rel (%p127) target = $region12
    $region11: #{double_conv_forward.9} parent=5 // pred_region
      %s131 = ssub.s32 %s9, 1
      // Predicated region
      $region13: #{double_conv_forward.9} parent=11 // pred_check
        %p132 = pneg %p68
      $region14: #{double_conv_forward.9} parent=11 // pred_check_branch
        %134 = sbr.rel (%p132) target = $region16
      $region15: #{double_conv_forward.9} parent=11 // pred_region
        _
      $region16: #{double_conv_forward.9} parent=11 // pred_fallthru
        _
      // Predicated region
      $region17: #{double_conv_forward.9} parent=11 // pred_check
        %p135 = pneg %p89
      $region18: #{double_conv_forward.9} parent=11 // pred_check_branch
        %137 = sbr.rel (%p135) target = $region20
      $region19: #{double_conv_forward.9} parent=11 // pred_region
        _
      $region20: #{double_conv_forward.9} parent=11 // pred_fallthru
        _
    $region12: #{double_conv_forward.9} parent=5 // pred_fallthru
      _
    %p138 = scmp.lt.s32.totalorder %s9, 2
    // Predicated region
    $region21: #{double_conv_forward.9} parent=5 // pred_check
      %p139 = pneg %p138
    $region22: #{double_conv_forward.9} parent=5 // pred_check_branch
      %141 = sbr.rel (%p139) target = $region24
    $region23: #{double_conv_forward.9} parent=5 // pred_region
      // Predicated region
      $region25: #{double_conv_forward.9} parent=23 // pred_check
        %p142 = pneg %p41
      $region26: #{double_conv_forward.9} parent=23 // pred_check_branch
        %144 = sbr.rel (%p142) target = $region28
      $region27: #{double_conv_forward.9} parent=23 // pred_region
        %p145 = scmp.lt.s32.totalorder %s16, 1
        %s146 = scalar_select %p145, %s16, 1
        %s147 = smul.addr %s146, 54
        %s148 = smul.addr %s147, 4
        %s149 = scalar_lea.vmem %s0, %s148
      $region28: #{double_conv_forward.9} parent=23 // pred_fallthru
        _
    $region24: #{double_conv_forward.9} parent=5 // pred_fallthru
      _
    %p150 = scmp.le.s32.totalorder 1, %s9
    %p151 = scmp.lt.s32.totalorder %s9, 3
    %p152 = pnand %p150, %p151
    %p153 = pneg %p152
    // Predicated region
    $region29: #{double_conv_forward.9} parent=5 // pred_check
      _
    $region30: #{double_conv_forward.9} parent=5 // pred_check_branch
      %155 = sbr.rel (%p152) target = $region32
    $region31: #{double_conv_forward.9} parent=5 // pred_region
      %s156 = ssub.s32 %s9, 1
      %p157 = scmp.lt.s32.totalorder %s18, 1
      %s158 = scalar_select %p157, %s18, 1
      %s159 = smul.addr %s158, 54
      %s160 = smul.addr %s159, 4
      %s161 = scalar_lea.vmem %s0, %s160
      %p162 = pneg %p47
      %p163 = pneg %p44
      %p164 = pneg %p68
      %p165 = pneg %p65
      %p166 = pneg %p89
      %p167 = pneg %p86
      %p168 = pneg %p117
      %p169 = pneg %p114
      %s170 = smul.u32 16, %s19
      %p171 = scmp.lt.s32.totalorder %s18, 1
      %s172 = scalar_select %p171, %s18, 1
      %p173 = scmp.lt.s32.totalorder %s170, 15
      %s174 = scalar_select %p173, %s170, 15
      %s175 = smul.addr %s174, 2
      %s176 = smul.addr %s172, 32
      %s177 = sadd.s32 %s175, %s176
      %s178 = smul.addr %s177, 8
      %s179 = scalar_lea.vmem %s3, %s178
      %p180 = scmp.lt.s32.totalorder %s18, 1
      %s181 = scalar_select %p180, %s18, 1
      %s182 = smul.addr %s181, 54
      %s183 = smul.addr %s182, 4
      %s184 = scalar_lea.vmem %s0, %s183
      %s185 = smul.u32 16, %s19
      %p186 = scmp.lt.s32.totalorder %s18, 1
      %s187 = scalar_select %p186, %s18, 1
      %p188 = scmp.lt.s32.totalorder %s185, 15
      %s189 = scalar_select %p188, %s185, 15
      %s190 = smul.addr %s189, 2
      %s191 = smul.addr %s187, 32
      %s192 = sadd.s32 %s190, %s191
      %s193 = smul.addr %s192, 8
      %s194 = scalar_lea.vmem %s3, %s193
      %s195 = smul.u32 16, %s19
      %v196 = vld [vmem:[%s184] sm:$0xf]
      %v197 = vld [vmem:[%s184 + $0x4] sm:$0xf]
      %v198 = vld [vmem:[%s184 + $0x8] sm:$0x1]
      %v199 = vld [vmem:[%s184 + $0xc] sm:$0xf]
      %v200 = vld [vmem:[%s184 + $0x10] sm:$0xf]
      %v201 = vld [vmem:[%s184 + $0x14] sm:$0x1]
      %v202 = vld [vmem:[%s184 + $0x18] sm:$0xf]
      %v203 = vld [vmem:[%s184 + $0x1c] sm:$0xf]
      %v204 = vld [vmem:[%s184 + $0x20] sm:$0x1]
      %v205 = vld [vmem:[%s184 + $0x24] sm:$0xf]
      %v206 = vld [vmem:[%s184 + $0x28] sm:$0xf]
      %v207 = vld [vmem:[%s184 + $0x2c] sm:$0x1]
      %v208 = vld [vmem:[%s184 + $0x30] sm:$0xf]
      %v209 = vld [vmem:[%s184 + $0x34] sm:$0xf]
      %v210 = vld [vmem:[%s184 + $0x38] sm:$0x1]
      %v211 = vld [vmem:[%s184 + $0x3c] sm:$0xf]
      %v212 = vld [vmem:[%s184 + $0x40] sm:$0xf]
      %v213 = vld [vmem:[%s184 + $0x44] sm:$0x1]
      %v214 = vld [vmem:[%s184 + $0x48] sm:$0xf]
      %v215 = vld [vmem:[%s184 + $0x4c] sm:$0xf]
      %v216 = vld [vmem:[%s184 + $0x50] sm:$0x1]
      %v217 = vld [vmem:[%s184 + $0x54] sm:$0xf]
      %v218 = vld [vmem:[%s184 + $0x58] sm:$0xf]
      %v219 = vld [vmem:[%s184 + $0x5c] sm:$0x1]
      %v220 = vld [vmem:[%s184 + $0x60] sm:$0xf]
      %v221 = vld [vmem:[%s184 + $0x64] sm:$0xf]
      %v222 = vld [vmem:[%s184 + $0x68] sm:$0x1]
      %v223 = vld [vmem:[%s184 + $0x6c] sm:$0xf]
      %v224 = vld [vmem:[%s184 + $0x70] sm:$0xf]
      %v225 = vld [vmem:[%s184 + $0x74] sm:$0x1]
      %v226 = vld [vmem:[%s184 + $0x78] sm:$0xf]
      %v227 = vld [vmem:[%s184 + $0x7c] sm:$0xf]
      %v228 = vld [vmem:[%s184 + $0x80] sm:$0x1]
      %v229 = vld [vmem:[%s184 + $0x84] sm:$0xf]
      %v230 = vld [vmem:[%s184 + $0x88] sm:$0xf]
      %v231 = vld [vmem:[%s184 + $0x8c] sm:$0x1]
      %v232 = vld [vmem:[%s184 + $0x90] sm:$0xf]
      %v233 = vld [vmem:[%s184 + $0x94] sm:$0xf]
      %v234 = vld [vmem:[%s184 + $0x98] sm:$0x1]
      %v235 = vld [vmem:[%s184 + $0x9c] sm:$0xf]
      %v236 = vld [vmem:[%s184 + $0xa0] sm:$0xf]
      %v237 = vld [vmem:[%s184 + $0xa4] sm:$0x1]
      %v238 = vld [vmem:[%s184 + $0xa8] sm:$0xf]
      %v239 = vld [vmem:[%s184 + $0xac] sm:$0xf]
      %v240 = vld [vmem:[%s184 + $0xb0] sm:$0x1]
      %v241 = vld [vmem:[%s184 + $0xb4] sm:$0xf]
      %v242 = vld [vmem:[%s184 + $0xb8] sm:$0xf]
      %v243 = vld [vmem:[%s184 + $0xbc] sm:$0x1]
      %v244 = vld [vmem:[%s1] sm:$0xf]
      %v245 = vld [vmem:[%s1 + $0x4] sm:$0xf]
      %v246 = vld [vmem:[%s1 + $0x8] sm:$0xf]
      %v247 = vld [vmem:[%s1 + $0xc] sm:$0xf]
      %v248 = vld [vmem:[%s1 + $0x10] sm:$0xf]
      %v249 = vld [vmem:[%s1 + $0x14] sm:$0xf]
      %v250 = vld [vmem:[%s1 + $0x18] sm:$0xf]
      %v251 = vld [vmem:[%s1 + $0x1c] sm:$0xf]
      %v252 = vld [vmem:[%s1 + $0x20] sm:$0xf]
      %v253 = vld [vmem:[%s1 + $0x24] sm:$0xf]
      %v254 = vld [vmem:[%s1 + $0x28] sm:$0xf]
      %v255 = vld [vmem:[%s1 + $0x2c] sm:$0xf]
      %v256 = vld [vmem:[%s1 + $0x30] sm:$0xf]
      %v257 = vld [vmem:[%s1 + $0x34] sm:$0xf]
      %v258 = vld [vmem:[%s1 + $0x38] sm:$0xf]
      %v259 = vld [vmem:[%s1 + $0x3c] sm:$0xf]
      %vm260 = vsmask.f32 3328
      %vm261 = vsmask.f32 7440
      %vm262 = vmor %vm260, %vm261
      %v264 = vshrl.u32 %v196, 16
      %v266 = vrot.slane %v264, 4
      %v267 = vshll.u32 %v196, 16
      %v269 = vrot.slane %v267, 5
      %v270 = vor.u32 %v266, %v269
      %v271 = vrot.slane %v270, 4
      %v273 = vshll.u32 %v197, 16
      %v275 = vrot.slane %v273, 5
      %v276 = vsel %vm262, %v271, %v275
      %v277 = vshrl.u32 %v197, 16
      %v279 = vrot.slane %v277, 4
      %v280 = vor.u32 %v279, %v275
      %v281 = vrot.slane %v280, 4
      %v283 = vshll.u32 %v198, 16
      %v285 = vrot.slane %v283, 5
      %v286 = vsel %vm262, %v281, %v285
      %v288 = vshrl.u32 %v199, 16
      %v290 = vrot.slane %v288, 4
      %v291 = vshll.u32 %v199, 16
      %v293 = vrot.slane %v291, 5
      %v294 = vor.u32 %v290, %v293
      %v295 = vrot.slane %v294, 4
      %v297 = vshll.u32 %v200, 16
      %v299 = vrot.slane %v297, 5
      %v300 = vsel %vm262, %v295, %v299
      %v301 = vshrl.u32 %v200, 16
      %v303 = vrot.slane %v301, 4
      %v304 = vor.u32 %v303, %v299
      %v305 = vrot.slane %v304, 4
      %v307 = vshll.u32 %v201, 16
      %v309 = vrot.slane %v307, 5
      %v310 = vsel %vm262, %v305, %v309
      %v312 = vshrl.u32 %v202, 16
      %v314 = vrot.slane %v312, 4
      %v315 = vshll.u32 %v202, 16
      %v317 = vrot.slane %v315, 5
      %v318 = vor.u32 %v314, %v317
      %v319 = vrot.slane %v318, 4
      %v321 = vshll.u32 %v203, 16
      %v323 = vrot.slane %v321, 5
      %v324 = vsel %vm262, %v319, %v323
      %v325 = vshrl.u32 %v203, 16
      %v327 = vrot.slane %v325, 4
      %v328 = vor.u32 %v327, %v323
      %v329 = vrot.slane %v328, 4
      %v331 = vshll.u32 %v204, 16
      %v333 = vrot.slane %v331, 5
      %v334 = vsel %vm262, %v329, %v333
      %v336 = vshrl.u32 %v205, 16
      %v338 = vrot.slane %v336, 4
      %v339 = vshll.u32 %v205, 16
      %v341 = vrot.slane %v339, 5
      %v342 = vor.u32 %v338, %v341
      %v343 = vrot.slane %v342, 4
      %v345 = vshll.u32 %v206, 16
      %v347 = vrot.slane %v345, 5
      %v348 = vsel %vm262, %v343, %v347
      %v349 = vshrl.u32 %v206, 16
      %v351 = vrot.slane %v349, 4
      %v352 = vor.u32 %v351, %v347
      %v353 = vrot.slane %v352, 4
      %v355 = vshll.u32 %v207, 16
      %v357 = vrot.slane %v355, 5
      %v358 = vsel %vm262, %v353, %v357
      %v360 = vshrl.u32 %v208, 16
      %v362 = vrot.slane %v360, 4
      %v363 = vshll.u32 %v208, 16
      %v365 = vrot.slane %v363, 5
      %v366 = vor.u32 %v362, %v365
      %v367 = vrot.slane %v366, 4
      %v369 = vshll.u32 %v209, 16
      %v371 = vrot.slane %v369, 5
      %v372 = vsel %vm262, %v367, %v371
      %v373 = vshrl.u32 %v209, 16
      %v375 = vrot.slane %v373, 4
      %v376 = vor.u32 %v375, %v371
      %v377 = vrot.slane %v376, 4
      %v379 = vshll.u32 %v210, 16
      %v381 = vrot.slane %v379, 5
      %v382 = vsel %vm262, %v377, %v381
      %v384 = vshrl.u32 %v211, 16
      %v386 = vrot.slane %v384, 4
      %v387 = vshll.u32 %v211, 16
      %v389 = vrot.slane %v387, 5
      %v390 = vor.u32 %v386, %v389
      %v391 = vrot.slane %v390, 4
      %v393 = vshll.u32 %v212, 16
      %v395 = vrot.slane %v393, 5
      %v396 = vsel %vm262, %v391, %v395
      %v397 = vshrl.u32 %v212, 16
      %v399 = vrot.slane %v397, 4
      %v400 = vor.u32 %v399, %v395
      %v401 = vrot.slane %v400, 4
      %v403 = vshll.u32 %v213, 16
      %v405 = vrot.slane %v403, 5
      %v406 = vsel %vm262, %v401, %v405
      %v408 = vshrl.u32 %v214, 16
      %v410 = vrot.slane %v408, 4
      %v411 = vshll.u32 %v214, 16
      %v413 = vrot.slane %v411, 5
      %v414 = vor.u32 %v410, %v413
      %v415 = vrot.slane %v414, 4
      %v417 = vshll.u32 %v215, 16
      %v419 = vrot.slane %v417, 5
      %v420 = vsel %vm262, %v415, %v419
      %v421 = vshrl.u32 %v215, 16
      %v423 = vrot.slane %v421, 4
      %v424 = vor.u32 %v423, %v419
      %v425 = vrot.slane %v424, 4
      %v427 = vshll.u32 %v216, 16
      %v429 = vrot.slane %v427, 5
      %v430 = vsel %vm262, %v425, %v429
      %v432 = vshrl.u32 %v217, 16
      %v434 = vrot.slane %v432, 4
      %v435 = vshll.u32 %v217, 16
      %v437 = vrot.slane %v435, 5
      %v438 = vor.u32 %v434, %v437
      %v439 = vrot.slane %v438, 4
      %v441 = vshll.u32 %v218, 16
      %v443 = vrot.slane %v441, 5
      %v444 = vsel %vm262, %v439, %v443
      %v445 = vshrl.u32 %v218, 16
      %v447 = vrot.slane %v445, 4
      %v448 = vor.u32 %v447, %v443
      %v449 = vrot.slane %v448, 4
      %v451 = vshll.u32 %v219, 16
      %v453 = vrot.slane %v451, 5
      %v454 = vsel %vm262, %v449, %v453
      %v456 = vshrl.u32 %v220, 16
      %v458 = vrot.slane %v456, 4
      %v459 = vshll.u32 %v220, 16
      %v461 = vrot.slane %v459, 5
      %v462 = vor.u32 %v458, %v461
      %v463 = vrot.slane %v462, 4
      %v465 = vshll.u32 %v221, 16
      %v467 = vrot.slane %v465, 5
      %v468 = vsel %vm262, %v463, %v467
      %v469 = vshrl.u32 %v221, 16
      %v471 = vrot.slane %v469, 4
      %v472 = vor.u32 %v471, %v467
      %v473 = vrot.slane %v472, 4
      %v475 = vshll.u32 %v222, 16
      %v477 = vrot.slane %v475, 5
      %v478 = vsel %vm262, %v473, %v477
      %v480 = vshrl.u32 %v223, 16
      %v482 = vrot.slane %v480, 4
      %v483 = vshll.u32 %v223, 16
      %v485 = vrot.slane %v483, 5
      %v486 = vor.u32 %v482, %v485
      %v487 = vrot.slane %v486, 4
      %v489 = vshll.u32 %v224, 16
      %v491 = vrot.slane %v489, 5
      %v492 = vsel %vm262, %v487, %v491
      %v493 = vshrl.u32 %v224, 16
      %v495 = vrot.slane %v493, 4
      %v496 = vor.u32 %v495, %v491
      %v497 = vrot.slane %v496, 4
      %v499 = vshll.u32 %v225, 16
      %v501 = vrot.slane %v499, 5
      %v502 = vsel %vm262, %v497, %v501
      %v504 = vshrl.u32 %v226, 16
      %v506 = vrot.slane %v504, 4
      %v507 = vshll.u32 %v226, 16
      %v509 = vrot.slane %v507, 5
      %v510 = vor.u32 %v506, %v509
      %v511 = vrot.slane %v510, 4
      %v513 = vshll.u32 %v227, 16
      %v515 = vrot.slane %v513, 5
      %v516 = vsel %vm262, %v511, %v515
      %v517 = vshrl.u32 %v227, 16
      %v519 = vrot.slane %v517, 4
      %v520 = vor.u32 %v519, %v515
      %v521 = vrot.slane %v520, 4
      %v523 = vshll.u32 %v228, 16
      %v525 = vrot.slane %v523, 5
      %v526 = vsel %vm262, %v521, %v525
      %v528 = vshrl.u32 %v229, 16
      %v530 = vrot.slane %v528, 4
      %v531 = vshll.u32 %v229, 16
      %v533 = vrot.slane %v531, 5
      %v534 = vor.u32 %v530, %v533
      %v535 = vrot.slane %v534, 4
      %v537 = vshll.u32 %v230, 16
      %v539 = vrot.slane %v537, 5
      %v540 = vsel %vm262, %v535, %v539
      %v541 = vshrl.u32 %v230, 16
      %v543 = vrot.slane %v541, 4
      %v544 = vor.u32 %v543, %v539
      %v545 = vrot.slane %v544, 4
      %v547 = vshll.u32 %v231, 16
      %v549 = vrot.slane %v547, 5
      %v550 = vsel %vm262, %v545, %v549
      %v552 = vshrl.u32 %v232, 16
      %v554 = vrot.slane %v552, 4
      %v555 = vshll.u32 %v232, 16
      %v557 = vrot.slane %v555, 5
      %v558 = vor.u32 %v554, %v557
      %v559 = vrot.slane %v558, 4
      %v561 = vshll.u32 %v233, 16
      %v563 = vrot.slane %v561, 5
      %v564 = vsel %vm262, %v559, %v563
      %v565 = vshrl.u32 %v233, 16
      %v567 = vrot.slane %v565, 4
      %v568 = vor.u32 %v567, %v563
      %v569 = vrot.slane %v568, 4
      %v571 = vshll.u32 %v234, 16
      %v573 = vrot.slane %v571, 5
      %v574 = vsel %vm262, %v569, %v573
      %v576 = vshrl.u32 %v235, 16
      %v578 = vrot.slane %v576, 4
      %v579 = vshll.u32 %v235, 16
      %v581 = vrot.slane %v579, 5
      %v582 = vor.u32 %v578, %v581
      %v583 = vrot.slane %v582, 4
      %v585 = vshll.u32 %v236, 16
      %v587 = vrot.slane %v585, 5
      %v588 = vsel %vm262, %v583, %v587
      %v589 = vshrl.u32 %v236, 16
      %v591 = vrot.slane %v589, 4
      %v592 = vor.u32 %v591, %v587
      %v593 = vrot.slane %v592, 4
      %v595 = vshll.u32 %v237, 16
      %v597 = vrot.slane %v595, 5
      %v598 = vsel %vm262, %v593, %v597
      %v600 = vshrl.u32 %v238, 16
      %v602 = vrot.slane %v600, 4
      %v603 = vshll.u32 %v238, 16
      %v605 = vrot.slane %v603, 5
      %v606 = vor.u32 %v602, %v605
      %v607 = vrot.slane %v606, 4
      %v609 = vshll.u32 %v239, 16
      %v611 = vrot.slane %v609, 5
      %v612 = vsel %vm262, %v607, %v611
      %v613 = vshrl.u32 %v239, 16
      %v615 = vrot.slane %v613, 4
      %v616 = vor.u32 %v615, %v611
      %v617 = vrot.slane %v616, 4
      %v619 = vshll.u32 %v240, 16
      %v621 = vrot.slane %v619, 5
      %v622 = vsel %vm262, %v617, %v621
      %v624 = vshrl.u32 %v241, 16
      %v626 = vrot.slane %v624, 4
      %v627 = vshll.u32 %v241, 16
      %v629 = vrot.slane %v627, 5
      %v630 = vor.u32 %v626, %v629
      %v631 = vrot.slane %v630, 4
      %v633 = vshll.u32 %v242, 16
      %v635 = vrot.slane %v633, 5
      %v636 = vsel %vm262, %v631, %v635
      %v637 = vshrl.u32 %v242, 16
      %v639 = vrot.slane %v637, 4
      %v640 = vor.u32 %v639, %v635
      %v641 = vrot.slane %v640, 4
      %v643 = vshll.u32 %v243, 16
      %v645 = vrot.slane %v643, 5
      %v646 = vsel %vm262, %v641, %v645
      %s647 = scalar_lea.vmem %s1, 64
      %v648 = vld [vmem:[%s647] sm:$0xf]
      %v649 = vld [vmem:[%s647 + $0x4] sm:$0xf]
      %v650 = vld [vmem:[%s647 + $0x8] sm:$0xf]
      %v651 = vld [vmem:[%s647 + $0xc] sm:$0xf]
      %v652 = vld [vmem:[%s647 + $0x10] sm:$0xf]
      %v653 = vld [vmem:[%s647 + $0x14] sm:$0xf]
      %v654 = vld [vmem:[%s647 + $0x18] sm:$0xf]
      %v655 = vld [vmem:[%s647 + $0x1c] sm:$0xf]
      %v656 = vld [vmem:[%s647 + $0x20] sm:$0xf]
      %v657 = vld [vmem:[%s647 + $0x24] sm:$0xf]
      %v658 = vld [vmem:[%s647 + $0x28] sm:$0xf]
      %v659 = vld [vmem:[%s647 + $0x2c] sm:$0xf]
      %v660 = vld [vmem:[%s647 + $0x30] sm:$0xf]
      %v661 = vld [vmem:[%s647 + $0x34] sm:$0xf]
      %v662 = vld [vmem:[%s647 + $0x38] sm:$0xf]
      %v663 = vld [vmem:[%s647 + $0x3c] sm:$0xf]
      %v664 = vunpack.c.l.b16 %v276
      %v665 = vunpack.c.l.b16 %v286
      %v666 = vunpack.c.l.b16 %v300
      %v667 = vunpack.c.l.b16 %v310
      %v668 = vunpack.c.l.b16 %v324
      %v669 = vunpack.c.l.b16 %v334
      %v670 = vunpack.c.l.b16 %v348
      %v671 = vunpack.c.l.b16 %v358
      %v672 = vunpack.c.l.b16 %v372
      %v673 = vunpack.c.l.b16 %v382
      %v674 = vunpack.c.l.b16 %v396
      %v675 = vunpack.c.l.b16 %v406
      %v676 = vunpack.c.l.b16 %v420
      %v677 = vunpack.c.l.b16 %v430
      %v678 = vunpack.c.l.b16 %v444
      %v679 = vunpack.c.l.b16 %v454
      %v680 = vunpack.c.l.b16 %v468
      %v681 = vunpack.c.l.b16 %v478
      %v682 = vunpack.c.l.b16 %v492
      %v683 = vunpack.c.l.b16 %v502
      %v684 = vunpack.c.l.b16 %v516
      %v685 = vunpack.c.l.b16 %v526
      %v686 = vunpack.c.l.b16 %v540
      %v687 = vunpack.c.l.b16 %v550
      %v688 = vunpack.c.l.b16 %v564
      %v689 = vunpack.c.l.b16 %v574
      %v690 = vunpack.c.l.b16 %v588
      %v691 = vunpack.c.l.b16 %v598
      %v692 = vunpack.c.l.b16 %v612
      %v693 = vunpack.c.l.b16 %v622
      %v694 = vunpack.c.l.b16 %v636
      %v695 = vunpack.c.l.b16 %v646
      %v696 = vpack.c.b16 %v665, %v664
      %v697 = vpack.c.b16 %v667, %v666
      %v698 = vpack.c.b16 %v669, %v668
      %v699 = vpack.c.b16 %v671, %v670
      %v700 = vpack.c.b16 %v673, %v672
      %v701 = vpack.c.b16 %v675, %v674
      %v702 = vpack.c.b16 %v677, %v676
      %v703 = vpack.c.b16 %v679, %v678
      %v704 = vpack.c.b16 %v681, %v680
      %v705 = vpack.c.b16 %v683, %v682
      %v706 = vpack.c.b16 %v685, %v684
      %v707 = vpack.c.b16 %v687, %v686
      %v708 = vpack.c.b16 %v689, %v688
      %v709 = vpack.c.b16 %v691, %v690
      %v710 = vpack.c.b16 %v693, %v692
      %v711 = vpack.c.b16 %v695, %v694
      %v744 = vunpack.c.l.b16 %v648
      %v745 = vunpack.c.l.b16 %v649
      %v746 = vunpack.c.l.b16 %v650
      %v747 = vunpack.c.l.b16 %v651
      %v748 = vunpack.c.l.b16 %v652
      %v749 = vunpack.c.l.b16 %v653
      %v750 = vunpack.c.l.b16 %v654
      %v751 = vunpack.c.l.b16 %v655
      %v752 = vunpack.c.l.b16 %v656
      %v753 = vunpack.c.l.b16 %v657
      %v754 = vunpack.c.l.b16 %v658
      %v755 = vunpack.c.l.b16 %v659
      %v756 = vunpack.c.l.b16 %v660
      %v757 = vunpack.c.l.b16 %v661
      %v758 = vunpack.c.l.b16 %v662
      %v759 = vunpack.c.l.b16 %v663
      %v760 = vpack.c.b16 %v745, %v744
      %v761 = vpack.c.b16 %v747, %v746
      %v762 = vpack.c.b16 %v749, %v748
      %v763 = vpack.c.b16 %v751, %v750
      %v764 = vpack.c.b16 %v753, %v752
      %v765 = vpack.c.b16 %v755, %v754
      %v766 = vpack.c.b16 %v757, %v756
      %v767 = vpack.c.b16 %v759, %v758
      %776 = vmatpush.bf16.msra.mxu0 %v767
      %777 = vmatpush.bf16.msra.mxu0 %v766
      %778 = vmatpush.bf16.msra.mxu0 %v765
      %779 = vmatpush.bf16.msra.mxu0 %v764
      %780 = vmatpush.bf16.msra.mxu0 %v763
      %781 = vmatpush.bf16.msra.mxu0 %v762
      %782 = vmatpush.bf16.msra.mxu0 %v761
      %783 = vmatpush.bf16.msra.mxu0 %v760
      %784 = vmatmul.bf16.gmra.mxu0 %v696
      %v785 = vpop.f32.mrf.mxu0
      %v786 = vadd.f32 0.0, %v785
      %v787 = vpop.f32.mrf.mxu0
      %v788 = vadd.f32 0.0, %v787
      %789 = vmatmul.bf16.gmra.mxu0 %v697
      %v790 = vpop.f32.mrf.mxu0
      %v791 = vadd.f32 0.0, %v790
      %v792 = vpop.f32.mrf.mxu0
      %v793 = vadd.f32 0.0, %v792
      %794 = vmatmul.bf16.gmra.mxu0 %v698
      %v795 = vpop.f32.mrf.mxu0
      %v796 = vadd.f32 0.0, %v795
      %v797 = vpop.f32.mrf.mxu0
      %v798 = vadd.f32 0.0, %v797
      %799 = vmatmul.bf16.gmra.mxu0 %v699
      %v800 = vpop.f32.mrf.mxu0
      %v801 = vadd.f32 0.0, %v800
      %v802 = vpop.f32.mrf.mxu0
      %v803 = vadd.f32 0.0, %v802
      %804 = vmatmul.bf16.gmra.mxu0 %v700
      %v805 = vpop.f32.mrf.mxu0
      %v806 = vadd.f32 0.0, %v805
      %v807 = vpop.f32.mrf.mxu0
      %v808 = vadd.f32 0.0, %v807
      %809 = vmatmul.bf16.gmra.mxu0 %v701
      %v810 = vpop.f32.mrf.mxu0
      %v811 = vadd.f32 0.0, %v810
      %v812 = vpop.f32.mrf.mxu0
      %v813 = vadd.f32 0.0, %v812
      %814 = vmatmul.bf16.gmra.mxu0 %v702
      %v815 = vpop.f32.mrf.mxu0
      %v816 = vadd.f32 0.0, %v815
      %v817 = vpop.f32.mrf.mxu0
      %v818 = vadd.f32 0.0, %v817
      %819 = vmatmul.bf16.gmra.mxu0 %v703
      %v820 = vpop.f32.mrf.mxu0
      %v821 = vadd.f32 0.0, %v820
      %v822 = vpop.f32.mrf.mxu0
      %v823 = vadd.f32 0.0, %v822
      %824 = vmatmul.bf16.gmra.mxu0 %v704
      %v825 = vpop.f32.mrf.mxu0
      %v826 = vadd.f32 0.0, %v825
      %v827 = vpop.f32.mrf.mxu0
      %v828 = vadd.f32 0.0, %v827
      %829 = vmatmul.bf16.gmra.mxu0 %v705
      %v830 = vpop.f32.mrf.mxu0
      %v831 = vadd.f32 0.0, %v830
      %v832 = vpop.f32.mrf.mxu0
      %v833 = vadd.f32 0.0, %v832
      %834 = vmatmul.bf16.gmra.mxu0 %v706
      %v835 = vpop.f32.mrf.mxu0
      %v836 = vadd.f32 0.0, %v835
      %v837 = vpop.f32.mrf.mxu0
      %v838 = vadd.f32 0.0, %v837
      %839 = vmatmul.bf16.gmra.mxu0 %v707
      %v840 = vpop.f32.mrf.mxu0
      %v841 = vadd.f32 0.0, %v840
      %v842 = vpop.f32.mrf.mxu0
      %v843 = vadd.f32 0.0, %v842
      %844 = vmatmul.bf16.gmra.mxu0 %v708
      %v845 = vpop.f32.mrf.mxu0
      %v846 = vadd.f32 0.0, %v845
      %v847 = vpop.f32.mrf.mxu0
      %v848 = vadd.f32 0.0, %v847
      %849 = vmatmul.bf16.gmra.mxu0 %v709
      %v850 = vpop.f32.mrf.mxu0
      %v851 = vadd.f32 0.0, %v850
      %v852 = vpop.f32.mrf.mxu0
      %v853 = vadd.f32 0.0, %v852
      %854 = vmatmul.bf16.gmra.mxu0 %v710
      %v855 = vpop.f32.mrf.mxu0
      %v856 = vadd.f32 0.0, %v855
      %v857 = vpop.f32.mrf.mxu0
      %v858 = vadd.f32 0.0, %v857
      %859 = vmatmul.bf16.gmra.mxu0 %v711
      %v860 = vpop.f32.mrf.mxu0
      %v861 = vadd.f32 0.0, %v860
      %v862 = vpop.f32.mrf.mxu0
      %v863 = vadd.f32 0.0, %v862
      %864 = vdwg.mxu0
      %v897 = vunpack.c.l.b16 %v196
      %v898 = vunpack.c.l.b16 %v197
      %v899 = vunpack.c.l.b16 %v199
      %v900 = vunpack.c.l.b16 %v200
      %v901 = vunpack.c.l.b16 %v202
      %v902 = vunpack.c.l.b16 %v203
      %v903 = vunpack.c.l.b16 %v205
      %v904 = vunpack.c.l.b16 %v206
      %v905 = vunpack.c.l.b16 %v208
      %v906 = vunpack.c.l.b16 %v209
      %v907 = vunpack.c.l.b16 %v211
      %v908 = vunpack.c.l.b16 %v212
      %v909 = vunpack.c.l.b16 %v214
      %v910 = vunpack.c.l.b16 %v215
      %v911 = vunpack.c.l.b16 %v217
      %v912 = vunpack.c.l.b16 %v218
      %v913 = vunpack.c.l.b16 %v220
      %v914 = vunpack.c.l.b16 %v221
      %v915 = vunpack.c.l.b16 %v223
      %v916 = vunpack.c.l.b16 %v224
      %v917 = vunpack.c.l.b16 %v226
      %v918 = vunpack.c.l.b16 %v227
      %v919 = vunpack.c.l.b16 %v229
      %v920 = vunpack.c.l.b16 %v230
      %v921 = vunpack.c.l.b16 %v232
      %v922 = vunpack.c.l.b16 %v233
      %v923 = vunpack.c.l.b16 %v235
      %v924 = vunpack.c.l.b16 %v236
      %v925 = vunpack.c.l.b16 %v238
      %v926 = vunpack.c.l.b16 %v239
      %v927 = vunpack.c.l.b16 %v241
      %v928 = vunpack.c.l.b16 %v242
      %v929 = vpack.c.b16 %v898, %v897
      %v930 = vpack.c.b16 %v900, %v899
      %v931 = vpack.c.b16 %v902, %v901
      %v932 = vpack.c.b16 %v904, %v903
      %v933 = vpack.c.b16 %v906, %v905
      %v934 = vpack.c.b16 %v908, %v907
      %v935 = vpack.c.b16 %v910, %v909
      %v936 = vpack.c.b16 %v912, %v911
      %v937 = vpack.c.b16 %v914, %v913
      %v938 = vpack.c.b16 %v916, %v915
      %v939 = vpack.c.b16 %v918, %v917
      %v940 = vpack.c.b16 %v920, %v919
      %v941 = vpack.c.b16 %v922, %v921
      %v942 = vpack.c.b16 %v924, %v923
      %v943 = vpack.c.b16 %v926, %v925
      %v944 = vpack.c.b16 %v928, %v927
      %v977 = vunpack.c.l.b16 %v244
      %v978 = vunpack.c.l.b16 %v245
      %v979 = vunpack.c.l.b16 %v246
      %v980 = vunpack.c.l.b16 %v247
      %v981 = vunpack.c.l.b16 %v248
      %v982 = vunpack.c.l.b16 %v249
      %v983 = vunpack.c.l.b16 %v250
      %v984 = vunpack.c.l.b16 %v251
      %v985 = vunpack.c.l.b16 %v252
      %v986 = vunpack.c.l.b16 %v253
      %v987 = vunpack.c.l.b16 %v254
      %v988 = vunpack.c.l.b16 %v255
      %v989 = vunpack.c.l.b16 %v256
      %v990 = vunpack.c.l.b16 %v257
      %v991 = vunpack.c.l.b16 %v258
      %v992 = vunpack.c.l.b16 %v259
      %v993 = vpack.c.b16 %v978, %v977
      %v994 = vpack.c.b16 %v980, %v979
      %v995 = vpack.c.b16 %v982, %v981
      %v996 = vpack.c.b16 %v984, %v983
      %v997 = vpack.c.b16 %v986, %v985
      %v998 = vpack.c.b16 %v988, %v987
      %v999 = vpack.c.b16 %v990, %v989
      %v1000 = vpack.c.b16 %v992, %v991
      %1009 = vmatpush.bf16.msra.mxu0 %v1000
      %1010 = vmatpush.bf16.msra.mxu0 %v999
      %1011 = vmatpush.bf16.msra.mxu0 %v998
      %1012 = vmatpush.bf16.msra.mxu0 %v997
      %1013 = vmatpush.bf16.msra.mxu0 %v996
      %1014 = vmatpush.bf16.msra.mxu0 %v995
      %1015 = vmatpush.bf16.msra.mxu0 %v994
      %1016 = vmatpush.bf16.msra.mxu0 %v993
      %1017 = vmatmul.bf16.gmra.mxu0 %v929
      %v1018 = vpop.f32.mrf.mxu0
      %v1019 = vadd.f32 %v786, %v1018
      %v1020 = vpop.f32.mrf.mxu0
      %v1021 = vadd.f32 %v788, %v1020
      %1022 = vmatmul.bf16.gmra.mxu0 %v930
      %v1023 = vpop.f32.mrf.mxu0
      %v1024 = vadd.f32 %v791, %v1023
      %v1025 = vpop.f32.mrf.mxu0
      %v1026 = vadd.f32 %v793, %v1025
      %1027 = vmatmul.bf16.gmra.mxu0 %v931
      %v1028 = vpop.f32.mrf.mxu0
      %v1029 = vadd.f32 %v796, %v1028
      %v1030 = vpop.f32.mrf.mxu0
      %v1031 = vadd.f32 %v798, %v1030
      %1032 = vmatmul.bf16.gmra.mxu0 %v932
      %v1033 = vpop.f32.mrf.mxu0
      %v1034 = vadd.f32 %v801, %v1033
      %v1035 = vpop.f32.mrf.mxu0
      %v1036 = vadd.f32 %v803, %v1035
      %1037 = vmatmul.bf16.gmra.mxu0 %v933
      %v1038 = vpop.f32.mrf.mxu0
      %v1039 = vadd.f32 %v806, %v1038
      %v1040 = vpop.f32.mrf.mxu0
      %v1041 = vadd.f32 %v808, %v1040
      %1042 = vmatmul.bf16.gmra.mxu0 %v934
      %v1043 = vpop.f32.mrf.mxu0
      %v1044 = vadd.f32 %v811, %v1043
      %v1045 = vpop.f32.mrf.mxu0
      %v1046 = vadd.f32 %v813, %v1045
      %1047 = vmatmul.bf16.gmra.mxu0 %v935
      %v1048 = vpop.f32.mrf.mxu0
      %v1049 = vadd.f32 %v816, %v1048
      %v1050 = vpop.f32.mrf.mxu0
      %v1051 = vadd.f32 %v818, %v1050
      %1052 = vmatmul.bf16.gmra.mxu0 %v936
      %v1053 = vpop.f32.mrf.mxu0
      %v1054 = vadd.f32 %v821, %v1053
      %v1055 = vpop.f32.mrf.mxu0
      %v1056 = vadd.f32 %v823, %v1055
      %1057 = vmatmul.bf16.gmra.mxu0 %v937
      %v1058 = vpop.f32.mrf.mxu0
      %v1059 = vadd.f32 %v826, %v1058
      %v1060 = vpop.f32.mrf.mxu0
      %v1061 = vadd.f32 %v828, %v1060
      %1062 = vmatmul.bf16.gmra.mxu0 %v938
      %v1063 = vpop.f32.mrf.mxu0
      %v1064 = vadd.f32 %v831, %v1063
      %v1065 = vpop.f32.mrf.mxu0
      %v1066 = vadd.f32 %v833, %v1065
      %1067 = vmatmul.bf16.gmra.mxu0 %v939
      %v1068 = vpop.f32.mrf.mxu0
      %v1069 = vadd.f32 %v836, %v1068
      %v1070 = vpop.f32.mrf.mxu0
      %v1071 = vadd.f32 %v838, %v1070
      %1072 = vmatmul.bf16.gmra.mxu0 %v940
      %v1073 = vpop.f32.mrf.mxu0
      %v1074 = vadd.f32 %v841, %v1073
      %v1075 = vpop.f32.mrf.mxu0
      %v1076 = vadd.f32 %v843, %v1075
      %1077 = vmatmul.bf16.gmra.mxu0 %v941
      %v1078 = vpop.f32.mrf.mxu0
      %v1079 = vadd.f32 %v846, %v1078
      %v1080 = vpop.f32.mrf.mxu0
      %v1081 = vadd.f32 %v848, %v1080
      %1082 = vmatmul.bf16.gmra.mxu0 %v942
      %v1083 = vpop.f32.mrf.mxu0
      %v1084 = vadd.f32 %v851, %v1083
      %v1085 = vpop.f32.mrf.mxu0
      %v1086 = vadd.f32 %v853, %v1085
      %1087 = vmatmul.bf16.gmra.mxu0 %v943
      %v1088 = vpop.f32.mrf.mxu0
      %v1089 = vadd.f32 %v856, %v1088
      %v1090 = vpop.f32.mrf.mxu0
      %v1091 = vadd.f32 %v858, %v1090
      %1092 = vmatmul.bf16.gmra.mxu0 %v944
      %v1093 = vpop.f32.mrf.mxu0
      %v1094 = vadd.f32 %v861, %v1093
      %v1095 = vpop.f32.mrf.mxu0
      %v1096 = vadd.f32 %v863, %v1095
      %1097 = vdwg.mxu0
      %vm1114 = vcmask 1042432
      %vm1115 = vcmask 1046532
      %vm1116 = vmor %vm1114, %vm1115
      %v1117 = vrot.slane %v196, 5
      %v1118 = vrot.slane %v1117, 4
      %v1119 = vrot.slane %v197, 5
      %v1120 = vsel %vm1116, %v1118, %v1119
      %v1121 = vrot.slane %v1119, 4
      %v1122 = vrot.slane %v198, 5
      %v1123 = vsel %vm1116, %v1121, %v1122
      %v1124 = vrot.slane %v199, 5
      %v1125 = vrot.slane %v1124, 4
      %v1126 = vrot.slane %v200, 5
      %v1127 = vsel %vm1116, %v1125, %v1126
      %v1128 = vrot.slane %v1126, 4
      %v1129 = vrot.slane %v201, 5
      %v1130 = vsel %vm1116, %v1128, %v1129
      %v1131 = vrot.slane %v202, 5
      %v1132 = vrot.slane %v1131, 4
      %v1133 = vrot.slane %v203, 5
      %v1134 = vsel %vm1116, %v1132, %v1133
      %v1135 = vrot.slane %v1133, 4
      %v1136 = vrot.slane %v204, 5
      %v1137 = vsel %vm1116, %v1135, %v1136
      %v1138 = vrot.slane %v205, 5
      %v1139 = vrot.slane %v1138, 4
      %v1140 = vrot.slane %v206, 5
      %v1141 = vsel %vm1116, %v1139, %v1140
      %v1142 = vrot.slane %v1140, 4
      %v1143 = vrot.slane %v207, 5
      %v1144 = vsel %vm1116, %v1142, %v1143
      %v1145 = vrot.slane %v208, 5
      %v1146 = vrot.slane %v1145, 4
      %v1147 = vrot.slane %v209, 5
      %v1148 = vsel %vm1116, %v1146, %v1147
      %v1149 = vrot.slane %v1147, 4
      %v1150 = vrot.slane %v210, 5
      %v1151 = vsel %vm1116, %v1149, %v1150
      %v1152 = vrot.slane %v211, 5
      %v1153 = vrot.slane %v1152, 4
      %v1154 = vrot.slane %v212, 5
      %v1155 = vsel %vm1116, %v1153, %v1154
      %v1156 = vrot.slane %v1154, 4
      %v1157 = vrot.slane %v213, 5
      %v1158 = vsel %vm1116, %v1156, %v1157
      %v1159 = vrot.slane %v214, 5
      %v1160 = vrot.slane %v1159, 4
      %v1161 = vrot.slane %v215, 5
      %v1162 = vsel %vm1116, %v1160, %v1161
      %v1163 = vrot.slane %v1161, 4
      %v1164 = vrot.slane %v216, 5
      %v1165 = vsel %vm1116, %v1163, %v1164
      %v1166 = vrot.slane %v217, 5
      %v1167 = vrot.slane %v1166, 4
      %v1168 = vrot.slane %v218, 5
      %v1169 = vsel %vm1116, %v1167, %v1168
      %v1170 = vrot.slane %v1168, 4
      %v1171 = vrot.slane %v219, 5
      %v1172 = vsel %vm1116, %v1170, %v1171
      %v1173 = vrot.slane %v220, 5
      %v1174 = vrot.slane %v1173, 4
      %v1175 = vrot.slane %v221, 5
      %v1176 = vsel %vm1116, %v1174, %v1175
      %v1177 = vrot.slane %v1175, 4
      %v1178 = vrot.slane %v222, 5
      %v1179 = vsel %vm1116, %v1177, %v1178
      %v1180 = vrot.slane %v223, 5
      %v1181 = vrot.slane %v1180, 4
      %v1182 = vrot.slane %v224, 5
      %v1183 = vsel %vm1116, %v1181, %v1182
      %v1184 = vrot.slane %v1182, 4
      %v1185 = vrot.slane %v225, 5
      %v1186 = vsel %vm1116, %v1184, %v1185
      %v1187 = vrot.slane %v226, 5
      %v1188 = vrot.slane %v1187, 4
      %v1189 = vrot.slane %v227, 5
      %v1190 = vsel %vm1116, %v1188, %v1189
      %v1191 = vrot.slane %v1189, 4
      %v1192 = vrot.slane %v228, 5
      %v1193 = vsel %vm1116, %v1191, %v1192
      %v1194 = vrot.slane %v229, 5
      %v1195 = vrot.slane %v1194, 4
      %v1196 = vrot.slane %v230, 5
      %v1197 = vsel %vm1116, %v1195, %v1196
      %v1198 = vrot.slane %v1196, 4
      %v1199 = vrot.slane %v231, 5
      %v1200 = vsel %vm1116, %v1198, %v1199
      %v1201 = vrot.slane %v232, 5
      %v1202 = vrot.slane %v1201, 4
      %v1203 = vrot.slane %v233, 5
      %v1204 = vsel %vm1116, %v1202, %v1203
      %v1205 = vrot.slane %v1203, 4
      %v1206 = vrot.slane %v234, 5
      %v1207 = vsel %vm1116, %v1205, %v1206
      %v1208 = vrot.slane %v235, 5
      %v1209 = vrot.slane %v1208, 4
      %v1210 = vrot.slane %v236, 5
      %v1211 = vsel %vm1116, %v1209, %v1210
      %v1212 = vrot.slane %v1210, 4
      %v1213 = vrot.slane %v237, 5
      %v1214 = vsel %vm1116, %v1212, %v1213
      %v1215 = vrot.slane %v238, 5
      %v1216 = vrot.slane %v1215, 4
      %v1217 = vrot.slane %v239, 5
      %v1218 = vsel %vm1116, %v1216, %v1217
      %v1219 = vrot.slane %v1217, 4
      %v1220 = vrot.slane %v240, 5
      %v1221 = vsel %vm1116, %v1219, %v1220
      %v1222 = vrot.slane %v241, 5
      %v1223 = vrot.slane %v1222, 4
      %v1224 = vrot.slane %v242, 5
      %v1225 = vsel %vm1116, %v1223, %v1224
      %v1226 = vrot.slane %v1224, 4
      %v1227 = vrot.slane %v243, 5
      %v1228 = vsel %vm1116, %v1226, %v1227
      %s1229 = scalar_lea.vmem %s1, 128
      %v1230 = vld [vmem:[%s1229] sm:$0xf]
      %v1231 = vld [vmem:[%s1229 + $0x4] sm:$0xf]
      %v1232 = vld [vmem:[%s1229 + $0x8] sm:$0xf]
      %v1233 = vld [vmem:[%s1229 + $0xc] sm:$0xf]
      %v1234 = vld [vmem:[%s1229 + $0x10] sm:$0xf]
      %v1235 = vld [vmem:[%s1229 + $0x14] sm:$0xf]
      %v1236 = vld [vmem:[%s1229 + $0x18] sm:$0xf]
      %v1237 = vld [vmem:[%s1229 + $0x1c] sm:$0xf]
      %v1238 = vld [vmem:[%s1229 + $0x20] sm:$0xf]
      %v1239 = vld [vmem:[%s1229 + $0x24] sm:$0xf]
      %v1240 = vld [vmem:[%s1229 + $0x28] sm:$0xf]
      %v1241 = vld [vmem:[%s1229 + $0x2c] sm:$0xf]
      %v1242 = vld [vmem:[%s1229 + $0x30] sm:$0xf]
      %v1243 = vld [vmem:[%s1229 + $0x34] sm:$0xf]
      %v1244 = vld [vmem:[%s1229 + $0x38] sm:$0xf]
      %v1245 = vld [vmem:[%s1229 + $0x3c] sm:$0xf]
      %v1246 = vunpack.c.l.b16 %v1120
      %v1247 = vunpack.c.l.b16 %v1123
      %v1248 = vunpack.c.l.b16 %v1127
      %v1249 = vunpack.c.l.b16 %v1130
      %v1250 = vunpack.c.l.b16 %v1134
      %v1251 = vunpack.c.l.b16 %v1137
      %v1252 = vunpack.c.l.b16 %v1141
      %v1253 = vunpack.c.l.b16 %v1144
      %v1254 = vunpack.c.l.b16 %v1148
      %v1255 = vunpack.c.l.b16 %v1151
      %v1256 = vunpack.c.l.b16 %v1155
      %v1257 = vunpack.c.l.b16 %v1158
      %v1258 = vunpack.c.l.b16 %v1162
      %v1259 = vunpack.c.l.b16 %v1165
      %v1260 = vunpack.c.l.b16 %v1169
      %v1261 = vunpack.c.l.b16 %v1172
      %v1262 = vunpack.c.l.b16 %v1176
      %v1263 = vunpack.c.l.b16 %v1179
      %v1264 = vunpack.c.l.b16 %v1183
      %v1265 = vunpack.c.l.b16 %v1186
      %v1266 = vunpack.c.l.b16 %v1190
      %v1267 = vunpack.c.l.b16 %v1193
      %v1268 = vunpack.c.l.b16 %v1197
      %v1269 = vunpack.c.l.b16 %v1200
      %v1270 = vunpack.c.l.b16 %v1204
      %v1271 = vunpack.c.l.b16 %v1207
      %v1272 = vunpack.c.l.b16 %v1211
      %v1273 = vunpack.c.l.b16 %v1214
      %v1274 = vunpack.c.l.b16 %v1218
      %v1275 = vunpack.c.l.b16 %v1221
      %v1276 = vunpack.c.l.b16 %v1225
      %v1277 = vunpack.c.l.b16 %v1228
      %v1278 = vpack.c.b16 %v1247, %v1246
      %v1279 = vpack.c.b16 %v1249, %v1248
      %v1280 = vpack.c.b16 %v1251, %v1250
      %v1281 = vpack.c.b16 %v1253, %v1252
      %v1282 = vpack.c.b16 %v1255, %v1254
      %v1283 = vpack.c.b16 %v1257, %v1256
      %v1284 = vpack.c.b16 %v1259, %v1258
      %v1285 = vpack.c.b16 %v1261, %v1260
      %v1286 = vpack.c.b16 %v1263, %v1262
      %v1287 = vpack.c.b16 %v1265, %v1264
      %v1288 = vpack.c.b16 %v1267, %v1266
      %v1289 = vpack.c.b16 %v1269, %v1268
      %v1290 = vpack.c.b16 %v1271, %v1270
      %v1291 = vpack.c.b16 %v1273, %v1272
      %v1292 = vpack.c.b16 %v1275, %v1274
      %v1293 = vpack.c.b16 %v1277, %v1276
      %v1326 = vunpack.c.l.b16 %v1230
      %v1327 = vunpack.c.l.b16 %v1231
      %v1328 = vunpack.c.l.b16 %v1232
      %v1329 = vunpack.c.l.b16 %v1233
      %v1330 = vunpack.c.l.b16 %v1234
      %v1331 = vunpack.c.l.b16 %v1235
      %v1332 = vunpack.c.l.b16 %v1236
      %v1333 = vunpack.c.l.b16 %v1237
      %v1334 = vunpack.c.l.b16 %v1238
      %v1335 = vunpack.c.l.b16 %v1239
      %v1336 = vunpack.c.l.b16 %v1240
      %v1337 = vunpack.c.l.b16 %v1241
      %v1338 = vunpack.c.l.b16 %v1242
      %v1339 = vunpack.c.l.b16 %v1243
      %v1340 = vunpack.c.l.b16 %v1244
      %v1341 = vunpack.c.l.b16 %v1245
      %v1342 = vpack.c.b16 %v1327, %v1326
      %v1343 = vpack.c.b16 %v1329, %v1328
      %v1344 = vpack.c.b16 %v1331, %v1330
      %v1345 = vpack.c.b16 %v1333, %v1332
      %v1346 = vpack.c.b16 %v1335, %v1334
      %v1347 = vpack.c.b16 %v1337, %v1336
      %v1348 = vpack.c.b16 %v1339, %v1338
      %v1349 = vpack.c.b16 %v1341, %v1340
      %1358 = vmatpush.bf16.msra.mxu0 %v1349
      %1359 = vmatpush.bf16.msra.mxu0 %v1348
      %1360 = vmatpush.bf16.msra.mxu0 %v1347
      %1361 = vmatpush.bf16.msra.mxu0 %v1346
      %1362 = vmatpush.bf16.msra.mxu0 %v1345
      %1363 = vmatpush.bf16.msra.mxu0 %v1344
      %1364 = vmatpush.bf16.msra.mxu0 %v1343
      %1365 = vmatpush.bf16.msra.mxu0 %v1342
      %1366 = vmatmul.bf16.gmra.mxu0 %v1278
      %v1367 = vpop.f32.mrf.mxu0
      %v1368 = vadd.f32 0.0, %v1367
      %v1369 = vpop.f32.mrf.mxu0
      %v1370 = vadd.f32 0.0, %v1369
      %1371 = vmatmul.bf16.gmra.mxu0 %v1279
      %v1372 = vpop.f32.mrf.mxu0
      %v1373 = vadd.f32 0.0, %v1372
      %v1374 = vpop.f32.mrf.mxu0
      %v1375 = vadd.f32 0.0, %v1374
      %1376 = vmatmul.bf16.gmra.mxu0 %v1280
      %v1377 = vpop.f32.mrf.mxu0
      %v1378 = vadd.f32 0.0, %v1377
      %v1379 = vpop.f32.mrf.mxu0
      %v1380 = vadd.f32 0.0, %v1379
      %1381 = vmatmul.bf16.gmra.mxu0 %v1281
      %v1382 = vpop.f32.mrf.mxu0
      %v1383 = vadd.f32 0.0, %v1382
      %v1384 = vpop.f32.mrf.mxu0
      %v1385 = vadd.f32 0.0, %v1384
      %1386 = vmatmul.bf16.gmra.mxu0 %v1282
      %v1387 = vpop.f32.mrf.mxu0
      %v1388 = vadd.f32 0.0, %v1387
      %v1389 = vpop.f32.mrf.mxu0
      %v1390 = vadd.f32 0.0, %v1389
      %1391 = vmatmul.bf16.gmra.mxu0 %v1283
      %v1392 = vpop.f32.mrf.mxu0
      %v1393 = vadd.f32 0.0, %v1392
      %v1394 = vpop.f32.mrf.mxu0
      %v1395 = vadd.f32 0.0, %v1394
      %1396 = vmatmul.bf16.gmra.mxu0 %v1284
      %v1397 = vpop.f32.mrf.mxu0
      %v1398 = vadd.f32 0.0, %v1397
      %v1399 = vpop.f32.mrf.mxu0
      %v1400 = vadd.f32 0.0, %v1399
      %1401 = vmatmul.bf16.gmra.mxu0 %v1285
      %v1402 = vpop.f32.mrf.mxu0
      %v1403 = vadd.f32 0.0, %v1402
      %v1404 = vpop.f32.mrf.mxu0
      %v1405 = vadd.f32 0.0, %v1404
      %1406 = vmatmul.bf16.gmra.mxu0 %v1286
      %v1407 = vpop.f32.mrf.mxu0
      %v1408 = vadd.f32 0.0, %v1407
      %v1409 = vpop.f32.mrf.mxu0
      %v1410 = vadd.f32 0.0, %v1409
      %1411 = vmatmul.bf16.gmra.mxu0 %v1287
      %v1412 = vpop.f32.mrf.mxu0
      %v1413 = vadd.f32 0.0, %v1412
      %v1414 = vpop.f32.mrf.mxu0
      %v1415 = vadd.f32 0.0, %v1414
      %1416 = vmatmul.bf16.gmra.mxu0 %v1288
      %v1417 = vpop.f32.mrf.mxu0
      %v1418 = vadd.f32 0.0, %v1417
      %v1419 = vpop.f32.mrf.mxu0
      %v1420 = vadd.f32 0.0, %v1419
      %1421 = vmatmul.bf16.gmra.mxu0 %v1289
      %v1422 = vpop.f32.mrf.mxu0
      %v1423 = vadd.f32 0.0, %v1422
      %v1424 = vpop.f32.mrf.mxu0
      %v1425 = vadd.f32 0.0, %v1424
      %1426 = vmatmul.bf16.gmra.mxu0 %v1290
      %v1427 = vpop.f32.mrf.mxu0
      %v1428 = vadd.f32 0.0, %v1427
      %v1429 = vpop.f32.mrf.mxu0
      %v1430 = vadd.f32 0.0, %v1429
      %1431 = vmatmul.bf16.gmra.mxu0 %v1291
      %v1432 = vpop.f32.mrf.mxu0
      %v1433 = vadd.f32 0.0, %v1432
      %v1434 = vpop.f32.mrf.mxu0
      %v1435 = vadd.f32 0.0, %v1434
      %1436 = vmatmul.bf16.gmra.mxu0 %v1292
      %v1437 = vpop.f32.mrf.mxu0
      %v1438 = vadd.f32 0.0, %v1437
      %v1439 = vpop.f32.mrf.mxu0
      %v1440 = vadd.f32 0.0, %v1439
      %1441 = vmatmul.bf16.gmra.mxu0 %v1293
      %v1442 = vpop.f32.mrf.mxu0
      %v1443 = vadd.f32 0.0, %v1442
      %v1444 = vpop.f32.mrf.mxu0
      %v1445 = vadd.f32 0.0, %v1444
      %1446 = vdwg.mxu0
      %v1447 = vadd.f32 %v1019, %v1368
      %v1448 = vadd.f32 %v1021, %v1370
      %v1449 = vadd.f32 %v1024, %v1373
      %v1450 = vadd.f32 %v1026, %v1375
      %v1451 = vadd.f32 %v1029, %v1378
      %v1452 = vadd.f32 %v1031, %v1380
      %v1453 = vadd.f32 %v1034, %v1383
      %v1454 = vadd.f32 %v1036, %v1385
      %v1455 = vadd.f32 %v1039, %v1388
      %v1456 = vadd.f32 %v1041, %v1390
      %v1457 = vadd.f32 %v1044, %v1393
      %v1458 = vadd.f32 %v1046, %v1395
      %v1459 = vadd.f32 %v1049, %v1398
      %v1460 = vadd.f32 %v1051, %v1400
      %v1461 = vadd.f32 %v1054, %v1403
      %v1462 = vadd.f32 %v1056, %v1405
      %v1463 = vadd.f32 %v1059, %v1408
      %v1464 = vadd.f32 %v1061, %v1410
      %v1465 = vadd.f32 %v1064, %v1413
      %v1466 = vadd.f32 %v1066, %v1415
      %v1467 = vadd.f32 %v1069, %v1418
      %v1468 = vadd.f32 %v1071, %v1420
      %v1469 = vadd.f32 %v1074, %v1423
      %v1470 = vadd.f32 %v1076, %v1425
      %v1471 = vadd.f32 %v1079, %v1428
      %v1472 = vadd.f32 %v1081, %v1430
      %v1473 = vadd.f32 %v1084, %v1433
      %v1474 = vadd.f32 %v1086, %v1435
      %v1475 = vadd.f32 %v1089, %v1438
      %v1476 = vadd.f32 %v1091, %v1440
      %v1477 = vadd.f32 %v1094, %v1443
      %v1478 = vadd.f32 %v1096, %v1445
      %s1479 = scalar_lea.vmem %s184, 12
      %v1480 = vld [vmem:[%s1479] sm:$0xf]
      %v1481 = vld [vmem:[%s1479 + $0x4] sm:$0xf]
      %v1482 = vld [vmem:[%s1479 + $0x8] sm:$0x1]
      %v1483 = vld [vmem:[%s1479 + $0xc] sm:$0xf]
      %v1484 = vld [vmem:[%s1479 + $0x10] sm:$0xf]
      %v1485 = vld [vmem:[%s1479 + $0x14] sm:$0x1]
      %v1486 = vld [vmem:[%s1479 + $0x18] sm:$0xf]
      %v1487 = vld [vmem:[%s1479 + $0x1c] sm:$0xf]
      %v1488 = vld [vmem:[%s1479 + $0x20] sm:$0x1]
      %v1489 = vld [vmem:[%s1479 + $0x24] sm:$0xf]
      %v1490 = vld [vmem:[%s1479 + $0x28] sm:$0xf]
      %v1491 = vld [vmem:[%s1479 + $0x2c] sm:$0x1]
      %v1492 = vld [vmem:[%s1479 + $0x30] sm:$0xf]
      %v1493 = vld [vmem:[%s1479 + $0x34] sm:$0xf]
      %v1494 = vld [vmem:[%s1479 + $0x38] sm:$0x1]
      %v1495 = vld [vmem:[%s1479 + $0x3c] sm:$0xf]
      %v1496 = vld [vmem:[%s1479 + $0x40] sm:$0xf]
      %v1497 = vld [vmem:[%s1479 + $0x44] sm:$0x1]
      %v1498 = vld [vmem:[%s1479 + $0x48] sm:$0xf]
      %v1499 = vld [vmem:[%s1479 + $0x4c] sm:$0xf]
      %v1500 = vld [vmem:[%s1479 + $0x50] sm:$0x1]
      %v1501 = vld [vmem:[%s1479 + $0x54] sm:$0xf]
      %v1502 = vld [vmem:[%s1479 + $0x58] sm:$0xf]
      %v1503 = vld [vmem:[%s1479 + $0x5c] sm:$0x1]
      %v1504 = vld [vmem:[%s1479 + $0x60] sm:$0xf]
      %v1505 = vld [vmem:[%s1479 + $0x64] sm:$0xf]
      %v1506 = vld [vmem:[%s1479 + $0x68] sm:$0x1]
      %v1507 = vld [vmem:[%s1479 + $0x6c] sm:$0xf]
      %v1508 = vld [vmem:[%s1479 + $0x70] sm:$0xf]
      %v1509 = vld [vmem:[%s1479 + $0x74] sm:$0x1]
      %v1510 = vld [vmem:[%s1479 + $0x78] sm:$0xf]
      %v1511 = vld [vmem:[%s1479 + $0x7c] sm:$0xf]
      %v1512 = vld [vmem:[%s1479 + $0x80] sm:$0x1]
      %v1513 = vld [vmem:[%s1479 + $0x84] sm:$0xf]
      %v1514 = vld [vmem:[%s1479 + $0x88] sm:$0xf]
      %v1515 = vld [vmem:[%s1479 + $0x8c] sm:$0x1]
      %v1516 = vld [vmem:[%s1479 + $0x90] sm:$0xf]
      %v1517 = vld [vmem:[%s1479 + $0x94] sm:$0xf]
      %v1518 = vld [vmem:[%s1479 + $0x98] sm:$0x1]
      %v1519 = vld [vmem:[%s1479 + $0x9c] sm:$0xf]
      %v1520 = vld [vmem:[%s1479 + $0xa0] sm:$0xf]
      %v1521 = vld [vmem:[%s1479 + $0xa4] sm:$0x1]
      %v1522 = vld [vmem:[%s1479 + $0xa8] sm:$0xf]
      %v1523 = vld [vmem:[%s1479 + $0xac] sm:$0xf]
      %v1524 = vld [vmem:[%s1479 + $0xb0] sm:$0x1]
      %v1525 = vld [vmem:[%s1479 + $0xb4] sm:$0xf]
      %v1526 = vld [vmem:[%s1479 + $0xb8] sm:$0xf]
      %v1527 = vld [vmem:[%s1479 + $0xbc] sm:$0x1]
      %s1528 = scalar_lea.vmem %s1, 192
      %v1529 = vld [vmem:[%s1528] sm:$0xf]
      %v1530 = vld [vmem:[%s1528 + $0x4] sm:$0xf]
      %v1531 = vld [vmem:[%s1528 + $0x8] sm:$0xf]
      %v1532 = vld [vmem:[%s1528 + $0xc] sm:$0xf]
      %v1533 = vld [vmem:[%s1528 + $0x10] sm:$0xf]
      %v1534 = vld [vmem:[%s1528 + $0x14] sm:$0xf]
      %v1535 = vld [vmem:[%s1528 + $0x18] sm:$0xf]
      %v1536 = vld [vmem:[%s1528 + $0x1c] sm:$0xf]
      %v1537 = vld [vmem:[%s1528 + $0x20] sm:$0xf]
      %v1538 = vld [vmem:[%s1528 + $0x24] sm:$0xf]
      %v1539 = vld [vmem:[%s1528 + $0x28] sm:$0xf]
      %v1540 = vld [vmem:[%s1528 + $0x2c] sm:$0xf]
      %v1541 = vld [vmem:[%s1528 + $0x30] sm:$0xf]
      %v1542 = vld [vmem:[%s1528 + $0x34] sm:$0xf]
      %v1543 = vld [vmem:[%s1528 + $0x38] sm:$0xf]
      %v1544 = vld [vmem:[%s1528 + $0x3c] sm:$0xf]
      %v1577 = vunpack.c.l.b16 %v1480
      %v1578 = vunpack.c.l.b16 %v1481
      %v1579 = vunpack.c.l.b16 %v1483
      %v1580 = vunpack.c.l.b16 %v1484
      %v1581 = vunpack.c.l.b16 %v1486
      %v1582 = vunpack.c.l.b16 %v1487
      %v1583 = vunpack.c.l.b16 %v1489
      %v1584 = vunpack.c.l.b16 %v1490
      %v1585 = vunpack.c.l.b16 %v1492
      %v1586 = vunpack.c.l.b16 %v1493
      %v1587 = vunpack.c.l.b16 %v1495
      %v1588 = vunpack.c.l.b16 %v1496
      %v1589 = vunpack.c.l.b16 %v1498
      %v1590 = vunpack.c.l.b16 %v1499
      %v1591 = vunpack.c.l.b16 %v1501
      %v1592 = vunpack.c.l.b16 %v1502
      %v1593 = vunpack.c.l.b16 %v1504
      %v1594 = vunpack.c.l.b16 %v1505
      %v1595 = vunpack.c.l.b16 %v1507
      %v1596 = vunpack.c.l.b16 %v1508
      %v1597 = vunpack.c.l.b16 %v1510
      %v1598 = vunpack.c.l.b16 %v1511
      %v1599 = vunpack.c.l.b16 %v1513
      %v1600 = vunpack.c.l.b16 %v1514
      %v1601 = vunpack.c.l.b16 %v1516
      %v1602 = vunpack.c.l.b16 %v1517
      %v1603 = vunpack.c.l.b16 %v1519
      %v1604 = vunpack.c.l.b16 %v1520
      %v1605 = vunpack.c.l.b16 %v1522
      %v1606 = vunpack.c.l.b16 %v1523
      %v1607 = vunpack.c.l.b16 %v1525
      %v1608 = vunpack.c.l.b16 %v1526
      %v1609 = vpack.c.b16 %v1578, %v1577
      %v1610 = vpack.c.b16 %v1580, %v1579
      %v1611 = vpack.c.b16 %v1582, %v1581
      %v1612 = vpack.c.b16 %v1584, %v1583
      %v1613 = vpack.c.b16 %v1586, %v1585
      %v1614 = vpack.c.b16 %v1588, %v1587
      %v1615 = vpack.c.b16 %v1590, %v1589
      %v1616 = vpack.c.b16 %v1592, %v1591
      %v1617 = vpack.c.b16 %v1594, %v1593
      %v1618 = vpack.c.b16 %v1596, %v1595
      %v1619 = vpack.c.b16 %v1598, %v1597
      %v1620 = vpack.c.b16 %v1600, %v1599
      %v1621 = vpack.c.b16 %v1602, %v1601
      %v1622 = vpack.c.b16 %v1604, %v1603
      %v1623 = vpack.c.b16 %v1606, %v1605
      %v1624 = vpack.c.b16 %v1608, %v1607
      %v1657 = vunpack.c.l.b16 %v1529
      %v1658 = vunpack.c.l.b16 %v1530
      %v1659 = vunpack.c.l.b16 %v1531
      %v1660 = vunpack.c.l.b16 %v1532
      %v1661 = vunpack.c.l.b16 %v1533
      %v1662 = vunpack.c.l.b16 %v1534
      %v1663 = vunpack.c.l.b16 %v1535
      %v1664 = vunpack.c.l.b16 %v1536
      %v1665 = vunpack.c.l.b16 %v1537
      %v1666 = vunpack.c.l.b16 %v1538
      %v1667 = vunpack.c.l.b16 %v1539
      %v1668 = vunpack.c.l.b16 %v1540
      %v1669 = vunpack.c.l.b16 %v1541
      %v1670 = vunpack.c.l.b16 %v1542
      %v1671 = vunpack.c.l.b16 %v1543
      %v1672 = vunpack.c.l.b16 %v1544
      %v1673 = vpack.c.b16 %v1658, %v1657
      %v1674 = vpack.c.b16 %v1660, %v1659
      %v1675 = vpack.c.b16 %v1662, %v1661
      %v1676 = vpack.c.b16 %v1664, %v1663
      %v1677 = vpack.c.b16 %v1666, %v1665
      %v1678 = vpack.c.b16 %v1668, %v1667
      %v1679 = vpack.c.b16 %v1670, %v1669
      %v1680 = vpack.c.b16 %v1672, %v1671
      %1689 = vmatpush.bf16.msra.mxu0 %v1680
      %1690 = vmatpush.bf16.msra.mxu0 %v1679
      %1691 = vmatpush.bf16.msra.mxu0 %v1678
      %1692 = vmatpush.bf16.msra.mxu0 %v1677
      %1693 = vmatpush.bf16.msra.mxu0 %v1676
      %1694 = vmatpush.bf16.msra.mxu0 %v1675
      %1695 = vmatpush.bf16.msra.mxu0 %v1674
      %1696 = vmatpush.bf16.msra.mxu0 %v1673
      %1697 = vmatmul.bf16.gmra.mxu0 %v1609
      %v1698 = vpop.f32.mrf.mxu0
      %v1699 = vadd.f32 0.0, %v1698
      %v1700 = vpop.f32.mrf.mxu0
      %v1701 = vadd.f32 0.0, %v1700
      %1702 = vmatmul.bf16.gmra.mxu0 %v1610
      %v1703 = vpop.f32.mrf.mxu0
      %v1704 = vadd.f32 0.0, %v1703
      %v1705 = vpop.f32.mrf.mxu0
      %v1706 = vadd.f32 0.0, %v1705
      %1707 = vmatmul.bf16.gmra.mxu0 %v1611
      %v1708 = vpop.f32.mrf.mxu0
      %v1709 = vadd.f32 0.0, %v1708
      %v1710 = vpop.f32.mrf.mxu0
      %v1711 = vadd.f32 0.0, %v1710
      %1712 = vmatmul.bf16.gmra.mxu0 %v1612
      %v1713 = vpop.f32.mrf.mxu0
      %v1714 = vadd.f32 0.0, %v1713
      %v1715 = vpop.f32.mrf.mxu0
      %v1716 = vadd.f32 0.0, %v1715
      %1717 = vmatmul.bf16.gmra.mxu0 %v1613
      %v1718 = vpop.f32.mrf.mxu0
      %v1719 = vadd.f32 0.0, %v1718
      %v1720 = vpop.f32.mrf.mxu0
      %v1721 = vadd.f32 0.0, %v1720
      %1722 = vmatmul.bf16.gmra.mxu0 %v1614
      %v1723 = vpop.f32.mrf.mxu0
      %v1724 = vadd.f32 0.0, %v1723
      %v1725 = vpop.f32.mrf.mxu0
      %v1726 = vadd.f32 0.0, %v1725
      %1727 = vmatmul.bf16.gmra.mxu0 %v1615
      %v1728 = vpop.f32.mrf.mxu0
      %v1729 = vadd.f32 0.0, %v1728
      %v1730 = vpop.f32.mrf.mxu0
      %v1731 = vadd.f32 0.0, %v1730
      %1732 = vmatmul.bf16.gmra.mxu0 %v1616
      %v1733 = vpop.f32.mrf.mxu0
      %v1734 = vadd.f32 0.0, %v1733
      %v1735 = vpop.f32.mrf.mxu0
      %v1736 = vadd.f32 0.0, %v1735
      %1737 = vmatmul.bf16.gmra.mxu0 %v1617
      %v1738 = vpop.f32.mrf.mxu0
      %v1739 = vadd.f32 0.0, %v1738
      %v1740 = vpop.f32.mrf.mxu0
      %v1741 = vadd.f32 0.0, %v1740
      %1742 = vmatmul.bf16.gmra.mxu0 %v1618
      %v1743 = vpop.f32.mrf.mxu0
      %v1744 = vadd.f32 0.0, %v1743
      %v1745 = vpop.f32.mrf.mxu0
      %v1746 = vadd.f32 0.0, %v1745
      %1747 = vmatmul.bf16.gmra.mxu0 %v1619
      %v1748 = vpop.f32.mrf.mxu0
      %v1749 = vadd.f32 0.0, %v1748
      %v1750 = vpop.f32.mrf.mxu0
      %v1751 = vadd.f32 0.0, %v1750
      %1752 = vmatmul.bf16.gmra.mxu0 %v1620
      %v1753 = vpop.f32.mrf.mxu0
      %v1754 = vadd.f32 0.0, %v1753
      %v1755 = vpop.f32.mrf.mxu0
      %v1756 = vadd.f32 0.0, %v1755
      %1757 = vmatmul.bf16.gmra.mxu0 %v1621
      %v1758 = vpop.f32.mrf.mxu0
      %v1759 = vadd.f32 0.0, %v1758
      %v1760 = vpop.f32.mrf.mxu0
      %v1761 = vadd.f32 0.0, %v1760
      %1762 = vmatmul.bf16.gmra.mxu0 %v1622
      %v1763 = vpop.f32.mrf.mxu0
      %v1764 = vadd.f32 0.0, %v1763
      %v1765 = vpop.f32.mrf.mxu0
      %v1766 = vadd.f32 0.0, %v1765
      %1767 = vmatmul.bf16.gmra.mxu0 %v1623
      %v1768 = vpop.f32.mrf.mxu0
      %v1769 = vadd.f32 0.0, %v1768
      %v1770 = vpop.f32.mrf.mxu0
      %v1771 = vadd.f32 0.0, %v1770
      %1772 = vmatmul.bf16.gmra.mxu0 %v1624
      %v1773 = vpop.f32.mrf.mxu0
      %v1774 = vadd.f32 0.0, %v1773
      %v1775 = vpop.f32.mrf.mxu0
      %v1776 = vadd.f32 0.0, %v1775
      %1777 = vdwg.mxu0
      %v1778 = vadd.f32 %v1447, %v1699
      %v1779 = vadd.f32 %v1448, %v1701
      %v1780 = vadd.f32 %v1449, %v1704
      %v1781 = vadd.f32 %v1450, %v1706
      %v1782 = vadd.f32 %v1451, %v1709
      %v1783 = vadd.f32 %v1452, %v1711
      %v1784 = vadd.f32 %v1453, %v1714
      %v1785 = vadd.f32 %v1454, %v1716
      %v1786 = vadd.f32 %v1455, %v1719
      %v1787 = vadd.f32 %v1456, %v1721
      %v1788 = vadd.f32 %v1457, %v1724
      %v1789 = vadd.f32 %v1458, %v1726
      %v1790 = vadd.f32 %v1459, %v1729
      %v1791 = vadd.f32 %v1460, %v1731
      %v1792 = vadd.f32 %v1461, %v1734
      %v1793 = vadd.f32 %v1462, %v1736
      %v1794 = vadd.f32 %v1463, %v1739
      %v1795 = vadd.f32 %v1464, %v1741
      %v1796 = vadd.f32 %v1465, %v1744
      %v1797 = vadd.f32 %v1466, %v1746
      %v1798 = vadd.f32 %v1467, %v1749
      %v1799 = vadd.f32 %v1468, %v1751
      %v1800 = vadd.f32 %v1469, %v1754
      %v1801 = vadd.f32 %v1470, %v1756
      %v1802 = vadd.f32 %v1471, %v1759
      %v1803 = vadd.f32 %v1472, %v1761
      %v1804 = vadd.f32 %v1473, %v1764
      %v1805 = vadd.f32 %v1474, %v1766
      %v1806 = vadd.f32 %v1475, %v1769
      %v1807 = vadd.f32 %v1476, %v1771
      %v1808 = vadd.f32 %v1477, %v1774
      %v1809 = vadd.f32 %v1478, %v1776
      %v1811 = vshrl.u32 %v1480, 16
      %v1813 = vrot.slane %v1811, 4
      %v1814 = vshll.u32 %v1480, 16
      %v1816 = vrot.slane %v1814, 5
      %v1817 = vor.u32 %v1813, %v1816
      %v1818 = vrot.slane %v1817, 4
      %v1820 = vshll.u32 %v1481, 16
      %v1822 = vrot.slane %v1820, 5
      %v1823 = vsel %vm262, %v1818, %v1822
      %v1824 = vshrl.u32 %v1481, 16
      %v1826 = vrot.slane %v1824, 4
      %v1827 = vor.u32 %v1826, %v1822
      %v1828 = vrot.slane %v1827, 4
      %v1830 = vshll.u32 %v1482, 16
      %v1832 = vrot.slane %v1830, 5
      %v1833 = vsel %vm262, %v1828, %v1832
      %v1835 = vshrl.u32 %v1483, 16
      %v1837 = vrot.slane %v1835, 4
      %v1838 = vshll.u32 %v1483, 16
      %v1840 = vrot.slane %v1838, 5
      %v1841 = vor.u32 %v1837, %v1840
      %v1842 = vrot.slane %v1841, 4
      %v1844 = vshll.u32 %v1484, 16
      %v1846 = vrot.slane %v1844, 5
      %v1847 = vsel %vm262, %v1842, %v1846
      %v1848 = vshrl.u32 %v1484, 16
      %v1850 = vrot.slane %v1848, 4
      %v1851 = vor.u32 %v1850, %v1846
      %v1852 = vrot.slane %v1851, 4
      %v1854 = vshll.u32 %v1485, 16
      %v1856 = vrot.slane %v1854, 5
      %v1857 = vsel %vm262, %v1852, %v1856
      %v1859 = vshrl.u32 %v1486, 16
      %v1861 = vrot.slane %v1859, 4
      %v1862 = vshll.u32 %v1486, 16
      %v1864 = vrot.slane %v1862, 5
      %v1865 = vor.u32 %v1861, %v1864
      %v1866 = vrot.slane %v1865, 4
      %v1868 = vshll.u32 %v1487, 16
      %v1870 = vrot.slane %v1868, 5
      %v1871 = vsel %vm262, %v1866, %v1870
      %v1872 = vshrl.u32 %v1487, 16
      %v1874 = vrot.slane %v1872, 4
      %v1875 = vor.u32 %v1874, %v1870
      %v1876 = vrot.slane %v1875, 4
      %v1878 = vshll.u32 %v1488, 16
      %v1880 = vrot.slane %v1878, 5
      %v1881 = vsel %vm262, %v1876, %v1880
      %v1883 = vshrl.u32 %v1489, 16
      %v1885 = vrot.slane %v1883, 4
      %v1886 = vshll.u32 %v1489, 16
      %v1888 = vrot.slane %v1886, 5
      %v1889 = vor.u32 %v1885, %v1888
      %v1890 = vrot.slane %v1889, 4
      %v1892 = vshll.u32 %v1490, 16
      %v1894 = vrot.slane %v1892, 5
      %v1895 = vsel %vm262, %v1890, %v1894
      %v1896 = vshrl.u32 %v1490, 16
      %v1898 = vrot.slane %v1896, 4
      %v1899 = vor.u32 %v1898, %v1894
      %v1900 = vrot.slane %v1899, 4
      %v1902 = vshll.u32 %v1491, 16
      %v1904 = vrot.slane %v1902, 5
      %v1905 = vsel %vm262, %v1900, %v1904
      %v1907 = vshrl.u32 %v1492, 16
      %v1909 = vrot.slane %v1907, 4
      %v1910 = vshll.u32 %v1492, 16
      %v1912 = vrot.slane %v1910, 5
      %v1913 = vor.u32 %v1909, %v1912
      %v1914 = vrot.slane %v1913, 4
      %v1916 = vshll.u32 %v1493, 16
      %v1918 = vrot.slane %v1916, 5
      %v1919 = vsel %vm262, %v1914, %v1918
      %v1920 = vshrl.u32 %v1493, 16
      %v1922 = vrot.slane %v1920, 4
      %v1923 = vor.u32 %v1922, %v1918
      %v1924 = vrot.slane %v1923, 4
      %v1926 = vshll.u32 %v1494, 16
      %v1928 = vrot.slane %v1926, 5
      %v1929 = vsel %vm262, %v1924, %v1928
      %v1931 = vshrl.u32 %v1495, 16
      %v1933 = vrot.slane %v1931, 4
      %v1934 = vshll.u32 %v1495, 16
      %v1936 = vrot.slane %v1934, 5
      %v1937 = vor.u32 %v1933, %v1936
      %v1938 = vrot.slane %v1937, 4
      %v1940 = vshll.u32 %v1496, 16
      %v1942 = vrot.slane %v1940, 5
      %v1943 = vsel %vm262, %v1938, %v1942
      %v1944 = vshrl.u32 %v1496, 16
      %v1946 = vrot.slane %v1944, 4
      %v1947 = vor.u32 %v1946, %v1942
      %v1948 = vrot.slane %v1947, 4
      %v1950 = vshll.u32 %v1497, 16
      %v1952 = vrot.slane %v1950, 5
      %v1953 = vsel %vm262, %v1948, %v1952
      %v1955 = vshrl.u32 %v1498, 16
      %v1957 = vrot.slane %v1955, 4
      %v1958 = vshll.u32 %v1498, 16
      %v1960 = vrot.slane %v1958, 5
      %v1961 = vor.u32 %v1957, %v1960
      %v1962 = vrot.slane %v1961, 4
      %v1964 = vshll.u32 %v1499, 16
      %v1966 = vrot.slane %v1964, 5
      %v1967 = vsel %vm262, %v1962, %v1966
      %v1968 = vshrl.u32 %v1499, 16
      %v1970 = vrot.slane %v1968, 4
      %v1971 = vor.u32 %v1970, %v1966
      %v1972 = vrot.slane %v1971, 4
      %v1974 = vshll.u32 %v1500, 16
      %v1976 = vrot.slane %v1974, 5
      %v1977 = vsel %vm262, %v1972, %v1976
      %v1979 = vshrl.u32 %v1501, 16
      %v1981 = vrot.slane %v1979, 4
      %v1982 = vshll.u32 %v1501, 16
      %v1984 = vrot.slane %v1982, 5
      %v1985 = vor.u32 %v1981, %v1984
      %v1986 = vrot.slane %v1985, 4
      %v1988 = vshll.u32 %v1502, 16
      %v1990 = vrot.slane %v1988, 5
      %v1991 = vsel %vm262, %v1986, %v1990
      %v1992 = vshrl.u32 %v1502, 16
      %v1994 = vrot.slane %v1992, 4
      %v1995 = vor.u32 %v1994, %v1990
      %v1996 = vrot.slane %v1995, 4
      %v1998 = vshll.u32 %v1503, 16
      %v2000 = vrot.slane %v1998, 5
      %v2001 = vsel %vm262, %v1996, %v2000
      %v2003 = vshrl.u32 %v1504, 16
      %v2005 = vrot.slane %v2003, 4
      %v2006 = vshll.u32 %v1504, 16
      %v2008 = vrot.slane %v2006, 5
      %v2009 = vor.u32 %v2005, %v2008
      %v2010 = vrot.slane %v2009, 4
      %v2012 = vshll.u32 %v1505, 16
      %v2014 = vrot.slane %v2012, 5
      %v2015 = vsel %vm262, %v2010, %v2014
      %v2016 = vshrl.u32 %v1505, 16
      %v2018 = vrot.slane %v2016, 4
      %v2019 = vor.u32 %v2018, %v2014
      %v2020 = vrot.slane %v2019, 4
      %v2022 = vshll.u32 %v1506, 16
      %v2024 = vrot.slane %v2022, 5
      %v2025 = vsel %vm262, %v2020, %v2024
      %v2027 = vshrl.u32 %v1507, 16
      %v2029 = vrot.slane %v2027, 4
      %v2030 = vshll.u32 %v1507, 16
      %v2032 = vrot.slane %v2030, 5
      %v2033 = vor.u32 %v2029, %v2032
      %v2034 = vrot.slane %v2033, 4
      %v2036 = vshll.u32 %v1508, 16
      %v2038 = vrot.slane %v2036, 5
      %v2039 = vsel %vm262, %v2034, %v2038
      %v2040 = vshrl.u32 %v1508, 16
      %v2042 = vrot.slane %v2040, 4
      %v2043 = vor.u32 %v2042, %v2038
      %v2044 = vrot.slane %v2043, 4
      %v2046 = vshll.u32 %v1509, 16
      %v2048 = vrot.slane %v2046, 5
      %v2049 = vsel %vm262, %v2044, %v2048
      %v2051 = vshrl.u32 %v1510, 16
      %v2053 = vrot.slane %v2051, 4
      %v2054 = vshll.u32 %v1510, 16
      %v2056 = vrot.slane %v2054, 5
      %v2057 = vor.u32 %v2053, %v2056
      %v2058 = vrot.slane %v2057, 4
      %v2060 = vshll.u32 %v1511, 16
      %v2062 = vrot.slane %v2060, 5
      %v2063 = vsel %vm262, %v2058, %v2062
      %v2064 = vshrl.u32 %v1511, 16
      %v2066 = vrot.slane %v2064, 4
      %v2067 = vor.u32 %v2066, %v2062
      %v2068 = vrot.slane %v2067, 4
      %v2070 = vshll.u32 %v1512, 16
      %v2072 = vrot.slane %v2070, 5
      %v2073 = vsel %vm262, %v2068, %v2072
      %v2075 = vshrl.u32 %v1513, 16
      %v2077 = vrot.slane %v2075, 4
      %v2078 = vshll.u32 %v1513, 16
      %v2080 = vrot.slane %v2078, 5
      %v2081 = vor.u32 %v2077, %v2080
      %v2082 = vrot.slane %v2081, 4
      %v2084 = vshll.u32 %v1514, 16
      %v2086 = vrot.slane %v2084, 5
      %v2087 = vsel %vm262, %v2082, %v2086
      %v2088 = vshrl.u32 %v1514, 16
      %v2090 = vrot.slane %v2088, 4
      %v2091 = vor.u32 %v2090, %v2086
      %v2092 = vrot.slane %v2091, 4
      %v2094 = vshll.u32 %v1515, 16
      %v2096 = vrot.slane %v2094, 5
      %v2097 = vsel %vm262, %v2092, %v2096
      %v2099 = vshrl.u32 %v1516, 16
      %v2101 = vrot.slane %v2099, 4
      %v2102 = vshll.u32 %v1516, 16
      %v2104 = vrot.slane %v2102, 5
      %v2105 = vor.u32 %v2101, %v2104
      %v2106 = vrot.slane %v2105, 4
      %v2108 = vshll.u32 %v1517, 16
      %v2110 = vrot.slane %v2108, 5
      %v2111 = vsel %vm262, %v2106, %v2110
      %v2112 = vshrl.u32 %v1517, 16
      %v2114 = vrot.slane %v2112, 4
      %v2115 = vor.u32 %v2114, %v2110
      %v2116 = vrot.slane %v2115, 4
      %v2118 = vshll.u32 %v1518, 16
      %v2120 = vrot.slane %v2118, 5
      %v2121 = vsel %vm262, %v2116, %v2120
      %v2123 = vshrl.u32 %v1519, 16
      %v2125 = vrot.slane %v2123, 4
      %v2126 = vshll.u32 %v1519, 16
      %v2128 = vrot.slane %v2126, 5
      %v2129 = vor.u32 %v2125, %v2128
      %v2130 = vrot.slane %v2129, 4
      %v2132 = vshll.u32 %v1520, 16
      %v2134 = vrot.slane %v2132, 5
      %v2135 = vsel %vm262, %v2130, %v2134
      %v2136 = vshrl.u32 %v1520, 16
      %v2138 = vrot.slane %v2136, 4
      %v2139 = vor.u32 %v2138, %v2134
      %v2140 = vrot.slane %v2139, 4
      %v2142 = vshll.u32 %v1521, 16
      %v2144 = vrot.slane %v2142, 5
      %v2145 = vsel %vm262, %v2140, %v2144
      %v2147 = vshrl.u32 %v1522, 16
      %v2149 = vrot.slane %v2147, 4
      %v2150 = vshll.u32 %v1522, 16
      %v2152 = vrot.slane %v2150, 5
      %v2153 = vor.u32 %v2149, %v2152
      %v2154 = vrot.slane %v2153, 4
      %v2156 = vshll.u32 %v1523, 16
      %v2158 = vrot.slane %v2156, 5
      %v2159 = vsel %vm262, %v2154, %v2158
      %v2160 = vshrl.u32 %v1523, 16
      %v2162 = vrot.slane %v2160, 4
      %v2163 = vor.u32 %v2162, %v2158
      %v2164 = vrot.slane %v2163, 4
      %v2166 = vshll.u32 %v1524, 16
      %v2168 = vrot.slane %v2166, 5
      %v2169 = vsel %vm262, %v2164, %v2168
      %v2171 = vshrl.u32 %v1525, 16
      %v2173 = vrot.slane %v2171, 4
      %v2174 = vshll.u32 %v1525, 16
      %v2176 = vrot.slane %v2174, 5
      %v2177 = vor.u32 %v2173, %v2176
      %v2178 = vrot.slane %v2177, 4
      %v2180 = vshll.u32 %v1526, 16
      %v2182 = vrot.slane %v2180, 5
      %v2183 = vsel %vm262, %v2178, %v2182
      %v2184 = vshrl.u32 %v1526, 16
      %v2186 = vrot.slane %v2184, 4
      %v2187 = vor.u32 %v2186, %v2182
      %v2188 = vrot.slane %v2187, 4
      %v2190 = vshll.u32 %v1527, 16
      %v2192 = vrot.slane %v2190, 5
      %v2193 = vsel %vm262, %v2188, %v2192
      %s2194 = scalar_lea.vmem %s1, 256
      %v2195 = vld [vmem:[%s2194] sm:$0xf]
      %v2196 = vld [vmem:[%s2194 + $0x4] sm:$0xf]
      %v2197 = vld [vmem:[%s2194 + $0x8] sm:$0xf]
      %v2198 = vld [vmem:[%s2194 + $0xc] sm:$0xf]
      %v2199 = vld [vmem:[%s2194 + $0x10] sm:$0xf]
      %v2200 = vld [vmem:[%s2194 + $0x14] sm:$0xf]
      %v2201 = vld [vmem:[%s2194 + $0x18] sm:$0xf]
      %v2202 = vld [vmem:[%s2194 + $0x1c] sm:$0xf]
      %v2203 = vld [vmem:[%s2194 + $0x20] sm:$0xf]
      %v2204 = vld [vmem:[%s2194 + $0x24] sm:$0xf]
      %v2205 = vld [vmem:[%s2194 + $0x28] sm:$0xf]
      %v2206 = vld [vmem:[%s2194 + $0x2c] sm:$0xf]
      %v2207 = vld [vmem:[%s2194 + $0x30] sm:$0xf]
      %v2208 = vld [vmem:[%s2194 + $0x34] sm:$0xf]
      %v2209 = vld [vmem:[%s2194 + $0x38] sm:$0xf]
      %v2210 = vld [vmem:[%s2194 + $0x3c] sm:$0xf]
      %v2211 = vunpack.c.l.b16 %v1823
      %v2212 = vunpack.c.l.b16 %v1833
      %v2213 = vunpack.c.l.b16 %v1847
      %v2214 = vunpack.c.l.b16 %v1857
      %v2215 = vunpack.c.l.b16 %v1871
      %v2216 = vunpack.c.l.b16 %v1881
      %v2217 = vunpack.c.l.b16 %v1895
      %v2218 = vunpack.c.l.b16 %v1905
      %v2219 = vunpack.c.l.b16 %v1919
      %v2220 = vunpack.c.l.b16 %v1929
      %v2221 = vunpack.c.l.b16 %v1943
      %v2222 = vunpack.c.l.b16 %v1953
      %v2223 = vunpack.c.l.b16 %v1967
      %v2224 = vunpack.c.l.b16 %v1977
      %v2225 = vunpack.c.l.b16 %v1991
      %v2226 = vunpack.c.l.b16 %v2001
      %v2227 = vunpack.c.l.b16 %v2015
      %v2228 = vunpack.c.l.b16 %v2025
      %v2229 = vunpack.c.l.b16 %v2039
      %v2230 = vunpack.c.l.b16 %v2049
      %v2231 = vunpack.c.l.b16 %v2063
      %v2232 = vunpack.c.l.b16 %v2073
      %v2233 = vunpack.c.l.b16 %v2087
      %v2234 = vunpack.c.l.b16 %v2097
      %v2235 = vunpack.c.l.b16 %v2111
      %v2236 = vunpack.c.l.b16 %v2121
      %v2237 = vunpack.c.l.b16 %v2135
      %v2238 = vunpack.c.l.b16 %v2145
      %v2239 = vunpack.c.l.b16 %v2159
      %v2240 = vunpack.c.l.b16 %v2169
      %v2241 = vunpack.c.l.b16 %v2183
      %v2242 = vunpack.c.l.b16 %v2193
      %v2243 = vpack.c.b16 %v2212, %v2211
      %v2244 = vpack.c.b16 %v2214, %v2213
      %v2245 = vpack.c.b16 %v2216, %v2215
      %v2246 = vpack.c.b16 %v2218, %v2217
      %v2247 = vpack.c.b16 %v2220, %v2219
      %v2248 = vpack.c.b16 %v2222, %v2221
      %v2249 = vpack.c.b16 %v2224, %v2223
      %v2250 = vpack.c.b16 %v2226, %v2225
      %v2251 = vpack.c.b16 %v2228, %v2227
      %v2252 = vpack.c.b16 %v2230, %v2229
      %v2253 = vpack.c.b16 %v2232, %v2231
      %v2254 = vpack.c.b16 %v2234, %v2233
      %v2255 = vpack.c.b16 %v2236, %v2235
      %v2256 = vpack.c.b16 %v2238, %v2237
      %v2257 = vpack.c.b16 %v2240, %v2239
      %v2258 = vpack.c.b16 %v2242, %v2241
      %v2291 = vunpack.c.l.b16 %v2195
      %v2292 = vunpack.c.l.b16 %v2196
      %v2293 = vunpack.c.l.b16 %v2197
      %v2294 = vunpack.c.l.b16 %v2198
      %v2295 = vunpack.c.l.b16 %v2199
      %v2296 = vunpack.c.l.b16 %v2200
      %v2297 = vunpack.c.l.b16 %v2201
      %v2298 = vunpack.c.l.b16 %v2202
      %v2299 = vunpack.c.l.b16 %v2203
      %v2300 = vunpack.c.l.b16 %v2204
      %v2301 = vunpack.c.l.b16 %v2205
      %v2302 = vunpack.c.l.b16 %v2206
      %v2303 = vunpack.c.l.b16 %v2207
      %v2304 = vunpack.c.l.b16 %v2208
      %v2305 = vunpack.c.l.b16 %v2209
      %v2306 = vunpack.c.l.b16 %v2210
      %v2307 = vpack.c.b16 %v2292, %v2291
      %v2308 = vpack.c.b16 %v2294, %v2293
      %v2309 = vpack.c.b16 %v2296, %v2295
      %v2310 = vpack.c.b16 %v2298, %v2297
      %v2311 = vpack.c.b16 %v2300, %v2299
      %v2312 = vpack.c.b16 %v2302, %v2301
      %v2313 = vpack.c.b16 %v2304, %v2303
      %v2314 = vpack.c.b16 %v2306, %v2305
      %2323 = vmatpush.bf16.msra.mxu0 %v2314
      %2324 = vmatpush.bf16.msra.mxu0 %v2313
      %2325 = vmatpush.bf16.msra.mxu0 %v2312
      %2326 = vmatpush.bf16.msra.mxu0 %v2311
      %2327 = vmatpush.bf16.msra.mxu0 %v2310
      %2328 = vmatpush.bf16.msra.mxu0 %v2309
      %2329 = vmatpush.bf16.msra.mxu0 %v2308
      %2330 = vmatpush.bf16.msra.mxu0 %v2307
      %2331 = vmatmul.bf16.gmra.mxu0 %v2243
      %v2332 = vpop.f32.mrf.mxu0
      %v2333 = vadd.f32 0.0, %v2332
      %v2334 = vpop.f32.mrf.mxu0
      %v2335 = vadd.f32 0.0, %v2334
      %2336 = vmatmul.bf16.gmra.mxu0 %v2244
      %v2337 = vpop.f32.mrf.mxu0
      %v2338 = vadd.f32 0.0, %v2337
      %v2339 = vpop.f32.mrf.mxu0
      %v2340 = vadd.f32 0.0, %v2339
      %2341 = vmatmul.bf16.gmra.mxu0 %v2245
      %v2342 = vpop.f32.mrf.mxu0
      %v2343 = vadd.f32 0.0, %v2342
      %v2344 = vpop.f32.mrf.mxu0
      %v2345 = vadd.f32 0.0, %v2344
      %2346 = vmatmul.bf16.gmra.mxu0 %v2246
      %v2347 = vpop.f32.mrf.mxu0
      %v2348 = vadd.f32 0.0, %v2347
      %v2349 = vpop.f32.mrf.mxu0
      %v2350 = vadd.f32 0.0, %v2349
      %2351 = vmatmul.bf16.gmra.mxu0 %v2247
      %v2352 = vpop.f32.mrf.mxu0
      %v2353 = vadd.f32 0.0, %v2352
      %v2354 = vpop.f32.mrf.mxu0
      %v2355 = vadd.f32 0.0, %v2354
      %2356 = vmatmul.bf16.gmra.mxu0 %v2248
      %v2357 = vpop.f32.mrf.mxu0
      %v2358 = vadd.f32 0.0, %v2357
      %v2359 = vpop.f32.mrf.mxu0
      %v2360 = vadd.f32 0.0, %v2359
      %2361 = vmatmul.bf16.gmra.mxu0 %v2249
      %v2362 = vpop.f32.mrf.mxu0
      %v2363 = vadd.f32 0.0, %v2362
      %v2364 = vpop.f32.mrf.mxu0
      %v2365 = vadd.f32 0.0, %v2364
      %2366 = vmatmul.bf16.gmra.mxu0 %v2250
      %v2367 = vpop.f32.mrf.mxu0
      %v2368 = vadd.f32 0.0, %v2367
      %v2369 = vpop.f32.mrf.mxu0
      %v2370 = vadd.f32 0.0, %v2369
      %2371 = vmatmul.bf16.gmra.mxu0 %v2251
      %v2372 = vpop.f32.mrf.mxu0
      %v2373 = vadd.f32 0.0, %v2372
      %v2374 = vpop.f32.mrf.mxu0
      %v2375 = vadd.f32 0.0, %v2374
      %2376 = vmatmul.bf16.gmra.mxu0 %v2252
      %v2377 = vpop.f32.mrf.mxu0
      %v2378 = vadd.f32 0.0, %v2377
      %v2379 = vpop.f32.mrf.mxu0
      %v2380 = vadd.f32 0.0, %v2379
      %2381 = vmatmul.bf16.gmra.mxu0 %v2253
      %v2382 = vpop.f32.mrf.mxu0
      %v2383 = vadd.f32 0.0, %v2382
      %v2384 = vpop.f32.mrf.mxu0
      %v2385 = vadd.f32 0.0, %v2384
      %2386 = vmatmul.bf16.gmra.mxu0 %v2254
      %v2387 = vpop.f32.mrf.mxu0
      %v2388 = vadd.f32 0.0, %v2387
      %v2389 = vpop.f32.mrf.mxu0
      %v2390 = vadd.f32 0.0, %v2389
      %2391 = vmatmul.bf16.gmra.mxu0 %v2255
      %v2392 = vpop.f32.mrf.mxu0
      %v2393 = vadd.f32 0.0, %v2392
      %v2394 = vpop.f32.mrf.mxu0
      %v2395 = vadd.f32 0.0, %v2394
      %2396 = vmatmul.bf16.gmra.mxu0 %v2256
      %v2397 = vpop.f32.mrf.mxu0
      %v2398 = vadd.f32 0.0, %v2397
      %v2399 = vpop.f32.mrf.mxu0
      %v2400 = vadd.f32 0.0, %v2399
      %2401 = vmatmul.bf16.gmra.mxu0 %v2257
      %v2402 = vpop.f32.mrf.mxu0
      %v2403 = vadd.f32 0.0, %v2402
      %v2404 = vpop.f32.mrf.mxu0
      %v2405 = vadd.f32 0.0, %v2404
      %2406 = vmatmul.bf16.gmra.mxu0 %v2258
      %v2407 = vpop.f32.mrf.mxu0
      %v2408 = vadd.f32 0.0, %v2407
      %v2409 = vpop.f32.mrf.mxu0
      %v2410 = vadd.f32 0.0, %v2409
      %2411 = vdwg.mxu0
      %v2412 = vadd.f32 %v1778, %v2333
      %v2413 = vadd.f32 %v1779, %v2335
      %v2414 = vadd.f32 %v1780, %v2338
      %v2415 = vadd.f32 %v1781, %v2340
      %v2416 = vadd.f32 %v1782, %v2343
      %v2417 = vadd.f32 %v1783, %v2345
      %v2418 = vadd.f32 %v1784, %v2348
      %v2419 = vadd.f32 %v1785, %v2350
      %v2420 = vadd.f32 %v1786, %v2353
      %v2421 = vadd.f32 %v1787, %v2355
      %v2422 = vadd.f32 %v1788, %v2358
      %v2423 = vadd.f32 %v1789, %v2360
      %v2424 = vadd.f32 %v1790, %v2363
      %v2425 = vadd.f32 %v1791, %v2365
      %v2426 = vadd.f32 %v1792, %v2368
      %v2427 = vadd.f32 %v1793, %v2370
      %v2428 = vadd.f32 %v1794, %v2373
      %v2429 = vadd.f32 %v1795, %v2375
      %v2430 = vadd.f32 %v1796, %v2378
      %v2431 = vadd.f32 %v1797, %v2380
      %v2432 = vadd.f32 %v1798, %v2383
      %v2433 = vadd.f32 %v1799, %v2385
      %v2434 = vadd.f32 %v1800, %v2388
      %v2435 = vadd.f32 %v1801, %v2390
      %v2436 = vadd.f32 %v1802, %v2393
      %v2437 = vadd.f32 %v1803, %v2395
      %v2438 = vadd.f32 %v1804, %v2398
      %v2439 = vadd.f32 %v1805, %v2400
      %v2440 = vadd.f32 %v1806, %v2403
      %v2441 = vadd.f32 %v1807, %v2405
      %v2442 = vadd.f32 %v1808, %v2408
      %v2443 = vadd.f32 %v1809, %v2410
      %v2460 = vrot.slane %v1480, 5
      %v2461 = vrot.slane %v2460, 4
      %v2462 = vrot.slane %v1481, 5
      %v2463 = vsel %vm1116, %v2461, %v2462
      %v2464 = vrot.slane %v2462, 4
      %v2465 = vrot.slane %v1482, 5
      %v2466 = vsel %vm1116, %v2464, %v2465
      %v2467 = vrot.slane %v1483, 5
      %v2468 = vrot.slane %v2467, 4
      %v2469 = vrot.slane %v1484, 5
      %v2470 = vsel %vm1116, %v2468, %v2469
      %v2471 = vrot.slane %v2469, 4
      %v2472 = vrot.slane %v1485, 5
      %v2473 = vsel %vm1116, %v2471, %v2472
      %v2474 = vrot.slane %v1486, 5
      %v2475 = vrot.slane %v2474, 4
      %v2476 = vrot.slane %v1487, 5
      %v2477 = vsel %vm1116, %v2475, %v2476
      %v2478 = vrot.slane %v2476, 4
      %v2479 = vrot.slane %v1488, 5
      %v2480 = vsel %vm1116, %v2478, %v2479
      %v2481 = vrot.slane %v1489, 5
      %v2482 = vrot.slane %v2481, 4
      %v2483 = vrot.slane %v1490, 5
      %v2484 = vsel %vm1116, %v2482, %v2483
      %v2485 = vrot.slane %v2483, 4
      %v2486 = vrot.slane %v1491, 5
      %v2487 = vsel %vm1116, %v2485, %v2486
      %v2488 = vrot.slane %v1492, 5
      %v2489 = vrot.slane %v2488, 4
      %v2490 = vrot.slane %v1493, 5
      %v2491 = vsel %vm1116, %v2489, %v2490
      %v2492 = vrot.slane %v2490, 4
      %v2493 = vrot.slane %v1494, 5
      %v2494 = vsel %vm1116, %v2492, %v2493
      %v2495 = vrot.slane %v1495, 5
      %v2496 = vrot.slane %v2495, 4
      %v2497 = vrot.slane %v1496, 5
      %v2498 = vsel %vm1116, %v2496, %v2497
      %v2499 = vrot.slane %v2497, 4
      %v2500 = vrot.slane %v1497, 5
      %v2501 = vsel %vm1116, %v2499, %v2500
      %v2502 = vrot.slane %v1498, 5
      %v2503 = vrot.slane %v2502, 4
      %v2504 = vrot.slane %v1499, 5
      %v2505 = vsel %vm1116, %v2503, %v2504
      %v2506 = vrot.slane %v2504, 4
      %v2507 = vrot.slane %v1500, 5
      %v2508 = vsel %vm1116, %v2506, %v2507
      %v2509 = vrot.slane %v1501, 5
      %v2510 = vrot.slane %v2509, 4
      %v2511 = vrot.slane %v1502, 5
      %v2512 = vsel %vm1116, %v2510, %v2511
      %v2513 = vrot.slane %v2511, 4
      %v2514 = vrot.slane %v1503, 5
      %v2515 = vsel %vm1116, %v2513, %v2514
      %v2516 = vrot.slane %v1504, 5
      %v2517 = vrot.slane %v2516, 4
      %v2518 = vrot.slane %v1505, 5
      %v2519 = vsel %vm1116, %v2517, %v2518
      %v2520 = vrot.slane %v2518, 4
      %v2521 = vrot.slane %v1506, 5
      %v2522 = vsel %vm1116, %v2520, %v2521
      %v2523 = vrot.slane %v1507, 5
      %v2524 = vrot.slane %v2523, 4
      %v2525 = vrot.slane %v1508, 5
      %v2526 = vsel %vm1116, %v2524, %v2525
      %v2527 = vrot.slane %v2525, 4
      %v2528 = vrot.slane %v1509, 5
      %v2529 = vsel %vm1116, %v2527, %v2528
      %v2530 = vrot.slane %v1510, 5
      %v2531 = vrot.slane %v2530, 4
      %v2532 = vrot.slane %v1511, 5
      %v2533 = vsel %vm1116, %v2531, %v2532
      %v2534 = vrot.slane %v2532, 4
      %v2535 = vrot.slane %v1512, 5
      %v2536 = vsel %vm1116, %v2534, %v2535
      %v2537 = vrot.slane %v1513, 5
      %v2538 = vrot.slane %v2537, 4
      %v2539 = vrot.slane %v1514, 5
      %v2540 = vsel %vm1116, %v2538, %v2539
      %v2541 = vrot.slane %v2539, 4
      %v2542 = vrot.slane %v1515, 5
      %v2543 = vsel %vm1116, %v2541, %v2542
      %v2544 = vrot.slane %v1516, 5
      %v2545 = vrot.slane %v2544, 4
      %v2546 = vrot.slane %v1517, 5
      %v2547 = vsel %vm1116, %v2545, %v2546
      %v2548 = vrot.slane %v2546, 4
      %v2549 = vrot.slane %v1518, 5
      %v2550 = vsel %vm1116, %v2548, %v2549
      %v2551 = vrot.slane %v1519, 5
      %v2552 = vrot.slane %v2551, 4
      %v2553 = vrot.slane %v1520, 5
      %v2554 = vsel %vm1116, %v2552, %v2553
      %v2555 = vrot.slane %v2553, 4
      %v2556 = vrot.slane %v1521, 5
      %v2557 = vsel %vm1116, %v2555, %v2556
      %v2558 = vrot.slane %v1522, 5
      %v2559 = vrot.slane %v2558, 4
      %v2560 = vrot.slane %v1523, 5
      %v2561 = vsel %vm1116, %v2559, %v2560
      %v2562 = vrot.slane %v2560, 4
      %v2563 = vrot.slane %v1524, 5
      %v2564 = vsel %vm1116, %v2562, %v2563
      %v2565 = vrot.slane %v1525, 5
      %v2566 = vrot.slane %v2565, 4
      %v2567 = vrot.slane %v1526, 5
      %v2568 = vsel %vm1116, %v2566, %v2567
      %v2569 = vrot.slane %v2567, 4
      %v2570 = vrot.slane %v1527, 5
      %v2571 = vsel %vm1116, %v2569, %v2570
      %s2572 = scalar_lea.vmem %s1, 320
      %v2573 = vld [vmem:[%s2572] sm:$0xf]
      %v2574 = vld [vmem:[%s2572 + $0x4] sm:$0xf]
      %v2575 = vld [vmem:[%s2572 + $0x8] sm:$0xf]
      %v2576 = vld [vmem:[%s2572 + $0xc] sm:$0xf]
      %v2577 = vld [vmem:[%s2572 + $0x10] sm:$0xf]
      %v2578 = vld [vmem:[%s2572 + $0x14] sm:$0xf]
      %v2579 = vld [vmem:[%s2572 + $0x18] sm:$0xf]
      %v2580 = vld [vmem:[%s2572 + $0x1c] sm:$0xf]
      %v2581 = vld [vmem:[%s2572 + $0x20] sm:$0xf]
      %v2582 = vld [vmem:[%s2572 + $0x24] sm:$0xf]
      %v2583 = vld [vmem:[%s2572 + $0x28] sm:$0xf]
      %v2584 = vld [vmem:[%s2572 + $0x2c] sm:$0xf]
      %v2585 = vld [vmem:[%s2572 + $0x30] sm:$0xf]
      %v2586 = vld [vmem:[%s2572 + $0x34] sm:$0xf]
      %v2587 = vld [vmem:[%s2572 + $0x38] sm:$0xf]
      %v2588 = vld [vmem:[%s2572 + $0x3c] sm:$0xf]
      %v2589 = vunpack.c.l.b16 %v2463
      %v2590 = vunpack.c.l.b16 %v2466
      %v2591 = vunpack.c.l.b16 %v2470
      %v2592 = vunpack.c.l.b16 %v2473
      %v2593 = vunpack.c.l.b16 %v2477
      %v2594 = vunpack.c.l.b16 %v2480
      %v2595 = vunpack.c.l.b16 %v2484
      %v2596 = vunpack.c.l.b16 %v2487
      %v2597 = vunpack.c.l.b16 %v2491
      %v2598 = vunpack.c.l.b16 %v2494
      %v2599 = vunpack.c.l.b16 %v2498
      %v2600 = vunpack.c.l.b16 %v2501
      %v2601 = vunpack.c.l.b16 %v2505
      %v2602 = vunpack.c.l.b16 %v2508
      %v2603 = vunpack.c.l.b16 %v2512
      %v2604 = vunpack.c.l.b16 %v2515
      %v2605 = vunpack.c.l.b16 %v2519
      %v2606 = vunpack.c.l.b16 %v2522
      %v2607 = vunpack.c.l.b16 %v2526
      %v2608 = vunpack.c.l.b16 %v2529
      %v2609 = vunpack.c.l.b16 %v2533
      %v2610 = vunpack.c.l.b16 %v2536
      %v2611 = vunpack.c.l.b16 %v2540
      %v2612 = vunpack.c.l.b16 %v2543
      %v2613 = vunpack.c.l.b16 %v2547
      %v2614 = vunpack.c.l.b16 %v2550
      %v2615 = vunpack.c.l.b16 %v2554
      %v2616 = vunpack.c.l.b16 %v2557
      %v2617 = vunpack.c.l.b16 %v2561
      %v2618 = vunpack.c.l.b16 %v2564
      %v2619 = vunpack.c.l.b16 %v2568
      %v2620 = vunpack.c.l.b16 %v2571
      %v2621 = vpack.c.b16 %v2590, %v2589
      %v2622 = vpack.c.b16 %v2592, %v2591
      %v2623 = vpack.c.b16 %v2594, %v2593
      %v2624 = vpack.c.b16 %v2596, %v2595
      %v2625 = vpack.c.b16 %v2598, %v2597
      %v2626 = vpack.c.b16 %v2600, %v2599
      %v2627 = vpack.c.b16 %v2602, %v2601
      %v2628 = vpack.c.b16 %v2604, %v2603
      %v2629 = vpack.c.b16 %v2606, %v2605
      %v2630 = vpack.c.b16 %v2608, %v2607
      %v2631 = vpack.c.b16 %v2610, %v2609
      %v2632 = vpack.c.b16 %v2612, %v2611
      %v2633 = vpack.c.b16 %v2614, %v2613
      %v2634 = vpack.c.b16 %v2616, %v2615
      %v2635 = vpack.c.b16 %v2618, %v2617
      %v2636 = vpack.c.b16 %v2620, %v2619
      %v2669 = vunpack.c.l.b16 %v2573
      %v2670 = vunpack.c.l.b16 %v2574
      %v2671 = vunpack.c.l.b16 %v2575
      %v2672 = vunpack.c.l.b16 %v2576
      %v2673 = vunpack.c.l.b16 %v2577
      %v2674 = vunpack.c.l.b16 %v2578
      %v2675 = vunpack.c.l.b16 %v2579
      %v2676 = vunpack.c.l.b16 %v2580
      %v2677 = vunpack.c.l.b16 %v2581
      %v2678 = vunpack.c.l.b16 %v2582
      %v2679 = vunpack.c.l.b16 %v2583
      %v2680 = vunpack.c.l.b16 %v2584
      %v2681 = vunpack.c.l.b16 %v2585
      %v2682 = vunpack.c.l.b16 %v2586
      %v2683 = vunpack.c.l.b16 %v2587
      %v2684 = vunpack.c.l.b16 %v2588
      %v2685 = vpack.c.b16 %v2670, %v2669
      %v2686 = vpack.c.b16 %v2672, %v2671
      %v2687 = vpack.c.b16 %v2674, %v2673
      %v2688 = vpack.c.b16 %v2676, %v2675
      %v2689 = vpack.c.b16 %v2678, %v2677
      %v2690 = vpack.c.b16 %v2680, %v2679
      %v2691 = vpack.c.b16 %v2682, %v2681
      %v2692 = vpack.c.b16 %v2684, %v2683
      %2701 = vmatpush.bf16.msra.mxu0 %v2692
      %2702 = vmatpush.bf16.msra.mxu0 %v2691
      %2703 = vmatpush.bf16.msra.mxu0 %v2690
      %2704 = vmatpush.bf16.msra.mxu0 %v2689
      %2705 = vmatpush.bf16.msra.mxu0 %v2688
      %2706 = vmatpush.bf16.msra.mxu0 %v2687
      %2707 = vmatpush.bf16.msra.mxu0 %v2686
      %2708 = vmatpush.bf16.msra.mxu0 %v2685
      %2709 = vmatmul.bf16.gmra.mxu0 %v2621
      %v2710 = vpop.f32.mrf.mxu0
      %v2711 = vadd.f32 0.0, %v2710
      %v2712 = vpop.f32.mrf.mxu0
      %v2713 = vadd.f32 0.0, %v2712
      %2714 = vmatmul.bf16.gmra.mxu0 %v2622
      %v2715 = vpop.f32.mrf.mxu0
      %v2716 = vadd.f32 0.0, %v2715
      %v2717 = vpop.f32.mrf.mxu0
      %v2718 = vadd.f32 0.0, %v2717
      %2719 = vmatmul.bf16.gmra.mxu0 %v2623
      %v2720 = vpop.f32.mrf.mxu0
      %v2721 = vadd.f32 0.0, %v2720
      %v2722 = vpop.f32.mrf.mxu0
      %v2723 = vadd.f32 0.0, %v2722
      %2724 = vmatmul.bf16.gmra.mxu0 %v2624
      %v2725 = vpop.f32.mrf.mxu0
      %v2726 = vadd.f32 0.0, %v2725
      %v2727 = vpop.f32.mrf.mxu0
      %v2728 = vadd.f32 0.0, %v2727
      %2729 = vmatmul.bf16.gmra.mxu0 %v2625
      %v2730 = vpop.f32.mrf.mxu0
      %v2731 = vadd.f32 0.0, %v2730
      %v2732 = vpop.f32.mrf.mxu0
      %v2733 = vadd.f32 0.0, %v2732
      %2734 = vmatmul.bf16.gmra.mxu0 %v2626
      %v2735 = vpop.f32.mrf.mxu0
      %v2736 = vadd.f32 0.0, %v2735
      %v2737 = vpop.f32.mrf.mxu0
      %v2738 = vadd.f32 0.0, %v2737
      %2739 = vmatmul.bf16.gmra.mxu0 %v2627
      %v2740 = vpop.f32.mrf.mxu0
      %v2741 = vadd.f32 0.0, %v2740
      %v2742 = vpop.f32.mrf.mxu0
      %v2743 = vadd.f32 0.0, %v2742
      %2744 = vmatmul.bf16.gmra.mxu0 %v2628
      %v2745 = vpop.f32.mrf.mxu0
      %v2746 = vadd.f32 0.0, %v2745
      %v2747 = vpop.f32.mrf.mxu0
      %v2748 = vadd.f32 0.0, %v2747
      %2749 = vmatmul.bf16.gmra.mxu0 %v2629
      %v2750 = vpop.f32.mrf.mxu0
      %v2751 = vadd.f32 0.0, %v2750
      %v2752 = vpop.f32.mrf.mxu0
      %v2753 = vadd.f32 0.0, %v2752
      %2754 = vmatmul.bf16.gmra.mxu0 %v2630
      %v2755 = vpop.f32.mrf.mxu0
      %v2756 = vadd.f32 0.0, %v2755
      %v2757 = vpop.f32.mrf.mxu0
      %v2758 = vadd.f32 0.0, %v2757
      %2759 = vmatmul.bf16.gmra.mxu0 %v2631
      %v2760 = vpop.f32.mrf.mxu0
      %v2761 = vadd.f32 0.0, %v2760
      %v2762 = vpop.f32.mrf.mxu0
      %v2763 = vadd.f32 0.0, %v2762
      %2764 = vmatmul.bf16.gmra.mxu0 %v2632
      %v2765 = vpop.f32.mrf.mxu0
      %v2766 = vadd.f32 0.0, %v2765
      %v2767 = vpop.f32.mrf.mxu0
      %v2768 = vadd.f32 0.0, %v2767
      %2769 = vmatmul.bf16.gmra.mxu0 %v2633
      %v2770 = vpop.f32.mrf.mxu0
      %v2771 = vadd.f32 0.0, %v2770
      %v2772 = vpop.f32.mrf.mxu0
      %v2773 = vadd.f32 0.0, %v2772
      %2774 = vmatmul.bf16.gmra.mxu0 %v2634
      %v2775 = vpop.f32.mrf.mxu0
      %v2776 = vadd.f32 0.0, %v2775
      %v2777 = vpop.f32.mrf.mxu0
      %v2778 = vadd.f32 0.0, %v2777
      %2779 = vmatmul.bf16.gmra.mxu0 %v2635
      %v2780 = vpop.f32.mrf.mxu0
      %v2781 = vadd.f32 0.0, %v2780
      %v2782 = vpop.f32.mrf.mxu0
      %v2783 = vadd.f32 0.0, %v2782
      %2784 = vmatmul.bf16.gmra.mxu0 %v2636
      %v2785 = vpop.f32.mrf.mxu0
      %v2786 = vadd.f32 0.0, %v2785
      %v2787 = vpop.f32.mrf.mxu0
      %v2788 = vadd.f32 0.0, %v2787
      %2789 = vdwg.mxu0
      %v2790 = vadd.f32 %v2412, %v2711
      %v2791 = vadd.f32 %v2413, %v2713
      %v2792 = vadd.f32 %v2414, %v2716
      %v2793 = vadd.f32 %v2415, %v2718
      %v2794 = vadd.f32 %v2416, %v2721
      %v2795 = vadd.f32 %v2417, %v2723
      %v2796 = vadd.f32 %v2418, %v2726
      %v2797 = vadd.f32 %v2419, %v2728
      %v2798 = vadd.f32 %v2420, %v2731
      %v2799 = vadd.f32 %v2421, %v2733
      %v2800 = vadd.f32 %v2422, %v2736
      %v2801 = vadd.f32 %v2423, %v2738
      %v2802 = vadd.f32 %v2424, %v2741
      %v2803 = vadd.f32 %v2425, %v2743
      %v2804 = vadd.f32 %v2426, %v2746
      %v2805 = vadd.f32 %v2427, %v2748
      %v2806 = vadd.f32 %v2428, %v2751
      %v2807 = vadd.f32 %v2429, %v2753
      %v2808 = vadd.f32 %v2430, %v2756
      %v2809 = vadd.f32 %v2431, %v2758
      %v2810 = vadd.f32 %v2432, %v2761
      %v2811 = vadd.f32 %v2433, %v2763
      %v2812 = vadd.f32 %v2434, %v2766
      %v2813 = vadd.f32 %v2435, %v2768
      %v2814 = vadd.f32 %v2436, %v2771
      %v2815 = vadd.f32 %v2437, %v2773
      %v2816 = vadd.f32 %v2438, %v2776
      %v2817 = vadd.f32 %v2439, %v2778
      %v2818 = vadd.f32 %v2440, %v2781
      %v2819 = vadd.f32 %v2441, %v2783
      %v2820 = vadd.f32 %v2442, %v2786
      %v2821 = vadd.f32 %v2443, %v2788
      %s2822 = scalar_lea.vmem %s184, 24
      %v2823 = vld [vmem:[%s2822] sm:$0xf]
      %v2824 = vld [vmem:[%s2822 + $0x4] sm:$0xf]
      %v2825 = vld [vmem:[%s2822 + $0x8] sm:$0x1]
      %v2826 = vld [vmem:[%s2822 + $0xc] sm:$0xf]
      %v2827 = vld [vmem:[%s2822 + $0x10] sm:$0xf]
      %v2828 = vld [vmem:[%s2822 + $0x14] sm:$0x1]
      %v2829 = vld [vmem:[%s2822 + $0x18] sm:$0xf]
      %v2830 = vld [vmem:[%s2822 + $0x1c] sm:$0xf]
      %v2831 = vld [vmem:[%s2822 + $0x20] sm:$0x1]
      %v2832 = vld [vmem:[%s2822 + $0x24] sm:$0xf]
      %v2833 = vld [vmem:[%s2822 + $0x28] sm:$0xf]
      %v2834 = vld [vmem:[%s2822 + $0x2c] sm:$0x1]
      %v2835 = vld [vmem:[%s2822 + $0x30] sm:$0xf]
      %v2836 = vld [vmem:[%s2822 + $0x34] sm:$0xf]
      %v2837 = vld [vmem:[%s2822 + $0x38] sm:$0x1]
      %v2838 = vld [vmem:[%s2822 + $0x3c] sm:$0xf]
      %v2839 = vld [vmem:[%s2822 + $0x40] sm:$0xf]
      %v2840 = vld [vmem:[%s2822 + $0x44] sm:$0x1]
      %v2841 = vld [vmem:[%s2822 + $0x48] sm:$0xf]
      %v2842 = vld [vmem:[%s2822 + $0x4c] sm:$0xf]
      %v2843 = vld [vmem:[%s2822 + $0x50] sm:$0x1]
      %v2844 = vld [vmem:[%s2822 + $0x54] sm:$0xf]
      %v2845 = vld [vmem:[%s2822 + $0x58] sm:$0xf]
      %v2846 = vld [vmem:[%s2822 + $0x5c] sm:$0x1]
      %v2847 = vld [vmem:[%s2822 + $0x60] sm:$0xf]
      %v2848 = vld [vmem:[%s2822 + $0x64] sm:$0xf]
      %v2849 = vld [vmem:[%s2822 + $0x68] sm:$0x1]
      %v2850 = vld [vmem:[%s2822 + $0x6c] sm:$0xf]
      %v2851 = vld [vmem:[%s2822 + $0x70] sm:$0xf]
      %v2852 = vld [vmem:[%s2822 + $0x74] sm:$0x1]
      %v2853 = vld [vmem:[%s2822 + $0x78] sm:$0xf]
      %v2854 = vld [vmem:[%s2822 + $0x7c] sm:$0xf]
      %v2855 = vld [vmem:[%s2822 + $0x80] sm:$0x1]
      %v2856 = vld [vmem:[%s2822 + $0x84] sm:$0xf]
      %v2857 = vld [vmem:[%s2822 + $0x88] sm:$0xf]
      %v2858 = vld [vmem:[%s2822 + $0x8c] sm:$0x1]
      %v2859 = vld [vmem:[%s2822 + $0x90] sm:$0xf]
      %v2860 = vld [vmem:[%s2822 + $0x94] sm:$0xf]
      %v2861 = vld [vmem:[%s2822 + $0x98] sm:$0x1]
      %v2862 = vld [vmem:[%s2822 + $0x9c] sm:$0xf]
      %v2863 = vld [vmem:[%s2822 + $0xa0] sm:$0xf]
      %v2864 = vld [vmem:[%s2822 + $0xa4] sm:$0x1]
      %v2865 = vld [vmem:[%s2822 + $0xa8] sm:$0xf]
      %v2866 = vld [vmem:[%s2822 + $0xac] sm:$0xf]
      %v2867 = vld [vmem:[%s2822 + $0xb0] sm:$0x1]
      %v2868 = vld [vmem:[%s2822 + $0xb4] sm:$0xf]
      %v2869 = vld [vmem:[%s2822 + $0xb8] sm:$0xf]
      %v2870 = vld [vmem:[%s2822 + $0xbc] sm:$0x1]
      %s2871 = scalar_lea.vmem %s1, 384
      %v2872 = vld [vmem:[%s2871] sm:$0xf]
      %v2873 = vld [vmem:[%s2871 + $0x4] sm:$0xf]
      %v2874 = vld [vmem:[%s2871 + $0x8] sm:$0xf]
      %v2875 = vld [vmem:[%s2871 + $0xc] sm:$0xf]
      %v2876 = vld [vmem:[%s2871 + $0x10] sm:$0xf]
      %v2877 = vld [vmem:[%s2871 + $0x14] sm:$0xf]
      %v2878 = vld [vmem:[%s2871 + $0x18] sm:$0xf]
      %v2879 = vld [vmem:[%s2871 + $0x1c] sm:$0xf]
      %v2880 = vld [vmem:[%s2871 + $0x20] sm:$0xf]
      %v2881 = vld [vmem:[%s2871 + $0x24] sm:$0xf]
      %v2882 = vld [vmem:[%s2871 + $0x28] sm:$0xf]
      %v2883 = vld [vmem:[%s2871 + $0x2c] sm:$0xf]
      %v2884 = vld [vmem:[%s2871 + $0x30] sm:$0xf]
      %v2885 = vld [vmem:[%s2871 + $0x34] sm:$0xf]
      %v2886 = vld [vmem:[%s2871 + $0x38] sm:$0xf]
      %v2887 = vld [vmem:[%s2871 + $0x3c] sm:$0xf]
      %v2920 = vunpack.c.l.b16 %v2823
      %v2921 = vunpack.c.l.b16 %v2824
      %v2922 = vunpack.c.l.b16 %v2826
      %v2923 = vunpack.c.l.b16 %v2827
      %v2924 = vunpack.c.l.b16 %v2829
      %v2925 = vunpack.c.l.b16 %v2830
      %v2926 = vunpack.c.l.b16 %v2832
      %v2927 = vunpack.c.l.b16 %v2833
      %v2928 = vunpack.c.l.b16 %v2835
      %v2929 = vunpack.c.l.b16 %v2836
      %v2930 = vunpack.c.l.b16 %v2838
      %v2931 = vunpack.c.l.b16 %v2839
      %v2932 = vunpack.c.l.b16 %v2841
      %v2933 = vunpack.c.l.b16 %v2842
      %v2934 = vunpack.c.l.b16 %v2844
      %v2935 = vunpack.c.l.b16 %v2845
      %v2936 = vunpack.c.l.b16 %v2847
      %v2937 = vunpack.c.l.b16 %v2848
      %v2938 = vunpack.c.l.b16 %v2850
      %v2939 = vunpack.c.l.b16 %v2851
      %v2940 = vunpack.c.l.b16 %v2853
      %v2941 = vunpack.c.l.b16 %v2854
      %v2942 = vunpack.c.l.b16 %v2856
      %v2943 = vunpack.c.l.b16 %v2857
      %v2944 = vunpack.c.l.b16 %v2859
      %v2945 = vunpack.c.l.b16 %v2860
      %v2946 = vunpack.c.l.b16 %v2862
      %v2947 = vunpack.c.l.b16 %v2863
      %v2948 = vunpack.c.l.b16 %v2865
      %v2949 = vunpack.c.l.b16 %v2866
      %v2950 = vunpack.c.l.b16 %v2868
      %v2951 = vunpack.c.l.b16 %v2869
      %v2952 = vpack.c.b16 %v2921, %v2920
      %v2953 = vpack.c.b16 %v2923, %v2922
      %v2954 = vpack.c.b16 %v2925, %v2924
      %v2955 = vpack.c.b16 %v2927, %v2926
      %v2956 = vpack.c.b16 %v2929, %v2928
      %v2957 = vpack.c.b16 %v2931, %v2930
      %v2958 = vpack.c.b16 %v2933, %v2932
      %v2959 = vpack.c.b16 %v2935, %v2934
      %v2960 = vpack.c.b16 %v2937, %v2936
      %v2961 = vpack.c.b16 %v2939, %v2938
      %v2962 = vpack.c.b16 %v2941, %v2940
      %v2963 = vpack.c.b16 %v2943, %v2942
      %v2964 = vpack.c.b16 %v2945, %v2944
      %v2965 = vpack.c.b16 %v2947, %v2946
      %v2966 = vpack.c.b16 %v2949, %v2948
      %v2967 = vpack.c.b16 %v2951, %v2950
      %v3000 = vunpack.c.l.b16 %v2872
      %v3001 = vunpack.c.l.b16 %v2873
      %v3002 = vunpack.c.l.b16 %v2874
      %v3003 = vunpack.c.l.b16 %v2875
      %v3004 = vunpack.c.l.b16 %v2876
      %v3005 = vunpack.c.l.b16 %v2877
      %v3006 = vunpack.c.l.b16 %v2878
      %v3007 = vunpack.c.l.b16 %v2879
      %v3008 = vunpack.c.l.b16 %v2880
      %v3009 = vunpack.c.l.b16 %v2881
      %v3010 = vunpack.c.l.b16 %v2882
      %v3011 = vunpack.c.l.b16 %v2883
      %v3012 = vunpack.c.l.b16 %v2884
      %v3013 = vunpack.c.l.b16 %v2885
      %v3014 = vunpack.c.l.b16 %v2886
      %v3015 = vunpack.c.l.b16 %v2887
      %v3016 = vpack.c.b16 %v3001, %v3000
      %v3017 = vpack.c.b16 %v3003, %v3002
      %v3018 = vpack.c.b16 %v3005, %v3004
      %v3019 = vpack.c.b16 %v3007, %v3006
      %v3020 = vpack.c.b16 %v3009, %v3008
      %v3021 = vpack.c.b16 %v3011, %v3010
      %v3022 = vpack.c.b16 %v3013, %v3012
      %v3023 = vpack.c.b16 %v3015, %v3014
      %3032 = vmatpush.bf16.msra.mxu0 %v3023
      %3033 = vmatpush.bf16.msra.mxu0 %v3022
      %3034 = vmatpush.bf16.msra.mxu0 %v3021
      %3035 = vmatpush.bf16.msra.mxu0 %v3020
      %3036 = vmatpush.bf16.msra.mxu0 %v3019
      %3037 = vmatpush.bf16.msra.mxu0 %v3018
      %3038 = vmatpush.bf16.msra.mxu0 %v3017
      %3039 = vmatpush.bf16.msra.mxu0 %v3016
      %3040 = vmatmul.bf16.gmra.mxu0 %v2952
      %v3041 = vpop.f32.mrf.mxu0
      %v3042 = vadd.f32 0.0, %v3041
      %v3043 = vpop.f32.mrf.mxu0
      %v3044 = vadd.f32 0.0, %v3043
      %3045 = vmatmul.bf16.gmra.mxu0 %v2953
      %v3046 = vpop.f32.mrf.mxu0
      %v3047 = vadd.f32 0.0, %v3046
      %v3048 = vpop.f32.mrf.mxu0
      %v3049 = vadd.f32 0.0, %v3048
      %3050 = vmatmul.bf16.gmra.mxu0 %v2954
      %v3051 = vpop.f32.mrf.mxu0
      %v3052 = vadd.f32 0.0, %v3051
      %v3053 = vpop.f32.mrf.mxu0
      %v3054 = vadd.f32 0.0, %v3053
      %3055 = vmatmul.bf16.gmra.mxu0 %v2955
      %v3056 = vpop.f32.mrf.mxu0
      %v3057 = vadd.f32 0.0, %v3056
      %v3058 = vpop.f32.mrf.mxu0
      %v3059 = vadd.f32 0.0, %v3058
      %3060 = vmatmul.bf16.gmra.mxu0 %v2956
      %v3061 = vpop.f32.mrf.mxu0
      %v3062 = vadd.f32 0.0, %v3061
      %v3063 = vpop.f32.mrf.mxu0
      %v3064 = vadd.f32 0.0, %v3063
      %3065 = vmatmul.bf16.gmra.mxu0 %v2957
      %v3066 = vpop.f32.mrf.mxu0
      %v3067 = vadd.f32 0.0, %v3066
      %v3068 = vpop.f32.mrf.mxu0
      %v3069 = vadd.f32 0.0, %v3068
      %3070 = vmatmul.bf16.gmra.mxu0 %v2958
      %v3071 = vpop.f32.mrf.mxu0
      %v3072 = vadd.f32 0.0, %v3071
      %v3073 = vpop.f32.mrf.mxu0
      %v3074 = vadd.f32 0.0, %v3073
      %3075 = vmatmul.bf16.gmra.mxu0 %v2959
      %v3076 = vpop.f32.mrf.mxu0
      %v3077 = vadd.f32 0.0, %v3076
      %v3078 = vpop.f32.mrf.mxu0
      %v3079 = vadd.f32 0.0, %v3078
      %3080 = vmatmul.bf16.gmra.mxu0 %v2960
      %v3081 = vpop.f32.mrf.mxu0
      %v3082 = vadd.f32 0.0, %v3081
      %v3083 = vpop.f32.mrf.mxu0
      %v3084 = vadd.f32 0.0, %v3083
      %3085 = vmatmul.bf16.gmra.mxu0 %v2961
      %v3086 = vpop.f32.mrf.mxu0
      %v3087 = vadd.f32 0.0, %v3086
      %v3088 = vpop.f32.mrf.mxu0
      %v3089 = vadd.f32 0.0, %v3088
      %3090 = vmatmul.bf16.gmra.mxu0 %v2962
      %v3091 = vpop.f32.mrf.mxu0
      %v3092 = vadd.f32 0.0, %v3091
      %v3093 = vpop.f32.mrf.mxu0
      %v3094 = vadd.f32 0.0, %v3093
      %3095 = vmatmul.bf16.gmra.mxu0 %v2963
      %v3096 = vpop.f32.mrf.mxu0
      %v3097 = vadd.f32 0.0, %v3096
      %v3098 = vpop.f32.mrf.mxu0
      %v3099 = vadd.f32 0.0, %v3098
      %3100 = vmatmul.bf16.gmra.mxu0 %v2964
      %v3101 = vpop.f32.mrf.mxu0
      %v3102 = vadd.f32 0.0, %v3101
      %v3103 = vpop.f32.mrf.mxu0
      %v3104 = vadd.f32 0.0, %v3103
      %3105 = vmatmul.bf16.gmra.mxu0 %v2965
      %v3106 = vpop.f32.mrf.mxu0
      %v3107 = vadd.f32 0.0, %v3106
      %v3108 = vpop.f32.mrf.mxu0
      %v3109 = vadd.f32 0.0, %v3108
      %3110 = vmatmul.bf16.gmra.mxu0 %v2966
      %v3111 = vpop.f32.mrf.mxu0
      %v3112 = vadd.f32 0.0, %v3111
      %v3113 = vpop.f32.mrf.mxu0
      %v3114 = vadd.f32 0.0, %v3113
      %3115 = vmatmul.bf16.gmra.mxu0 %v2967
      %v3116 = vpop.f32.mrf.mxu0
      %v3117 = vadd.f32 0.0, %v3116
      %v3118 = vpop.f32.mrf.mxu0
      %v3119 = vadd.f32 0.0, %v3118
      %3120 = vdwg.mxu0
      %v3121 = vadd.f32 %v2790, %v3042
      %v3122 = vadd.f32 %v2791, %v3044
      %v3123 = vadd.f32 %v2792, %v3047
      %v3124 = vadd.f32 %v2793, %v3049
      %v3125 = vadd.f32 %v2794, %v3052
      %v3126 = vadd.f32 %v2795, %v3054
      %v3127 = vadd.f32 %v2796, %v3057
      %v3128 = vadd.f32 %v2797, %v3059
      %v3129 = vadd.f32 %v2798, %v3062
      %v3130 = vadd.f32 %v2799, %v3064
      %v3131 = vadd.f32 %v2800, %v3067
      %v3132 = vadd.f32 %v2801, %v3069
      %v3133 = vadd.f32 %v2802, %v3072
      %v3134 = vadd.f32 %v2803, %v3074
      %v3135 = vadd.f32 %v2804, %v3077
      %v3136 = vadd.f32 %v2805, %v3079
      %v3137 = vadd.f32 %v2806, %v3082
      %v3138 = vadd.f32 %v2807, %v3084
      %v3139 = vadd.f32 %v2808, %v3087
      %v3140 = vadd.f32 %v2809, %v3089
      %v3141 = vadd.f32 %v2810, %v3092
      %v3142 = vadd.f32 %v2811, %v3094
      %v3143 = vadd.f32 %v2812, %v3097
      %v3144 = vadd.f32 %v2813, %v3099
      %v3145 = vadd.f32 %v2814, %v3102
      %v3146 = vadd.f32 %v2815, %v3104
      %v3147 = vadd.f32 %v2816, %v3107
      %v3148 = vadd.f32 %v2817, %v3109
      %v3149 = vadd.f32 %v2818, %v3112
      %v3150 = vadd.f32 %v2819, %v3114
      %v3151 = vadd.f32 %v2820, %v3117
      %v3152 = vadd.f32 %v2821, %v3119
      %v3154 = vshrl.u32 %v2823, 16
      %v3156 = vrot.slane %v3154, 4
      %v3157 = vshll.u32 %v2823, 16
      %v3159 = vrot.slane %v3157, 5
      %v3160 = vor.u32 %v3156, %v3159
      %v3161 = vrot.slane %v3160, 4
      %v3163 = vshll.u32 %v2824, 16
      %v3165 = vrot.slane %v3163, 5
      %v3166 = vsel %vm262, %v3161, %v3165
      %v3167 = vshrl.u32 %v2824, 16
      %v3169 = vrot.slane %v3167, 4
      %v3170 = vor.u32 %v3169, %v3165
      %v3171 = vrot.slane %v3170, 4
      %v3173 = vshll.u32 %v2825, 16
      %v3175 = vrot.slane %v3173, 5
      %v3176 = vsel %vm262, %v3171, %v3175
      %v3178 = vshrl.u32 %v2826, 16
      %v3180 = vrot.slane %v3178, 4
      %v3181 = vshll.u32 %v2826, 16
      %v3183 = vrot.slane %v3181, 5
      %v3184 = vor.u32 %v3180, %v3183
      %v3185 = vrot.slane %v3184, 4
      %v3187 = vshll.u32 %v2827, 16
      %v3189 = vrot.slane %v3187, 5
      %v3190 = vsel %vm262, %v3185, %v3189
      %v3191 = vshrl.u32 %v2827, 16
      %v3193 = vrot.slane %v3191, 4
      %v3194 = vor.u32 %v3193, %v3189
      %v3195 = vrot.slane %v3194, 4
      %v3197 = vshll.u32 %v2828, 16
      %v3199 = vrot.slane %v3197, 5
      %v3200 = vsel %vm262, %v3195, %v3199
      %v3202 = vshrl.u32 %v2829, 16
      %v3204 = vrot.slane %v3202, 4
      %v3205 = vshll.u32 %v2829, 16
      %v3207 = vrot.slane %v3205, 5
      %v3208 = vor.u32 %v3204, %v3207
      %v3209 = vrot.slane %v3208, 4
      %v3211 = vshll.u32 %v2830, 16
      %v3213 = vrot.slane %v3211, 5
      %v3214 = vsel %vm262, %v3209, %v3213
      %v3215 = vshrl.u32 %v2830, 16
      %v3217 = vrot.slane %v3215, 4
      %v3218 = vor.u32 %v3217, %v3213
      %v3219 = vrot.slane %v3218, 4
      %v3221 = vshll.u32 %v2831, 16
      %v3223 = vrot.slane %v3221, 5
      %v3224 = vsel %vm262, %v3219, %v3223
      %v3226 = vshrl.u32 %v2832, 16
      %v3228 = vrot.slane %v3226, 4
      %v3229 = vshll.u32 %v2832, 16
      %v3231 = vrot.slane %v3229, 5
      %v3232 = vor.u32 %v3228, %v3231
      %v3233 = vrot.slane %v3232, 4
      %v3235 = vshll.u32 %v2833, 16
      %v3237 = vrot.slane %v3235, 5
      %v3238 = vsel %vm262, %v3233, %v3237
      %v3239 = vshrl.u32 %v2833, 16
      %v3241 = vrot.slane %v3239, 4
      %v3242 = vor.u32 %v3241, %v3237
      %v3243 = vrot.slane %v3242, 4
      %v3245 = vshll.u32 %v2834, 16
      %v3247 = vrot.slane %v3245, 5
      %v3248 = vsel %vm262, %v3243, %v3247
      %v3250 = vshrl.u32 %v2835, 16
      %v3252 = vrot.slane %v3250, 4
      %v3253 = vshll.u32 %v2835, 16
      %v3255 = vrot.slane %v3253, 5
      %v3256 = vor.u32 %v3252, %v3255
      %v3257 = vrot.slane %v3256, 4
      %v3259 = vshll.u32 %v2836, 16
      %v3261 = vrot.slane %v3259, 5
      %v3262 = vsel %vm262, %v3257, %v3261
      %v3263 = vshrl.u32 %v2836, 16
      %v3265 = vrot.slane %v3263, 4
      %v3266 = vor.u32 %v3265, %v3261
      %v3267 = vrot.slane %v3266, 4
      %v3269 = vshll.u32 %v2837, 16
      %v3271 = vrot.slane %v3269, 5
      %v3272 = vsel %vm262, %v3267, %v3271
      %v3274 = vshrl.u32 %v2838, 16
      %v3276 = vrot.slane %v3274, 4
      %v3277 = vshll.u32 %v2838, 16
      %v3279 = vrot.slane %v3277, 5
      %v3280 = vor.u32 %v3276, %v3279
      %v3281 = vrot.slane %v3280, 4
      %v3283 = vshll.u32 %v2839, 16
      %v3285 = vrot.slane %v3283, 5
      %v3286 = vsel %vm262, %v3281, %v3285
      %v3287 = vshrl.u32 %v2839, 16
      %v3289 = vrot.slane %v3287, 4
      %v3290 = vor.u32 %v3289, %v3285
      %v3291 = vrot.slane %v3290, 4
      %v3293 = vshll.u32 %v2840, 16
      %v3295 = vrot.slane %v3293, 5
      %v3296 = vsel %vm262, %v3291, %v3295
      %v3298 = vshrl.u32 %v2841, 16
      %v3300 = vrot.slane %v3298, 4
      %v3301 = vshll.u32 %v2841, 16
      %v3303 = vrot.slane %v3301, 5
      %v3304 = vor.u32 %v3300, %v3303
      %v3305 = vrot.slane %v3304, 4
      %v3307 = vshll.u32 %v2842, 16
      %v3309 = vrot.slane %v3307, 5
      %v3310 = vsel %vm262, %v3305, %v3309
      %v3311 = vshrl.u32 %v2842, 16
      %v3313 = vrot.slane %v3311, 4
      %v3314 = vor.u32 %v3313, %v3309
      %v3315 = vrot.slane %v3314, 4
      %v3317 = vshll.u32 %v2843, 16
      %v3319 = vrot.slane %v3317, 5
      %v3320 = vsel %vm262, %v3315, %v3319
      %v3322 = vshrl.u32 %v2844, 16
      %v3324 = vrot.slane %v3322, 4
      %v3325 = vshll.u32 %v2844, 16
      %v3327 = vrot.slane %v3325, 5
      %v3328 = vor.u32 %v3324, %v3327
      %v3329 = vrot.slane %v3328, 4
      %v3331 = vshll.u32 %v2845, 16
      %v3333 = vrot.slane %v3331, 5
      %v3334 = vsel %vm262, %v3329, %v3333
      %v3335 = vshrl.u32 %v2845, 16
      %v3337 = vrot.slane %v3335, 4
      %v3338 = vor.u32 %v3337, %v3333
      %v3339 = vrot.slane %v3338, 4
      %v3341 = vshll.u32 %v2846, 16
      %v3343 = vrot.slane %v3341, 5
      %v3344 = vsel %vm262, %v3339, %v3343
      %v3346 = vshrl.u32 %v2847, 16
      %v3348 = vrot.slane %v3346, 4
      %v3349 = vshll.u32 %v2847, 16
      %v3351 = vrot.slane %v3349, 5
      %v3352 = vor.u32 %v3348, %v3351
      %v3353 = vrot.slane %v3352, 4
      %v3355 = vshll.u32 %v2848, 16
      %v3357 = vrot.slane %v3355, 5
      %v3358 = vsel %vm262, %v3353, %v3357
      %v3359 = vshrl.u32 %v2848, 16
      %v3361 = vrot.slane %v3359, 4
      %v3362 = vor.u32 %v3361, %v3357
      %v3363 = vrot.slane %v3362, 4
      %v3365 = vshll.u32 %v2849, 16
      %v3367 = vrot.slane %v3365, 5
      %v3368 = vsel %vm262, %v3363, %v3367
      %v3370 = vshrl.u32 %v2850, 16
      %v3372 = vrot.slane %v3370, 4
      %v3373 = vshll.u32 %v2850, 16
      %v3375 = vrot.slane %v3373, 5
      %v3376 = vor.u32 %v3372, %v3375
      %v3377 = vrot.slane %v3376, 4
      %v3379 = vshll.u32 %v2851, 16
      %v3381 = vrot.slane %v3379, 5
      %v3382 = vsel %vm262, %v3377, %v3381
      %v3383 = vshrl.u32 %v2851, 16
      %v3385 = vrot.slane %v3383, 4
      %v3386 = vor.u32 %v3385, %v3381
      %v3387 = vrot.slane %v3386, 4
      %v3389 = vshll.u32 %v2852, 16
      %v3391 = vrot.slane %v3389, 5
      %v3392 = vsel %vm262, %v3387, %v3391
      %v3394 = vshrl.u32 %v2853, 16
      %v3396 = vrot.slane %v3394, 4
      %v3397 = vshll.u32 %v2853, 16
      %v3399 = vrot.slane %v3397, 5
      %v3400 = vor.u32 %v3396, %v3399
      %v3401 = vrot.slane %v3400, 4
      %v3403 = vshll.u32 %v2854, 16
      %v3405 = vrot.slane %v3403, 5
      %v3406 = vsel %vm262, %v3401, %v3405
      %v3407 = vshrl.u32 %v2854, 16
      %v3409 = vrot.slane %v3407, 4
      %v3410 = vor.u32 %v3409, %v3405
      %v3411 = vrot.slane %v3410, 4
      %v3413 = vshll.u32 %v2855, 16
      %v3415 = vrot.slane %v3413, 5
      %v3416 = vsel %vm262, %v3411, %v3415
      %v3418 = vshrl.u32 %v2856, 16
      %v3420 = vrot.slane %v3418, 4
      %v3421 = vshll.u32 %v2856, 16
      %v3423 = vrot.slane %v3421, 5
      %v3424 = vor.u32 %v3420, %v3423
      %v3425 = vrot.slane %v3424, 4
      %v3427 = vshll.u32 %v2857, 16
      %v3429 = vrot.slane %v3427, 5
      %v3430 = vsel %vm262, %v3425, %v3429
      %v3431 = vshrl.u32 %v2857, 16
      %v3433 = vrot.slane %v3431, 4
      %v3434 = vor.u32 %v3433, %v3429
      %v3435 = vrot.slane %v3434, 4
      %v3437 = vshll.u32 %v2858, 16
      %v3439 = vrot.slane %v3437, 5
      %v3440 = vsel %vm262, %v3435, %v3439
      %v3442 = vshrl.u32 %v2859, 16
      %v3444 = vrot.slane %v3442, 4
      %v3445 = vshll.u32 %v2859, 16
      %v3447 = vrot.slane %v3445, 5
      %v3448 = vor.u32 %v3444, %v3447
      %v3449 = vrot.slane %v3448, 4
      %v3451 = vshll.u32 %v2860, 16
      %v3453 = vrot.slane %v3451, 5
      %v3454 = vsel %vm262, %v3449, %v3453
      %v3455 = vshrl.u32 %v2860, 16
      %v3457 = vrot.slane %v3455, 4
      %v3458 = vor.u32 %v3457, %v3453
      %v3459 = vrot.slane %v3458, 4
      %v3461 = vshll.u32 %v2861, 16
      %v3463 = vrot.slane %v3461, 5
      %v3464 = vsel %vm262, %v3459, %v3463
      %v3466 = vshrl.u32 %v2862, 16
      %v3468 = vrot.slane %v3466, 4
      %v3469 = vshll.u32 %v2862, 16
      %v3471 = vrot.slane %v3469, 5
      %v3472 = vor.u32 %v3468, %v3471
      %v3473 = vrot.slane %v3472, 4
      %v3475 = vshll.u32 %v2863, 16
      %v3477 = vrot.slane %v3475, 5
      %v3478 = vsel %vm262, %v3473, %v3477
      %v3479 = vshrl.u32 %v2863, 16
      %v3481 = vrot.slane %v3479, 4
      %v3482 = vor.u32 %v3481, %v3477
      %v3483 = vrot.slane %v3482, 4
      %v3485 = vshll.u32 %v2864, 16
      %v3487 = vrot.slane %v3485, 5
      %v3488 = vsel %vm262, %v3483, %v3487
      %v3490 = vshrl.u32 %v2865, 16
      %v3492 = vrot.slane %v3490, 4
      %v3493 = vshll.u32 %v2865, 16
      %v3495 = vrot.slane %v3493, 5
      %v3496 = vor.u32 %v3492, %v3495
      %v3497 = vrot.slane %v3496, 4
      %v3499 = vshll.u32 %v2866, 16
      %v3501 = vrot.slane %v3499, 5
      %v3502 = vsel %vm262, %v3497, %v3501
      %v3503 = vshrl.u32 %v2866, 16
      %v3505 = vrot.slane %v3503, 4
      %v3506 = vor.u32 %v3505, %v3501
      %v3507 = vrot.slane %v3506, 4
      %v3509 = vshll.u32 %v2867, 16
      %v3511 = vrot.slane %v3509, 5
      %v3512 = vsel %vm262, %v3507, %v3511
      %v3514 = vshrl.u32 %v2868, 16
      %v3516 = vrot.slane %v3514, 4
      %v3517 = vshll.u32 %v2868, 16
      %v3519 = vrot.slane %v3517, 5
      %v3520 = vor.u32 %v3516, %v3519
      %v3521 = vrot.slane %v3520, 4
      %v3523 = vshll.u32 %v2869, 16
      %v3525 = vrot.slane %v3523, 5
      %v3526 = vsel %vm262, %v3521, %v3525
      %v3527 = vshrl.u32 %v2869, 16
      %v3529 = vrot.slane %v3527, 4
      %v3530 = vor.u32 %v3529, %v3525
      %v3531 = vrot.slane %v3530, 4
      %v3533 = vshll.u32 %v2870, 16
      %v3535 = vrot.slane %v3533, 5
      %v3536 = vsel %vm262, %v3531, %v3535
      %s3537 = scalar_lea.vmem %s1, 448
      %v3538 = vld [vmem:[%s3537] sm:$0xf]
      %v3539 = vld [vmem:[%s3537 + $0x4] sm:$0xf]
      %v3540 = vld [vmem:[%s3537 + $0x8] sm:$0xf]
      %v3541 = vld [vmem:[%s3537 + $0xc] sm:$0xf]
      %v3542 = vld [vmem:[%s3537 + $0x10] sm:$0xf]
      %v3543 = vld [vmem:[%s3537 + $0x14] sm:$0xf]
      %v3544 = vld [vmem:[%s3537 + $0x18] sm:$0xf]
      %v3545 = vld [vmem:[%s3537 + $0x1c] sm:$0xf]
      %v3546 = vld [vmem:[%s3537 + $0x20] sm:$0xf]
      %v3547 = vld [vmem:[%s3537 + $0x24] sm:$0xf]
      %v3548 = vld [vmem:[%s3537 + $0x28] sm:$0xf]
      %v3549 = vld [vmem:[%s3537 + $0x2c] sm:$0xf]
      %v3550 = vld [vmem:[%s3537 + $0x30] sm:$0xf]
      %v3551 = vld [vmem:[%s3537 + $0x34] sm:$0xf]
      %v3552 = vld [vmem:[%s3537 + $0x38] sm:$0xf]
      %v3553 = vld [vmem:[%s3537 + $0x3c] sm:$0xf]
      %v3554 = vunpack.c.l.b16 %v3166
      %v3555 = vunpack.c.l.b16 %v3176
      %v3556 = vunpack.c.l.b16 %v3190
      %v3557 = vunpack.c.l.b16 %v3200
      %v3558 = vunpack.c.l.b16 %v3214
      %v3559 = vunpack.c.l.b16 %v3224
      %v3560 = vunpack.c.l.b16 %v3238
      %v3561 = vunpack.c.l.b16 %v3248
      %v3562 = vunpack.c.l.b16 %v3262
      %v3563 = vunpack.c.l.b16 %v3272
      %v3564 = vunpack.c.l.b16 %v3286
      %v3565 = vunpack.c.l.b16 %v3296
      %v3566 = vunpack.c.l.b16 %v3310
      %v3567 = vunpack.c.l.b16 %v3320
      %v3568 = vunpack.c.l.b16 %v3334
      %v3569 = vunpack.c.l.b16 %v3344
      %v3570 = vunpack.c.l.b16 %v3358
      %v3571 = vunpack.c.l.b16 %v3368
      %v3572 = vunpack.c.l.b16 %v3382
      %v3573 = vunpack.c.l.b16 %v3392
      %v3574 = vunpack.c.l.b16 %v3406
      %v3575 = vunpack.c.l.b16 %v3416
      %v3576 = vunpack.c.l.b16 %v3430
      %v3577 = vunpack.c.l.b16 %v3440
      %v3578 = vunpack.c.l.b16 %v3454
      %v3579 = vunpack.c.l.b16 %v3464
      %v3580 = vunpack.c.l.b16 %v3478
      %v3581 = vunpack.c.l.b16 %v3488
      %v3582 = vunpack.c.l.b16 %v3502
      %v3583 = vunpack.c.l.b16 %v3512
      %v3584 = vunpack.c.l.b16 %v3526
      %v3585 = vunpack.c.l.b16 %v3536
      %v3586 = vpack.c.b16 %v3555, %v3554
      %v3587 = vpack.c.b16 %v3557, %v3556
      %v3588 = vpack.c.b16 %v3559, %v3558
      %v3589 = vpack.c.b16 %v3561, %v3560
      %v3590 = vpack.c.b16 %v3563, %v3562
      %v3591 = vpack.c.b16 %v3565, %v3564
      %v3592 = vpack.c.b16 %v3567, %v3566
      %v3593 = vpack.c.b16 %v3569, %v3568
      %v3594 = vpack.c.b16 %v3571, %v3570
      %v3595 = vpack.c.b16 %v3573, %v3572
      %v3596 = vpack.c.b16 %v3575, %v3574
      %v3597 = vpack.c.b16 %v3577, %v3576
      %v3598 = vpack.c.b16 %v3579, %v3578
      %v3599 = vpack.c.b16 %v3581, %v3580
      %v3600 = vpack.c.b16 %v3583, %v3582
      %v3601 = vpack.c.b16 %v3585, %v3584
      %v3634 = vunpack.c.l.b16 %v3538
      %v3635 = vunpack.c.l.b16 %v3539
      %v3636 = vunpack.c.l.b16 %v3540
      %v3637 = vunpack.c.l.b16 %v3541
      %v3638 = vunpack.c.l.b16 %v3542
      %v3639 = vunpack.c.l.b16 %v3543
      %v3640 = vunpack.c.l.b16 %v3544
      %v3641 = vunpack.c.l.b16 %v3545
      %v3642 = vunpack.c.l.b16 %v3546
      %v3643 = vunpack.c.l.b16 %v3547
      %v3644 = vunpack.c.l.b16 %v3548
      %v3645 = vunpack.c.l.b16 %v3549
      %v3646 = vunpack.c.l.b16 %v3550
      %v3647 = vunpack.c.l.b16 %v3551
      %v3648 = vunpack.c.l.b16 %v3552
      %v3649 = vunpack.c.l.b16 %v3553
      %v3650 = vpack.c.b16 %v3635, %v3634
      %v3651 = vpack.c.b16 %v3637, %v3636
      %v3652 = vpack.c.b16 %v3639, %v3638
      %v3653 = vpack.c.b16 %v3641, %v3640
      %v3654 = vpack.c.b16 %v3643, %v3642
      %v3655 = vpack.c.b16 %v3645, %v3644
      %v3656 = vpack.c.b16 %v3647, %v3646
      %v3657 = vpack.c.b16 %v3649, %v3648
      %3666 = vmatpush.bf16.msra.mxu0 %v3657
      %3667 = vmatpush.bf16.msra.mxu0 %v3656
      %3668 = vmatpush.bf16.msra.mxu0 %v3655
      %3669 = vmatpush.bf16.msra.mxu0 %v3654
      %3670 = vmatpush.bf16.msra.mxu0 %v3653
      %3671 = vmatpush.bf16.msra.mxu0 %v3652
      %3672 = vmatpush.bf16.msra.mxu0 %v3651
      %3673 = vmatpush.bf16.msra.mxu0 %v3650
      %3674 = vmatmul.bf16.gmra.mxu0 %v3586
      %v3675 = vpop.f32.mrf.mxu0
      %v3676 = vadd.f32 0.0, %v3675
      %v3677 = vpop.f32.mrf.mxu0
      %v3678 = vadd.f32 0.0, %v3677
      %3679 = vmatmul.bf16.gmra.mxu0 %v3587
      %v3680 = vpop.f32.mrf.mxu0
      %v3681 = vadd.f32 0.0, %v3680
      %v3682 = vpop.f32.mrf.mxu0
      %v3683 = vadd.f32 0.0, %v3682
      %3684 = vmatmul.bf16.gmra.mxu0 %v3588
      %v3685 = vpop.f32.mrf.mxu0
      %v3686 = vadd.f32 0.0, %v3685
      %v3687 = vpop.f32.mrf.mxu0
      %v3688 = vadd.f32 0.0, %v3687
      %3689 = vmatmul.bf16.gmra.mxu0 %v3589
      %v3690 = vpop.f32.mrf.mxu0
      %v3691 = vadd.f32 0.0, %v3690
      %v3692 = vpop.f32.mrf.mxu0
      %v3693 = vadd.f32 0.0, %v3692
      %3694 = vmatmul.bf16.gmra.mxu0 %v3590
      %v3695 = vpop.f32.mrf.mxu0
      %v3696 = vadd.f32 0.0, %v3695
      %v3697 = vpop.f32.mrf.mxu0
      %v3698 = vadd.f32 0.0, %v3697
      %3699 = vmatmul.bf16.gmra.mxu0 %v3591
      %v3700 = vpop.f32.mrf.mxu0
      %v3701 = vadd.f32 0.0, %v3700
      %v3702 = vpop.f32.mrf.mxu0
      %v3703 = vadd.f32 0.0, %v3702
      %3704 = vmatmul.bf16.gmra.mxu0 %v3592
      %v3705 = vpop.f32.mrf.mxu0
      %v3706 = vadd.f32 0.0, %v3705
      %v3707 = vpop.f32.mrf.mxu0
      %v3708 = vadd.f32 0.0, %v3707
      %3709 = vmatmul.bf16.gmra.mxu0 %v3593
      %v3710 = vpop.f32.mrf.mxu0
      %v3711 = vadd.f32 0.0, %v3710
      %v3712 = vpop.f32.mrf.mxu0
      %v3713 = vadd.f32 0.0, %v3712
      %3714 = vmatmul.bf16.gmra.mxu0 %v3594
      %v3715 = vpop.f32.mrf.mxu0
      %v3716 = vadd.f32 0.0, %v3715
      %v3717 = vpop.f32.mrf.mxu0
      %v3718 = vadd.f32 0.0, %v3717
      %3719 = vmatmul.bf16.gmra.mxu0 %v3595
      %v3720 = vpop.f32.mrf.mxu0
      %v3721 = vadd.f32 0.0, %v3720
      %v3722 = vpop.f32.mrf.mxu0
      %v3723 = vadd.f32 0.0, %v3722
      %3724 = vmatmul.bf16.gmra.mxu0 %v3596
      %v3725 = vpop.f32.mrf.mxu0
      %v3726 = vadd.f32 0.0, %v3725
      %v3727 = vpop.f32.mrf.mxu0
      %v3728 = vadd.f32 0.0, %v3727
      %3729 = vmatmul.bf16.gmra.mxu0 %v3597
      %v3730 = vpop.f32.mrf.mxu0
      %v3731 = vadd.f32 0.0, %v3730
      %v3732 = vpop.f32.mrf.mxu0
      %v3733 = vadd.f32 0.0, %v3732
      %3734 = vmatmul.bf16.gmra.mxu0 %v3598
      %v3735 = vpop.f32.mrf.mxu0
      %v3736 = vadd.f32 0.0, %v3735
      %v3737 = vpop.f32.mrf.mxu0
      %v3738 = vadd.f32 0.0, %v3737
      %3739 = vmatmul.bf16.gmra.mxu0 %v3599
      %v3740 = vpop.f32.mrf.mxu0
      %v3741 = vadd.f32 0.0, %v3740
      %v3742 = vpop.f32.mrf.mxu0
      %v3743 = vadd.f32 0.0, %v3742
      %3744 = vmatmul.bf16.gmra.mxu0 %v3600
      %v3745 = vpop.f32.mrf.mxu0
      %v3746 = vadd.f32 0.0, %v3745
      %v3747 = vpop.f32.mrf.mxu0
      %v3748 = vadd.f32 0.0, %v3747
      %3749 = vmatmul.bf16.gmra.mxu0 %v3601
      %v3750 = vpop.f32.mrf.mxu0
      %v3751 = vadd.f32 0.0, %v3750
      %v3752 = vpop.f32.mrf.mxu0
      %v3753 = vadd.f32 0.0, %v3752
      %3754 = vdwg.mxu0
      %v3755 = vadd.f32 %v3121, %v3676
      %v3756 = vadd.f32 %v3122, %v3678
      %v3757 = vadd.f32 %v3123, %v3681
      %v3758 = vadd.f32 %v3124, %v3683
      %v3759 = vadd.f32 %v3125, %v3686
      %v3760 = vadd.f32 %v3126, %v3688
      %v3761 = vadd.f32 %v3127, %v3691
      %v3762 = vadd.f32 %v3128, %v3693
      %v3763 = vadd.f32 %v3129, %v3696
      %v3764 = vadd.f32 %v3130, %v3698
      %v3765 = vadd.f32 %v3131, %v3701
      %v3766 = vadd.f32 %v3132, %v3703
      %v3767 = vadd.f32 %v3133, %v3706
      %v3768 = vadd.f32 %v3134, %v3708
      %v3769 = vadd.f32 %v3135, %v3711
      %v3770 = vadd.f32 %v3136, %v3713
      %v3771 = vadd.f32 %v3137, %v3716
      %v3772 = vadd.f32 %v3138, %v3718
      %v3773 = vadd.f32 %v3139, %v3721
      %v3774 = vadd.f32 %v3140, %v3723
      %v3775 = vadd.f32 %v3141, %v3726
      %v3776 = vadd.f32 %v3142, %v3728
      %v3777 = vadd.f32 %v3143, %v3731
      %v3778 = vadd.f32 %v3144, %v3733
      %v3779 = vadd.f32 %v3145, %v3736
      %v3780 = vadd.f32 %v3146, %v3738
      %v3781 = vadd.f32 %v3147, %v3741
      %v3782 = vadd.f32 %v3148, %v3743
      %v3783 = vadd.f32 %v3149, %v3746
      %v3784 = vadd.f32 %v3150, %v3748
      %v3785 = vadd.f32 %v3151, %v3751
      %v3786 = vadd.f32 %v3152, %v3753
      %v3803 = vrot.slane %v2823, 5
      %v3804 = vrot.slane %v3803, 4
      %v3805 = vrot.slane %v2824, 5
      %v3806 = vsel %vm1116, %v3804, %v3805
      %v3807 = vrot.slane %v3805, 4
      %v3808 = vrot.slane %v2825, 5
      %v3809 = vsel %vm1116, %v3807, %v3808
      %v3810 = vrot.slane %v2826, 5
      %v3811 = vrot.slane %v3810, 4
      %v3812 = vrot.slane %v2827, 5
      %v3813 = vsel %vm1116, %v3811, %v3812
      %v3814 = vrot.slane %v3812, 4
      %v3815 = vrot.slane %v2828, 5
      %v3816 = vsel %vm1116, %v3814, %v3815
      %v3817 = vrot.slane %v2829, 5
      %v3818 = vrot.slane %v3817, 4
      %v3819 = vrot.slane %v2830, 5
      %v3820 = vsel %vm1116, %v3818, %v3819
      %v3821 = vrot.slane %v3819, 4
      %v3822 = vrot.slane %v2831, 5
      %v3823 = vsel %vm1116, %v3821, %v3822
      %v3824 = vrot.slane %v2832, 5
      %v3825 = vrot.slane %v3824, 4
      %v3826 = vrot.slane %v2833, 5
      %v3827 = vsel %vm1116, %v3825, %v3826
      %v3828 = vrot.slane %v3826, 4
      %v3829 = vrot.slane %v2834, 5
      %v3830 = vsel %vm1116, %v3828, %v3829
      %v3831 = vrot.slane %v2835, 5
      %v3832 = vrot.slane %v3831, 4
      %v3833 = vrot.slane %v2836, 5
      %v3834 = vsel %vm1116, %v3832, %v3833
      %v3835 = vrot.slane %v3833, 4
      %v3836 = vrot.slane %v2837, 5
      %v3837 = vsel %vm1116, %v3835, %v3836
      %v3838 = vrot.slane %v2838, 5
      %v3839 = vrot.slane %v3838, 4
      %v3840 = vrot.slane %v2839, 5
      %v3841 = vsel %vm1116, %v3839, %v3840
      %v3842 = vrot.slane %v3840, 4
      %v3843 = vrot.slane %v2840, 5
      %v3844 = vsel %vm1116, %v3842, %v3843
      %v3845 = vrot.slane %v2841, 5
      %v3846 = vrot.slane %v3845, 4
      %v3847 = vrot.slane %v2842, 5
      %v3848 = vsel %vm1116, %v3846, %v3847
      %v3849 = vrot.slane %v3847, 4
      %v3850 = vrot.slane %v2843, 5
      %v3851 = vsel %vm1116, %v3849, %v3850
      %v3852 = vrot.slane %v2844, 5
      %v3853 = vrot.slane %v3852, 4
      %v3854 = vrot.slane %v2845, 5
      %v3855 = vsel %vm1116, %v3853, %v3854
      %v3856 = vrot.slane %v3854, 4
      %v3857 = vrot.slane %v2846, 5
      %v3858 = vsel %vm1116, %v3856, %v3857
      %v3859 = vrot.slane %v2847, 5
      %v3860 = vrot.slane %v3859, 4
      %v3861 = vrot.slane %v2848, 5
      %v3862 = vsel %vm1116, %v3860, %v3861
      %v3863 = vrot.slane %v3861, 4
      %v3864 = vrot.slane %v2849, 5
      %v3865 = vsel %vm1116, %v3863, %v3864
      %v3866 = vrot.slane %v2850, 5
      %v3867 = vrot.slane %v3866, 4
      %v3868 = vrot.slane %v2851, 5
      %v3869 = vsel %vm1116, %v3867, %v3868
      %v3870 = vrot.slane %v3868, 4
      %v3871 = vrot.slane %v2852, 5
      %v3872 = vsel %vm1116, %v3870, %v3871
      %v3873 = vrot.slane %v2853, 5
      %v3874 = vrot.slane %v3873, 4
      %v3875 = vrot.slane %v2854, 5
      %v3876 = vsel %vm1116, %v3874, %v3875
      %v3877 = vrot.slane %v3875, 4
      %v3878 = vrot.slane %v2855, 5
      %v3879 = vsel %vm1116, %v3877, %v3878
      %v3880 = vrot.slane %v2856, 5
      %v3881 = vrot.slane %v3880, 4
      %v3882 = vrot.slane %v2857, 5
      %v3883 = vsel %vm1116, %v3881, %v3882
      %v3884 = vrot.slane %v3882, 4
      %v3885 = vrot.slane %v2858, 5
      %v3886 = vsel %vm1116, %v3884, %v3885
      %v3887 = vrot.slane %v2859, 5
      %v3888 = vrot.slane %v3887, 4
      %v3889 = vrot.slane %v2860, 5
      %v3890 = vsel %vm1116, %v3888, %v3889
      %v3891 = vrot.slane %v3889, 4
      %v3892 = vrot.slane %v2861, 5
      %v3893 = vsel %vm1116, %v3891, %v3892
      %v3894 = vrot.slane %v2862, 5
      %v3895 = vrot.slane %v3894, 4
      %v3896 = vrot.slane %v2863, 5
      %v3897 = vsel %vm1116, %v3895, %v3896
      %v3898 = vrot.slane %v3896, 4
      %v3899 = vrot.slane %v2864, 5
      %v3900 = vsel %vm1116, %v3898, %v3899
      %v3901 = vrot.slane %v2865, 5
      %v3902 = vrot.slane %v3901, 4
      %v3903 = vrot.slane %v2866, 5
      %v3904 = vsel %vm1116, %v3902, %v3903
      %v3905 = vrot.slane %v3903, 4
      %v3906 = vrot.slane %v2867, 5
      %v3907 = vsel %vm1116, %v3905, %v3906
      %v3908 = vrot.slane %v2868, 5
      %v3909 = vrot.slane %v3908, 4
      %v3910 = vrot.slane %v2869, 5
      %v3911 = vsel %vm1116, %v3909, %v3910
      %v3912 = vrot.slane %v3910, 4
      %v3913 = vrot.slane %v2870, 5
      %v3914 = vsel %vm1116, %v3912, %v3913
      %s3915 = scalar_lea.vmem %s1, 512
      %v3916 = vld [vmem:[%s3915] sm:$0xf]
      %v3917 = vld [vmem:[%s3915 + $0x4] sm:$0xf]
      %v3918 = vld [vmem:[%s3915 + $0x8] sm:$0xf]
      %v3919 = vld [vmem:[%s3915 + $0xc] sm:$0xf]
      %v3920 = vld [vmem:[%s3915 + $0x10] sm:$0xf]
      %v3921 = vld [vmem:[%s3915 + $0x14] sm:$0xf]
      %v3922 = vld [vmem:[%s3915 + $0x18] sm:$0xf]
      %v3923 = vld [vmem:[%s3915 + $0x1c] sm:$0xf]
      %v3924 = vld [vmem:[%s3915 + $0x20] sm:$0xf]
      %v3925 = vld [vmem:[%s3915 + $0x24] sm:$0xf]
      %v3926 = vld [vmem:[%s3915 + $0x28] sm:$0xf]
      %v3927 = vld [vmem:[%s3915 + $0x2c] sm:$0xf]
      %v3928 = vld [vmem:[%s3915 + $0x30] sm:$0xf]
      %v3929 = vld [vmem:[%s3915 + $0x34] sm:$0xf]
      %v3930 = vld [vmem:[%s3915 + $0x38] sm:$0xf]
      %v3931 = vld [vmem:[%s3915 + $0x3c] sm:$0xf]
      %v3932 = vunpack.c.l.b16 %v3806
      %v3933 = vunpack.c.l.b16 %v3809
      %v3934 = vunpack.c.l.b16 %v3813
      %v3935 = vunpack.c.l.b16 %v3816
      %v3936 = vunpack.c.l.b16 %v3820
      %v3937 = vunpack.c.l.b16 %v3823
      %v3938 = vunpack.c.l.b16 %v3827
      %v3939 = vunpack.c.l.b16 %v3830
      %v3940 = vunpack.c.l.b16 %v3834
      %v3941 = vunpack.c.l.b16 %v3837
      %v3942 = vunpack.c.l.b16 %v3841
      %v3943 = vunpack.c.l.b16 %v3844
      %v3944 = vunpack.c.l.b16 %v3848
      %v3945 = vunpack.c.l.b16 %v3851
      %v3946 = vunpack.c.l.b16 %v3855
      %v3947 = vunpack.c.l.b16 %v3858
      %v3948 = vunpack.c.l.b16 %v3862
      %v3949 = vunpack.c.l.b16 %v3865
      %v3950 = vunpack.c.l.b16 %v3869
      %v3951 = vunpack.c.l.b16 %v3872
      %v3952 = vunpack.c.l.b16 %v3876
      %v3953 = vunpack.c.l.b16 %v3879
      %v3954 = vunpack.c.l.b16 %v3883
      %v3955 = vunpack.c.l.b16 %v3886
      %v3956 = vunpack.c.l.b16 %v3890
      %v3957 = vunpack.c.l.b16 %v3893
      %v3958 = vunpack.c.l.b16 %v3897
      %v3959 = vunpack.c.l.b16 %v3900
      %v3960 = vunpack.c.l.b16 %v3904
      %v3961 = vunpack.c.l.b16 %v3907
      %v3962 = vunpack.c.l.b16 %v3911
      %v3963 = vunpack.c.l.b16 %v3914
      %v3964 = vpack.c.b16 %v3933, %v3932
      %v3965 = vpack.c.b16 %v3935, %v3934
      %v3966 = vpack.c.b16 %v3937, %v3936
      %v3967 = vpack.c.b16 %v3939, %v3938
      %v3968 = vpack.c.b16 %v3941, %v3940
      %v3969 = vpack.c.b16 %v3943, %v3942
      %v3970 = vpack.c.b16 %v3945, %v3944
      %v3971 = vpack.c.b16 %v3947, %v3946
      %v3972 = vpack.c.b16 %v3949, %v3948
      %v3973 = vpack.c.b16 %v3951, %v3950
      %v3974 = vpack.c.b16 %v3953, %v3952
      %v3975 = vpack.c.b16 %v3955, %v3954
      %v3976 = vpack.c.b16 %v3957, %v3956
      %v3977 = vpack.c.b16 %v3959, %v3958
      %v3978 = vpack.c.b16 %v3961, %v3960
      %v3979 = vpack.c.b16 %v3963, %v3962
      %v4012 = vunpack.c.l.b16 %v3916
      %v4013 = vunpack.c.l.b16 %v3917
      %v4014 = vunpack.c.l.b16 %v3918
      %v4015 = vunpack.c.l.b16 %v3919
      %v4016 = vunpack.c.l.b16 %v3920
      %v4017 = vunpack.c.l.b16 %v3921
      %v4018 = vunpack.c.l.b16 %v3922
      %v4019 = vunpack.c.l.b16 %v3923
      %v4020 = vunpack.c.l.b16 %v3924
      %v4021 = vunpack.c.l.b16 %v3925
      %v4022 = vunpack.c.l.b16 %v3926
      %v4023 = vunpack.c.l.b16 %v3927
      %v4024 = vunpack.c.l.b16 %v3928
      %v4025 = vunpack.c.l.b16 %v3929
      %v4026 = vunpack.c.l.b16 %v3930
      %v4027 = vunpack.c.l.b16 %v3931
      %v4028 = vpack.c.b16 %v4013, %v4012
      %v4029 = vpack.c.b16 %v4015, %v4014
      %v4030 = vpack.c.b16 %v4017, %v4016
      %v4031 = vpack.c.b16 %v4019, %v4018
      %v4032 = vpack.c.b16 %v4021, %v4020
      %v4033 = vpack.c.b16 %v4023, %v4022
      %v4034 = vpack.c.b16 %v4025, %v4024
      %v4035 = vpack.c.b16 %v4027, %v4026
      %4044 = vmatpush.bf16.msra.mxu0 %v4035
      %4045 = vmatpush.bf16.msra.mxu0 %v4034
      %4046 = vmatpush.bf16.msra.mxu0 %v4033
      %4047 = vmatpush.bf16.msra.mxu0 %v4032
      %4048 = vmatpush.bf16.msra.mxu0 %v4031
      %4049 = vmatpush.bf16.msra.mxu0 %v4030
      %4050 = vmatpush.bf16.msra.mxu0 %v4029
      %4051 = vmatpush.bf16.msra.mxu0 %v4028
      %4052 = vmatmul.bf16.gmra.mxu0 %v3964
      %v4053 = vpop.f32.mrf.mxu0
      %v4054 = vadd.f32 0.0, %v4053
      %v4055 = vpop.f32.mrf.mxu0
      %v4056 = vadd.f32 0.0, %v4055
      %4057 = vmatmul.bf16.gmra.mxu0 %v3965
      %v4058 = vpop.f32.mrf.mxu0
      %v4059 = vadd.f32 0.0, %v4058
      %v4060 = vpop.f32.mrf.mxu0
      %v4061 = vadd.f32 0.0, %v4060
      %4062 = vmatmul.bf16.gmra.mxu0 %v3966
      %v4063 = vpop.f32.mrf.mxu0
      %v4064 = vadd.f32 0.0, %v4063
      %v4065 = vpop.f32.mrf.mxu0
      %v4066 = vadd.f32 0.0, %v4065
      %4067 = vmatmul.bf16.gmra.mxu0 %v3967
      %v4068 = vpop.f32.mrf.mxu0
      %v4069 = vadd.f32 0.0, %v4068
      %v4070 = vpop.f32.mrf.mxu0
      %v4071 = vadd.f32 0.0, %v4070
      %4072 = vmatmul.bf16.gmra.mxu0 %v3968
      %v4073 = vpop.f32.mrf.mxu0
      %v4074 = vadd.f32 0.0, %v4073
      %v4075 = vpop.f32.mrf.mxu0
      %v4076 = vadd.f32 0.0, %v4075
      %4077 = vmatmul.bf16.gmra.mxu0 %v3969
      %v4078 = vpop.f32.mrf.mxu0
      %v4079 = vadd.f32 0.0, %v4078
      %v4080 = vpop.f32.mrf.mxu0
      %v4081 = vadd.f32 0.0, %v4080
      %4082 = vmatmul.bf16.gmra.mxu0 %v3970
      %v4083 = vpop.f32.mrf.mxu0
      %v4084 = vadd.f32 0.0, %v4083
      %v4085 = vpop.f32.mrf.mxu0
      %v4086 = vadd.f32 0.0, %v4085
      %4087 = vmatmul.bf16.gmra.mxu0 %v3971
      %v4088 = vpop.f32.mrf.mxu0
      %v4089 = vadd.f32 0.0, %v4088
      %v4090 = vpop.f32.mrf.mxu0
      %v4091 = vadd.f32 0.0, %v4090
      %4092 = vmatmul.bf16.gmra.mxu0 %v3972
      %v4093 = vpop.f32.mrf.mxu0
      %v4094 = vadd.f32 0.0, %v4093
      %v4095 = vpop.f32.mrf.mxu0
      %v4096 = vadd.f32 0.0, %v4095
      %4097 = vmatmul.bf16.gmra.mxu0 %v3973
      %v4098 = vpop.f32.mrf.mxu0
      %v4099 = vadd.f32 0.0, %v4098
      %v4100 = vpop.f32.mrf.mxu0
      %v4101 = vadd.f32 0.0, %v4100
      %4102 = vmatmul.bf16.gmra.mxu0 %v3974
      %v4103 = vpop.f32.mrf.mxu0
      %v4104 = vadd.f32 0.0, %v4103
      %v4105 = vpop.f32.mrf.mxu0
      %v4106 = vadd.f32 0.0, %v4105
      %4107 = vmatmul.bf16.gmra.mxu0 %v3975
      %v4108 = vpop.f32.mrf.mxu0
      %v4109 = vadd.f32 0.0, %v4108
      %v4110 = vpop.f32.mrf.mxu0
      %v4111 = vadd.f32 0.0, %v4110
      %4112 = vmatmul.bf16.gmra.mxu0 %v3976
      %v4113 = vpop.f32.mrf.mxu0
      %v4114 = vadd.f32 0.0, %v4113
      %v4115 = vpop.f32.mrf.mxu0
      %v4116 = vadd.f32 0.0, %v4115
      %4117 = vmatmul.bf16.gmra.mxu0 %v3977
      %v4118 = vpop.f32.mrf.mxu0
      %v4119 = vadd.f32 0.0, %v4118
      %v4120 = vpop.f32.mrf.mxu0
      %v4121 = vadd.f32 0.0, %v4120
      %4122 = vmatmul.bf16.gmra.mxu0 %v3978
      %v4123 = vpop.f32.mrf.mxu0
      %v4124 = vadd.f32 0.0, %v4123
      %v4125 = vpop.f32.mrf.mxu0
      %v4126 = vadd.f32 0.0, %v4125
      %4127 = vmatmul.bf16.gmra.mxu0 %v3979
      %v4128 = vpop.f32.mrf.mxu0
      %v4129 = vadd.f32 0.0, %v4128
      %v4130 = vpop.f32.mrf.mxu0
      %v4131 = vadd.f32 0.0, %v4130
      %4132 = vdwg.mxu0
      %v4133 = vadd.f32 %v3755, %v4054
      %v4134 = vadd.f32 %v3756, %v4056
      %v4135 = vadd.f32 %v3757, %v4059
      %v4136 = vadd.f32 %v3758, %v4061
      %v4137 = vadd.f32 %v3759, %v4064
      %v4138 = vadd.f32 %v3760, %v4066
      %v4139 = vadd.f32 %v3761, %v4069
      %v4140 = vadd.f32 %v3762, %v4071
      %v4141 = vadd.f32 %v3763, %v4074
      %v4142 = vadd.f32 %v3764, %v4076
      %v4143 = vadd.f32 %v3765, %v4079
      %v4144 = vadd.f32 %v3766, %v4081
      %v4145 = vadd.f32 %v3767, %v4084
      %v4146 = vadd.f32 %v3768, %v4086
      %v4147 = vadd.f32 %v3769, %v4089
      %v4148 = vadd.f32 %v3770, %v4091
      %v4149 = vadd.f32 %v3771, %v4094
      %v4150 = vadd.f32 %v3772, %v4096
      %v4151 = vadd.f32 %v3773, %v4099
      %v4152 = vadd.f32 %v3774, %v4101
      %v4153 = vadd.f32 %v3775, %v4104
      %v4154 = vadd.f32 %v3776, %v4106
      %v4155 = vadd.f32 %v3777, %v4109
      %v4156 = vadd.f32 %v3778, %v4111
      %v4157 = vadd.f32 %v3779, %v4114
      %v4158 = vadd.f32 %v3780, %v4116
      %v4159 = vadd.f32 %v3781, %v4119
      %v4160 = vadd.f32 %v3782, %v4121
      %v4161 = vadd.f32 %v3783, %v4124
      %v4162 = vadd.f32 %v3784, %v4126
      %v4163 = vadd.f32 %v3785, %v4129
      %v4164 = vadd.f32 %v3786, %v4131
      %v4165 = vld [vmem:[%s2] sm:$0x1]
      %v4166 = vperm.slane %v4165, 0
      %v4167 = vadd.f32 %v4133, %v4166
      %v4168 = vadd.f32 %v4134, %v4166
      %v4169 = vadd.f32 %v4135, %v4166
      %v4170 = vadd.f32 %v4136, %v4166
      %v4171 = vadd.f32 %v4137, %v4166
      %v4172 = vadd.f32 %v4138, %v4166
      %v4173 = vadd.f32 %v4139, %v4166
      %v4174 = vadd.f32 %v4140, %v4166
      %v4175 = vadd.f32 %v4141, %v4166
      %v4176 = vadd.f32 %v4142, %v4166
      %v4177 = vadd.f32 %v4143, %v4166
      %v4178 = vadd.f32 %v4144, %v4166
      %v4179 = vadd.f32 %v4145, %v4166
      %v4180 = vadd.f32 %v4146, %v4166
      %v4181 = vadd.f32 %v4147, %v4166
      %v4182 = vadd.f32 %v4148, %v4166
      %v4183 = vadd.f32 %v4149, %v4166
      %v4184 = vadd.f32 %v4150, %v4166
      %v4185 = vadd.f32 %v4151, %v4166
      %v4186 = vadd.f32 %v4152, %v4166
      %v4187 = vadd.f32 %v4153, %v4166
      %v4188 = vadd.f32 %v4154, %v4166
      %v4189 = vadd.f32 %v4155, %v4166
      %v4190 = vadd.f32 %v4156, %v4166
      %v4191 = vadd.f32 %v4157, %v4166
      %v4192 = vadd.f32 %v4158, %v4166
      %v4193 = vadd.f32 %v4159, %v4166
      %v4194 = vadd.f32 %v4160, %v4166
      %v4195 = vadd.f32 %v4161, %v4166
      %v4196 = vadd.f32 %v4162, %v4166
      %v4197 = vadd.f32 %v4163, %v4166
      %v4198 = vadd.f32 %v4164, %v4166
      %vm4199 = vcmp.gt.f32.partialorder %v4167, 0.0
      %vm4200 = vcmp.gt.f32.partialorder %v4168, 0.0
      %vm4201 = vcmp.gt.f32.partialorder %v4169, 0.0
      %vm4202 = vcmp.gt.f32.partialorder %v4170, 0.0
      %vm4203 = vcmp.gt.f32.partialorder %v4171, 0.0
      %vm4204 = vcmp.gt.f32.partialorder %v4172, 0.0
      %vm4205 = vcmp.gt.f32.partialorder %v4173, 0.0
      %vm4206 = vcmp.gt.f32.partialorder %v4174, 0.0
      %vm4207 = vcmp.gt.f32.partialorder %v4175, 0.0
      %vm4208 = vcmp.gt.f32.partialorder %v4176, 0.0
      %vm4209 = vcmp.gt.f32.partialorder %v4177, 0.0
      %vm4210 = vcmp.gt.f32.partialorder %v4178, 0.0
      %vm4211 = vcmp.gt.f32.partialorder %v4179, 0.0
      %vm4212 = vcmp.gt.f32.partialorder %v4180, 0.0
      %vm4213 = vcmp.gt.f32.partialorder %v4181, 0.0
      %vm4214 = vcmp.gt.f32.partialorder %v4182, 0.0
      %vm4215 = vcmp.gt.f32.partialorder %v4183, 0.0
      %vm4216 = vcmp.gt.f32.partialorder %v4184, 0.0
      %vm4217 = vcmp.gt.f32.partialorder %v4185, 0.0
      %vm4218 = vcmp.gt.f32.partialorder %v4186, 0.0
      %vm4219 = vcmp.gt.f32.partialorder %v4187, 0.0
      %vm4220 = vcmp.gt.f32.partialorder %v4188, 0.0
      %vm4221 = vcmp.gt.f32.partialorder %v4189, 0.0
      %vm4222 = vcmp.gt.f32.partialorder %v4190, 0.0
      %vm4223 = vcmp.gt.f32.partialorder %v4191, 0.0
      %vm4224 = vcmp.gt.f32.partialorder %v4192, 0.0
      %vm4225 = vcmp.gt.f32.partialorder %v4193, 0.0
      %vm4226 = vcmp.gt.f32.partialorder %v4194, 0.0
      %vm4227 = vcmp.gt.f32.partialorder %v4195, 0.0
      %vm4228 = vcmp.gt.f32.partialorder %v4196, 0.0
      %vm4229 = vcmp.gt.f32.partialorder %v4197, 0.0
      %vm4230 = vcmp.gt.f32.partialorder %v4198, 0.0
      %v4231 = vld [vmem:[%s2 + $0x1] sm:$0x1]
      %v4232 = vperm.slane %v4231, 0
      %v4233 = vmul.f32 %v4232, %v4167
      %v4234 = vmul.f32 %v4232, %v4168
      %v4235 = vmul.f32 %v4232, %v4169
      %v4236 = vmul.f32 %v4232, %v4170
      %v4237 = vmul.f32 %v4232, %v4171
      %v4238 = vmul.f32 %v4232, %v4172
      %v4239 = vmul.f32 %v4232, %v4173
      %v4240 = vmul.f32 %v4232, %v4174
      %v4241 = vmul.f32 %v4232, %v4175
      %v4242 = vmul.f32 %v4232, %v4176
      %v4243 = vmul.f32 %v4232, %v4177
      %v4244 = vmul.f32 %v4232, %v4178
      %v4245 = vmul.f32 %v4232, %v4179
      %v4246 = vmul.f32 %v4232, %v4180
      %v4247 = vmul.f32 %v4232, %v4181
      %v4248 = vmul.f32 %v4232, %v4182
      %v4249 = vmul.f32 %v4232, %v4183
      %v4250 = vmul.f32 %v4232, %v4184
      %v4251 = vmul.f32 %v4232, %v4185
      %v4252 = vmul.f32 %v4232, %v4186
      %v4253 = vmul.f32 %v4232, %v4187
      %v4254 = vmul.f32 %v4232, %v4188
      %v4255 = vmul.f32 %v4232, %v4189
      %v4256 = vmul.f32 %v4232, %v4190
      %v4257 = vmul.f32 %v4232, %v4191
      %v4258 = vmul.f32 %v4232, %v4192
      %v4259 = vmul.f32 %v4232, %v4193
      %v4260 = vmul.f32 %v4232, %v4194
      %v4261 = vmul.f32 %v4232, %v4195
      %v4262 = vmul.f32 %v4232, %v4196
      %v4263 = vmul.f32 %v4232, %v4197
      %v4264 = vmul.f32 %v4232, %v4198
      %v4265 = vsel %vm4199, %v4167, %v4233
      %v4266 = vsel %vm4200, %v4168, %v4234
      %v4267 = vsel %vm4201, %v4169, %v4235
      %v4268 = vsel %vm4202, %v4170, %v4236
      %v4269 = vsel %vm4203, %v4171, %v4237
      %v4270 = vsel %vm4204, %v4172, %v4238
      %v4271 = vsel %vm4205, %v4173, %v4239
      %v4272 = vsel %vm4206, %v4174, %v4240
      %v4273 = vsel %vm4207, %v4175, %v4241
      %v4274 = vsel %vm4208, %v4176, %v4242
      %v4275 = vsel %vm4209, %v4177, %v4243
      %v4276 = vsel %vm4210, %v4178, %v4244
      %v4277 = vsel %vm4211, %v4179, %v4245
      %v4278 = vsel %vm4212, %v4180, %v4246
      %v4279 = vsel %vm4213, %v4181, %v4247
      %v4280 = vsel %vm4214, %v4182, %v4248
      %v4281 = vsel %vm4215, %v4183, %v4249
      %v4282 = vsel %vm4216, %v4184, %v4250
      %v4283 = vsel %vm4217, %v4185, %v4251
      %v4284 = vsel %vm4218, %v4186, %v4252
      %v4285 = vsel %vm4219, %v4187, %v4253
      %v4286 = vsel %vm4220, %v4188, %v4254
      %v4287 = vsel %vm4221, %v4189, %v4255
      %v4288 = vsel %vm4222, %v4190, %v4256
      %v4289 = vsel %vm4223, %v4191, %v4257
      %v4290 = vsel %vm4224, %v4192, %v4258
      %v4291 = vsel %vm4225, %v4193, %v4259
      %v4292 = vsel %vm4226, %v4194, %v4260
      %v4293 = vsel %vm4227, %v4195, %v4261
      %v4294 = vsel %vm4228, %v4196, %v4262
      %v4295 = vsel %vm4229, %v4197, %v4263
      %v4296 = vsel %vm4230, %v4198, %v4264
      %4297 = vst [vmem:[%s194] sm:$0xff] %v4265
      %4298 = vst [vmem:[%s194 + $0x8] sm:$0xff] %v4266
      %4299 = vst [vmem:[%s194 + $0x10] sm:$0xff] %v4267
      %4300 = vst [vmem:[%s194 + $0x18] sm:$0xff] %v4268
      %4301 = vst [vmem:[%s194 + $0x20] sm:$0xff] %v4269
      %4302 = vst [vmem:[%s194 + $0x28] sm:$0xff] %v4270
      %4303 = vst [vmem:[%s194 + $0x30] sm:$0xff] %v4271
      %4304 = vst [vmem:[%s194 + $0x38] sm:$0xff] %v4272
      %4305 = vst [vmem:[%s194 + $0x40] sm:$0xff] %v4273
      %4306 = vst [vmem:[%s194 + $0x48] sm:$0xff] %v4274
      %4307 = vst [vmem:[%s194 + $0x50] sm:$0xff] %v4275
      %4308 = vst [vmem:[%s194 + $0x58] sm:$0xff] %v4276
      %4309 = vst [vmem:[%s194 + $0x60] sm:$0xff] %v4277
      %4310 = vst [vmem:[%s194 + $0x68] sm:$0xff] %v4278
      %4311 = vst [vmem:[%s194 + $0x70] sm:$0xff] %v4279
      %4312 = vst [vmem:[%s194 + $0x78] sm:$0xff] %v4280
      %4313 = vst [vmem:[%s194 + $0x80] sm:$0xff] %v4281
      %4314 = vst [vmem:[%s194 + $0x88] sm:$0xff] %v4282
      %4315 = vst [vmem:[%s194 + $0x90] sm:$0xff] %v4283
      %4316 = vst [vmem:[%s194 + $0x98] sm:$0xff] %v4284
      %4317 = vst [vmem:[%s194 + $0xa0] sm:$0xff] %v4285
      %4318 = vst [vmem:[%s194 + $0xa8] sm:$0xff] %v4286
      %4319 = vst [vmem:[%s194 + $0xb0] sm:$0xff] %v4287
      %4320 = vst [vmem:[%s194 + $0xb8] sm:$0xff] %v4288
      %4321 = vst [vmem:[%s194 + $0xc0] sm:$0xff] %v4289
      %4322 = vst [vmem:[%s194 + $0xc8] sm:$0xff] %v4290
      %4323 = vst [vmem:[%s194 + $0xd0] sm:$0xff] %v4291
      %4324 = vst [vmem:[%s194 + $0xd8] sm:$0xff] %v4292
      %4325 = vst [vmem:[%s194 + $0xe0] sm:$0xff] %v4293
      %4326 = vst [vmem:[%s194 + $0xe8] sm:$0xff] %v4294
      %4327 = vst [vmem:[%s194 + $0xf0] sm:$0xff] %v4295
      %4328 = vst [vmem:[%s194 + $0xf8] sm:$0xff] %v4296
      %s4329 = smul.u32 16, %s19
      %p4330 = scmp.lt.s32.totalorder %s18, 1
      %s4331 = scalar_select %p4330, %s18, 1
      %p4332 = scmp.lt.s32.totalorder %s4329, 15
      %s4333 = scalar_select %p4332, %s4329, 15
      %s4334 = smul.addr %s4333, 2
      %s4335 = smul.addr %s4331, 32
      %s4336 = sadd.s32 %s4334, %s4335
      %s4337 = smul.addr %s4336, 8
      %s4338 = scalar_lea.vmem %s3, %s4337
      // Predicated region
      $region33: #{double_conv_forward.9} parent=31 // pred_check
        %p4339 = pneg %p114
      $region34: #{double_conv_forward.9} parent=31 // pred_check_branch
        %4341 = sbr.rel (%p4339) target = $region36
      $region35: #{double_conv_forward.9} parent=31 // pred_region
        %s4342 = smul.u32 16, %s19
      $region36: #{double_conv_forward.9} parent=31 // pred_fallthru
        _
    $region32: #{double_conv_forward.9} parent=5 // pred_fallthru
      _
    %p4343 = scmp.le.s32.totalorder 2, %s9
    // Predicated region
    $region37: #{double_conv_forward.9} parent=5 // pred_check
      %p4344 = pneg %p4343
    $region38: #{double_conv_forward.9} parent=5 // pred_check_branch
      %4346 = sbr.rel (%p4344) target = $region40
    $region39: #{double_conv_forward.9} parent=5 // pred_region
      %s4347 = ssub.s32 %s9, 2
      // Predicated region
      $region41: #{double_conv_forward.9} parent=39 // pred_check
        %p4348 = pneg %p120
      $region42: #{double_conv_forward.9} parent=39 // pred_check_branch
        %4350 = sbr.rel (%p4348) target = $region44
      $region43: #{double_conv_forward.9} parent=39 // pred_region
        %s4351 = smul.u32 16, %s21
        %p4352 = scmp.lt.s32.totalorder %s20, 1
        %s4353 = scalar_select %p4352, %s20, 1
        %p4354 = scmp.lt.s32.totalorder %s4351, 15
        %s4355 = scalar_select %p4354, %s4351, 15
        %s4356 = smul.addr %s4355, 2
        %s4357 = smul.addr %s4353, 32
        %s4358 = sadd.s32 %s4356, %s4357
        %s4359 = smul.addr %s4358, 8
        %s4360 = scalar_lea.vmem %s3, %s4359
      $region44: #{double_conv_forward.9} parent=39 // pred_fallthru
        _
    $region40: #{double_conv_forward.9} parent=5 // pred_fallthru
      _
  $region6: #{double_conv_forward.9} parent=0 // loop_footer
    %s13 = sadd.s32 1, %s9
  $region7: #{double_conv_forward.9} parent=0 // loop_footer_branch
    %8 = sbr.rel target = $region3
  $region8: #{double_conv_forward.9} parent=0 // loop_exit
    _

</llo_original>
